<compile_context>
chip_gen: v5e
topology: v5e:2x2
jax: 0.10.0
libtpu: 0.0.40
codegen_flags: <defaults>
</compile_context>

<pallas_src>
import jax
import jax.numpy as jnp
from jax import lax
from jax.experimental import pallas as pl
from jax.experimental.pallas import tpu as pltpu


# ----------------------------- small helpers -------------------------------

def _round_up(x, m):
    return (x + m - 1) // m * m


def _bilinear_matrix(n_in, n_out):
    """(n_out, n_in) 1-D bilinear resize matrix, align_corners=True."""
    p = jnp.arange(n_out, dtype=jnp.float32)
    if n_out > 1:
        s = p * (n_in - 1) / (n_out - 1)
    else:
        s = jnp.zeros_like(p)
    i0 = jnp.clip(jnp.floor(s), 0, n_in - 1).astype(jnp.int32)
    i1 = jnp.minimum(i0 + 1, n_in - 1)
    frac = s - i0.astype(jnp.float32)
    M = jnp.zeros((n_out, n_in), jnp.float32)
    M = M.at[jnp.arange(n_out), i0].add(1.0 - frac)
    M = M.at[jnp.arange(n_out), i1].add(frac)
    return M


def _row_tables(H, H2):
    """Integer 2-tap lerp tables for padded output rows p in [0, H2+4).

    Row p corresponds to global upsampled row g = p - 2 (2-row halo per side).
    Out-of-image rows are clamped; the kernel zeroes their lerp weights."""
    g = jnp.arange(H2 + 4, dtype=jnp.int32) - 2
    gc = jnp.clip(g, 0, H2 - 1)
    num = gc * (H - 1)
    i0 = num // (H2 - 1)                      # H2 = 2H >= 2
    rem = num - i0 * (H2 - 1)                 # frac = rem / (H2 - 1)
    i1 = jnp.minimum(i0 + 1, H - 1)
    return (i0.astype(jnp.int32), i1.astype(jnp.int32), rem.astype(jnp.int32))


def _fold_bn(gamma, beta, mean, var, eps=1e-5):
    scale = gamma / jnp.sqrt(var + eps)
    shift = beta - mean * scale
    return scale, shift


# ------------------------------- the kernel --------------------------------

def _make_kernel(H, H2, W2, TH, NT, Cinp, Coutp):
    Wp = W2 + 2                       # padded row width (1-px border each side)
    R2, R1 = TH + 4, TH + 2           # upsampled rows / conv1 rows per tile
    M1, M2 = R1 * Wp, TH * Wp         # flat matmul M for conv1 / conv2
    inv_d = 1.0 / float(max(H2 - 1, 1))
    f32, bf16 = jnp.float32, jnp.bfloat16

    def kernel(i0_ref, i1_ref, rem_ref,                         # SMEM prefetch
               x_ref, ww_ref, w1m_ref, b1_ref, w2m_ref, b2_ref,  # VMEM inputs
               o_ref,                                            # VMEM output
               xw_ref, pad1_ref, pad2_ref):                      # VMEM scratch
        t = pl.program_id(1)

        # ---- once per image: zero pad borders + W-direction upsample --------
        @pl.when(t == 0)
        def _per_image():
            z1 = jnp.zeros((1, Cinp), bf16)
            for k in range(R2):                       # 1-px left/right borders
                pad1_ref[pl.ds(k * Wp, 1), :] = z1
                pad1_ref[pl.ds(k * Wp + W2 + 1, 1), :] = z1
            pad1_ref[pl.ds(R2 * Wp, 8), :] = jnp.zeros((8, Cinp), bf16)
            z2 = jnp.zeros((1, Coutp), bf16)
            for j in range(R1):
                pad2_ref[pl.ds(j * Wp, 1), :] = z2
                pad2_ref[pl.ds(j * Wp + W2 + 1, 1), :] = z2
            pad2_ref[pl.ds(R1 * Wp, 8), :] = jnp.zeros((8, Coutp), bf16)

            wwm = ww_ref[...]                          # (W2, W) bf16, hoisted

            @pl.loop(0, H)                             # amortized over all tiles
            def _w_up(h):
                row = jnp.dot(wwm, x_ref[h], preferred_element_type=f32)
                xw_ref[pl.ds(h, 1), :, :] = row.astype(bf16).reshape(1, W2, Cinp)

        # ---- per-tile H-direction 2-tap lerp into the pad1 interior ---------
        for k in range(R2):
            p = t * TH + k                 # padded global row id in [0, H2+4)
            g = p - 2                      # upsampled row id (may be off-image)
            valid = jnp.logical_and(g >= 0, g <= H2 - 1)
            fr = rem_ref[p].astype(f32) * inv_d
            wb = jnp.where(valid, fr, 0.0)             # off-image rows -> zeros
            wa = jnp.where(valid, 1.0 - fr, 0.0)       #   == conv1 zero padding
            row = wa * xw_ref[i0_ref[p]] + wb * xw_ref[i1_ref[p]]  # (W2, Cinp)
            pad1_ref[pl.ds(k * Wp + 1, W2), :] = row.astype(bf16)

        # ---- conv1: 9 accumulated shifted-slab MXU dots (BN1 scale folded) --
        h1 = None
        for tap in range(9):
            dh, dw = divmod(tap, 3)
            lhs = pad1_ref[pl.ds(dh * Wp + dw, M1), :]           # (M1, Cinp)
            wk = w1m_ref[pl.ds(tap * Cinp, Cinp), :]             # (Cinp, Coutp)
            d = jnp.dot(lhs, wk, preferred_element_type=f32)
            h1 = d if h1 is None else h1 + d
        h1 = jnp.maximum(h1 + b1_ref[...], 0.0)                  # (M1, Coutp)

        # ---- stage conv1 output (valid columns only) into padded conv2 input
        for j in range(R1):
            pad2_ref[pl.ds(j * Wp + 1, W2), :] = (
                h1[j * Wp:j * Wp + W2, :].astype(bf16))

        @pl.when(t == 0)
        def _zero_top():          # conv2 zero padding above the image
            pad2_ref[pl.ds(0, Wp), :] = jnp.zeros((Wp, Coutp), bf16)

        @pl.when(t == NT - 1)
        def _zero_bottom():       # conv2 zero padding below the image
            pad2_ref[pl.ds((R1 - 1) * Wp, Wp), :] = jnp.zeros((Wp, Coutp), bf16)

        # ---- conv2: 9 accumulated shifted-slab MXU dots (BN2 scale folded) --
        h2 = None
        for tap in range(9):
            dh, dw = divmod(tap, 3)
            lhs = pad2_ref[pl.ds(dh * Wp + dw, M2), :]           # (M2, Coutp)
            wk = w2m_ref[pl.ds(tap * Coutp, Coutp), :]           # (Coutp, Coutp)
            d = jnp.dot(lhs, wk, preferred_element_type=f32)
            h2 = d if h2 is None else h2 + d
        h2 = jnp.maximum(h2 + b2_ref[...], 0.0)                  # (M2, Coutp)

        # ---- store valid output columns (lane-dense channel stores) ---------
        for j in range(TH):
            o_ref[pl.ds(j, 1), :, :] = (
                h2[j * Wp:j * Wp + W2, :].reshape(1, W2, Coutp))

    return kernel


# ------------------------------ public wrapper ------------------------------

def upnoskip_forward(x_nchw, params, tile_h=None):
    """x_nchw: (N, Cin, H, W) float32 -> (N, Cout, 2H, 2W) float32."""
    N, Cin, H, W = x_nchw.shape
    w1 = params["w1"]                        # (Cout, Cin, 3, 3)
    w2 = params["w2"]                        # (Cout, Cout, 3, 3)
    Cout = w1.shape[0]
    H2, W2 = 2 * H, 2 * W
    Wp = W2 + 2

    LANE = 128
    Cinp = _round_up(Cin, LANE)              # lane-dense channel padding
    Coutp = _round_up(Cout, LANE)

    # ---- per-generation VMEM budget (v5e/v6e: 128 MiB, v7x: 64 MiB/core) ----
    try:
        vmem_cap = int(getattr(pltpu.get_tpu_info(), "vmem_capacity_bytes",
                               64 * 2 ** 20))
    except Exception:
        vmem_cap = 64 * 2 ** 20

    def _vmem_bytes(th):
        r2, r1 = th + 4, th + 2
        m1, m2 = r1 * Wp, th * Wp
        return (2 * H * W * Cinp * 2                        # x block (bf16, x2)
                + 2 * th * W2 * Coutp * 4                   # out block (f32, x2)
                + 2 * (W2 * W + 9 * Cinp * Coutp + 9 * Coutp * Coutp) * 2
                + 2 * 2 * Coutp * 4                         # biases
                + H * W2 * Cinp * 2                         # xw scratch
                + (r2 * Wp + 8) * Cinp * 2                  # pad1 scratch
                + (r1 * Wp + 8) * Coutp * 2                 # pad2 scratch
                + (m1 + m2) * Coutp * 4                     # conv accumulators
                + m1 * Cinp * 2)                            # largest tap slab

    if tile_h is None:
        budget = int(0.55 * vmem_cap)
        cands = [c for c in (128, 64, 32, 16, 8, 4, 2, 1)
                 if c <= H2 and H2 % c == 0]
        tile_h = cands[-1]
        for c in cands:                       # largest tile that fits the budget
            if _vmem_bytes(c) <= budget:
                tile_h = c
                break
    assert H2 % tile_h == 0, "tile_h must divide 2*H"
    TH, NT = tile_h, H2 // tile_h
    vmem_limit = int(min(int(0.9 * vmem_cap),
                         max(32 * 2 ** 20, int(1.5 * _vmem_bytes(TH)))))

    # ---- fold eval-mode BN scale into the conv weights; pad to 128 lanes ----
    s1, b1 = _fold_bn(params["g1"], params["be1"], params["m1"], params["v1"])
    s2, b2 = _fold_bn(params["g2"], params["be2"], params["m2"], params["v2"])
    w1_hwio = jnp.transpose(w1, (2, 3, 1, 0)) * s1[None, None, None, :]
    w2_hwio = jnp.transpose(w2, (2, 3, 1, 0)) * s2[None, None, None, :]
    w1m = (jnp.zeros((3, 3, Cinp, Coutp), jnp.float32)
           .at[:, :, :Cin, :Cout].set(w1_hwio)
           .reshape(9 * Cinp, Coutp).astype(jnp.bfloat16))
    w2m = (jnp.zeros((3, 3, Coutp, Coutp), jnp.float32)
           .at[:, :, :Cout, :Cout].set(w2_hwio)
           .reshape(9 * Coutp, Coutp).astype(jnp.bfloat16))
    b1p = jnp.zeros((1, Coutp), jnp.float32).at[0, :Cout].set(b1)
    b2p = jnp.zeros((1, Coutp), jnp.float32).at[0, :Cout].set(b2)

    ww = _bilinear_matrix(W, W2).astype(jnp.bfloat16)           # (W2, W)
    i0_tab, i1_tab, rem_tab = _row_tables(H, H2)                # int32, (H2+4,)

    x_nhwc = jnp.transpose(x_nchw, (0, 2, 3, 1))
    x_p = (jnp.zeros((N, H, W, Cinp), jnp.float32)
           .at[..., :Cin].set(x_nhwc).astype(jnp.bfloat16))

    kernel = _make_kernel(H, H2, W2, TH, NT, Cinp, Coutp)

    grid_spec = pltpu.PrefetchScalarGridSpec(
        num_scalar_prefetch=3,
        grid=(N, NT),
        in_specs=[
            pl.BlockSpec((None, H, W, Cinp), lambda n, t, *_: (n, 0, 0, 0)),
            pl.BlockSpec((W2, W), lambda n, t, *_: (0, 0)),
            pl.BlockSpec((9 * Cinp, Coutp), lambda n, t, *_: (0, 0)),
            pl.BlockSpec((1, Coutp), lambda n, t, *_: (0, 0)),
            pl.BlockSpec((9 * Coutp, Coutp), lambda n, t, *_: (0, 0)),
            pl.BlockSpec((1, Coutp), lambda n, t, *_: (0, 0)),
        ],
        out_specs=pl.BlockSpec((None, TH, W2, Coutp),
                               lambda n, t, *_: (n, t, 0, 0)),
        scratch_shapes=[
            pltpu.VMEM((H, W2, Cinp), jnp.bfloat16),              # xw (per image)
            pltpu.VMEM(((TH + 4) * Wp + 8, Cinp), jnp.bfloat16),  # pad1 (flat)
            pltpu.VMEM(((TH + 2) * Wp + 8, Coutp), jnp.bfloat16),  # pad2 (flat)
        ],
    )

    out_nhwc = pl.pallas_call(
        kernel,
        out_shape=jax.ShapeDtypeStruct((N, H2, W2, Coutp), jnp.float32),
        grid_spec=grid_spec,
        compiler_params=pltpu.CompilerParams(
            # the tile axis carries per-image state (xw scratch, pad borders)
            # -> must stay sequential; the batch axis is megacore-parallel.
            dimension_semantics=("parallel", "arbitrary"),
            vmem_limit_bytes=vmem_limit),
    )(i0_tab, i1_tab, rem_tab, x_p, ww, w1m, b1p, w2m, b2p)

    return jnp.transpose(out_nhwc[..., :Cout], (0, 3, 1, 2))


# ------------------------- pure-JAX (XLA) reference -------------------------

def _reference_forward(x_nchw, params):
    """Same math, f32 end-to-end (eval-mode BN)."""
    N, Cin, H, W = x_nchw.shape
    w1, w2 = params["w1"], params["w2"]
    H2, W2 = 2 * H, 2 * W
    Wh = _bilinear_matrix(H, H2)
    Ww = _bilinear_matrix(W, W2)
    s1, b1 = _fold_bn(params["g1"], params["be1"], params["m1"], params["v1"])
    s2, b2 = _fold_bn(params["g2"], params["be2"], params["m2"], params["v2"])

    x = jnp.transpose(x_nchw, (0, 2, 3, 1)).astype(jnp.float32)
    u = jnp.einsum("ph,nhwc->npwc", Wh, x)
    u = jnp.einsum("qw,npwc->npqc", Ww, u)
    y = lax.conv_general_dilated(u, jnp.transpose(w1, (2, 3, 1, 0)), (1, 1),
                                 "SAME",
                                 dimension_numbers=("NHWC", "HWIO", "NHWC"))
    y = jnp.maximum(y * s1 + b1, 0.0)
    y = lax.conv_general_dilated(y, jnp.transpose(w2, (2, 3, 1, 0)), (1, 1),
                                 "SAME",
                                 dimension_numbers=("NHWC", "HWIO", "NHWC"))
    y = jnp.maximum(y * s2 + b2, 0.0)
    return jnp.transpose(y, (0, 3, 1, 2))


def init_params(key, in_channels, out_channels):
    ks = jax.random.split(key, 6)
    return {
        "w1": 0.1 * jax.random.normal(ks[0], (out_channels, in_channels, 3, 3),
                                      jnp.float32),
        "w2": 0.1 * jax.random.normal(ks[1], (out_channels, out_channels, 3, 3),
                                      jnp.float32),
        # BatchNorm params / running stats (eval mode)
        "g1": 1.0 + 0.1 * jax.random.normal(ks[2], (out_channels,), jnp.float32),
        "be1": 0.1 * jax.random.normal(ks[3], (out_channels,), jnp.float32),
        "m1": jnp.zeros((out_channels,), jnp.float32),
        "v1": jnp.ones((out_channels,), jnp.float32),
        "g2": 1.0 + 0.1 * jax.random.normal(ks[4], (out_channels,), jnp.float32),
        "be2": 0.1 * jax.random.normal(ks[5], (out_channels,), jnp.float32),
        "m2": jnp.zeros((out_channels,), jnp.float32),
        "v2": jnp.ones((out_channels,), jnp.float32),
    }


if __name__ == "__main__":
    key = jax.random.PRNGKey(0)
    kx, kp = jax.random.split(key)

    # N=2, Cin=8, Cout=4, 16x16 -> 32x32; tile_h=8 gives 4 row tiles so the
    # t==0 / interior / t==NT-1 halo paths are all exercised.
    N, in_channels, out_channels, H, W = 2, 8, 4, 16, 16
    x = jax.random.normal(kx, (N, in_channels, H, W), jnp.float32)
    params = init_params(kp, in_channels, out_channels)

    out = jax.block_until_ready(upnoskip_forward(x, params, tile_h=8))
    ref = jax.block_until_ready(_reference_forward(x, params))

    assert out.shape == (N, out_channels, 2 * H, 2 * W), out.shape
    # upsample + conv operands are bf16 (f32 accumulation) -> loosened tolerance
    if not jnp.allclose(out, ref, atol=3e-2, rtol=3e-2):
        err = float(jnp.max(jnp.abs(out - ref)))
        raise AssertionError(
            f"Pallas kernel disagrees with JAX reference (max abs err {err})")
    print("KERNEL_OK")
</pallas_src>

<mosaic_0001>
module attributes {stable_mosaic.version = 11 : i64} {
  func.func @kernel(%arg0: i32, %arg1: i32, %arg2: memref<36xi32, #tpu.memory_space<smem>>, %arg3: memref<36xi32, #tpu.memory_space<smem>>, %arg4: memref<36xi32, #tpu.memory_space<smem>>, %arg5: memref<1x16x16x128xbf16, #tpu.memory_space<vmem>>, %arg6: memref<32x16xbf16, #tpu.memory_space<vmem>>, %arg7: memref<1152x128xbf16, #tpu.memory_space<vmem>>, %arg8: memref<1x128xf32, #tpu.memory_space<vmem>>, %arg9: memref<1152x128xbf16, #tpu.memory_space<vmem>>, %arg10: memref<1x128xf32, #tpu.memory_space<vmem>>, %arg11: memref<1x8x32x128xf32, #tpu.memory_space<vmem>>, %arg12: memref<16x32x128xbf16, #tpu.memory_space<vmem>>, %arg13: memref<416x128xbf16, #tpu.memory_space<vmem>>, %arg14: memref<348x128xbf16, #tpu.memory_space<vmem>>) attributes {dimension_semantics = [#tpu.dimension_semantics<parallel>, #tpu.dimension_semantics<arbitrary>], iteration_bounds = array<i64: 2, 4>, scalar_prefetch = 3 : i64, scratch_operands = 3 : i64, tpu.core_type = #tpu.core_type<tc>, window_params = [{transform_indices = @transform_0, window_bounds = array<i64: 1, 16, 16, 128>}, {pipeline_mode = #tpu.pipeline_mode<synchronous>, transform_indices = @transform_1, window_bounds = array<i64: 32, 16>}, {pipeline_mode = #tpu.pipeline_mode<synchronous>, transform_indices = @transform_2, window_bounds = array<i64: 1152, 128>}, {pipeline_mode = #tpu.pipeline_mode<synchronous>, transform_indices = @transform_3, window_bounds = array<i64: 1, 128>}, {pipeline_mode = #tpu.pipeline_mode<synchronous>, transform_indices = @transform_4, window_bounds = array<i64: 1152, 128>}, {pipeline_mode = #tpu.pipeline_mode<synchronous>, transform_indices = @transform_5, window_bounds = array<i64: 1, 128>}, {transform_indices = @transform_6, window_bounds = array<i64: 1, 8, 32, 128>}]} {
    %c0_i32 = arith.constant 0 : i32
    %0 = arith.cmpi eq, %arg1, %c0_i32 : i32
    %1 = arith.extui %0 : i1 to i32
    %c0_i32_0 = arith.constant 0 : i32
    %2 = arith.cmpi ne, %1, %c0_i32_0 : i32
    scf.if %2 {
      %cst_289 = arith.constant 0.000000e+00 : bf16
      %543 = vector.broadcast %cst_289 : bf16 to vector<1x128xbf16>
      %c0_290 = arith.constant 0 : index
      %c0_291 = arith.constant 0 : index
      %544 = vector.load %arg13[%c0_290, %c0_291] : memref<416x128xbf16, #tpu.memory_space<vmem>>, vector<1x128xbf16>
      tpu.vector_store %arg13[%c0_290, %c0_291], %543 {strides = array<i32>} : memref<416x128xbf16, #tpu.memory_space<vmem>>, vector<1x128xbf16>,
      %c33 = arith.constant 33 : index
      %c0_292 = arith.constant 0 : index
      %545 = vector.load %arg13[%c33, %c0_292] : memref<416x128xbf16, #tpu.memory_space<vmem>>, vector<1x128xbf16>
      tpu.vector_store %arg13[%c33, %c0_292], %543 {strides = array<i32>} : memref<416x128xbf16, #tpu.memory_space<vmem>>, vector<1x128xbf16>,
      %c34_293 = arith.constant 34 : index
      %c0_294 = arith.constant 0 : index
      %546 = vector.load %arg13[%c34_293, %c0_294] : memref<416x128xbf16, #tpu.memory_space<vmem>>, vector<1x128xbf16>
      tpu.vector_store %arg13[%c34_293, %c0_294], %543 {strides = array<i32>} : memref<416x128xbf16, #tpu.memory_space<vmem>>, vector<1x128xbf16>,
      %c67 = arith.constant 67 : index
      %c0_295 = arith.constant 0 : index
      %547 = vector.load %arg13[%c67, %c0_295] : memref<416x128xbf16, #tpu.memory_space<vmem>>, vector<1x128xbf16>
      tpu.vector_store %arg13[%c67, %c0_295], %543 {strides = array<i32>} : memref<416x128xbf16, #tpu.memory_space<vmem>>, vector<1x128xbf16>,
      %c68_296 = arith.constant 68 : index
      %c0_297 = arith.constant 0 : index
      %548 = vector.load %arg13[%c68_296, %c0_297] : memref<416x128xbf16, #tpu.memory_space<vmem>>, vector<1x128xbf16>
      tpu.vector_store %arg13[%c68_296, %c0_297], %543 {strides = array<i32>} : memref<416x128xbf16, #tpu.memory_space<vmem>>, vector<1x128xbf16>,
      %c101 = arith.constant 101 : index
      %c0_298 = arith.constant 0 : index
      %549 = vector.load %arg13[%c101, %c0_298] : memref<416x128xbf16, #tpu.memory_space<vmem>>, vector<1x128xbf16>
      tpu.vector_store %arg13[%c101, %c0_298], %543 {strides = array<i32>} : memref<416x128xbf16, #tpu.memory_space<vmem>>, vector<1x128xbf16>,
      %c102 = arith.constant 102 : index
      %c0_299 = arith.constant 0 : index
      %550 = vector.load %arg13[%c102, %c0_299] : memref<416x128xbf16, #tpu.memory_space<vmem>>, vector<1x128xbf16>
      tpu.vector_store %arg13[%c102, %c0_299], %543 {strides = array<i32>} : memref<416x128xbf16, #tpu.memory_space<vmem>>, vector<1x128xbf16>,
      %c135 = arith.constant 135 : index
      %c0_300 = arith.constant 0 : index
      %551 = vector.load %arg13[%c135, %c0_300] : memref<416x128xbf16, #tpu.memory_space<vmem>>, vector<1x128xbf16>
      tpu.vector_store %arg13[%c135, %c0_300], %543 {strides = array<i32>} : memref<416x128xbf16, #tpu.memory_space<vmem>>, vector<1x128xbf16>,
      %c136 = arith.constant 136 : index
      %c0_301 = arith.constant 0 : index
      %552 = vector.load %arg13[%c136, %c0_301] : memref<416x128xbf16, #tpu.memory_space<vmem>>, vector<1x128xbf16>
      tpu.vector_store %arg13[%c136, %c0_301], %543 {strides = array<i32>} : memref<416x128xbf16, #tpu.memory_space<vmem>>, vector<1x128xbf16>,
      %c169 = arith.constant 169 : index
      %c0_302 = arith.constant 0 : index
      %553 = vector.load %arg13[%c169, %c0_302] : memref<416x128xbf16, #tpu.memory_space<vmem>>, vector<1x128xbf16>
      tpu.vector_store %arg13[%c169, %c0_302], %543 {strides = array<i32>} : memref<416x128xbf16, #tpu.memory_space<vmem>>, vector<1x128xbf16>,
      %c170 = arith.constant 170 : index
      %c0_303 = arith.constant 0 : index
      %554 = vector.load %arg13[%c170, %c0_303] : memref<416x128xbf16, #tpu.memory_space<vmem>>, vector<1x128xbf16>
      tpu.vector_store %arg13[%c170, %c0_303], %543 {strides = array<i32>} : memref<416x128xbf16, #tpu.memory_space<vmem>>, vector<1x128xbf16>,
      %c203 = arith.constant 203 : index
      %c0_304 = arith.constant 0 : index
      %555 = vector.load %arg13[%c203, %c0_304] : memref<416x128xbf16, #tpu.memory_space<vmem>>, vector<1x128xbf16>
      tpu.vector_store %arg13[%c203, %c0_304], %543 {strides = array<i32>} : memref<416x128xbf16, #tpu.memory_space<vmem>>, vector<1x128xbf16>,
      %c204 = arith.constant 204 : index
      %c0_305 = arith.constant 0 : index
      %556 = vector.load %arg13[%c204, %c0_305] : memref<416x128xbf16, #tpu.memory_space<vmem>>, vector<1x128xbf16>
      tpu.vector_store %arg13[%c204, %c0_305], %543 {strides = array<i32>} : memref<416x128xbf16, #tpu.memory_space<vmem>>, vector<1x128xbf16>,
      %c237 = arith.constant 237 : index
      %c0_306 = arith.constant 0 : index
      %557 = vector.load %arg13[%c237, %c0_306] : memref<416x128xbf16, #tpu.memory_space<vmem>>, vector<1x128xbf16>
      tpu.vector_store %arg13[%c237, %c0_306], %543 {strides = array<i32>} : memref<416x128xbf16, #tpu.memory_space<vmem>>, vector<1x128xbf16>,
      %c238 = arith.constant 238 : index
      %c0_307 = arith.constant 0 : index
      %558 = vector.load %arg13[%c238, %c0_307] : memref<416x128xbf16, #tpu.memory_space<vmem>>, vector<1x128xbf16>
      tpu.vector_store %arg13[%c238, %c0_307], %543 {strides = array<i32>} : memref<416x128xbf16, #tpu.memory_space<vmem>>, vector<1x128xbf16>,
      %c271 = arith.constant 271 : index
      %c0_308 = arith.constant 0 : index
      %559 = vector.load %arg13[%c271, %c0_308] : memref<416x128xbf16, #tpu.memory_space<vmem>>, vector<1x128xbf16>
      tpu.vector_store %arg13[%c271, %c0_308], %543 {strides = array<i32>} : memref<416x128xbf16, #tpu.memory_space<vmem>>, vector<1x128xbf16>,
      %c272 = arith.constant 272 : index
      %c0_309 = arith.constant 0 : index
      %560 = vector.load %arg13[%c272, %c0_309] : memref<416x128xbf16, #tpu.memory_space<vmem>>, vector<1x128xbf16>
      tpu.vector_store %arg13[%c272, %c0_309], %543 {strides = array<i32>} : memref<416x128xbf16, #tpu.memory_space<vmem>>, vector<1x128xbf16>,
      %c305 = arith.constant 305 : index
      %c0_310 = arith.constant 0 : index
      %561 = vector.load %arg13[%c305, %c0_310] : memref<416x128xbf16, #tpu.memory_space<vmem>>, vector<1x128xbf16>
      tpu.vector_store %arg13[%c305, %c0_310], %543 {strides = array<i32>} : memref<416x128xbf16, #tpu.memory_space<vmem>>, vector<1x128xbf16>,
      %c306 = arith.constant 306 : index
      %c0_311 = arith.constant 0 : index
      %562 = vector.load %arg13[%c306, %c0_311] : memref<416x128xbf16, #tpu.memory_space<vmem>>, vector<1x128xbf16>
      tpu.vector_store %arg13[%c306, %c0_311], %543 {strides = array<i32>} : memref<416x128xbf16, #tpu.memory_space<vmem>>, vector<1x128xbf16>,
      %c339 = arith.constant 339 : index
      %c0_312 = arith.constant 0 : index
      %563 = vector.load %arg13[%c339, %c0_312] : memref<416x128xbf16, #tpu.memory_space<vmem>>, vector<1x128xbf16>
      tpu.vector_store %arg13[%c339, %c0_312], %543 {strides = array<i32>} : memref<416x128xbf16, #tpu.memory_space<vmem>>, vector<1x128xbf16>,
      %c340 = arith.constant 340 : index
      %c0_313 = arith.constant 0 : index
      %564 = vector.load %arg13[%c340, %c0_313] : memref<416x128xbf16, #tpu.memory_space<vmem>>, vector<1x128xbf16>
      tpu.vector_store %arg13[%c340, %c0_313], %543 {strides = array<i32>} : memref<416x128xbf16, #tpu.memory_space<vmem>>, vector<1x128xbf16>,
      %c373 = arith.constant 373 : index
      %c0_314 = arith.constant 0 : index
      %565 = vector.load %arg13[%c373, %c0_314] : memref<416x128xbf16, #tpu.memory_space<vmem>>, vector<1x128xbf16>
      tpu.vector_store %arg13[%c373, %c0_314], %543 {strides = array<i32>} : memref<416x128xbf16, #tpu.memory_space<vmem>>, vector<1x128xbf16>,
      %c374 = arith.constant 374 : index
      %c0_315 = arith.constant 0 : index
      %566 = vector.load %arg13[%c374, %c0_315] : memref<416x128xbf16, #tpu.memory_space<vmem>>, vector<1x128xbf16>
      tpu.vector_store %arg13[%c374, %c0_315], %543 {strides = array<i32>} : memref<416x128xbf16, #tpu.memory_space<vmem>>, vector<1x128xbf16>,
      %c407 = arith.constant 407 : index
      %c0_316 = arith.constant 0 : index
      %567 = vector.load %arg13[%c407, %c0_316] : memref<416x128xbf16, #tpu.memory_space<vmem>>, vector<1x128xbf16>
      tpu.vector_store %arg13[%c407, %c0_316], %543 {strides = array<i32>} : memref<416x128xbf16, #tpu.memory_space<vmem>>, vector<1x128xbf16>,
      %cst_317 = arith.constant 0.000000e+00 : bf16
      %568 = vector.broadcast %cst_317 : bf16 to vector<8x128xbf16>
      %c408 = arith.constant 408 : index
      %c0_318 = arith.constant 0 : index
      %569 = vector.load %arg13[%c408, %c0_318] : memref<416x128xbf16, #tpu.memory_space<vmem>>, vector<8x128xbf16>
      tpu.vector_store %arg13[%c408, %c0_318], %568 {strides = array<i32>} : memref<416x128xbf16, #tpu.memory_space<vmem>>, vector<8x128xbf16>,
      %cst_319 = arith.constant 0.000000e+00 : bf16
      %570 = vector.broadcast %cst_319 : bf16 to vector<1x128xbf16>
      %c0_320 = arith.constant 0 : index
      %c0_321 = arith.constant 0 : index
      %571 = vector.load %arg14[%c0_320, %c0_321] : memref<348x128xbf16, #tpu.memory_space<vmem>>, vector<1x128xbf16>
      tpu.vector_store %arg14[%c0_320, %c0_321], %570 {strides = array<i32>} : memref<348x128xbf16, #tpu.memory_space<vmem>>, vector<1x128xbf16>,
      %c33_322 = arith.constant 33 : index
      %c0_323 = arith.constant 0 : index
      %572 = vector.load %arg14[%c33_322, %c0_323] : memref<348x128xbf16, #tpu.memory_space<vmem>>, vector<1x128xbf16>
      tpu.vector_store %arg14[%c33_322, %c0_323], %570 {strides = array<i32>} : memref<348x128xbf16, #tpu.memory_space<vmem>>, vector<1x128xbf16>,
      %c34_324 = arith.constant 34 : index
      %c0_325 = arith.constant 0 : index
      %573 = vector.load %arg14[%c34_324, %c0_325] : memref<348x128xbf16, #tpu.memory_space<vmem>>, vector<1x128xbf16>
      tpu.vector_store %arg14[%c34_324, %c0_325], %570 {strides = array<i32>} : memref<348x128xbf16, #tpu.memory_space<vmem>>, vector<1x128xbf16>,
      %c67_326 = arith.constant 67 : index
      %c0_327 = arith.constant 0 : index
      %574 = vector.load %arg14[%c67_326, %c0_327] : memref<348x128xbf16, #tpu.memory_space<vmem>>, vector<1x128xbf16>
      tpu.vector_store %arg14[%c67_326, %c0_327], %570 {strides = array<i32>} : memref<348x128xbf16, #tpu.memory_space<vmem>>, vector<1x128xbf16>,
      %c68_328 = arith.constant 68 : index
      %c0_329 = arith.constant 0 : index
      %575 = vector.load %arg14[%c68_328, %c0_329] : memref<348x128xbf16, #tpu.memory_space<vmem>>, vector<1x128xbf16>
      tpu.vector_store %arg14[%c68_328, %c0_329], %570 {strides = array<i32>} : memref<348x128xbf16, #tpu.memory_space<vmem>>, vector<1x128xbf16>,
      %c101_330 = arith.constant 101 : index
      %c0_331 = arith.constant 0 : index
      %576 = vector.load %arg14[%c101_330, %c0_331] : memref<348x128xbf16, #tpu.memory_space<vmem>>, vector<1x128xbf16>
      tpu.vector_store %arg14[%c101_330, %c0_331], %570 {strides = array<i32>} : memref<348x128xbf16, #tpu.memory_space<vmem>>, vector<1x128xbf16>,
      %c102_332 = arith.constant 102 : index
      %c0_333 = arith.constant 0 : index
      %577 = vector.load %arg14[%c102_332, %c0_333] : memref<348x128xbf16, #tpu.memory_space<vmem>>, vector<1x128xbf16>
      tpu.vector_store %arg14[%c102_332, %c0_333], %570 {strides = array<i32>} : memref<348x128xbf16, #tpu.memory_space<vmem>>, vector<1x128xbf16>,
      %c135_334 = arith.constant 135 : index
      %c0_335 = arith.constant 0 : index
      %578 = vector.load %arg14[%c135_334, %c0_335] : memref<348x128xbf16, #tpu.memory_space<vmem>>, vector<1x128xbf16>
      tpu.vector_store %arg14[%c135_334, %c0_335], %570 {strides = array<i32>} : memref<348x128xbf16, #tpu.memory_space<vmem>>, vector<1x128xbf16>,
      %c136_336 = arith.constant 136 : index
      %c0_337 = arith.constant 0 : index
      %579 = vector.load %arg14[%c136_336, %c0_337] : memref<348x128xbf16, #tpu.memory_space<vmem>>, vector<1x128xbf16>
      tpu.vector_store %arg14[%c136_336, %c0_337], %570 {strides = array<i32>} : memref<348x128xbf16, #tpu.memory_space<vmem>>, vector<1x128xbf16>,
      %c169_338 = arith.constant 169 : index
      %c0_339 = arith.constant 0 : index
      %580 = vector.load %arg14[%c169_338, %c0_339] : memref<348x128xbf16, #tpu.memory_space<vmem>>, vector<1x128xbf16>
      tpu.vector_store %arg14[%c169_338, %c0_339], %570 {strides = array<i32>} : memref<348x128xbf16, #tpu.memory_space<vmem>>, vector<1x128xbf16>,
      %c170_340 = arith.constant 170 : index
      %c0_341 = arith.constant 0 : index
      %581 = vector.load %arg14[%c170_340, %c0_341] : memref<348x128xbf16, #tpu.memory_space<vmem>>, vector<1x128xbf16>
      tpu.vector_store %arg14[%c170_340, %c0_341], %570 {strides = array<i32>} : memref<348x128xbf16, #tpu.memory_space<vmem>>, vector<1x128xbf16>,
      %c203_342 = arith.constant 203 : index
      %c0_343 = arith.constant 0 : index
      %582 = vector.load %arg14[%c203_342, %c0_343] : memref<348x128xbf16, #tpu.memory_space<vmem>>, vector<1x128xbf16>
      tpu.vector_store %arg14[%c203_342, %c0_343], %570 {strides = array<i32>} : memref<348x128xbf16, #tpu.memory_space<vmem>>, vector<1x128xbf16>,
      %c204_344 = arith.constant 204 : index
      %c0_345 = arith.constant 0 : index
      %583 = vector.load %arg14[%c204_344, %c0_345] : memref<348x128xbf16, #tpu.memory_space<vmem>>, vector<1x128xbf16>
      tpu.vector_store %arg14[%c204_344, %c0_345], %570 {strides = array<i32>} : memref<348x128xbf16, #tpu.memory_space<vmem>>, vector<1x128xbf16>,
      %c237_346 = arith.constant 237 : index
      %c0_347 = arith.constant 0 : index
      %584 = vector.load %arg14[%c237_346, %c0_347] : memref<348x128xbf16, #tpu.memory_space<vmem>>, vector<1x128xbf16>
      tpu.vector_store %arg14[%c237_346, %c0_347], %570 {strides = array<i32>} : memref<348x128xbf16, #tpu.memory_space<vmem>>, vector<1x128xbf16>,
      %c238_348 = arith.constant 238 : index
      %c0_349 = arith.constant 0 : index
      %585 = vector.load %arg14[%c238_348, %c0_349] : memref<348x128xbf16, #tpu.memory_space<vmem>>, vector<1x128xbf16>
      tpu.vector_store %arg14[%c238_348, %c0_349], %570 {strides = array<i32>} : memref<348x128xbf16, #tpu.memory_space<vmem>>, vector<1x128xbf16>,
      %c271_350 = arith.constant 271 : index
      %c0_351 = arith.constant 0 : index
      %586 = vector.load %arg14[%c271_350, %c0_351] : memref<348x128xbf16, #tpu.memory_space<vmem>>, vector<1x128xbf16>
      tpu.vector_store %arg14[%c271_350, %c0_351], %570 {strides = array<i32>} : memref<348x128xbf16, #tpu.memory_space<vmem>>, vector<1x128xbf16>,
      %c272_352 = arith.constant 272 : index
      %c0_353 = arith.constant 0 : index
      %587 = vector.load %arg14[%c272_352, %c0_353] : memref<348x128xbf16, #tpu.memory_space<vmem>>, vector<1x128xbf16>
      tpu.vector_store %arg14[%c272_352, %c0_353], %570 {strides = array<i32>} : memref<348x128xbf16, #tpu.memory_space<vmem>>, vector<1x128xbf16>,
      %c305_354 = arith.constant 305 : index
      %c0_355 = arith.constant 0 : index
      %588 = vector.load %arg14[%c305_354, %c0_355] : memref<348x128xbf16, #tpu.memory_space<vmem>>, vector<1x128xbf16>
      tpu.vector_store %arg14[%c305_354, %c0_355], %570 {strides = array<i32>} : memref<348x128xbf16, #tpu.memory_space<vmem>>, vector<1x128xbf16>,
      %c306_356 = arith.constant 306 : index
      %c0_357 = arith.constant 0 : index
      %589 = vector.load %arg14[%c306_356, %c0_357] : memref<348x128xbf16, #tpu.memory_space<vmem>>, vector<1x128xbf16>
      tpu.vector_store %arg14[%c306_356, %c0_357], %570 {strides = array<i32>} : memref<348x128xbf16, #tpu.memory_space<vmem>>, vector<1x128xbf16>,
      %c339_358 = arith.constant 339 : index
      %c0_359 = arith.constant 0 : index
      %590 = vector.load %arg14[%c339_358, %c0_359] : memref<348x128xbf16, #tpu.memory_space<vmem>>, vector<1x128xbf16>
      tpu.vector_store %arg14[%c339_358, %c0_359], %570 {strides = array<i32>} : memref<348x128xbf16, #tpu.memory_space<vmem>>, vector<1x128xbf16>,
      %cst_360 = arith.constant 0.000000e+00 : bf16
      %591 = vector.broadcast %cst_360 : bf16 to vector<8x128xbf16>
      %c340_361 = arith.constant 340 : index
      %c0_362 = arith.constant 0 : index
      %592 = vector.load %arg14[%c340_361, %c0_362] : memref<348x128xbf16, #tpu.memory_space<vmem>>, vector<8x128xbf16>
      tpu.vector_store %arg14[%c340_361, %c0_362], %591 {strides = array<i32>} : memref<348x128xbf16, #tpu.memory_space<vmem>>, vector<8x128xbf16>,
      %c0_363 = arith.constant 0 : index
      %c0_364 = arith.constant 0 : index
      %593 = vector.load %arg6[%c0_363, %c0_364] : memref<32x16xbf16, #tpu.memory_space<vmem>>, vector<32x16xbf16>
      %c0_i32_365 = arith.constant 0 : i32
      %c16_i32 = arith.constant 16 : i32
      %594 = arith.addi %c0_i32_365, %c16_i32 : i32
      %c1_i32_366 = arith.constant 1 : i32
      scf.for %arg15 = %c0_i32_365 to %594 step %c1_i32_366  : i32 {
        %c1_i32_368 = arith.constant 1 : i32
        %595 = arith.muli %arg15, %c1_i32_368 : i32
        %c0_i32_369 = arith.constant 0 : i32
        %596 = arith.addi %c0_i32_369, %595 : i32
        %c0_370 = arith.constant 0 : index
        %597 = arith.index_cast %596 : i32 to index
        %c0_371 = arith.constant 0 : index
        %c0_372 = arith.constant 0 : index
        %598 = vector.load %arg5[%c0_370, %597, %c0_371, %c0_372] : memref<1x16x16x128xbf16, #tpu.memory_space<vmem>>, vector<1x1x16x128xbf16>
        %599 = vector.shape_cast %598 : vector<1x1x16x128xbf16> to vector<16x128xbf16>
        %cst_373 = arith.constant dense<0.000000e+00> : vector<32x128xf32>
        %600 = tpu.matmul %593, %599, %cst_373 {dimension_numbers = #tpu.dot_dimension_numbers<[1], [0], [0], [1], [0, 0, 1, 1], [], []>} : vector<32x16xbf16>, vector<16x128xbf16>, vector<32x128xf32> -> vector<32x128xf32>
        %601 = arith.truncf %600 : vector<32x128xf32> to vector<32x128xbf16>
        %602 = vector.shape_cast %601 : vector<32x128xbf16> to vector<1x32x128xbf16>
        %603 = arith.index_cast %596 : i32 to index
        %c0_374 = arith.constant 0 : index
        %c0_375 = arith.constant 0 : index
        %604 = vector.load %arg12[%603, %c0_374, %c0_375] : memref<16x32x128xbf16, #tpu.memory_space<vmem>>, vector<1x32x128xbf16>
        tpu.vector_store %arg12[%603, %c0_374, %c0_375], %602 {strides = array<i32>} : memref<16x32x128xbf16, #tpu.memory_space<vmem>>, vector<1x32x128xbf16>,
      }
      %c16_i32_367 = arith.constant 16 : i32
    } else {
    }
    %c8_i32 = arith.constant 8 : i32
    %3 = arith.muli %arg1, %c8_i32 : i32
    %c0_i32_1 = arith.constant 0 : i32
    %4 = arith.addi %3, %c0_i32_1 : i32
    %c2_i32 = arith.constant 2 : i32
    %5 = arith.subi %4, %c2_i32 : i32
    %c0_i32_2 = arith.constant 0 : i32
    %6 = arith.cmpi sge, %5, %c0_i32_2 : i32
    %c31_i32 = arith.constant 31 : i32
    %7 = arith.cmpi sle, %5, %c31_i32 : i32
    %8 = arith.andi %6, %7 : i1
    %9 = arith.index_cast %4 : i32 to index
    %10 = memref.load %arg4[%9] : memref<36xi32, #tpu.memory_space<smem>>
    %11 = arith.sitofp %10 : i32 to f32
    %cst = arith.constant 0.0322580636 : f32
    %12 = arith.mulf %11, %cst : f32
    %cst_3 = arith.constant 0.000000e+00 : f32
    %13 = arith.select %8, %12, %cst_3 : f32
    %cst_4 = arith.constant 1.000000e+00 : f32
    %14 = arith.subf %cst_4, %12 : f32
    %cst_5 = arith.constant 0.000000e+00 : f32
    %15 = arith.select %8, %14, %cst_5 : f32
    %16 = arith.index_cast %4 : i32 to index
    %17 = memref.load %arg2[%16] : memref<36xi32, #tpu.memory_space<smem>>
    %18 = arith.index_cast %17 : i32 to index
    %c0 = arith.constant 0 : index
    %c0_6 = arith.constant 0 : index
    %19 = vector.load %arg12[%18, %c0, %c0_6] : memref<16x32x128xbf16, #tpu.memory_space<vmem>>, vector<1x32x128xbf16>
    %20 = vector.shape_cast %19 : vector<1x32x128xbf16> to vector<32x128xbf16>
    %21 = arith.extf %20 : vector<32x128xbf16> to vector<32x128xf32>
    %22 = vector.broadcast %15 : f32 to vector<32x128xf32>
    %23 = arith.mulf %22, %21 : vector<32x128xf32>
    %24 = arith.index_cast %4 : i32 to index
    %25 = memref.load %arg3[%24] : memref<36xi32, #tpu.memory_space<smem>>
    %26 = arith.index_cast %25 : i32 to index
    %c0_7 = arith.constant 0 : index
    %c0_8 = arith.constant 0 : index
    %27 = vector.load %arg12[%26, %c0_7, %c0_8] : memref<16x32x128xbf16, #tpu.memory_space<vmem>>, vector<1x32x128xbf16>
    %28 = vector.shape_cast %27 : vector<1x32x128xbf16> to vector<32x128xbf16>
    %29 = arith.extf %28 : vector<32x128xbf16> to vector<32x128xf32>
    %30 = vector.broadcast %13 : f32 to vector<32x128xf32>
    %31 = arith.mulf %30, %29 : vector<32x128xf32>
    %32 = arith.addf %23, %31 : vector<32x128xf32>
    %33 = arith.truncf %32 : vector<32x128xf32> to vector<32x128xbf16>
    %c1 = arith.constant 1 : index
    %c0_9 = arith.constant 0 : index
    %34 = vector.load %arg13[%c1, %c0_9] : memref<416x128xbf16, #tpu.memory_space<vmem>>, vector<32x128xbf16>
    tpu.vector_store %arg13[%c1, %c0_9], %33 {strides = array<i32>} : memref<416x128xbf16, #tpu.memory_space<vmem>>, vector<32x128xbf16>,
    %c8_i32_10 = arith.constant 8 : i32
    %35 = arith.muli %arg1, %c8_i32_10 : i32
    %c1_i32 = arith.constant 1 : i32
    %36 = arith.addi %35, %c1_i32 : i32
    %c2_i32_11 = arith.constant 2 : i32
    %37 = arith.subi %36, %c2_i32_11 : i32
    %c0_i32_12 = arith.constant 0 : i32
    %38 = arith.cmpi sge, %37, %c0_i32_12 : i32
    %c31_i32_13 = arith.constant 31 : i32
    %39 = arith.cmpi sle, %37, %c31_i32_13 : i32
    %40 = arith.andi %38, %39 : i1
    %41 = arith.index_cast %36 : i32 to index
    %42 = memref.load %arg4[%41] : memref<36xi32, #tpu.memory_space<smem>>
    %43 = arith.sitofp %42 : i32 to f32
    %cst_14 = arith.constant 0.0322580636 : f32
    %44 = arith.mulf %43, %cst_14 : f32
    %cst_15 = arith.constant 0.000000e+00 : f32
    %45 = arith.select %40, %44, %cst_15 : f32
    %cst_16 = arith.constant 1.000000e+00 : f32
    %46 = arith.subf %cst_16, %44 : f32
    %cst_17 = arith.constant 0.000000e+00 : f32
    %47 = arith.select %40, %46, %cst_17 : f32
    %48 = arith.index_cast %36 : i32 to index
    %49 = memref.load %arg2[%48] : memref<36xi32, #tpu.memory_space<smem>>
    %50 = arith.index_cast %49 : i32 to index
    %c0_18 = arith.constant 0 : index
    %c0_19 = arith.constant 0 : index
    %51 = vector.load %arg12[%50, %c0_18, %c0_19] : memref<16x32x128xbf16, #tpu.memory_space<vmem>>, vector<1x32x128xbf16>
    %52 = vector.shape_cast %51 : vector<1x32x128xbf16> to vector<32x128xbf16>
    %53 = arith.extf %52 : vector<32x128xbf16> to vector<32x128xf32>
    %54 = vector.broadcast %47 : f32 to vector<32x128xf32>
    %55 = arith.mulf %54, %53 : vector<32x128xf32>
    %56 = arith.index_cast %36 : i32 to index
    %57 = memref.load %arg3[%56] : memref<36xi32, #tpu.memory_space<smem>>
    %58 = arith.index_cast %57 : i32 to index
    %c0_20 = arith.constant 0 : index
    %c0_21 = arith.constant 0 : index
    %59 = vector.load %arg12[%58, %c0_20, %c0_21] : memref<16x32x128xbf16, #tpu.memory_space<vmem>>, vector<1x32x128xbf16>
    %60 = vector.shape_cast %59 : vector<1x32x128xbf16> to vector<32x128xbf16>
    %61 = arith.extf %60 : vector<32x128xbf16> to vector<32x128xf32>
    %62 = vector.broadcast %45 : f32 to vector<32x128xf32>
    %63 = arith.mulf %62, %61 : vector<32x128xf32>
    %64 = arith.addf %55, %63 : vector<32x128xf32>
    %65 = arith.truncf %64 : vector<32x128xf32> to vector<32x128xbf16>
    %c35 = arith.constant 35 : index
    %c0_22 = arith.constant 0 : index
    %66 = vector.load %arg13[%c35, %c0_22] : memref<416x128xbf16, #tpu.memory_space<vmem>>, vector<32x128xbf16>
    tpu.vector_store %arg13[%c35, %c0_22], %65 {strides = array<i32>} : memref<416x128xbf16, #tpu.memory_space<vmem>>, vector<32x128xbf16>,
    %c8_i32_23 = arith.constant 8 : i32
    %67 = arith.muli %arg1, %c8_i32_23 : i32
    %c2_i32_24 = arith.constant 2 : i32
    %68 = arith.addi %67, %c2_i32_24 : i32
    %c2_i32_25 = arith.constant 2 : i32
    %69 = arith.subi %68, %c2_i32_25 : i32
    %c0_i32_26 = arith.constant 0 : i32
    %70 = arith.cmpi sge, %69, %c0_i32_26 : i32
    %c31_i32_27 = arith.constant 31 : i32
    %71 = arith.cmpi sle, %69, %c31_i32_27 : i32
    %72 = arith.andi %70, %71 : i1
    %73 = arith.index_cast %68 : i32 to index
    %74 = memref.load %arg4[%73] : memref<36xi32, #tpu.memory_space<smem>>
    %75 = arith.sitofp %74 : i32 to f32
    %cst_28 = arith.constant 0.0322580636 : f32
    %76 = arith.mulf %75, %cst_28 : f32
    %cst_29 = arith.constant 0.000000e+00 : f32
    %77 = arith.select %72, %76, %cst_29 : f32
    %cst_30 = arith.constant 1.000000e+00 : f32
    %78 = arith.subf %cst_30, %76 : f32
    %cst_31 = arith.constant 0.000000e+00 : f32
    %79 = arith.select %72, %78, %cst_31 : f32
    %80 = arith.index_cast %68 : i32 to index
    %81 = memref.load %arg2[%80] : memref<36xi32, #tpu.memory_space<smem>>
    %82 = arith.index_cast %81 : i32 to index
    %c0_32 = arith.constant 0 : index
    %c0_33 = arith.constant 0 : index
    %83 = vector.load %arg12[%82, %c0_32, %c0_33] : memref<16x32x128xbf16, #tpu.memory_space<vmem>>, vector<1x32x128xbf16>
    %84 = vector.shape_cast %83 : vector<1x32x128xbf16> to vector<32x128xbf16>
    %85 = arith.extf %84 : vector<32x128xbf16> to vector<32x128xf32>
    %86 = vector.broadcast %79 : f32 to vector<32x128xf32>
    %87 = arith.mulf %86, %85 : vector<32x128xf32>
    %88 = arith.index_cast %68 : i32 to index
    %89 = memref.load %arg3[%88] : memref<36xi32, #tpu.memory_space<smem>>
    %90 = arith.index_cast %89 : i32 to index
    %c0_34 = arith.constant 0 : index
    %c0_35 = arith.constant 0 : index
    %91 = vector.load %arg12[%90, %c0_34, %c0_35] : memref<16x32x128xbf16, #tpu.memory_space<vmem>>, vector<1x32x128xbf16>
    %92 = vector.shape_cast %91 : vector<1x32x128xbf16> to vector<32x128xbf16>
    %93 = arith.extf %92 : vector<32x128xbf16> to vector<32x128xf32>
    %94 = vector.broadcast %77 : f32 to vector<32x128xf32>
    %95 = arith.mulf %94, %93 : vector<32x128xf32>
    %96 = arith.addf %87, %95 : vector<32x128xf32>
    %97 = arith.truncf %96 : vector<32x128xf32> to vector<32x128xbf16>
    %c69 = arith.constant 69 : index
    %c0_36 = arith.constant 0 : index
    %98 = vector.load %arg13[%c69, %c0_36] : memref<416x128xbf16, #tpu.memory_space<vmem>>, vector<32x128xbf16>
    tpu.vector_store %arg13[%c69, %c0_36], %97 {strides = array<i32>} : memref<416x128xbf16, #tpu.memory_space<vmem>>, vector<32x128xbf16>,
    %c8_i32_37 = arith.constant 8 : i32
    %99 = arith.muli %arg1, %c8_i32_37 : i32
    %c3_i32 = arith.constant 3 : i32
    %100 = arith.addi %99, %c3_i32 : i32
    %c2_i32_38 = arith.constant 2 : i32
    %101 = arith.subi %100, %c2_i32_38 : i32
    %c0_i32_39 = arith.constant 0 : i32
    %102 = arith.cmpi sge, %101, %c0_i32_39 : i32
    %c31_i32_40 = arith.constant 31 : i32
    %103 = arith.cmpi sle, %101, %c31_i32_40 : i32
    %104 = arith.andi %102, %103 : i1
    %105 = arith.index_cast %100 : i32 to index
    %106 = memref.load %arg4[%105] : memref<36xi32, #tpu.memory_space<smem>>
    %107 = arith.sitofp %106 : i32 to f32
    %cst_41 = arith.constant 0.0322580636 : f32
    %108 = arith.mulf %107, %cst_41 : f32
    %cst_42 = arith.constant 0.000000e+00 : f32
    %109 = arith.select %104, %108, %cst_42 : f32
    %cst_43 = arith.constant 1.000000e+00 : f32
    %110 = arith.subf %cst_43, %108 : f32
    %cst_44 = arith.constant 0.000000e+00 : f32
    %111 = arith.select %104, %110, %cst_44 : f32
    %112 = arith.index_cast %100 : i32 to index
    %113 = memref.load %arg2[%112] : memref<36xi32, #tpu.memory_space<smem>>
    %114 = arith.index_cast %113 : i32 to index
    %c0_45 = arith.constant 0 : index
    %c0_46 = arith.constant 0 : index
    %115 = vector.load %arg12[%114, %c0_45, %c0_46] : memref<16x32x128xbf16, #tpu.memory_space<vmem>>, vector<1x32x128xbf16>
    %116 = vector.shape_cast %115 : vector<1x32x128xbf16> to vector<32x128xbf16>
    %117 = arith.extf %116 : vector<32x128xbf16> to vector<32x128xf32>
    %118 = vector.broadcast %111 : f32 to vector<32x128xf32>
    %119 = arith.mulf %118, %117 : vector<32x128xf32>
    %120 = arith.index_cast %100 : i32 to index
    %121 = memref.load %arg3[%120] : memref<36xi32, #tpu.memory_space<smem>>
    %122 = arith.index_cast %121 : i32 to index
    %c0_47 = arith.constant 0 : index
    %c0_48 = arith.constant 0 : index
    %123 = vector.load %arg12[%122, %c0_47, %c0_48] : memref<16x32x128xbf16, #tpu.memory_space<vmem>>, vector<1x32x128xbf16>
    %124 = vector.shape_cast %123 : vector<1x32x128xbf16> to vector<32x128xbf16>
    %125 = arith.extf %124 : vector<32x128xbf16> to vector<32x128xf32>
    %126 = vector.broadcast %109 : f32 to vector<32x128xf32>
    %127 = arith.mulf %126, %125 : vector<32x128xf32>
    %128 = arith.addf %119, %127 : vector<32x128xf32>
    %129 = arith.truncf %128 : vector<32x128xf32> to vector<32x128xbf16>
    %c103 = arith.constant 103 : index
    %c0_49 = arith.constant 0 : index
    %130 = vector.load %arg13[%c103, %c0_49] : memref<416x128xbf16, #tpu.memory_space<vmem>>, vector<32x128xbf16>
    tpu.vector_store %arg13[%c103, %c0_49], %129 {strides = array<i32>} : memref<416x128xbf16, #tpu.memory_space<vmem>>, vector<32x128xbf16>,
    %c8_i32_50 = arith.constant 8 : i32
    %131 = arith.muli %arg1, %c8_i32_50 : i32
    %c4_i32 = arith.constant 4 : i32
    %132 = arith.addi %131, %c4_i32 : i32
    %c2_i32_51 = arith.constant 2 : i32
    %133 = arith.subi %132, %c2_i32_51 : i32
    %c0_i32_52 = arith.constant 0 : i32
    %134 = arith.cmpi sge, %133, %c0_i32_52 : i32
    %c31_i32_53 = arith.constant 31 : i32
    %135 = arith.cmpi sle, %133, %c31_i32_53 : i32
    %136 = arith.andi %134, %135 : i1
    %137 = arith.index_cast %132 : i32 to index
    %138 = memref.load %arg4[%137] : memref<36xi32, #tpu.memory_space<smem>>
    %139 = arith.sitofp %138 : i32 to f32
    %cst_54 = arith.constant 0.0322580636 : f32
    %140 = arith.mulf %139, %cst_54 : f32
    %cst_55 = arith.constant 0.000000e+00 : f32
    %141 = arith.select %136, %140, %cst_55 : f32
    %cst_56 = arith.constant 1.000000e+00 : f32
    %142 = arith.subf %cst_56, %140 : f32
    %cst_57 = arith.constant 0.000000e+00 : f32
    %143 = arith.select %136, %142, %cst_57 : f32
    %144 = arith.index_cast %132 : i32 to index
    %145 = memref.load %arg2[%144] : memref<36xi32, #tpu.memory_space<smem>>
    %146 = arith.index_cast %145 : i32 to index
    %c0_58 = arith.constant 0 : index
    %c0_59 = arith.constant 0 : index
    %147 = vector.load %arg12[%146, %c0_58, %c0_59] : memref<16x32x128xbf16, #tpu.memory_space<vmem>>, vector<1x32x128xbf16>
    %148 = vector.shape_cast %147 : vector<1x32x128xbf16> to vector<32x128xbf16>
    %149 = arith.extf %148 : vector<32x128xbf16> to vector<32x128xf32>
    %150 = vector.broadcast %143 : f32 to vector<32x128xf32>
    %151 = arith.mulf %150, %149 : vector<32x128xf32>
    %152 = arith.index_cast %132 : i32 to index
    %153 = memref.load %arg3[%152] : memref<36xi32, #tpu.memory_space<smem>>
    %154 = arith.index_cast %153 : i32 to index
    %c0_60 = arith.constant 0 : index
    %c0_61 = arith.constant 0 : index
    %155 = vector.load %arg12[%154, %c0_60, %c0_61] : memref<16x32x128xbf16, #tpu.memory_space<vmem>>, vector<1x32x128xbf16>
    %156 = vector.shape_cast %155 : vector<1x32x128xbf16> to vector<32x128xbf16>
    %157 = arith.extf %156 : vector<32x128xbf16> to vector<32x128xf32>
    %158 = vector.broadcast %141 : f32 to vector<32x128xf32>
    %159 = arith.mulf %158, %157 : vector<32x128xf32>
    %160 = arith.addf %151, %159 : vector<32x128xf32>
    %161 = arith.truncf %160 : vector<32x128xf32> to vector<32x128xbf16>
    %c137 = arith.constant 137 : index
    %c0_62 = arith.constant 0 : index
    %162 = vector.load %arg13[%c137, %c0_62] : memref<416x128xbf16, #tpu.memory_space<vmem>>, vector<32x128xbf16>
    tpu.vector_store %arg13[%c137, %c0_62], %161 {strides = array<i32>} : memref<416x128xbf16, #tpu.memory_space<vmem>>, vector<32x128xbf16>,
    %c8_i32_63 = arith.constant 8 : i32
    %163 = arith.muli %arg1, %c8_i32_63 : i32
    %c5_i32 = arith.constant 5 : i32
    %164 = arith.addi %163, %c5_i32 : i32
    %c2_i32_64 = arith.constant 2 : i32
    %165 = arith.subi %164, %c2_i32_64 : i32
    %c0_i32_65 = arith.constant 0 : i32
    %166 = arith.cmpi sge, %165, %c0_i32_65 : i32
    %c31_i32_66 = arith.constant 31 : i32
    %167 = arith.cmpi sle, %165, %c31_i32_66 : i32
    %168 = arith.andi %166, %167 : i1
    %169 = arith.index_cast %164 : i32 to index
    %170 = memref.load %arg4[%169] : memref<36xi32, #tpu.memory_space<smem>>
    %171 = arith.sitofp %170 : i32 to f32
    %cst_67 = arith.constant 0.0322580636 : f32
    %172 = arith.mulf %171, %cst_67 : f32
    %cst_68 = arith.constant 0.000000e+00 : f32
    %173 = arith.select %168, %172, %cst_68 : f32
    %cst_69 = arith.constant 1.000000e+00 : f32
    %174 = arith.subf %cst_69, %172 : f32
    %cst_70 = arith.constant 0.000000e+00 : f32
    %175 = arith.select %168, %174, %cst_70 : f32
    %176 = arith.index_cast %164 : i32 to index
    %177 = memref.load %arg2[%176] : memref<36xi32, #tpu.memory_space<smem>>
    %178 = arith.index_cast %177 : i32 to index
    %c0_71 = arith.constant 0 : index
    %c0_72 = arith.constant 0 : index
    %179 = vector.load %arg12[%178, %c0_71, %c0_72] : memref<16x32x128xbf16, #tpu.memory_space<vmem>>, vector<1x32x128xbf16>
    %180 = vector.shape_cast %179 : vector<1x32x128xbf16> to vector<32x128xbf16>
    %181 = arith.extf %180 : vector<32x128xbf16> to vector<32x128xf32>
    %182 = vector.broadcast %175 : f32 to vector<32x128xf32>
    %183 = arith.mulf %182, %181 : vector<32x128xf32>
    %184 = arith.index_cast %164 : i32 to index
    %185 = memref.load %arg3[%184] : memref<36xi32, #tpu.memory_space<smem>>
    %186 = arith.index_cast %185 : i32 to index
    %c0_73 = arith.constant 0 : index
    %c0_74 = arith.constant 0 : index
    %187 = vector.load %arg12[%186, %c0_73, %c0_74] : memref<16x32x128xbf16, #tpu.memory_space<vmem>>, vector<1x32x128xbf16>
    %188 = vector.shape_cast %187 : vector<1x32x128xbf16> to vector<32x128xbf16>
    %189 = arith.extf %188 : vector<32x128xbf16> to vector<32x128xf32>
    %190 = vector.broadcast %173 : f32 to vector<32x128xf32>
    %191 = arith.mulf %190, %189 : vector<32x128xf32>
    %192 = arith.addf %183, %191 : vector<32x128xf32>
    %193 = arith.truncf %192 : vector<32x128xf32> to vector<32x128xbf16>
    %c171 = arith.constant 171 : index
    %c0_75 = arith.constant 0 : index
    %194 = vector.load %arg13[%c171, %c0_75] : memref<416x128xbf16, #tpu.memory_space<vmem>>, vector<32x128xbf16>
    tpu.vector_store %arg13[%c171, %c0_75], %193 {strides = array<i32>} : memref<416x128xbf16, #tpu.memory_space<vmem>>, vector<32x128xbf16>,
    %c8_i32_76 = arith.constant 8 : i32
    %195 = arith.muli %arg1, %c8_i32_76 : i32
    %c6_i32 = arith.constant 6 : i32
    %196 = arith.addi %195, %c6_i32 : i32
    %c2_i32_77 = arith.constant 2 : i32
    %197 = arith.subi %196, %c2_i32_77 : i32
    %c0_i32_78 = arith.constant 0 : i32
    %198 = arith.cmpi sge, %197, %c0_i32_78 : i32
    %c31_i32_79 = arith.constant 31 : i32
    %199 = arith.cmpi sle, %197, %c31_i32_79 : i32
    %200 = arith.andi %198, %199 : i1
    %201 = arith.index_cast %196 : i32 to index
    %202 = memref.load %arg4[%201] : memref<36xi32, #tpu.memory_space<smem>>
    %203 = arith.sitofp %202 : i32 to f32
    %cst_80 = arith.constant 0.0322580636 : f32
    %204 = arith.mulf %203, %cst_80 : f32
    %cst_81 = arith.constant 0.000000e+00 : f32
    %205 = arith.select %200, %204, %cst_81 : f32
    %cst_82 = arith.constant 1.000000e+00 : f32
    %206 = arith.subf %cst_82, %204 : f32
    %cst_83 = arith.constant 0.000000e+00 : f32
    %207 = arith.select %200, %206, %cst_83 : f32
    %208 = arith.index_cast %196 : i32 to index
    %209 = memref.load %arg2[%208] : memref<36xi32, #tpu.memory_space<smem>>
    %210 = arith.index_cast %209 : i32 to index
    %c0_84 = arith.constant 0 : index
    %c0_85 = arith.constant 0 : index
    %211 = vector.load %arg12[%210, %c0_84, %c0_85] : memref<16x32x128xbf16, #tpu.memory_space<vmem>>, vector<1x32x128xbf16>
    %212 = vector.shape_cast %211 : vector<1x32x128xbf16> to vector<32x128xbf16>
    %213 = arith.extf %212 : vector<32x128xbf16> to vector<32x128xf32>
    %214 = vector.broadcast %207 : f32 to vector<32x128xf32>
    %215 = arith.mulf %214, %213 : vector<32x128xf32>
    %216 = arith.index_cast %196 : i32 to index
    %217 = memref.load %arg3[%216] : memref<36xi32, #tpu.memory_space<smem>>
    %218 = arith.index_cast %217 : i32 to index
    %c0_86 = arith.constant 0 : index
    %c0_87 = arith.constant 0 : index
    %219 = vector.load %arg12[%218, %c0_86, %c0_87] : memref<16x32x128xbf16, #tpu.memory_space<vmem>>, vector<1x32x128xbf16>
    %220 = vector.shape_cast %219 : vector<1x32x128xbf16> to vector<32x128xbf16>
    %221 = arith.extf %220 : vector<32x128xbf16> to vector<32x128xf32>
    %222 = vector.broadcast %205 : f32 to vector<32x128xf32>
    %223 = arith.mulf %222, %221 : vector<32x128xf32>
    %224 = arith.addf %215, %223 : vector<32x128xf32>
    %225 = arith.truncf %224 : vector<32x128xf32> to vector<32x128xbf16>
    %c205 = arith.constant 205 : index
    %c0_88 = arith.constant 0 : index
    %226 = vector.load %arg13[%c205, %c0_88] : memref<416x128xbf16, #tpu.memory_space<vmem>>, vector<32x128xbf16>
    tpu.vector_store %arg13[%c205, %c0_88], %225 {strides = array<i32>} : memref<416x128xbf16, #tpu.memory_space<vmem>>, vector<32x128xbf16>,
    %c8_i32_89 = arith.constant 8 : i32
    %227 = arith.muli %arg1, %c8_i32_89 : i32
    %c7_i32 = arith.constant 7 : i32
    %228 = arith.addi %227, %c7_i32 : i32
    %c2_i32_90 = arith.constant 2 : i32
    %229 = arith.subi %228, %c2_i32_90 : i32
    %c0_i32_91 = arith.constant 0 : i32
    %230 = arith.cmpi sge, %229, %c0_i32_91 : i32
    %c31_i32_92 = arith.constant 31 : i32
    %231 = arith.cmpi sle, %229, %c31_i32_92 : i32
    %232 = arith.andi %230, %231 : i1
    %233 = arith.index_cast %228 : i32 to index
    %234 = memref.load %arg4[%233] : memref<36xi32, #tpu.memory_space<smem>>
    %235 = arith.sitofp %234 : i32 to f32
    %cst_93 = arith.constant 0.0322580636 : f32
    %236 = arith.mulf %235, %cst_93 : f32
    %cst_94 = arith.constant 0.000000e+00 : f32
    %237 = arith.select %232, %236, %cst_94 : f32
    %cst_95 = arith.constant 1.000000e+00 : f32
    %238 = arith.subf %cst_95, %236 : f32
    %cst_96 = arith.constant 0.000000e+00 : f32
    %239 = arith.select %232, %238, %cst_96 : f32
    %240 = arith.index_cast %228 : i32 to index
    %241 = memref.load %arg2[%240] : memref<36xi32, #tpu.memory_space<smem>>
    %242 = arith.index_cast %241 : i32 to index
    %c0_97 = arith.constant 0 : index
    %c0_98 = arith.constant 0 : index
    %243 = vector.load %arg12[%242, %c0_97, %c0_98] : memref<16x32x128xbf16, #tpu.memory_space<vmem>>, vector<1x32x128xbf16>
    %244 = vector.shape_cast %243 : vector<1x32x128xbf16> to vector<32x128xbf16>
    %245 = arith.extf %244 : vector<32x128xbf16> to vector<32x128xf32>
    %246 = vector.broadcast %239 : f32 to vector<32x128xf32>
    %247 = arith.mulf %246, %245 : vector<32x128xf32>
    %248 = arith.index_cast %228 : i32 to index
    %249 = memref.load %arg3[%248] : memref<36xi32, #tpu.memory_space<smem>>
    %250 = arith.index_cast %249 : i32 to index
    %c0_99 = arith.constant 0 : index
    %c0_100 = arith.constant 0 : index
    %251 = vector.load %arg12[%250, %c0_99, %c0_100] : memref<16x32x128xbf16, #tpu.memory_space<vmem>>, vector<1x32x128xbf16>
    %252 = vector.shape_cast %251 : vector<1x32x128xbf16> to vector<32x128xbf16>
    %253 = arith.extf %252 : vector<32x128xbf16> to vector<32x128xf32>
    %254 = vector.broadcast %237 : f32 to vector<32x128xf32>
    %255 = arith.mulf %254, %253 : vector<32x128xf32>
    %256 = arith.addf %247, %255 : vector<32x128xf32>
    %257 = arith.truncf %256 : vector<32x128xf32> to vector<32x128xbf16>
    %c239 = arith.constant 239 : index
    %c0_101 = arith.constant 0 : index
    %258 = vector.load %arg13[%c239, %c0_101] : memref<416x128xbf16, #tpu.memory_space<vmem>>, vector<32x128xbf16>
    tpu.vector_store %arg13[%c239, %c0_101], %257 {strides = array<i32>} : memref<416x128xbf16, #tpu.memory_space<vmem>>, vector<32x128xbf16>,
    %c8_i32_102 = arith.constant 8 : i32
    %259 = arith.muli %arg1, %c8_i32_102 : i32
    %c8_i32_103 = arith.constant 8 : i32
    %260 = arith.addi %259, %c8_i32_103 : i32
    %c2_i32_104 = arith.constant 2 : i32
    %261 = arith.subi %260, %c2_i32_104 : i32
    %c0_i32_105 = arith.constant 0 : i32
    %262 = arith.cmpi sge, %261, %c0_i32_105 : i32
    %c31_i32_106 = arith.constant 31 : i32
    %263 = arith.cmpi sle, %261, %c31_i32_106 : i32
    %264 = arith.andi %262, %263 : i1
    %265 = arith.index_cast %260 : i32 to index
    %266 = memref.load %arg4[%265] : memref<36xi32, #tpu.memory_space<smem>>
    %267 = arith.sitofp %266 : i32 to f32
    %cst_107 = arith.constant 0.0322580636 : f32
    %268 = arith.mulf %267, %cst_107 : f32
    %cst_108 = arith.constant 0.000000e+00 : f32
    %269 = arith.select %264, %268, %cst_108 : f32
    %cst_109 = arith.constant 1.000000e+00 : f32
    %270 = arith.subf %cst_109, %268 : f32
    %cst_110 = arith.constant 0.000000e+00 : f32
    %271 = arith.select %264, %270, %cst_110 : f32
    %272 = arith.index_cast %260 : i32 to index
    %273 = memref.load %arg2[%272] : memref<36xi32, #tpu.memory_space<smem>>
    %274 = arith.index_cast %273 : i32 to index
    %c0_111 = arith.constant 0 : index
    %c0_112 = arith.constant 0 : index
    %275 = vector.load %arg12[%274, %c0_111, %c0_112] : memref<16x32x128xbf16, #tpu.memory_space<vmem>>, vector<1x32x128xbf16>
    %276 = vector.shape_cast %275 : vector<1x32x128xbf16> to vector<32x128xbf16>
    %277 = arith.extf %276 : vector<32x128xbf16> to vector<32x128xf32>
    %278 = vector.broadcast %271 : f32 to vector<32x128xf32>
    %279 = arith.mulf %278, %277 : vector<32x128xf32>
    %280 = arith.index_cast %260 : i32 to index
    %281 = memref.load %arg3[%280] : memref<36xi32, #tpu.memory_space<smem>>
    %282 = arith.index_cast %281 : i32 to index
    %c0_113 = arith.constant 0 : index
    %c0_114 = arith.constant 0 : index
    %283 = vector.load %arg12[%282, %c0_113, %c0_114] : memref<16x32x128xbf16, #tpu.memory_space<vmem>>, vector<1x32x128xbf16>
    %284 = vector.shape_cast %283 : vector<1x32x128xbf16> to vector<32x128xbf16>
    %285 = arith.extf %284 : vector<32x128xbf16> to vector<32x128xf32>
    %286 = vector.broadcast %269 : f32 to vector<32x128xf32>
    %287 = arith.mulf %286, %285 : vector<32x128xf32>
    %288 = arith.addf %279, %287 : vector<32x128xf32>
    %289 = arith.truncf %288 : vector<32x128xf32> to vector<32x128xbf16>
    %c273 = arith.constant 273 : index
    %c0_115 = arith.constant 0 : index
    %290 = vector.load %arg13[%c273, %c0_115] : memref<416x128xbf16, #tpu.memory_space<vmem>>, vector<32x128xbf16>
    tpu.vector_store %arg13[%c273, %c0_115], %289 {strides = array<i32>} : memref<416x128xbf16, #tpu.memory_space<vmem>>, vector<32x128xbf16>,
    %c8_i32_116 = arith.constant 8 : i32
    %291 = arith.muli %arg1, %c8_i32_116 : i32
    %c9_i32 = arith.constant 9 : i32
    %292 = arith.addi %291, %c9_i32 : i32
    %c2_i32_117 = arith.constant 2 : i32
    %293 = arith.subi %292, %c2_i32_117 : i32
    %c0_i32_118 = arith.constant 0 : i32
    %294 = arith.cmpi sge, %293, %c0_i32_118 : i32
    %c31_i32_119 = arith.constant 31 : i32
    %295 = arith.cmpi sle, %293, %c31_i32_119 : i32
    %296 = arith.andi %294, %295 : i1
    %297 = arith.index_cast %292 : i32 to index
    %298 = memref.load %arg4[%297] : memref<36xi32, #tpu.memory_space<smem>>
    %299 = arith.sitofp %298 : i32 to f32
    %cst_120 = arith.constant 0.0322580636 : f32
    %300 = arith.mulf %299, %cst_120 : f32
    %cst_121 = arith.constant 0.000000e+00 : f32
    %301 = arith.select %296, %300, %cst_121 : f32
    %cst_122 = arith.constant 1.000000e+00 : f32
    %302 = arith.subf %cst_122, %300 : f32
    %cst_123 = arith.constant 0.000000e+00 : f32
    %303 = arith.select %296, %302, %cst_123 : f32
    %304 = arith.index_cast %292 : i32 to index
    %305 = memref.load %arg2[%304] : memref<36xi32, #tpu.memory_space<smem>>
    %306 = arith.index_cast %305 : i32 to index
    %c0_124 = arith.constant 0 : index
    %c0_125 = arith.constant 0 : index
    %307 = vector.load %arg12[%306, %c0_124, %c0_125] : memref<16x32x128xbf16, #tpu.memory_space<vmem>>, vector<1x32x128xbf16>
    %308 = vector.shape_cast %307 : vector<1x32x128xbf16> to vector<32x128xbf16>
    %309 = arith.extf %308 : vector<32x128xbf16> to vector<32x128xf32>
    %310 = vector.broadcast %303 : f32 to vector<32x128xf32>
    %311 = arith.mulf %310, %309 : vector<32x128xf32>
    %312 = arith.index_cast %292 : i32 to index
    %313 = memref.load %arg3[%312] : memref<36xi32, #tpu.memory_space<smem>>
    %314 = arith.index_cast %313 : i32 to index
    %c0_126 = arith.constant 0 : index
    %c0_127 = arith.constant 0 : index
    %315 = vector.load %arg12[%314, %c0_126, %c0_127] : memref<16x32x128xbf16, #tpu.memory_space<vmem>>, vector<1x32x128xbf16>
    %316 = vector.shape_cast %315 : vector<1x32x128xbf16> to vector<32x128xbf16>
    %317 = arith.extf %316 : vector<32x128xbf16> to vector<32x128xf32>
    %318 = vector.broadcast %301 : f32 to vector<32x128xf32>
    %319 = arith.mulf %318, %317 : vector<32x128xf32>
    %320 = arith.addf %311, %319 : vector<32x128xf32>
    %321 = arith.truncf %320 : vector<32x128xf32> to vector<32x128xbf16>
    %c307 = arith.constant 307 : index
    %c0_128 = arith.constant 0 : index
    %322 = vector.load %arg13[%c307, %c0_128] : memref<416x128xbf16, #tpu.memory_space<vmem>>, vector<32x128xbf16>
    tpu.vector_store %arg13[%c307, %c0_128], %321 {strides = array<i32>} : memref<416x128xbf16, #tpu.memory_space<vmem>>, vector<32x128xbf16>,
    %c8_i32_129 = arith.constant 8 : i32
    %323 = arith.muli %arg1, %c8_i32_129 : i32
    %c10_i32 = arith.constant 10 : i32
    %324 = arith.addi %323, %c10_i32 : i32
    %c2_i32_130 = arith.constant 2 : i32
    %325 = arith.subi %324, %c2_i32_130 : i32
    %c0_i32_131 = arith.constant 0 : i32
    %326 = arith.cmpi sge, %325, %c0_i32_131 : i32
    %c31_i32_132 = arith.constant 31 : i32
    %327 = arith.cmpi sle, %325, %c31_i32_132 : i32
    %328 = arith.andi %326, %327 : i1
    %329 = arith.index_cast %324 : i32 to index
    %330 = memref.load %arg4[%329] : memref<36xi32, #tpu.memory_space<smem>>
    %331 = arith.sitofp %330 : i32 to f32
    %cst_133 = arith.constant 0.0322580636 : f32
    %332 = arith.mulf %331, %cst_133 : f32
    %cst_134 = arith.constant 0.000000e+00 : f32
    %333 = arith.select %328, %332, %cst_134 : f32
    %cst_135 = arith.constant 1.000000e+00 : f32
    %334 = arith.subf %cst_135, %332 : f32
    %cst_136 = arith.constant 0.000000e+00 : f32
    %335 = arith.select %328, %334, %cst_136 : f32
    %336 = arith.index_cast %324 : i32 to index
    %337 = memref.load %arg2[%336] : memref<36xi32, #tpu.memory_space<smem>>
    %338 = arith.index_cast %337 : i32 to index
    %c0_137 = arith.constant 0 : index
    %c0_138 = arith.constant 0 : index
    %339 = vector.load %arg12[%338, %c0_137, %c0_138] : memref<16x32x128xbf16, #tpu.memory_space<vmem>>, vector<1x32x128xbf16>
    %340 = vector.shape_cast %339 : vector<1x32x128xbf16> to vector<32x128xbf16>
    %341 = arith.extf %340 : vector<32x128xbf16> to vector<32x128xf32>
    %342 = vector.broadcast %335 : f32 to vector<32x128xf32>
    %343 = arith.mulf %342, %341 : vector<32x128xf32>
    %344 = arith.index_cast %324 : i32 to index
    %345 = memref.load %arg3[%344] : memref<36xi32, #tpu.memory_space<smem>>
    %346 = arith.index_cast %345 : i32 to index
    %c0_139 = arith.constant 0 : index
    %c0_140 = arith.constant 0 : index
    %347 = vector.load %arg12[%346, %c0_139, %c0_140] : memref<16x32x128xbf16, #tpu.memory_space<vmem>>, vector<1x32x128xbf16>
    %348 = vector.shape_cast %347 : vector<1x32x128xbf16> to vector<32x128xbf16>
    %349 = arith.extf %348 : vector<32x128xbf16> to vector<32x128xf32>
    %350 = vector.broadcast %333 : f32 to vector<32x128xf32>
    %351 = arith.mulf %350, %349 : vector<32x128xf32>
    %352 = arith.addf %343, %351 : vector<32x128xf32>
    %353 = arith.truncf %352 : vector<32x128xf32> to vector<32x128xbf16>
    %c341 = arith.constant 341 : index
    %c0_141 = arith.constant 0 : index
    %354 = vector.load %arg13[%c341, %c0_141] : memref<416x128xbf16, #tpu.memory_space<vmem>>, vector<32x128xbf16>
    tpu.vector_store %arg13[%c341, %c0_141], %353 {strides = array<i32>} : memref<416x128xbf16, #tpu.memory_space<vmem>>, vector<32x128xbf16>,
    %c8_i32_142 = arith.constant 8 : i32
    %355 = arith.muli %arg1, %c8_i32_142 : i32
    %c11_i32 = arith.constant 11 : i32
    %356 = arith.addi %355, %c11_i32 : i32
    %c2_i32_143 = arith.constant 2 : i32
    %357 = arith.subi %356, %c2_i32_143 : i32
    %c0_i32_144 = arith.constant 0 : i32
    %358 = arith.cmpi sge, %357, %c0_i32_144 : i32
    %c31_i32_145 = arith.constant 31 : i32
    %359 = arith.cmpi sle, %357, %c31_i32_145 : i32
    %360 = arith.andi %358, %359 : i1
    %361 = arith.index_cast %356 : i32 to index
    %362 = memref.load %arg4[%361] : memref<36xi32, #tpu.memory_space<smem>>
    %363 = arith.sitofp %362 : i32 to f32
    %cst_146 = arith.constant 0.0322580636 : f32
    %364 = arith.mulf %363, %cst_146 : f32
    %cst_147 = arith.constant 0.000000e+00 : f32
    %365 = arith.select %360, %364, %cst_147 : f32
    %cst_148 = arith.constant 1.000000e+00 : f32
    %366 = arith.subf %cst_148, %364 : f32
    %cst_149 = arith.constant 0.000000e+00 : f32
    %367 = arith.select %360, %366, %cst_149 : f32
    %368 = arith.index_cast %356 : i32 to index
    %369 = memref.load %arg2[%368] : memref<36xi32, #tpu.memory_space<smem>>
    %370 = arith.index_cast %369 : i32 to index
    %c0_150 = arith.constant 0 : index
    %c0_151 = arith.constant 0 : index
    %371 = vector.load %arg12[%370, %c0_150, %c0_151] : memref<16x32x128xbf16, #tpu.memory_space<vmem>>, vector<1x32x128xbf16>
    %372 = vector.shape_cast %371 : vector<1x32x128xbf16> to vector<32x128xbf16>
    %373 = arith.extf %372 : vector<32x128xbf16> to vector<32x128xf32>
    %374 = vector.broadcast %367 : f32 to vector<32x128xf32>
    %375 = arith.mulf %374, %373 : vector<32x128xf32>
    %376 = arith.index_cast %356 : i32 to index
    %377 = memref.load %arg3[%376] : memref<36xi32, #tpu.memory_space<smem>>
    %378 = arith.index_cast %377 : i32 to index
    %c0_152 = arith.constant 0 : index
    %c0_153 = arith.constant 0 : index
    %379 = vector.load %arg12[%378, %c0_152, %c0_153] : memref<16x32x128xbf16, #tpu.memory_space<vmem>>, vector<1x32x128xbf16>
    %380 = vector.shape_cast %379 : vector<1x32x128xbf16> to vector<32x128xbf16>
    %381 = arith.extf %380 : vector<32x128xbf16> to vector<32x128xf32>
    %382 = vector.broadcast %365 : f32 to vector<32x128xf32>
    %383 = arith.mulf %382, %381 : vector<32x128xf32>
    %384 = arith.addf %375, %383 : vector<32x128xf32>
    %385 = arith.truncf %384 : vector<32x128xf32> to vector<32x128xbf16>
    %c375 = arith.constant 375 : index
    %c0_154 = arith.constant 0 : index
    %386 = vector.load %arg13[%c375, %c0_154] : memref<416x128xbf16, #tpu.memory_space<vmem>>, vector<32x128xbf16>
    tpu.vector_store %arg13[%c375, %c0_154], %385 {strides = array<i32>} : memref<416x128xbf16, #tpu.memory_space<vmem>>, vector<32x128xbf16>,
    %c0_155 = arith.constant 0 : index
    %c0_156 = arith.constant 0 : index
    %387 = vector.load %arg13[%c0_155, %c0_156] : memref<416x128xbf16, #tpu.memory_space<vmem>>, vector<340x128xbf16>
    %c0_157 = arith.constant 0 : index
    %c0_158 = arith.constant 0 : index
    %388 = vector.load %arg7[%c0_157, %c0_158] : memref<1152x128xbf16, #tpu.memory_space<vmem>>, vector<128x128xbf16>
    %cst_159 = arith.constant dense<0.000000e+00> : vector<340x128xf32>
    %389 = tpu.matmul %387, %388, %cst_159 {dimension_numbers = #tpu.dot_dimension_numbers<[1], [0], [0], [1], [0, 0, 1, 1], [], []>} : vector<340x128xbf16>, vector<128x128xbf16>, vector<340x128xf32> -> vector<340x128xf32>
    %c1_160 = arith.constant 1 : index
    %c0_161 = arith.constant 0 : index
    %390 = vector.load %arg13[%c1_160, %c0_161] : memref<416x128xbf16, #tpu.memory_space<vmem>>, vector<340x128xbf16>
    %c128 = arith.constant 128 : index
    %c0_162 = arith.constant 0 : index
    %391 = vector.load %arg7[%c128, %c0_162] : memref<1152x128xbf16, #tpu.memory_space<vmem>>, vector<128x128xbf16>
    %cst_163 = arith.constant dense<0.000000e+00> : vector<340x128xf32>
    %392 = tpu.matmul %390, %391, %cst_163 {dimension_numbers = #tpu.dot_dimension_numbers<[1], [0], [0], [1], [0, 0, 1, 1], [], []>} : vector<340x128xbf16>, vector<128x128xbf16>, vector<340x128xf32> -> vector<340x128xf32>
    %393 = arith.addf %389, %392 : vector<340x128xf32>
    %c2 = arith.constant 2 : index
    %c0_164 = arith.constant 0 : index
    %394 = vector.load %arg13[%c2, %c0_164] : memref<416x128xbf16, #tpu.memory_space<vmem>>, vector<340x128xbf16>
    %c256 = arith.constant 256 : index
    %c0_165 = arith.constant 0 : index
    %395 = vector.load %arg7[%c256, %c0_165] : memref<1152x128xbf16, #tpu.memory_space<vmem>>, vector<128x128xbf16>
    %cst_166 = arith.constant dense<0.000000e+00> : vector<340x128xf32>
    %396 = tpu.matmul %394, %395, %cst_166 {dimension_numbers = #tpu.dot_dimension_numbers<[1], [0], [0], [1], [0, 0, 1, 1], [], []>} : vector<340x128xbf16>, vector<128x128xbf16>, vector<340x128xf32> -> vector<340x128xf32>
    %397 = arith.addf %393, %396 : vector<340x128xf32>
    %c34 = arith.constant 34 : index
    %c0_167 = arith.constant 0 : index
    %398 = vector.load %arg13[%c34, %c0_167] : memref<416x128xbf16, #tpu.memory_space<vmem>>, vector<340x128xbf16>
    %c384 = arith.constant 384 : index
    %c0_168 = arith.constant 0 : index
    %399 = vector.load %arg7[%c384, %c0_168] : memref<1152x128xbf16, #tpu.memory_space<vmem>>, vector<128x128xbf16>
    %cst_169 = arith.constant dense<0.000000e+00> : vector<340x128xf32>
    %400 = tpu.matmul %398, %399, %cst_169 {dimension_numbers = #tpu.dot_dimension_numbers<[1], [0], [0], [1], [0, 0, 1, 1], [], []>} : vector<340x128xbf16>, vector<128x128xbf16>, vector<340x128xf32> -> vector<340x128xf32>
    %401 = arith.addf %397, %400 : vector<340x128xf32>
    %c35_170 = arith.constant 35 : index
    %c0_171 = arith.constant 0 : index
    %402 = vector.load %arg13[%c35_170, %c0_171] : memref<416x128xbf16, #tpu.memory_space<vmem>>, vector<340x128xbf16>
    %c512 = arith.constant 512 : index
    %c0_172 = arith.constant 0 : index
    %403 = vector.load %arg7[%c512, %c0_172] : memref<1152x128xbf16, #tpu.memory_space<vmem>>, vector<128x128xbf16>
    %cst_173 = arith.constant dense<0.000000e+00> : vector<340x128xf32>
    %404 = tpu.matmul %402, %403, %cst_173 {dimension_numbers = #tpu.dot_dimension_numbers<[1], [0], [0], [1], [0, 0, 1, 1], [], []>} : vector<340x128xbf16>, vector<128x128xbf16>, vector<340x128xf32> -> vector<340x128xf32>
    %405 = arith.addf %401, %404 : vector<340x128xf32>
    %c36 = arith.constant 36 : index
    %c0_174 = arith.constant 0 : index
    %406 = vector.load %arg13[%c36, %c0_174] : memref<416x128xbf16, #tpu.memory_space<vmem>>, vector<340x128xbf16>
    %c640 = arith.constant 640 : index
    %c0_175 = arith.constant 0 : index
    %407 = vector.load %arg7[%c640, %c0_175] : memref<1152x128xbf16, #tpu.memory_space<vmem>>, vector<128x128xbf16>
    %cst_176 = arith.constant dense<0.000000e+00> : vector<340x128xf32>
    %408 = tpu.matmul %406, %407, %cst_176 {dimension_numbers = #tpu.dot_dimension_numbers<[1], [0], [0], [1], [0, 0, 1, 1], [], []>} : vector<340x128xbf16>, vector<128x128xbf16>, vector<340x128xf32> -> vector<340x128xf32>
    %409 = arith.addf %405, %408 : vector<340x128xf32>
    %c68 = arith.constant 68 : index
    %c0_177 = arith.constant 0 : index
    %410 = vector.load %arg13[%c68, %c0_177] : memref<416x128xbf16, #tpu.memory_space<vmem>>, vector<340x128xbf16>
    %c768 = arith.constant 768 : index
    %c0_178 = arith.constant 0 : index
    %411 = vector.load %arg7[%c768, %c0_178] : memref<1152x128xbf16, #tpu.memory_space<vmem>>, vector<128x128xbf16>
    %cst_179 = arith.constant dense<0.000000e+00> : vector<340x128xf32>
    %412 = tpu.matmul %410, %411, %cst_179 {dimension_numbers = #tpu.dot_dimension_numbers<[1], [0], [0], [1], [0, 0, 1, 1], [], []>} : vector<340x128xbf16>, vector<128x128xbf16>, vector<340x128xf32> -> vector<340x128xf32>
    %413 = arith.addf %409, %412 : vector<340x128xf32>
    %c69_180 = arith.constant 69 : index
    %c0_181 = arith.constant 0 : index
    %414 = vector.load %arg13[%c69_180, %c0_181] : memref<416x128xbf16, #tpu.memory_space<vmem>>, vector<340x128xbf16>
    %c896 = arith.constant 896 : index
    %c0_182 = arith.constant 0 : index
    %415 = vector.load %arg7[%c896, %c0_182] : memref<1152x128xbf16, #tpu.memory_space<vmem>>, vector<128x128xbf16>
    %cst_183 = arith.constant dense<0.000000e+00> : vector<340x128xf32>
    %416 = tpu.matmul %414, %415, %cst_183 {dimension_numbers = #tpu.dot_dimension_numbers<[1], [0], [0], [1], [0, 0, 1, 1], [], []>} : vector<340x128xbf16>, vector<128x128xbf16>, vector<340x128xf32> -> vector<340x128xf32>
    %417 = arith.addf %413, %416 : vector<340x128xf32>
    %c70 = arith.constant 70 : index
    %c0_184 = arith.constant 0 : index
    %418 = vector.load %arg13[%c70, %c0_184] : memref<416x128xbf16, #tpu.memory_space<vmem>>, vector<340x128xbf16>
    %c1024 = arith.constant 1024 : index
    %c0_185 = arith.constant 0 : index
    %419 = vector.load %arg7[%c1024, %c0_185] : memref<1152x128xbf16, #tpu.memory_space<vmem>>, vector<128x128xbf16>
    %cst_186 = arith.constant dense<0.000000e+00> : vector<340x128xf32>
    %420 = tpu.matmul %418, %419, %cst_186 {dimension_numbers = #tpu.dot_dimension_numbers<[1], [0], [0], [1], [0, 0, 1, 1], [], []>} : vector<340x128xbf16>, vector<128x128xbf16>, vector<340x128xf32> -> vector<340x128xf32>
    %421 = arith.addf %417, %420 : vector<340x128xf32>
    %c0_187 = arith.constant 0 : index
    %c0_188 = arith.constant 0 : index
    %422 = vector.load %arg8[%c0_187, %c0_188] : memref<1x128xf32, #tpu.memory_space<vmem>>, vector<1x128xf32>
    %423 = vector.broadcast %422 : vector<1x128xf32> to vector<340x128xf32>
    %424 = arith.addf %421, %423 : vector<340x128xf32>
    %cst_189 = arith.constant 0.000000e+00 : f32
    %425 = vector.broadcast %cst_189 : f32 to vector<340x128xf32>
    %426 = arith.maximumf %424, %425 : vector<340x128xf32>
    %427 = vector.extract_strided_slice %426 {offsets = [0, 0], sizes = [32, 128], strides = [1, 1]} : vector<340x128xf32> to vector<32x128xf32>
    %428 = arith.truncf %427 : vector<32x128xf32> to vector<32x128xbf16>
    %c1_190 = arith.constant 1 : index
    %c0_191 = arith.constant 0 : index
    %429 = vector.load %arg14[%c1_190, %c0_191] : memref<348x128xbf16, #tpu.memory_space<vmem>>, vector<32x128xbf16>
    tpu.vector_store %arg14[%c1_190, %c0_191], %428 {strides = array<i32>} : memref<348x128xbf16, #tpu.memory_space<vmem>>, vector<32x128xbf16>,
    %430 = vector.extract_strided_slice %426 {offsets = [34, 0], sizes = [32, 128], strides = [1, 1]} : vector<340x128xf32> to vector<32x128xf32>
    %431 = arith.truncf %430 : vector<32x128xf32> to vector<32x128xbf16>
    %c35_192 = arith.constant 35 : index
    %c0_193 = arith.constant 0 : index
    %432 = vector.load %arg14[%c35_192, %c0_193] : memref<348x128xbf16, #tpu.memory_space<vmem>>, vector<32x128xbf16>
    tpu.vector_store %arg14[%c35_192, %c0_193], %431 {strides = array<i32>} : memref<348x128xbf16, #tpu.memory_space<vmem>>, vector<32x128xbf16>,
    %433 = vector.extract_strided_slice %426 {offsets = [68, 0], sizes = [32, 128], strides = [1, 1]} : vector<340x128xf32> to vector<32x128xf32>
    %434 = arith.truncf %433 : vector<32x128xf32> to vector<32x128xbf16>
    %c69_194 = arith.constant 69 : index
    %c0_195 = arith.constant 0 : index
    %435 = vector.load %arg14[%c69_194, %c0_195] : memref<348x128xbf16, #tpu.memory_space<vmem>>, vector<32x128xbf16>
    tpu.vector_store %arg14[%c69_194, %c0_195], %434 {strides = array<i32>} : memref<348x128xbf16, #tpu.memory_space<vmem>>, vector<32x128xbf16>,
    %436 = vector.extract_strided_slice %426 {offsets = [102, 0], sizes = [32, 128], strides = [1, 1]} : vector<340x128xf32> to vector<32x128xf32>
    %437 = arith.truncf %436 : vector<32x128xf32> to vector<32x128xbf16>
    %c103_196 = arith.constant 103 : index
    %c0_197 = arith.constant 0 : index
    %438 = vector.load %arg14[%c103_196, %c0_197] : memref<348x128xbf16, #tpu.memory_space<vmem>>, vector<32x128xbf16>
    tpu.vector_store %arg14[%c103_196, %c0_197], %437 {strides = array<i32>} : memref<348x128xbf16, #tpu.memory_space<vmem>>, vector<32x128xbf16>,
    %439 = vector.extract_strided_slice %426 {offsets = [136, 0], sizes = [32, 128], strides = [1, 1]} : vector<340x128xf32> to vector<32x128xf32>
    %440 = arith.truncf %439 : vector<32x128xf32> to vector<32x128xbf16>
    %c137_198 = arith.constant 137 : index
    %c0_199 = arith.constant 0 : index
    %441 = vector.load %arg14[%c137_198, %c0_199] : memref<348x128xbf16, #tpu.memory_space<vmem>>, vector<32x128xbf16>
    tpu.vector_store %arg14[%c137_198, %c0_199], %440 {strides = array<i32>} : memref<348x128xbf16, #tpu.memory_space<vmem>>, vector<32x128xbf16>,
    %442 = vector.extract_strided_slice %426 {offsets = [170, 0], sizes = [32, 128], strides = [1, 1]} : vector<340x128xf32> to vector<32x128xf32>
    %443 = arith.truncf %442 : vector<32x128xf32> to vector<32x128xbf16>
    %c171_200 = arith.constant 171 : index
    %c0_201 = arith.constant 0 : index
    %444 = vector.load %arg14[%c171_200, %c0_201] : memref<348x128xbf16, #tpu.memory_space<vmem>>, vector<32x128xbf16>
    tpu.vector_store %arg14[%c171_200, %c0_201], %443 {strides = array<i32>} : memref<348x128xbf16, #tpu.memory_space<vmem>>, vector<32x128xbf16>,
    %445 = vector.extract_strided_slice %426 {offsets = [204, 0], sizes = [32, 128], strides = [1, 1]} : vector<340x128xf32> to vector<32x128xf32>
    %446 = arith.truncf %445 : vector<32x128xf32> to vector<32x128xbf16>
    %c205_202 = arith.constant 205 : index
    %c0_203 = arith.constant 0 : index
    %447 = vector.load %arg14[%c205_202, %c0_203] : memref<348x128xbf16, #tpu.memory_space<vmem>>, vector<32x128xbf16>
    tpu.vector_store %arg14[%c205_202, %c0_203], %446 {strides = array<i32>} : memref<348x128xbf16, #tpu.memory_space<vmem>>, vector<32x128xbf16>,
    %448 = vector.extract_strided_slice %426 {offsets = [238, 0], sizes = [32, 128], strides = [1, 1]} : vector<340x128xf32> to vector<32x128xf32>
    %449 = arith.truncf %448 : vector<32x128xf32> to vector<32x128xbf16>
    %c239_204 = arith.constant 239 : index
    %c0_205 = arith.constant 0 : index
    %450 = vector.load %arg14[%c239_204, %c0_205] : memref<348x128xbf16, #tpu.memory_space<vmem>>, vector<32x128xbf16>
    tpu.vector_store %arg14[%c239_204, %c0_205], %449 {strides = array<i32>} : memref<348x128xbf16, #tpu.memory_space<vmem>>, vector<32x128xbf16>,
    %451 = vector.extract_strided_slice %426 {offsets = [272, 0], sizes = [32, 128], strides = [1, 1]} : vector<340x128xf32> to vector<32x128xf32>
    %452 = arith.truncf %451 : vector<32x128xf32> to vector<32x128xbf16>
    %c273_206 = arith.constant 273 : index
    %c0_207 = arith.constant 0 : index
    %453 = vector.load %arg14[%c273_206, %c0_207] : memref<348x128xbf16, #tpu.memory_space<vmem>>, vector<32x128xbf16>
    tpu.vector_store %arg14[%c273_206, %c0_207], %452 {strides = array<i32>} : memref<348x128xbf16, #tpu.memory_space<vmem>>, vector<32x128xbf16>,
    %454 = vector.extract_strided_slice %426 {offsets = [306, 0], sizes = [32, 128], strides = [1, 1]} : vector<340x128xf32> to vector<32x128xf32>
    %455 = arith.truncf %454 : vector<32x128xf32> to vector<32x128xbf16>
    %c307_208 = arith.constant 307 : index
    %c0_209 = arith.constant 0 : index
    %456 = vector.load %arg14[%c307_208, %c0_209] : memref<348x128xbf16, #tpu.memory_space<vmem>>, vector<32x128xbf16>
    tpu.vector_store %arg14[%c307_208, %c0_209], %455 {strides = array<i32>} : memref<348x128xbf16, #tpu.memory_space<vmem>>, vector<32x128xbf16>,
    %c0_i32_210 = arith.constant 0 : i32
    %457 = arith.cmpi eq, %arg1, %c0_i32_210 : i32
    %458 = arith.extui %457 : i1 to i32
    %c0_i32_211 = arith.constant 0 : i32
    %459 = arith.cmpi ne, %458, %c0_i32_211 : i32
    scf.if %459 {
      %cst_289 = arith.constant 0.000000e+00 : bf16
      %543 = vector.broadcast %cst_289 : bf16 to vector<34x128xbf16>
      %c0_290 = arith.constant 0 : index
      %c0_291 = arith.constant 0 : index
      %544 = vector.load %arg14[%c0_290, %c0_291] : memref<348x128xbf16, #tpu.memory_space<vmem>>, vector<34x128xbf16>
      tpu.vector_store %arg14[%c0_290, %c0_291], %543 {strides = array<i32>} : memref<348x128xbf16, #tpu.memory_space<vmem>>, vector<34x128xbf16>,
    } else {
    }
    %c3_i32_212 = arith.constant 3 : i32
    %460 = arith.cmpi eq, %arg1, %c3_i32_212 : i32
    %461 = arith.extui %460 : i1 to i32
    %c0_i32_213 = arith.constant 0 : i32
    %462 = arith.cmpi ne, %461, %c0_i32_213 : i32
    scf.if %462 {
      %cst_289 = arith.constant 0.000000e+00 : bf16
      %543 = vector.broadcast %cst_289 : bf16 to vector<34x128xbf16>
      %c306 = arith.constant 306 : index
      %c0_290 = arith.constant 0 : index
      %544 = vector.load %arg14[%c306, %c0_290] : memref<348x128xbf16, #tpu.memory_space<vmem>>, vector<34x128xbf16>
      tpu.vector_store %arg14[%c306, %c0_290], %543 {strides = array<i32>} : memref<348x128xbf16, #tpu.memory_space<vmem>>, vector<34x128xbf16>,
    } else {
    }
    %c0_214 = arith.constant 0 : index
    %c0_215 = arith.constant 0 : index
    %463 = vector.load %arg14[%c0_214, %c0_215] : memref<348x128xbf16, #tpu.memory_space<vmem>>, vector<272x128xbf16>
    %c0_216 = arith.constant 0 : index
    %c0_217 = arith.constant 0 : index
    %464 = vector.load %arg9[%c0_216, %c0_217] : memref<1152x128xbf16, #tpu.memory_space<vmem>>, vector<128x128xbf16>
    %cst_218 = arith.constant dense<0.000000e+00> : vector<272x128xf32>
    %465 = tpu.matmul %463, %464, %cst_218 {dimension_numbers = #tpu.dot_dimension_numbers<[1], [0], [0], [1], [0, 0, 1, 1], [], []>} : vector<272x128xbf16>, vector<128x128xbf16>, vector<272x128xf32> -> vector<272x128xf32>
    %c1_219 = arith.constant 1 : index
    %c0_220 = arith.constant 0 : index
    %466 = vector.load %arg14[%c1_219, %c0_220] : memref<348x128xbf16, #tpu.memory_space<vmem>>, vector<272x128xbf16>
    %c128_221 = arith.constant 128 : index
    %c0_222 = arith.constant 0 : index
    %467 = vector.load %arg9[%c128_221, %c0_222] : memref<1152x128xbf16, #tpu.memory_space<vmem>>, vector<128x128xbf16>
    %cst_223 = arith.constant dense<0.000000e+00> : vector<272x128xf32>
    %468 = tpu.matmul %466, %467, %cst_223 {dimension_numbers = #tpu.dot_dimension_numbers<[1], [0], [0], [1], [0, 0, 1, 1], [], []>} : vector<272x128xbf16>, vector<128x128xbf16>, vector<272x128xf32> -> vector<272x128xf32>
    %469 = arith.addf %465, %468 : vector<272x128xf32>
    %c2_224 = arith.constant 2 : index
    %c0_225 = arith.constant 0 : index
    %470 = vector.load %arg14[%c2_224, %c0_225] : memref<348x128xbf16, #tpu.memory_space<vmem>>, vector<272x128xbf16>
    %c256_226 = arith.constant 256 : index
    %c0_227 = arith.constant 0 : index
    %471 = vector.load %arg9[%c256_226, %c0_227] : memref<1152x128xbf16, #tpu.memory_space<vmem>>, vector<128x128xbf16>
    %cst_228 = arith.constant dense<0.000000e+00> : vector<272x128xf32>
    %472 = tpu.matmul %470, %471, %cst_228 {dimension_numbers = #tpu.dot_dimension_numbers<[1], [0], [0], [1], [0, 0, 1, 1], [], []>} : vector<272x128xbf16>, vector<128x128xbf16>, vector<272x128xf32> -> vector<272x128xf32>
    %473 = arith.addf %469, %472 : vector<272x128xf32>
    %c34_229 = arith.constant 34 : index
    %c0_230 = arith.constant 0 : index
    %474 = vector.load %arg14[%c34_229, %c0_230] : memref<348x128xbf16, #tpu.memory_space<vmem>>, vector<272x128xbf16>
    %c384_231 = arith.constant 384 : index
    %c0_232 = arith.constant 0 : index
    %475 = vector.load %arg9[%c384_231, %c0_232] : memref<1152x128xbf16, #tpu.memory_space<vmem>>, vector<128x128xbf16>
    %cst_233 = arith.constant dense<0.000000e+00> : vector<272x128xf32>
    %476 = tpu.matmul %474, %475, %cst_233 {dimension_numbers = #tpu.dot_dimension_numbers<[1], [0], [0], [1], [0, 0, 1, 1], [], []>} : vector<272x128xbf16>, vector<128x128xbf16>, vector<272x128xf32> -> vector<272x128xf32>
    %477 = arith.addf %473, %476 : vector<272x128xf32>
    %c35_234 = arith.constant 35 : index
    %c0_235 = arith.constant 0 : index
    %478 = vector.load %arg14[%c35_234, %c0_235] : memref<348x128xbf16, #tpu.memory_space<vmem>>, vector<272x128xbf16>
    %c512_236 = arith.constant 512 : index
    %c0_237 = arith.constant 0 : index
    %479 = vector.load %arg9[%c512_236, %c0_237] : memref<1152x128xbf16, #tpu.memory_space<vmem>>, vector<128x128xbf16>
    %cst_238 = arith.constant dense<0.000000e+00> : vector<272x128xf32>
    %480 = tpu.matmul %478, %479, %cst_238 {dimension_numbers = #tpu.dot_dimension_numbers<[1], [0], [0], [1], [0, 0, 1, 1], [], []>} : vector<272x128xbf16>, vector<128x128xbf16>, vector<272x128xf32> -> vector<272x128xf32>
    %481 = arith.addf %477, %480 : vector<272x128xf32>
    %c36_239 = arith.constant 36 : index
    %c0_240 = arith.constant 0 : index
    %482 = vector.load %arg14[%c36_239, %c0_240] : memref<348x128xbf16, #tpu.memory_space<vmem>>, vector<272x128xbf16>
    %c640_241 = arith.constant 640 : index
    %c0_242 = arith.constant 0 : index
    %483 = vector.load %arg9[%c640_241, %c0_242] : memref<1152x128xbf16, #tpu.memory_space<vmem>>, vector<128x128xbf16>
    %cst_243 = arith.constant dense<0.000000e+00> : vector<272x128xf32>
    %484 = tpu.matmul %482, %483, %cst_243 {dimension_numbers = #tpu.dot_dimension_numbers<[1], [0], [0], [1], [0, 0, 1, 1], [], []>} : vector<272x128xbf16>, vector<128x128xbf16>, vector<272x128xf32> -> vector<272x128xf32>
    %485 = arith.addf %481, %484 : vector<272x128xf32>
    %c68_244 = arith.constant 68 : index
    %c0_245 = arith.constant 0 : index
    %486 = vector.load %arg14[%c68_244, %c0_245] : memref<348x128xbf16, #tpu.memory_space<vmem>>, vector<272x128xbf16>
    %c768_246 = arith.constant 768 : index
    %c0_247 = arith.constant 0 : index
    %487 = vector.load %arg9[%c768_246, %c0_247] : memref<1152x128xbf16, #tpu.memory_space<vmem>>, vector<128x128xbf16>
    %cst_248 = arith.constant dense<0.000000e+00> : vector<272x128xf32>
    %488 = tpu.matmul %486, %487, %cst_248 {dimension_numbers = #tpu.dot_dimension_numbers<[1], [0], [0], [1], [0, 0, 1, 1], [], []>} : vector<272x128xbf16>, vector<128x128xbf16>, vector<272x128xf32> -> vector<272x128xf32>
    %489 = arith.addf %485, %488 : vector<272x128xf32>
    %c69_249 = arith.constant 69 : index
    %c0_250 = arith.constant 0 : index
    %490 = vector.load %arg14[%c69_249, %c0_250] : memref<348x128xbf16, #tpu.memory_space<vmem>>, vector<272x128xbf16>
    %c896_251 = arith.constant 896 : index
    %c0_252 = arith.constant 0 : index
    %491 = vector.load %arg9[%c896_251, %c0_252] : memref<1152x128xbf16, #tpu.memory_space<vmem>>, vector<128x128xbf16>
    %cst_253 = arith.constant dense<0.000000e+00> : vector<272x128xf32>
    %492 = tpu.matmul %490, %491, %cst_253 {dimension_numbers = #tpu.dot_dimension_numbers<[1], [0], [0], [1], [0, 0, 1, 1], [], []>} : vector<272x128xbf16>, vector<128x128xbf16>, vector<272x128xf32> -> vector<272x128xf32>
    %493 = arith.addf %489, %492 : vector<272x128xf32>
    %c70_254 = arith.constant 70 : index
    %c0_255 = arith.constant 0 : index
    %494 = vector.load %arg14[%c70_254, %c0_255] : memref<348x128xbf16, #tpu.memory_space<vmem>>, vector<272x128xbf16>
    %c1024_256 = arith.constant 1024 : index
    %c0_257 = arith.constant 0 : index
    %495 = vector.load %arg9[%c1024_256, %c0_257] : memref<1152x128xbf16, #tpu.memory_space<vmem>>, vector<128x128xbf16>
    %cst_258 = arith.constant dense<0.000000e+00> : vector<272x128xf32>
    %496 = tpu.matmul %494, %495, %cst_258 {dimension_numbers = #tpu.dot_dimension_numbers<[1], [0], [0], [1], [0, 0, 1, 1], [], []>} : vector<272x128xbf16>, vector<128x128xbf16>, vector<272x128xf32> -> vector<272x128xf32>
    %497 = arith.addf %493, %496 : vector<272x128xf32>
    %c0_259 = arith.constant 0 : index
    %c0_260 = arith.constant 0 : index
    %498 = vector.load %arg10[%c0_259, %c0_260] : memref<1x128xf32, #tpu.memory_space<vmem>>, vector<1x128xf32>
    %499 = vector.broadcast %498 : vector<1x128xf32> to vector<272x128xf32>
    %500 = arith.addf %497, %499 : vector<272x128xf32>
    %cst_261 = arith.constant 0.000000e+00 : f32
    %501 = vector.broadcast %cst_261 : f32 to vector<272x128xf32>
    %502 = arith.maximumf %500, %501 : vector<272x128xf32>
    %503 = vector.extract_strided_slice %502 {offsets = [0, 0], sizes = [32, 128], strides = [1, 1]} : vector<272x128xf32> to vector<32x128xf32>
    %504 = vector.shape_cast %503 : vector<32x128xf32> to vector<1x32x128xf32>
    %c0_262 = arith.constant 0 : index
    %c0_263 = arith.constant 0 : index
    %c0_264 = arith.constant 0 : index
    %c0_265 = arith.constant 0 : index
    %505 = vector.load %arg11[%c0_262, %c0_263, %c0_264, %c0_265] : memref<1x8x32x128xf32, #tpu.memory_space<vmem>>, vector<1x1x32x128xf32>
    %506 = vector.shape_cast %505 : vector<1x1x32x128xf32> to vector<1x32x128xf32>
    %507 = vector.shape_cast %504 : vector<1x32x128xf32> to vector<1x1x32x128xf32>
    tpu.vector_store %arg11[%c0_262, %c0_263, %c0_264, %c0_265], %507 {strides = array<i32>} : memref<1x8x32x128xf32, #tpu.memory_space<vmem>>, vector<1x1x32x128xf32>,
    %508 = vector.extract_strided_slice %502 {offsets = [34, 0], sizes = [32, 128], strides = [1, 1]} : vector<272x128xf32> to vector<32x128xf32>
    %509 = vector.shape_cast %508 : vector<32x128xf32> to vector<1x32x128xf32>
    %c0_266 = arith.constant 0 : index
    %c1_267 = arith.constant 1 : index
    %c0_268 = arith.constant 0 : index
    %c0_269 = arith.constant 0 : index
    %510 = vector.load %arg11[%c0_266, %c1_267, %c0_268, %c0_269] : memref<1x8x32x128xf32, #tpu.memory_space<vmem>>, vector<1x1x32x128xf32>
    %511 = vector.shape_cast %510 : vector<1x1x32x128xf32> to vector<1x32x128xf32>
    %512 = vector.shape_cast %509 : vector<1x32x128xf32> to vector<1x1x32x128xf32>
    tpu.vector_store %arg11[%c0_266, %c1_267, %c0_268, %c0_269], %512 {strides = array<i32>} : memref<1x8x32x128xf32, #tpu.memory_space<vmem>>, vector<1x1x32x128xf32>,
    %513 = vector.extract_strided_slice %502 {offsets = [68, 0], sizes = [32, 128], strides = [1, 1]} : vector<272x128xf32> to vector<32x128xf32>
    %514 = vector.shape_cast %513 : vector<32x128xf32> to vector<1x32x128xf32>
    %c0_270 = arith.constant 0 : index
    %c2_271 = arith.constant 2 : index
    %c0_272 = arith.constant 0 : index
    %c0_273 = arith.constant 0 : index
    %515 = vector.load %arg11[%c0_270, %c2_271, %c0_272, %c0_273] : memref<1x8x32x128xf32, #tpu.memory_space<vmem>>, vector<1x1x32x128xf32>
    %516 = vector.shape_cast %515 : vector<1x1x32x128xf32> to vector<1x32x128xf32>
    %517 = vector.shape_cast %514 : vector<1x32x128xf32> to vector<1x1x32x128xf32>
    tpu.vector_store %arg11[%c0_270, %c2_271, %c0_272, %c0_273], %517 {strides = array<i32>} : memref<1x8x32x128xf32, #tpu.memory_space<vmem>>, vector<1x1x32x128xf32>,
    %518 = vector.extract_strided_slice %502 {offsets = [102, 0], sizes = [32, 128], strides = [1, 1]} : vector<272x128xf32> to vector<32x128xf32>
    %519 = vector.shape_cast %518 : vector<32x128xf32> to vector<1x32x128xf32>
    %c0_274 = arith.constant 0 : index
    %c3 = arith.constant 3 : index
    %c0_275 = arith.constant 0 : index
    %c0_276 = arith.constant 0 : index
    %520 = vector.load %arg11[%c0_274, %c3, %c0_275, %c0_276] : memref<1x8x32x128xf32, #tpu.memory_space<vmem>>, vector<1x1x32x128xf32>
    %521 = vector.shape_cast %520 : vector<1x1x32x128xf32> to vector<1x32x128xf32>
    %522 = vector.shape_cast %519 : vector<1x32x128xf32> to vector<1x1x32x128xf32>
    tpu.vector_store %arg11[%c0_274, %c3, %c0_275, %c0_276], %522 {strides = array<i32>} : memref<1x8x32x128xf32, #tpu.memory_space<vmem>>, vector<1x1x32x128xf32>,
    %523 = vector.extract_strided_slice %502 {offsets = [136, 0], sizes = [32, 128], strides = [1, 1]} : vector<272x128xf32> to vector<32x128xf32>
    %524 = vector.shape_cast %523 : vector<32x128xf32> to vector<1x32x128xf32>
    %c0_277 = arith.constant 0 : index
    %c4 = arith.constant 4 : index
    %c0_278 = arith.constant 0 : index
    %c0_279 = arith.constant 0 : index
    %525 = vector.load %arg11[%c0_277, %c4, %c0_278, %c0_279] : memref<1x8x32x128xf32, #tpu.memory_space<vmem>>, vector<1x1x32x128xf32>
    %526 = vector.shape_cast %525 : vector<1x1x32x128xf32> to vector<1x32x128xf32>
    %527 = vector.shape_cast %524 : vector<1x32x128xf32> to vector<1x1x32x128xf32>
    tpu.vector_store %arg11[%c0_277, %c4, %c0_278, %c0_279], %527 {strides = array<i32>} : memref<1x8x32x128xf32, #tpu.memory_space<vmem>>, vector<1x1x32x128xf32>,
    %528 = vector.extract_strided_slice %502 {offsets = [170, 0], sizes = [32, 128], strides = [1, 1]} : vector<272x128xf32> to vector<32x128xf32>
    %529 = vector.shape_cast %528 : vector<32x128xf32> to vector<1x32x128xf32>
    %c0_280 = arith.constant 0 : index
    %c5 = arith.constant 5 : index
    %c0_281 = arith.constant 0 : index
    %c0_282 = arith.constant 0 : index
    %530 = vector.load %arg11[%c0_280, %c5, %c0_281, %c0_282] : memref<1x8x32x128xf32, #tpu.memory_space<vmem>>, vector<1x1x32x128xf32>
    %531 = vector.shape_cast %530 : vector<1x1x32x128xf32> to vector<1x32x128xf32>
    %532 = vector.shape_cast %529 : vector<1x32x128xf32> to vector<1x1x32x128xf32>
    tpu.vector_store %arg11[%c0_280, %c5, %c0_281, %c0_282], %532 {strides = array<i32>} : memref<1x8x32x128xf32, #tpu.memory_space<vmem>>, vector<1x1x32x128xf32>,
    %533 = vector.extract_strided_slice %502 {offsets = [204, 0], sizes = [32, 128], strides = [1, 1]} : vector<272x128xf32> to vector<32x128xf32>
    %534 = vector.shape_cast %533 : vector<32x128xf32> to vector<1x32x128xf32>
    %c0_283 = arith.constant 0 : index
    %c6 = arith.constant 6 : index
    %c0_284 = arith.constant 0 : index
    %c0_285 = arith.constant 0 : index
    %535 = vector.load %arg11[%c0_283, %c6, %c0_284, %c0_285] : memref<1x8x32x128xf32, #tpu.memory_space<vmem>>, vector<1x1x32x128xf32>
    %536 = vector.shape_cast %535 : vector<1x1x32x128xf32> to vector<1x32x128xf32>
    %537 = vector.shape_cast %534 : vector<1x32x128xf32> to vector<1x1x32x128xf32>
    tpu.vector_store %arg11[%c0_283, %c6, %c0_284, %c0_285], %537 {strides = array<i32>} : memref<1x8x32x128xf32, #tpu.memory_space<vmem>>, vector<1x1x32x128xf32>,
    %538 = vector.extract_strided_slice %502 {offsets = [238, 0], sizes = [32, 128], strides = [1, 1]} : vector<272x128xf32> to vector<32x128xf32>
    %539 = vector.shape_cast %538 : vector<32x128xf32> to vector<1x32x128xf32>
    %c0_286 = arith.constant 0 : index
    %c7 = arith.constant 7 : index
    %c0_287 = arith.constant 0 : index
    %c0_288 = arith.constant 0 : index
    %540 = vector.load %arg11[%c0_286, %c7, %c0_287, %c0_288] : memref<1x8x32x128xf32, #tpu.memory_space<vmem>>, vector<1x1x32x128xf32>
    %541 = vector.shape_cast %540 : vector<1x1x32x128xf32> to vector<1x32x128xf32>
    %542 = vector.shape_cast %539 : vector<1x32x128xf32> to vector<1x1x32x128xf32>
    tpu.vector_store %arg11[%c0_286, %c7, %c0_287, %c0_288], %542 {strides = array<i32>} : memref<1x8x32x128xf32, #tpu.memory_space<vmem>>, vector<1x1x32x128xf32>,
    return
  }
  func.func @transform_0(%arg0: i32, %arg1: i32, %arg2: memref<36xi32, #tpu.memory_space<smem>>, %arg3: memref<36xi32, #tpu.memory_space<smem>>, %arg4: memref<36xi32, #tpu.memory_space<smem>>) -> (i32, i32, i32, i32) {
    %c0_i32 = arith.constant 0 : i32
    %c0_i32_0 = arith.constant 0 : i32
    %c0_i32_1 = arith.constant 0 : i32
    %c0_i32_2 = arith.constant 0 : i32
    return %arg0, %c0_i32, %c0_i32_0, %c0_i32_1 : i32, i32, i32, i32
  }
  func.func @transform_1(%arg0: i32, %arg1: i32, %arg2: memref<36xi32, #tpu.memory_space<smem>>, %arg3: memref<36xi32, #tpu.memory_space<smem>>, %arg4: memref<36xi32, #tpu.memory_space<smem>>) -> (i32, i32) {
    %c0_i32 = arith.constant 0 : i32
    %c0_i32_0 = arith.constant 0 : i32
    %c0_i32_1 = arith.constant 0 : i32
    return %c0_i32, %c0_i32_0 : i32, i32
  }
  func.func @transform_2(%arg0: i32, %arg1: i32, %arg2: memref<36xi32, #tpu.memory_space<smem>>, %arg3: memref<36xi32, #tpu.memory_space<smem>>, %arg4: memref<36xi32, #tpu.memory_space<smem>>) -> (i32, i32) {
    %c0_i32 = arith.constant 0 : i32
    %c0_i32_0 = arith.constant 0 : i32
    %c0_i32_1 = arith.constant 0 : i32
    return %c0_i32, %c0_i32_0 : i32, i32
  }
  func.func @transform_3(%arg0: i32, %arg1: i32, %arg2: memref<36xi32, #tpu.memory_space<smem>>, %arg3: memref<36xi32, #tpu.memory_space<smem>>, %arg4: memref<36xi32, #tpu.memory_space<smem>>) -> (i32, i32) {
    %c0_i32 = arith.constant 0 : i32
    %c0_i32_0 = arith.constant 0 : i32
    %c0_i32_1 = arith.constant 0 : i32
    return %c0_i32, %c0_i32_0 : i32, i32
  }
  func.func @transform_4(%arg0: i32, %arg1: i32, %arg2: memref<36xi32, #tpu.memory_space<smem>>, %arg3: memref<36xi32, #tpu.memory_space<smem>>, %arg4: memref<36xi32, #tpu.memory_space<smem>>) -> (i32, i32) {
    %c0_i32 = arith.constant 0 : i32
    %c0_i32_0 = arith.constant 0 : i32
    %c0_i32_1 = arith.constant 0 : i32
    return %c0_i32, %c0_i32_0 : i32, i32
  }
  func.func @transform_5(%arg0: i32, %arg1: i32, %arg2: memref<36xi32, #tpu.memory_space<smem>>, %arg3: memref<36xi32, #tpu.memory_space<smem>>, %arg4: memref<36xi32, #tpu.memory_space<smem>>) -> (i32, i32) {
    %c0_i32 = arith.constant 0 : i32
    %c0_i32_0 = arith.constant 0 : i32
    %c0_i32_1 = arith.constant 0 : i32
    return %c0_i32, %c0_i32_0 : i32, i32
  }
  func.func @transform_6(%arg0: i32, %arg1: i32, %arg2: memref<36xi32, #tpu.memory_space<smem>>, %arg3: memref<36xi32, #tpu.memory_space<smem>>, %arg4: memref<36xi32, #tpu.memory_space<smem>>) -> (i32, i32, i32, i32) {
    %c0_i32 = arith.constant 0 : i32
    %c0_i32_0 = arith.constant 0 : i32
    %c0_i32_1 = arith.constant 0 : i32
    return %arg0, %arg1, %c0_i32, %c0_i32_0 : i32, i32, i32, i32
  }
}

</mosaic_0001>

<llo_original>
// kernel: tpu_custom_call.1
$region0: #{tpu_custom_call.1}
  #allocation0 [shape = 'u32[]', space=smem, size = 0x4, offset = 0x4, fixed_abs, tag = 'smem constant byte address 0x4 - core index']
  #allocation1 [shape = 'u32[72,128]{1,0:T(1,128)}', space=vmem, size = 0x9000, scoped, tag = 'internal scratch']
  #allocation2 [shape = 'bf16[16,32,128]{2,1,0:T(8,128)(2,1)}', space=vmem, size = 0x20000, scoped, tag = 'scratch operand']
  #allocation3 [shape = 'bf16[416,128]{1,0:T(8,128)(2,1)}', space=vmem, size = 0x1a000, scoped, tag = 'scratch operand']
  #allocation4 [shape = 'bf16[348,128]{1,0:T(8,128)(2,1)}', space=vmem, size = 0x16000, scoped, tag = 'scratch operand']
  #allocation5 [shape = 's32[1]{0}', space=sflag, size = 0x4, scoped, tag = 'scoped memory for tpu_custom_call.1']
  #allocation6 [shape = 'u8[512]{0}', space=smem, size = 0x200, scoped, tag = 'prefetched SMEM operand 0']
  #allocation7 [shape = 'u8[512]{0}', space=smem, size = 0x200, scoped, tag = 'prefetched SMEM operand 1']
  #allocation8 [shape = 'u8[512]{0}', space=smem, size = 0x200, scoped, tag = 'prefetched SMEM operand 2']
  %s0 = inlined_call_operand.vmem [shape: s32[36], index: 0, kind: input, shape index: {}]
  %s1 = inlined_call_operand.vmem [shape: s32[36], index: 1, kind: input, shape index: {}]
  %s2 = inlined_call_operand.vmem [shape: s32[36], index: 2, kind: input, shape index: {}]
  %s3 = inlined_call_operand.hbm [shape: bf16[2,16,16,128], index: 3, kind: input, shape index: {}]
  %s4 = inlined_call_operand.vmem [shape: bf16[32,16], index: 4, kind: input, shape index: {}]
  %s5 = inlined_call_operand.hbm [shape: bf16[1152,128], index: 5, kind: input, shape index: {}]
  %s6 = inlined_call_operand.vmem [shape: f32[1,128], index: 6, kind: input, shape index: {}]
  %s7 = inlined_call_operand.hbm [shape: bf16[1152,128], index: 7, kind: input, shape index: {}]
  %s8 = inlined_call_operand.vmem [shape: f32[1,128], index: 8, kind: input, shape index: {}]
  %s9 = inlined_call_operand.hbm [shape: f32[2,32,32,128], index: 9, kind: output, shape index: {}]
  %s10 = sld [smem:[#allocation0]]
  $region88: #{tpu_custom_call.1} parent=0
    _
  %s12 = ssub.s32 1, %s10
  %s13 = scalar_select 0, %s12, %s10
  %s15 = sshll.u32 %s0, 4
  %s16 = int_to_ptr.vmem [resolvable:$true] %s15
  %18 = dma.vmem_to_smem %s16, 16, [#allocation6], [#allocation5]
  %s20 = sshll.u32 %s1, 4
  %s21 = int_to_ptr.vmem [resolvable:$true] %s20
  %23 = dma.vmem_to_smem %s21, 16, [#allocation7], [#allocation5]
  %s25 = sshll.u32 %s2, 4
  %s26 = int_to_ptr.vmem [resolvable:$true] %s25
  %28 = dma.vmem_to_smem %s26, 16, [#allocation8], [#allocation5]
  %30 = dma.done [#allocation5], 48
  %31 = sfence
  $region1: #{tpu_custom_call.1} parent=0
    #allocation9 [shape = 'u8[131072]{0}', space=vmem, size = 0x20000, scoped, tag = 'input window, operand 3']
    #allocation10 [shape = 's32[2]{0}', space=sflag, size = 0x8, scoped, tag = 'scoped memory for tpu_custom_call.1']
    #allocation11 [shape = 's32[2]{0}', space=sflag, size = 0x8, scoped, tag = 'scoped memory for tpu_custom_call.1']
    #allocation12 [shape = 'u8[294912]{0}', space=vmem, size = 0x48000, scoped, tag = 'input window, operand 5, single buffered']
    #allocation13 [shape = 's32[1]{0}', space=sflag, size = 0x4, scoped, tag = 'scoped memory for tpu_custom_call.1']
    #allocation14 [shape = 'u8[294912]{0}', space=vmem, size = 0x48000, scoped, tag = 'input window, operand 7, single buffered']
    #allocation15 [shape = 'u8[262144]{0}', space=vmem, size = 0x40000, scoped, tag = 'output window, operand 0']
    %32 = vsyncpa [#allocation10], 0
    %s33 = scalar_lea.sflag [#allocation10], 1
    %34 = vsyncpa %s33, 0
    %35 = vsyncpa [#allocation13], 0
    %36 = vsyncpa [#allocation11], 0
    %s37 = scalar_lea.sflag [#allocation11], 1
    %38 = vsyncpa %s37, 0
    loop: start=0, step=1, limit=10
    $region2: #{tpu_custom_call.1} parent=1 // loop_pre_header
      _
    $region3: #{tpu_custom_call.1} parent=1 // loop_header
      %s40 = sphi 0, %s44
      %p41 = scmp.ge.s32.totalorder %s40, 10
      %s47 = sphi 0, %s59
      %s48 = sphi 0, %s55
      %s49 = sphi 0, %s47
      %s50 = sphi 0, %s48
      %s51 = sphi 0, %s49
      %s52 = sphi 0, %s50
      %s62 = sphi 0, %s64
      %s65 = sphi 0, %s62
      %s66 = sphi 0, %s65
      %s82 = sphi 0, %s66
      %s86 = sphi 0, %s86
      %s88 = sphi 0, %s86
      %s89 = sphi 0, %s88
      %s103 = sphi 0, %s89
      %s107 = sphi 0, %s107
      %s109 = sphi 0, %s107
      %s110 = sphi 0, %s109
      %s124 = sphi 0, %s110
      %s128 = sphi 0, %s128
      %s130 = sphi 0, %s128
      %s131 = sphi 0, %s130
      %s145 = sphi 0, %s131
      %s149 = sphi 0, %s149
      %s151 = sphi 0, %s149
      %s152 = sphi 0, %s151
      %s166 = sphi 0, %s152
      %s170 = sphi 0, %s170
      %s172 = sphi 0, %s170
      %s173 = sphi 0, %s172
      %s187 = sphi 0, %s173
      %s195 = sphi 0, %s197
      %s198 = sphi 0, %s195
      %s199 = sphi 0, %s198
      %s215 = sphi 0, %s199
    $region4: #{tpu_custom_call.1} parent=1 // loop_header_branch
      %43 = sbr.rel (%p41) target = $region8
    $region5: #{tpu_custom_call.1} parent=1 // loop_body
      %s45 = ssub.s32 %s40, 1
      %s46 = ssub.s32 %s40, 2
      %s53 = sadd.s32 1, %s48
      %p54 = scmp.ge.s32.totalorder %s53, 4
      %s55 = scalar_select %p54, 0, %s53
      %s56 = sadd.s32 1, %s47
      %s57 = scalar_select %p54, %s56, %s47
      %p58 = scmp.ge.s32.totalorder %s57, 2
      %s59 = scalar_select %p58, 0, %s57
      %s60 = ssub.s32 %s47, %s59
      %p61 = scmp.eq.s32.totalorder %s60, 0
      %s63 = sadd.s32 %s62, 1
      %s64 = scalar_select %p61, %s62, %s63
      %p67 = pneg %p61
      %p68 = scmp.eq.s32.totalorder %s40, 7
      %p69 = por %p67, %p68
      %p70 = scmp.ne.s32.totalorder %s62, %s65
      %p71 = scmp.eq.s32.totalorder %s40, 0
      %p72 = por %p70, %p71
      %p73 = scmp.ne.s32.totalorder %s62, %s65
      %p74 = scmp.eq.s32.totalorder %s45, 7
      %p75 = por %p73, %p74
      %p76 = scmp.ne.s32.totalorder %s65, %s66
      %p77 = scmp.eq.s32.totalorder %s45, 0
      %p78 = por %p76, %p77
      %p79 = scmp.ne.s32.totalorder %s65, %s66
      %p80 = scmp.eq.s32.totalorder %s46, 7
      %p81 = por %p79, %p80
      %p83 = scmp.ne.s32.totalorder %s66, %s82
      %p84 = scmp.eq.s32.totalorder %s46, 0
      %p85 = por %p83, %p84
      %s87 = sadd.s32 %s86, 1
      %p90 = scmp.eq.s32.totalorder %s40, 7
      %p91 = scmp.ne.s32.totalorder %s86, %s88
      %p92 = scmp.eq.s32.totalorder %s40, 0
      %p93 = por %p91, %p92
      %p94 = scmp.ne.s32.totalorder %s86, %s88
      %p95 = scmp.eq.s32.totalorder %s45, 7
      %p96 = por %p94, %p95
      %p97 = scmp.ne.s32.totalorder %s88, %s89
      %p98 = scmp.eq.s32.totalorder %s45, 0
      %p99 = por %p97, %p98
      %p100 = scmp.ne.s32.totalorder %s88, %s89
      %p101 = scmp.eq.s32.totalorder %s46, 7
      %p102 = por %p100, %p101
      %p104 = scmp.ne.s32.totalorder %s89, %s103
      %p105 = scmp.eq.s32.totalorder %s46, 0
      %p106 = por %p104, %p105
      %s108 = sadd.s32 %s107, 1
      %p111 = scmp.eq.s32.totalorder %s40, 7
      %p112 = scmp.ne.s32.totalorder %s107, %s109
      %p113 = scmp.eq.s32.totalorder %s40, 0
      %p114 = por %p112, %p113
      %p115 = scmp.ne.s32.totalorder %s107, %s109
      %p116 = scmp.eq.s32.totalorder %s45, 7
      %p117 = por %p115, %p116
      %p118 = scmp.ne.s32.totalorder %s109, %s110
      %p119 = scmp.eq.s32.totalorder %s45, 0
      %p120 = por %p118, %p119
      %p121 = scmp.ne.s32.totalorder %s109, %s110
      %p122 = scmp.eq.s32.totalorder %s46, 7
      %p123 = por %p121, %p122
      %p125 = scmp.ne.s32.totalorder %s110, %s124
      %p126 = scmp.eq.s32.totalorder %s46, 0
      %p127 = por %p125, %p126
      %s129 = sadd.s32 %s128, 1
      %p132 = scmp.eq.s32.totalorder %s40, 7
      %p133 = scmp.ne.s32.totalorder %s128, %s130
      %p134 = scmp.eq.s32.totalorder %s40, 0
      %p135 = por %p133, %p134
      %p136 = scmp.ne.s32.totalorder %s128, %s130
      %p137 = scmp.eq.s32.totalorder %s45, 7
      %p138 = por %p136, %p137
      %p139 = scmp.ne.s32.totalorder %s130, %s131
      %p140 = scmp.eq.s32.totalorder %s45, 0
      %p141 = por %p139, %p140
      %p142 = scmp.ne.s32.totalorder %s130, %s131
      %p143 = scmp.eq.s32.totalorder %s46, 7
      %p144 = por %p142, %p143
      %p146 = scmp.ne.s32.totalorder %s131, %s145
      %p147 = scmp.eq.s32.totalorder %s46, 0
      %p148 = por %p146, %p147
      %s150 = sadd.s32 %s149, 1
      %p153 = scmp.eq.s32.totalorder %s40, 7
      %p154 = scmp.ne.s32.totalorder %s149, %s151
      %p155 = scmp.eq.s32.totalorder %s40, 0
      %p156 = por %p154, %p155
      %p157 = scmp.ne.s32.totalorder %s149, %s151
      %p158 = scmp.eq.s32.totalorder %s45, 7
      %p159 = por %p157, %p158
      %p160 = scmp.ne.s32.totalorder %s151, %s152
      %p161 = scmp.eq.s32.totalorder %s45, 0
      %p162 = por %p160, %p161
      %p163 = scmp.ne.s32.totalorder %s151, %s152
      %p164 = scmp.eq.s32.totalorder %s46, 7
      %p165 = por %p163, %p164
      %p167 = scmp.ne.s32.totalorder %s152, %s166
      %p168 = scmp.eq.s32.totalorder %s46, 0
      %p169 = por %p167, %p168
      %s171 = sadd.s32 %s170, 1
      %p174 = scmp.eq.s32.totalorder %s40, 7
      %p175 = scmp.ne.s32.totalorder %s170, %s172
      %p176 = scmp.eq.s32.totalorder %s40, 0
      %p177 = por %p175, %p176
      %p178 = scmp.ne.s32.totalorder %s170, %s172
      %p179 = scmp.eq.s32.totalorder %s45, 7
      %p180 = por %p178, %p179
      %p181 = scmp.ne.s32.totalorder %s172, %s173
      %p182 = scmp.eq.s32.totalorder %s45, 0
      %p183 = por %p181, %p182
      %p184 = scmp.ne.s32.totalorder %s172, %s173
      %p185 = scmp.eq.s32.totalorder %s46, 7
      %p186 = por %p184, %p185
      %p188 = scmp.ne.s32.totalorder %s173, %s187
      %p189 = scmp.eq.s32.totalorder %s46, 0
      %p190 = por %p188, %p189
      %s191 = ssub.s32 %s47, %s59
      %s192 = ssub.s32 %s48, %s55
      %s193 = sor.u32 %s191, %s192
      %p194 = scmp.eq.s32.totalorder %s193, 0
      %s196 = sadd.s32 %s195, 1
      %s197 = scalar_select %p194, %s195, %s196
      %p200 = pneg %p194
      %p201 = scmp.eq.s32.totalorder %s40, 7
      %p202 = por %p200, %p201
      %p203 = scmp.ne.s32.totalorder %s195, %s198
      %p204 = scmp.eq.s32.totalorder %s40, 0
      %p205 = por %p203, %p204
      %p206 = scmp.ne.s32.totalorder %s195, %s198
      %p207 = scmp.eq.s32.totalorder %s45, 7
      %p208 = por %p206, %p207
      %p209 = scmp.ne.s32.totalorder %s198, %s199
      %p210 = scmp.eq.s32.totalorder %s45, 0
      %p211 = por %p209, %p210
      %p212 = scmp.ne.s32.totalorder %s198, %s199
      %p213 = scmp.eq.s32.totalorder %s46, 7
      %p214 = por %p212, %p213
      %p216 = scmp.ne.s32.totalorder %s199, %s215
      %p217 = scmp.eq.s32.totalorder %s46, 0
      %p218 = por %p216, %p217
      %p219 = scmp.le.s32.totalorder 1, %s40
      %p220 = scmp.lt.s32.totalorder %s40, 9
      %p221 = pnand %p219, %p220
      %p222 = pneg %p221
      // Predicated region
      $region9: #{tpu_custom_call.1} parent=5 // pred_check
        _
      $region10: #{tpu_custom_call.1} parent=5 // pred_check_branch
        %224 = sbr.rel (%p221) target = $region12
      $region11: #{tpu_custom_call.1} parent=5 // pred_region
        %s225 = ssub.s32 %s40, 1
        // Predicated region
        $region13: #{tpu_custom_call.1} parent=11 // pred_check
          %p226 = pneg %p99
        $region14: #{tpu_custom_call.1} parent=11 // pred_check_branch
          %228 = sbr.rel (%p226) target = $region16
        $region15: #{tpu_custom_call.1} parent=11 // pred_region
          _
        $region16: #{tpu_custom_call.1} parent=11 // pred_fallthru
          _
        // Predicated region
        $region17: #{tpu_custom_call.1} parent=11 // pred_check
          %p229 = pneg %p120
        $region18: #{tpu_custom_call.1} parent=11 // pred_check_branch
          %231 = sbr.rel (%p229) target = $region20
        $region19: #{tpu_custom_call.1} parent=11 // pred_region
          %233 = vsyncadd [#allocation13], 0
          %s234 = sshll.u32 %s5, 4
          %s235 = int_to_ptr.hbm [resolvable:$true] %s234
          %s236 = sshll.u32 [#allocation12], 4
          %s237 = int_to_ptr.vmem [resolvable:$true] %s236
          %242 = dma.hbm_to_vmem [thread:$0]  %s235, 9216, %s237, [#allocation13], 64, 64, 4
        $region20: #{tpu_custom_call.1} parent=11 // pred_fallthru
          _
        // Predicated region
        $region21: #{tpu_custom_call.1} parent=11 // pred_check
          %p243 = pneg %p141
        $region22: #{tpu_custom_call.1} parent=11 // pred_check_branch
          %245 = sbr.rel (%p243) target = $region24
        $region23: #{tpu_custom_call.1} parent=11 // pred_region
          _
        $region24: #{tpu_custom_call.1} parent=11 // pred_fallthru
          _
        // Predicated region
        $region25: #{tpu_custom_call.1} parent=11 // pred_check
          %p246 = pneg %p162
        $region26: #{tpu_custom_call.1} parent=11 // pred_check_branch
          %248 = sbr.rel (%p246) target = $region28
        $region27: #{tpu_custom_call.1} parent=11 // pred_region
          %250 = vsyncadd [#allocation13], 0
          %s251 = sshll.u32 %s7, 4
          %s252 = int_to_ptr.hbm [resolvable:$true] %s251
          %s253 = sshll.u32 [#allocation14], 4
          %s254 = int_to_ptr.vmem [resolvable:$true] %s253
          %259 = dma.hbm_to_vmem [thread:$0]  %s252, 9216, %s254, [#allocation13], 64, 64, 4
        $region28: #{tpu_custom_call.1} parent=11 // pred_fallthru
          _
        // Predicated region
        $region29: #{tpu_custom_call.1} parent=11 // pred_check
          %p260 = pneg %p183
        $region30: #{tpu_custom_call.1} parent=11 // pred_check_branch
          %262 = sbr.rel (%p260) target = $region32
        $region31: #{tpu_custom_call.1} parent=11 // pred_region
          _
        $region32: #{tpu_custom_call.1} parent=11 // pred_fallthru
          _
      $region12: #{tpu_custom_call.1} parent=5 // pred_fallthru
        _
      %p263 = scmp.lt.s32.totalorder %s40, 8
      // Predicated region
      $region33: #{tpu_custom_call.1} parent=5 // pred_check
        %p264 = pneg %p263
      $region34: #{tpu_custom_call.1} parent=5 // pred_check_branch
        %266 = sbr.rel (%p264) target = $region36
      $region35: #{tpu_custom_call.1} parent=5 // pred_region
        // Predicated region
        $region37: #{tpu_custom_call.1} parent=35 // pred_check
          %p267 = pneg %p72
        $region38: #{tpu_custom_call.1} parent=35 // pred_check_branch
          %269 = sbr.rel (%p267) target = $region40
        $region39: #{tpu_custom_call.1} parent=35 // pred_region
          %s270 = sand.u32 %s62, 1
          %s271 = scalar_lea.sflag [#allocation10], %s270
          %s272 = sand.u32 %s62, 1
          %s273 = smul.addr %s272, 128
          %s274 = scalar_lea.vmem [#allocation9], %s273
          %276 = vsyncadd %s271, 0
          %s277 = smul.addr %s47, 32
          %s278 = smul.addr %s277, 4
          %s279 = scalar_lea.hbm %s3, %s278
          %s280 = sshll.u32 %s279, 4
          %s281 = int_to_ptr.hbm [resolvable:$true] %s280
          %s282 = sshll.u32 %s274, 4
          %s283 = int_to_ptr.vmem [resolvable:$true] %s282
          %288 = dma.hbm_to_vmem [thread:$0]  %s281, 2048, %s283, %s271, 64, 64, 4
        $region40: #{tpu_custom_call.1} parent=35 // pred_fallthru
          _
      $region36: #{tpu_custom_call.1} parent=5 // pred_fallthru
        _
      %p289 = scmp.le.s32.totalorder 1, %s40
      %p290 = scmp.lt.s32.totalorder %s40, 9
      %p291 = pnand %p289, %p290
      %p292 = pneg %p291
      // Predicated region
      $region41: #{tpu_custom_call.1} parent=5 // pred_check
        _
      $region42: #{tpu_custom_call.1} parent=5 // pred_check_branch
        %294 = sbr.rel (%p291) target = $region44
      $region43: #{tpu_custom_call.1} parent=5 // pred_region
        %s295 = ssub.s32 %s40, 1
        %s296 = sand.u32 %s65, 1
        %s297 = scalar_lea.sflag [#allocation10], %s296
        %s298 = sand.u32 %s65, 1
        %s299 = smul.addr %s298, 128
        %s300 = scalar_lea.vmem [#allocation9], %s299
        // Predicated region
        $region45: #{tpu_custom_call.1} parent=43 // pred_check
          %p301 = pneg %p78
        $region46: #{tpu_custom_call.1} parent=43 // pred_check_branch
          %303 = sbr.rel (%p301) target = $region48
        $region47: #{tpu_custom_call.1} parent=43 // pred_region
          %305 = dma.done %s297, 2048
        $region48: #{tpu_custom_call.1} parent=43 // pred_fallthru
          _
        // Predicated region
        $region49: #{tpu_custom_call.1} parent=43 // pred_check
          %p306 = pneg %p120
        $region50: #{tpu_custom_call.1} parent=43 // pred_check_branch
          %308 = sbr.rel (%p306) target = $region52
        $region51: #{tpu_custom_call.1} parent=43 // pred_region
          %310 = dma.done [#allocation13], 9216
        $region52: #{tpu_custom_call.1} parent=43 // pred_fallthru
          _
        // Predicated region
        $region53: #{tpu_custom_call.1} parent=43 // pred_check
          %p311 = pneg %p162
        $region54: #{tpu_custom_call.1} parent=43 // pred_check_branch
          %313 = sbr.rel (%p311) target = $region56
        $region55: #{tpu_custom_call.1} parent=43 // pred_region
          %315 = dma.done [#allocation13], 9216
        $region56: #{tpu_custom_call.1} parent=43 // pred_fallthru
          _
        %s316 = sand.u32 %s65, 1
        %s317 = scalar_lea.sflag [#allocation10], %s316
        %s318 = sand.u32 %s65, 1
        %s319 = smul.addr %s318, 128
        %s320 = scalar_lea.vmem [#allocation9], %s319
        %p321 = pneg %p78
        %p322 = pneg %p75
        %p323 = pneg %p99
        %p324 = pneg %p96
        %p325 = pneg %p120
        %p326 = pneg %p117
        %p327 = pneg %p141
        %p328 = pneg %p138
        %p329 = pneg %p162
        %p330 = pneg %p159
        %p331 = pneg %p183
        %p332 = pneg %p180
        %p333 = pneg %p211
        %p334 = pneg %p208
        %s335 = sand.u32 %s198, 1
        %s336 = scalar_lea.sflag [#allocation11], %s335
        %s337 = sand.u32 %s198, 1
        %s338 = smul.addr %s337, 256
        %s339 = scalar_lea.vmem [#allocation15], %s338
        %s340 = smul.u32 8, %s50
        %p342 = scmp.eq.s32.totalorder %s50, 0
        // Predicated region
        $region57: #{tpu_custom_call.1} parent=43 // pred_check
          %p343 = pneg %p342
        $region58: #{tpu_custom_call.1} parent=43 // pred_check_branch
          %345 = sbr.rel (%p343) target = $region60
        $region59: #{tpu_custom_call.1} parent=43 // pred_region
          %vm346 = vcmask 1040384
          %vm347 = vsmask.f32 256
          %vm348 = vmand %vm346, %vm347
          %v349 = vld [vmem:[#allocation3] sm:$0x1]
          %v350 = vsel %vm348, 0, %v349
          %351 = vst [vmem:[#allocation3] sm:$0x1] %v350
          %vm352 = vsmask.f32 7938
          %vm353 = vmand %vm346, %vm352
          %v354 = vld [vmem:[#allocation3 + $0x10] sm:$0x1]
          %v355 = vsel %vm353, 0, %v354
          %356 = vst [vmem:[#allocation3 + $0x10] sm:$0x1] %v355
          %vm357 = vcmask 1041409
          %vm358 = vsmask.f32 1280
          %vm359 = vmand %vm357, %vm358
          %v360 = vld [vmem:[#allocation3 + $0x10] sm:$0x2]
          %v361 = vsel %vm359, 0, %v360
          %362 = vst [vmem:[#allocation3 + $0x10] sm:$0x2] %v361
          %vm363 = vsmask.f32 7942
          %vm364 = vmand %vm357, %vm363
          %v365 = vld [vmem:[#allocation3 + $0x20] sm:$0x2]
          %v366 = vsel %vm364, 0, %v365
          %367 = vst [vmem:[#allocation3 + $0x20] sm:$0x2] %v366
          %vm368 = vcmask 1042434
          %vm369 = vsmask.f32 2304
          %vm370 = vmand %vm368, %vm369
          %v371 = vld [vmem:[#allocation3 + $0x20] sm:$0x4]
          %v372 = vsel %vm370, 0, %v371
          %373 = vst [vmem:[#allocation3 + $0x20] sm:$0x4] %v372
          %vm374 = vsmask.f32 7946
          %vm375 = vmand %vm368, %vm374
          %v376 = vld [vmem:[#allocation3 + $0x30] sm:$0x4]
          %v377 = vsel %vm375, 0, %v376
          %378 = vst [vmem:[#allocation3 + $0x30] sm:$0x4] %v377
          %vm379 = vcmask 1043459
          %vm380 = vsmask.f32 3328
          %vm381 = vmand %vm379, %vm380
          %v382 = vld [vmem:[#allocation3 + $0x30] sm:$0x8]
          %v383 = vsel %vm381, 0, %v382
          %384 = vst [vmem:[#allocation3 + $0x30] sm:$0x8] %v383
          %vm385 = vsmask.f32 7950
          %vm386 = vmand %vm379, %vm385
          %v387 = vld [vmem:[#allocation3 + $0x40] sm:$0x8]
          %v388 = vsel %vm386, 0, %v387
          %389 = vst [vmem:[#allocation3 + $0x40] sm:$0x8] %v388
          %v390 = vld [vmem:[#allocation3 + $0x44] sm:$0x1]
          %v391 = vsel %vm348, 0, %v390
          %392 = vst [vmem:[#allocation3 + $0x44] sm:$0x1] %v391
          %v393 = vld [vmem:[#allocation3 + $0x54] sm:$0x1]
          %v394 = vsel %vm353, 0, %v393
          %395 = vst [vmem:[#allocation3 + $0x54] sm:$0x1] %v394
          %v396 = vld [vmem:[#allocation3 + $0x54] sm:$0x2]
          %v397 = vsel %vm359, 0, %v396
          %398 = vst [vmem:[#allocation3 + $0x54] sm:$0x2] %v397
          %v399 = vld [vmem:[#allocation3 + $0x64] sm:$0x2]
          %v400 = vsel %vm364, 0, %v399
          %401 = vst [vmem:[#allocation3 + $0x64] sm:$0x2] %v400
          %v402 = vld [vmem:[#allocation3 + $0x64] sm:$0x4]
          %v403 = vsel %vm370, 0, %v402
          %404 = vst [vmem:[#allocation3 + $0x64] sm:$0x4] %v403
          %v405 = vld [vmem:[#allocation3 + $0x74] sm:$0x4]
          %v406 = vsel %vm375, 0, %v405
          %407 = vst [vmem:[#allocation3 + $0x74] sm:$0x4] %v406
          %v408 = vld [vmem:[#allocation3 + $0x74] sm:$0x8]
          %v409 = vsel %vm381, 0, %v408
          %410 = vst [vmem:[#allocation3 + $0x74] sm:$0x8] %v409
          %v411 = vld [vmem:[#allocation3 + $0x84] sm:$0x8]
          %v412 = vsel %vm386, 0, %v411
          %413 = vst [vmem:[#allocation3 + $0x84] sm:$0x8] %v412
          %v414 = vld [vmem:[#allocation3 + $0x88] sm:$0x1]
          %v415 = vsel %vm348, 0, %v414
          %416 = vst [vmem:[#allocation3 + $0x88] sm:$0x1] %v415
          %v417 = vld [vmem:[#allocation3 + $0x98] sm:$0x1]
          %v418 = vsel %vm353, 0, %v417
          %419 = vst [vmem:[#allocation3 + $0x98] sm:$0x1] %v418
          %v420 = vld [vmem:[#allocation3 + $0x98] sm:$0x2]
          %v421 = vsel %vm359, 0, %v420
          %422 = vst [vmem:[#allocation3 + $0x98] sm:$0x2] %v421
          %v423 = vld [vmem:[#allocation3 + $0xa8] sm:$0x2]
          %v424 = vsel %vm364, 0, %v423
          %425 = vst [vmem:[#allocation3 + $0xa8] sm:$0x2] %v424
          %v426 = vld [vmem:[#allocation3 + $0xa8] sm:$0x4]
          %v427 = vsel %vm370, 0, %v426
          %428 = vst [vmem:[#allocation3 + $0xa8] sm:$0x4] %v427
          %v429 = vld [vmem:[#allocation3 + $0xb8] sm:$0x4]
          %v430 = vsel %vm375, 0, %v429
          %431 = vst [vmem:[#allocation3 + $0xb8] sm:$0x4] %v430
          %v432 = vld [vmem:[#allocation3 + $0xb8] sm:$0x8]
          %v433 = vsel %vm381, 0, %v432
          %434 = vst [vmem:[#allocation3 + $0xb8] sm:$0x8] %v433
          %v435 = vld [vmem:[#allocation3 + $0xc8] sm:$0x8]
          %v436 = vsel %vm386, 0, %v435
          %437 = vst [vmem:[#allocation3 + $0xc8] sm:$0x8] %v436
          %438 = vst [vmem:[#allocation3 + $0xcc] sm:$0xf] 0
          %v439 = vld [vmem:[#allocation4] sm:$0x1]
          %v440 = vsel %vm348, 0, %v439
          %441 = vst [vmem:[#allocation4] sm:$0x1] %v440
          %v442 = vld [vmem:[#allocation4 + $0x10] sm:$0x1]
          %v443 = vsel %vm353, 0, %v442
          %444 = vst [vmem:[#allocation4 + $0x10] sm:$0x1] %v443
          %v445 = vld [vmem:[#allocation4 + $0x10] sm:$0x2]
          %v446 = vsel %vm359, 0, %v445
          %447 = vst [vmem:[#allocation4 + $0x10] sm:$0x2] %v446
          %v448 = vld [vmem:[#allocation4 + $0x20] sm:$0x2]
          %v449 = vsel %vm364, 0, %v448
          %450 = vst [vmem:[#allocation4 + $0x20] sm:$0x2] %v449
          %v451 = vld [vmem:[#allocation4 + $0x20] sm:$0x4]
          %v452 = vsel %vm370, 0, %v451
          %453 = vst [vmem:[#allocation4 + $0x20] sm:$0x4] %v452
          %v454 = vld [vmem:[#allocation4 + $0x30] sm:$0x4]
          %v455 = vsel %vm375, 0, %v454
          %456 = vst [vmem:[#allocation4 + $0x30] sm:$0x4] %v455
          %v457 = vld [vmem:[#allocation4 + $0x30] sm:$0x8]
          %v458 = vsel %vm381, 0, %v457
          %459 = vst [vmem:[#allocation4 + $0x30] sm:$0x8] %v458
          %v460 = vld [vmem:[#allocation4 + $0x40] sm:$0x8]
          %v461 = vsel %vm386, 0, %v460
          %462 = vst [vmem:[#allocation4 + $0x40] sm:$0x8] %v461
          %v463 = vld [vmem:[#allocation4 + $0x44] sm:$0x1]
          %v464 = vsel %vm348, 0, %v463
          %465 = vst [vmem:[#allocation4 + $0x44] sm:$0x1] %v464
          %v466 = vld [vmem:[#allocation4 + $0x54] sm:$0x1]
          %v467 = vsel %vm353, 0, %v466
          %468 = vst [vmem:[#allocation4 + $0x54] sm:$0x1] %v467
          %v469 = vld [vmem:[#allocation4 + $0x54] sm:$0x2]
          %v470 = vsel %vm359, 0, %v469
          %471 = vst [vmem:[#allocation4 + $0x54] sm:$0x2] %v470
          %v472 = vld [vmem:[#allocation4 + $0x64] sm:$0x2]
          %v473 = vsel %vm364, 0, %v472
          %474 = vst [vmem:[#allocation4 + $0x64] sm:$0x2] %v473
          %v475 = vld [vmem:[#allocation4 + $0x64] sm:$0x4]
          %v476 = vsel %vm370, 0, %v475
          %477 = vst [vmem:[#allocation4 + $0x64] sm:$0x4] %v476
          %v478 = vld [vmem:[#allocation4 + $0x74] sm:$0x4]
          %v479 = vsel %vm375, 0, %v478
          %480 = vst [vmem:[#allocation4 + $0x74] sm:$0x4] %v479
          %v481 = vld [vmem:[#allocation4 + $0x74] sm:$0x8]
          %v482 = vsel %vm381, 0, %v481
          %483 = vst [vmem:[#allocation4 + $0x74] sm:$0x8] %v482
          %v484 = vld [vmem:[#allocation4 + $0x84] sm:$0x8]
          %v485 = vsel %vm386, 0, %v484
          %486 = vst [vmem:[#allocation4 + $0x84] sm:$0x8] %v485
          %v487 = vld [vmem:[#allocation4 + $0x88] sm:$0x1]
          %v488 = vsel %vm348, 0, %v487
          %489 = vst [vmem:[#allocation4 + $0x88] sm:$0x1] %v488
          %v490 = vld [vmem:[#allocation4 + $0x98] sm:$0x1]
          %v491 = vsel %vm353, 0, %v490
          %492 = vst [vmem:[#allocation4 + $0x98] sm:$0x1] %v491
          %v493 = vld [vmem:[#allocation4 + $0x98] sm:$0x2]
          %v494 = vsel %vm359, 0, %v493
          %495 = vst [vmem:[#allocation4 + $0x98] sm:$0x2] %v494
          %v496 = vld [vmem:[#allocation4 + $0xa8] sm:$0x2]
          %v497 = vsel %vm364, 0, %v496
          %498 = vst [vmem:[#allocation4 + $0xa8] sm:$0x2] %v497
          %499 = vst [vmem:[#allocation4 + $0xa8] sm:$0xc] 0
          %500 = vst [vmem:[#allocation4 + $0xac] sm:$0x3] 0
          %v501 = vld [vmem:[%s4] sm:$0xf]
          %v502 = vld [vmem:[%s4 + $0x4] sm:$0xf]
          %v503 = vld [vmem:[%s4 + $0x8] sm:$0xf]
          %v504 = vld [vmem:[%s4 + $0xc] sm:$0xf]
          loop: start=0, step=1, limit=16
          $region61: #{tpu_custom_call.1} parent=59 // loop_pre_header
            _
          $region62: #{tpu_custom_call.1} parent=59 // loop_header
            %s506 = sphi 0, %s510
            %p507 = scmp.ge.s32.totalorder %s506, 16
          $region63: #{tpu_custom_call.1} parent=59 // loop_header_branch
            %509 = sbr.rel (%p507) target = $region67
          $region64: #{tpu_custom_call.1} parent=59 // loop_body
            %s511 = smul.u32 %s506, 2
            %s512 = smul.addr %s511, 4
            %s513 = scalar_lea.vmem %s300, %s512 [#allocation9]
            %v514 = vld [vmem:[%s513] sm:$0xf]
            %v515 = vld [vmem:[%s513 + $0x4] sm:$0xf]
            %v520 = vunpack.c.l.b16 %v501
            %v521 = vunpack.c.l.b16 %v502
            %v522 = vunpack.c.l.b16 %v503
            %v523 = vunpack.c.l.b16 %v504
            %v524 = vpack.c.b16 %v521, %v520
            %v525 = vpack.c.b16 %v523, %v522
            %v528 = vunpack.c.l.b16 %v514
            %v529 = vunpack.c.l.b16 %v515
            %v530 = vpack.c.b16 %v529, %v528
            %vm532 = vcmask 130048
            %v534 = vsel %vm532, %v524, 0
            %v537 = vsel %vm532, %v525, 0
            %539 = vmatpush.bf16.msra.mxu0 0
            %540 = vmatpush.bf16.msra.mxu0 0
            %541 = vmatpush.bf16.msra.mxu0 0
            %542 = vmatpush.bf16.msra.mxu0 0
            %543 = vmatpush.bf16.msra.mxu0 0
            %544 = vmatpush.bf16.msra.mxu0 0
            %545 = vmatpush.bf16.msra.mxu0 0
            %546 = vmatpush.bf16.msra.mxu0 %v530
            %547 = vmatmul.bf16.gmra.mxu0 %v534
            %v548 = vpop.f32.mrf.mxu0
            %v549 = vadd.f32 0.0, %v548
            %v550 = vpop.f32.mrf.mxu0
            %v551 = vadd.f32 0.0, %v550
            %552 = vmatmul.bf16.gmra.mxu0 %v537
            %v553 = vpop.f32.mrf.mxu0
            %v554 = vadd.f32 0.0, %v553
            %v555 = vpop.f32.mrf.mxu0
            %v556 = vadd.f32 0.0, %v555
            %557 = vdwg.mxu0
            %v558 = vpack.c.bf16 %v549, %v549
            %v559 = vpack.c.bf16 %v551, %v551
            %v560 = vpack.c.bf16 %v554, %v554
            %v561 = vpack.c.bf16 %v556, %v556
            %s562 = smul.u32 %s506, 4
            %s563 = smul.addr %s562, 4
            %s564 = scalar_lea.vmem [#allocation2], %s563
            %565 = vst [vmem:[%s564] sm:$0xf] %v558
            %566 = vst [vmem:[%s564 + $0x4] sm:$0xf] %v559
            %567 = vst [vmem:[%s564 + $0x8] sm:$0xf] %v560
            %568 = vst [vmem:[%s564 + $0xc] sm:$0xf] %v561
          $region65: #{tpu_custom_call.1} parent=59 // loop_footer
            %s510 = sadd.s32 1, %s506
          $region66: #{tpu_custom_call.1} parent=59 // loop_footer_branch
            %505 = sbr.rel target = $region62
          $region67: #{tpu_custom_call.1} parent=59 // loop_exit
            _
        $region60: #{tpu_custom_call.1} parent=43 // pred_fallthru
          _
        %s569 = smul.u32 %s50, 8
        %s570 = sadd.s32 %s569, 4294967294
        %p571 = scmp.ge.s32.totalorder %s570, 0
        %p572 = scmp.le.s32.totalorder %s570, 31
        %p573 = pnand %p571, %p572
        %p574 = pneg %p573
        %s575 = sld [smem:[#allocation8 + %s569]]
        %s576 = scvt.s32.f32 %s575
        %s577 = smul.f32 %s576, 0.032258064
        %s578 = scalar_select %p574, %s577, 0.0
        %s579 = ssub.f32 1.0, %s577
        %s580 = scalar_select %p574, %s579, 0.0
        %s581 = sld [smem:[#allocation6 + %s569]]
        %s582 = smul.u32 %s581, 4
        %s583 = smul.addr %s582, 4
        %s584 = scalar_lea.vmem [#allocation2], %s583
        %v585 = vld [vmem:[%s584] sm:$0xf]
        %v586 = vld [vmem:[%s584 + $0x4] sm:$0xf]
        %v587 = vld [vmem:[%s584 + $0x8] sm:$0xf]
        %v588 = vld [vmem:[%s584 + $0xc] sm:$0xf]
        %v589 = vunpack.c.l.bf16 %v585
        %v590 = vunpack.c.l.bf16 %v586
        %v591 = vunpack.c.l.bf16 %v587
        %v592 = vunpack.c.l.bf16 %v588
        %v593 = vstv %s580
        %v594 = vmul.f32 %v593, %v589
        %v595 = vmul.f32 %v593, %v590
        %v596 = vmul.f32 %v593, %v591
        %v597 = vmul.f32 %v593, %v592
        %s598 = sld [smem:[#allocation7 + %s569]]
        %s599 = smul.u32 %s598, 4
        %s600 = smul.addr %s599, 4
        %s601 = scalar_lea.vmem [#allocation2], %s600
        %v602 = vld [vmem:[%s601] sm:$0xf]
        %v603 = vld [vmem:[%s601 + $0x4] sm:$0xf]
        %v604 = vld [vmem:[%s601 + $0x8] sm:$0xf]
        %v605 = vld [vmem:[%s601 + $0xc] sm:$0xf]
        %v606 = vunpack.c.l.bf16 %v602
        %v607 = vunpack.c.l.bf16 %v603
        %v608 = vunpack.c.l.bf16 %v604
        %v609 = vunpack.c.l.bf16 %v605
        %v610 = vstv %s578
        %v611 = vmul.f32 %v610, %v606
        %v612 = vmul.f32 %v610, %v607
        %v613 = vmul.f32 %v610, %v608
        %v614 = vmul.f32 %v610, %v609
        %v615 = vadd.f32 %v594, %v611
        %v616 = vadd.f32 %v595, %v612
        %v617 = vadd.f32 %v596, %v613
        %v618 = vadd.f32 %v597, %v614
        %v619 = vpack.c.bf16 %v615, %v615
        %v620 = vpack.c.bf16 %v616, %v616
        %v621 = vpack.c.bf16 %v617, %v617
        %v622 = vpack.c.bf16 %v618, %v618
        %vm623 = vsmask.f32 256
        %vm624 = vsmask.f32 4368
        %vm625 = vmor %vm623, %vm624
        %v627 = vshrl.u32 %v619, 16
        %v629 = vrot.slane %v627, 7
        %v630 = vshll.u32 %v619, 16
        %v632 = vor.u32 %v629, %v630
        %v633 = vrot.slane %v629, 4
        %v635 = vshrl.u32 %v620, 16
        %v637 = vrot.slane %v635, 7
        %v638 = vshll.u32 %v620, 16
        %v640 = vor.u32 %v637, %v638
        %v641 = vsel %vm625, %v633, %v640
        %v642 = vrot.slane %v637, 4
        %v644 = vshrl.u32 %v621, 16
        %v646 = vrot.slane %v644, 7
        %v647 = vshll.u32 %v621, 16
        %v649 = vor.u32 %v646, %v647
        %v650 = vsel %vm625, %v642, %v649
        %v651 = vrot.slane %v646, 4
        %v653 = vshrl.u32 %v622, 16
        %v655 = vrot.slane %v653, 7
        %v656 = vshll.u32 %v622, 16
        %v658 = vor.u32 %v655, %v656
        %v659 = vsel %vm625, %v651, %v658
        %v660 = vrot.slane %v655, 4
        %vm666 = vcmask 1043456
        %vm667 = vsmask.f32 7938
        %vm668 = vmand %vm666, %vm667
        %v669 = vld [vmem:[#allocation3] sm:$0xf]
        %v670 = vsel %vm668, %v632, %v669
        %671 = vst [vmem:[#allocation3] sm:$0xf] %v670
        %672 = vst [vmem:[#allocation3 + $0x4] sm:$0xf] %v641
        %673 = vst [vmem:[#allocation3 + $0x8] sm:$0xf] %v650
        %674 = vst [vmem:[#allocation3 + $0xc] sm:$0xf] %v659
        %vm675 = vcmask 1040384
        %vm676 = vmand %vm675, %vm623
        %v677 = vld [vmem:[#allocation3 + $0x10] sm:$0x1]
        %v678 = vsel %vm676, %v660, %v677
        %679 = vst [vmem:[#allocation3 + $0x10] sm:$0x1] %v678
        %s680 = sadd.s32 %s569, 1
        %s681 = sadd.s32 %s569, 4294967295
        %p682 = scmp.ge.s32.totalorder %s681, 0
        %p683 = scmp.le.s32.totalorder %s681, 31
        %p684 = pnand %p682, %p683
        %p685 = pneg %p684
        %s686 = sld [smem:[#allocation8 + %s680]]
        %s687 = scvt.s32.f32 %s686
        %s688 = smul.f32 %s687, 0.032258064
        %s689 = scalar_select %p685, %s688, 0.0
        %s690 = ssub.f32 1.0, %s688
        %s691 = scalar_select %p685, %s690, 0.0
        %s692 = sld [smem:[#allocation6 + %s680]]
        %s693 = smul.u32 %s692, 4
        %s694 = smul.addr %s693, 4
        %s695 = scalar_lea.vmem [#allocation2], %s694
        %v696 = vld [vmem:[%s695] sm:$0xf]
        %v697 = vld [vmem:[%s695 + $0x4] sm:$0xf]
        %v698 = vld [vmem:[%s695 + $0x8] sm:$0xf]
        %v699 = vld [vmem:[%s695 + $0xc] sm:$0xf]
        %v700 = vunpack.c.l.bf16 %v696
        %v701 = vunpack.c.l.bf16 %v697
        %v702 = vunpack.c.l.bf16 %v698
        %v703 = vunpack.c.l.bf16 %v699
        %v704 = vstv %s691
        %v705 = vmul.f32 %v704, %v700
        %v706 = vmul.f32 %v704, %v701
        %v707 = vmul.f32 %v704, %v702
        %v708 = vmul.f32 %v704, %v703
        %s709 = sld [smem:[#allocation7 + %s680]]
        %s710 = smul.u32 %s709, 4
        %s711 = smul.addr %s710, 4
        %s712 = scalar_lea.vmem [#allocation2], %s711
        %v713 = vld [vmem:[%s712] sm:$0xf]
        %v714 = vld [vmem:[%s712 + $0x4] sm:$0xf]
        %v715 = vld [vmem:[%s712 + $0x8] sm:$0xf]
        %v716 = vld [vmem:[%s712 + $0xc] sm:$0xf]
        %v717 = vunpack.c.l.bf16 %v713
        %v718 = vunpack.c.l.bf16 %v714
        %v719 = vunpack.c.l.bf16 %v715
        %v720 = vunpack.c.l.bf16 %v716
        %v721 = vstv %s689
        %v722 = vmul.f32 %v721, %v717
        %v723 = vmul.f32 %v721, %v718
        %v724 = vmul.f32 %v721, %v719
        %v725 = vmul.f32 %v721, %v720
        %v726 = vadd.f32 %v705, %v722
        %v727 = vadd.f32 %v706, %v723
        %v728 = vadd.f32 %v707, %v724
        %v729 = vadd.f32 %v708, %v725
        %v730 = vpack.c.bf16 %v726, %v726
        %v731 = vpack.c.bf16 %v727, %v727
        %v732 = vpack.c.bf16 %v728, %v728
        %v733 = vpack.c.bf16 %v729, %v729
        %vm734 = vsmask.f32 1280
        %vm735 = vsmask.f32 5392
        %vm736 = vmor %vm734, %vm735
        %v738 = vshrl.u32 %v730, 16
        %v740 = vrot.slane %v738, 6
        %v741 = vshll.u32 %v730, 16
        %v743 = vrot.slane %v741, 7
        %v744 = vor.u32 %v740, %v743
        %v745 = vrot.slane %v744, 4
        %v747 = vshrl.u32 %v731, 16
        %v749 = vrot.slane %v747, 6
        %v750 = vshll.u32 %v731, 16
        %v752 = vrot.slane %v750, 7
        %v753 = vor.u32 %v749, %v752
        %v754 = vsel %vm736, %v745, %v753
        %v755 = vrot.slane %v753, 4
        %v757 = vshrl.u32 %v732, 16
        %v759 = vrot.slane %v757, 6
        %v760 = vshll.u32 %v732, 16
        %v762 = vrot.slane %v760, 7
        %v763 = vor.u32 %v759, %v762
        %v764 = vsel %vm736, %v755, %v763
        %v765 = vrot.slane %v763, 4
        %v767 = vshrl.u32 %v733, 16
        %v769 = vrot.slane %v767, 6
        %v770 = vshll.u32 %v733, 16
        %v772 = vrot.slane %v770, 7
        %v773 = vor.u32 %v769, %v772
        %v774 = vsel %vm736, %v765, %v773
        %v775 = vrot.slane %v773, 4
        %vm781 = vcmask 1043457
        %vm782 = vsmask.f32 7942
        %vm783 = vmand %vm781, %vm782
        %v784 = vld [vmem:[#allocation3 + $0x10] sm:$0xe]
        %v785 = vsel %vm783, %v744, %v784
        %786 = vst [vmem:[#allocation3 + $0x10] sm:$0xe] %v785
        %787 = vst [vmem:[#allocation3 + $0x14] sm:$0xf] %v754
        %788 = vst [vmem:[#allocation3 + $0x18] sm:$0xf] %v764
        %789 = vst [vmem:[#allocation3 + $0x1c] sm:$0xf] %v774
        %vm790 = vcmask 1041408
        %vm791 = vmand %vm790, %vm734
        %v792 = vld [vmem:[#allocation3 + $0x20] sm:$0x3]
        %v793 = vsel %vm791, %v775, %v792
        %794 = vst [vmem:[#allocation3 + $0x20] sm:$0x3] %v793
        %s795 = sadd.s32 %s569, 2
        %p796 = scmp.ge.s32.totalorder %s569, 0
        %p797 = scmp.le.s32.totalorder %s569, 31
        %p798 = pnand %p796, %p797
        %p799 = pneg %p798
        %s800 = sld [smem:[#allocation8 + %s795]]
        %s801 = scvt.s32.f32 %s800
        %s802 = smul.f32 %s801, 0.032258064
        %s803 = scalar_select %p799, %s802, 0.0
        %s804 = ssub.f32 1.0, %s802
        %s805 = scalar_select %p799, %s804, 0.0
        %s806 = sld [smem:[#allocation6 + %s795]]
        %s807 = smul.u32 %s806, 4
        %s808 = smul.addr %s807, 4
        %s809 = scalar_lea.vmem [#allocation2], %s808
        %v810 = vld [vmem:[%s809] sm:$0xf]
        %v811 = vld [vmem:[%s809 + $0x4] sm:$0xf]
        %v812 = vld [vmem:[%s809 + $0x8] sm:$0xf]
        %v813 = vld [vmem:[%s809 + $0xc] sm:$0xf]
        %v814 = vunpack.c.l.bf16 %v810
        %v815 = vunpack.c.l.bf16 %v811
        %v816 = vunpack.c.l.bf16 %v812
        %v817 = vunpack.c.l.bf16 %v813
        %v818 = vstv %s805
        %v819 = vmul.f32 %v818, %v814
        %v820 = vmul.f32 %v818, %v815
        %v821 = vmul.f32 %v818, %v816
        %v822 = vmul.f32 %v818, %v817
        %s823 = sld [smem:[#allocation7 + %s795]]
        %s824 = smul.u32 %s823, 4
        %s825 = smul.addr %s824, 4
        %s826 = scalar_lea.vmem [#allocation2], %s825
        %v827 = vld [vmem:[%s826] sm:$0xf]
        %v828 = vld [vmem:[%s826 + $0x4] sm:$0xf]
        %v829 = vld [vmem:[%s826 + $0x8] sm:$0xf]
        %v830 = vld [vmem:[%s826 + $0xc] sm:$0xf]
        %v831 = vunpack.c.l.bf16 %v827
        %v832 = vunpack.c.l.bf16 %v828
        %v833 = vunpack.c.l.bf16 %v829
        %v834 = vunpack.c.l.bf16 %v830
        %v835 = vstv %s803
        %v836 = vmul.f32 %v835, %v831
        %v837 = vmul.f32 %v835, %v832
        %v838 = vmul.f32 %v835, %v833
        %v839 = vmul.f32 %v835, %v834
        %v840 = vadd.f32 %v819, %v836
        %v841 = vadd.f32 %v820, %v837
        %v842 = vadd.f32 %v821, %v838
        %v843 = vadd.f32 %v822, %v839
        %v844 = vpack.c.bf16 %v840, %v840
        %v845 = vpack.c.bf16 %v841, %v841
        %v846 = vpack.c.bf16 %v842, %v842
        %v847 = vpack.c.bf16 %v843, %v843
        %vm848 = vsmask.f32 2304
        %vm849 = vsmask.f32 6416
        %vm850 = vmor %vm848, %vm849
        %v852 = vshrl.u32 %v844, 16
        %v854 = vrot.slane %v852, 5
        %v855 = vshll.u32 %v844, 16
        %v857 = vrot.slane %v855, 6
        %v858 = vor.u32 %v854, %v857
        %v859 = vrot.slane %v858, 4
        %v861 = vshrl.u32 %v845, 16
        %v863 = vrot.slane %v861, 5
        %v864 = vshll.u32 %v845, 16
        %v866 = vrot.slane %v864, 6
        %v867 = vor.u32 %v863, %v866
        %v868 = vsel %vm850, %v859, %v867
        %v869 = vrot.slane %v867, 4
        %v871 = vshrl.u32 %v846, 16
        %v873 = vrot.slane %v871, 5
        %v874 = vshll.u32 %v846, 16
        %v876 = vrot.slane %v874, 6
        %v877 = vor.u32 %v873, %v876
        %v878 = vsel %vm850, %v869, %v877
        %v879 = vrot.slane %v877, 4
        %v881 = vshrl.u32 %v847, 16
        %v883 = vrot.slane %v881, 5
        %v884 = vshll.u32 %v847, 16
        %v886 = vrot.slane %v884, 6
        %v887 = vor.u32 %v883, %v886
        %v888 = vsel %vm850, %v879, %v887
        %v889 = vrot.slane %v887, 4
        %vm895 = vcmask 1043458
        %vm896 = vsmask.f32 7946
        %vm897 = vmand %vm895, %vm896
        %v898 = vld [vmem:[#allocation3 + $0x20] sm:$0xc]
        %v899 = vsel %vm897, %v858, %v898
        %900 = vst [vmem:[#allocation3 + $0x20] sm:$0xc] %v899
        %901 = vst [vmem:[#allocation3 + $0x24] sm:$0xf] %v868
        %902 = vst [vmem:[#allocation3 + $0x28] sm:$0xf] %v878
        %903 = vst [vmem:[#allocation3 + $0x2c] sm:$0xf] %v888
        %vm904 = vcmask 1042432
        %vm905 = vmand %vm904, %vm848
        %v906 = vld [vmem:[#allocation3 + $0x30] sm:$0x7]
        %v907 = vsel %vm905, %v889, %v906
        %908 = vst [vmem:[#allocation3 + $0x30] sm:$0x7] %v907
        %s909 = sadd.s32 %s569, 3
        %p910 = scmp.ge.s32.totalorder %s680, 0
        %p911 = scmp.le.s32.totalorder %s680, 31
        %p912 = pnand %p910, %p911
        %p913 = pneg %p912
        %s914 = sld [smem:[#allocation8 + %s909]]
        %s915 = scvt.s32.f32 %s914
        %s916 = smul.f32 %s915, 0.032258064
        %s917 = scalar_select %p913, %s916, 0.0
        %s918 = ssub.f32 1.0, %s916
        %s919 = scalar_select %p913, %s918, 0.0
        %s920 = sld [smem:[#allocation6 + %s909]]
        %s921 = smul.u32 %s920, 4
        %s922 = smul.addr %s921, 4
        %s923 = scalar_lea.vmem [#allocation2], %s922
        %v924 = vld [vmem:[%s923] sm:$0xf]
        %v925 = vld [vmem:[%s923 + $0x4] sm:$0xf]
        %v926 = vld [vmem:[%s923 + $0x8] sm:$0xf]
        %v927 = vld [vmem:[%s923 + $0xc] sm:$0xf]
        %v928 = vunpack.c.l.bf16 %v924
        %v929 = vunpack.c.l.bf16 %v925
        %v930 = vunpack.c.l.bf16 %v926
        %v931 = vunpack.c.l.bf16 %v927
        %v932 = vstv %s919
        %v933 = vmul.f32 %v932, %v928
        %v934 = vmul.f32 %v932, %v929
        %v935 = vmul.f32 %v932, %v930
        %v936 = vmul.f32 %v932, %v931
        %s937 = sld [smem:[#allocation7 + %s909]]
        %s938 = smul.u32 %s937, 4
        %s939 = smul.addr %s938, 4
        %s940 = scalar_lea.vmem [#allocation2], %s939
        %v941 = vld [vmem:[%s940] sm:$0xf]
        %v942 = vld [vmem:[%s940 + $0x4] sm:$0xf]
        %v943 = vld [vmem:[%s940 + $0x8] sm:$0xf]
        %v944 = vld [vmem:[%s940 + $0xc] sm:$0xf]
        %v945 = vunpack.c.l.bf16 %v941
        %v946 = vunpack.c.l.bf16 %v942
        %v947 = vunpack.c.l.bf16 %v943
        %v948 = vunpack.c.l.bf16 %v944
        %v949 = vstv %s917
        %v950 = vmul.f32 %v949, %v945
        %v951 = vmul.f32 %v949, %v946
        %v952 = vmul.f32 %v949, %v947
        %v953 = vmul.f32 %v949, %v948
        %v954 = vadd.f32 %v933, %v950
        %v955 = vadd.f32 %v934, %v951
        %v956 = vadd.f32 %v935, %v952
        %v957 = vadd.f32 %v936, %v953
        %v958 = vpack.c.bf16 %v954, %v954
        %v959 = vpack.c.bf16 %v955, %v955
        %v960 = vpack.c.bf16 %v956, %v956
        %v961 = vpack.c.bf16 %v957, %v957
        %vm962 = vsmask.f32 3328
        %vm963 = vsmask.f32 7440
        %vm964 = vmor %vm962, %vm963
        %v966 = vshll.u32 %v958, 16
        %v968 = vrot.slane %v966, 5
        %v969 = vshrl.u32 %v958, 16
        %v971 = vrot.slane %v969, 4
        %v972 = vor.u32 %v971, %v968
        %v973 = vrot.slane %v972, 4
        %v975 = vshll.u32 %v959, 16
        %v977 = vrot.slane %v975, 5
        %v978 = vsel %vm964, %v973, %v977
        %v979 = vshrl.u32 %v959, 16
        %v981 = vrot.slane %v979, 4
        %v982 = vor.u32 %v981, %v977
        %v983 = vrot.slane %v982, 4
        %v985 = vshll.u32 %v960, 16
        %v987 = vrot.slane %v985, 5
        %v988 = vsel %vm964, %v983, %v987
        %v989 = vshrl.u32 %v960, 16
        %v991 = vrot.slane %v989, 4
        %v992 = vor.u32 %v991, %v987
        %v993 = vrot.slane %v992, 4
        %v995 = vshll.u32 %v961, 16
        %v997 = vrot.slane %v995, 5
        %v998 = vsel %vm964, %v993, %v997
        %v999 = vshrl.u32 %v961, 16
        %v1001 = vrot.slane %v999, 4
        %v1002 = vor.u32 %v1001, %v997
        %v1003 = vrot.slane %v1002, 4
        %vm1009 = vcmask 1043459
        %vm1010 = vsmask.f32 7950
        %vm1011 = vmand %vm1009, %vm1010
        %v1012 = vld [vmem:[#allocation3 + $0x30] sm:$0x8]
        %v1013 = vsel %vm1011, %v968, %v1012
        %1014 = vst [vmem:[#allocation3 + $0x30] sm:$0x8] %v1013
        %1015 = vst [vmem:[#allocation3 + $0x34] sm:$0xf] %v978
        %1016 = vst [vmem:[#allocation3 + $0x38] sm:$0xf] %v988
        %1017 = vst [vmem:[#allocation3 + $0x3c] sm:$0xf] %v998
        %vm1018 = vmand %vm666, %vm962
        %v1019 = vld [vmem:[#allocation3 + $0x40] sm:$0xf]
        %v1020 = vsel %vm1018, %v1003, %v1019
        %1021 = vst [vmem:[#allocation3 + $0x40] sm:$0xf] %v1020
        %s1022 = sadd.s32 %s569, 4
        %p1023 = scmp.ge.s32.totalorder %s795, 0
        %p1024 = scmp.le.s32.totalorder %s795, 31
        %p1025 = pnand %p1023, %p1024
        %p1026 = pneg %p1025
        %s1027 = sld [smem:[#allocation8 + %s1022]]
        %s1028 = scvt.s32.f32 %s1027
        %s1029 = smul.f32 %s1028, 0.032258064
        %s1030 = scalar_select %p1026, %s1029, 0.0
        %s1031 = ssub.f32 1.0, %s1029
        %s1032 = scalar_select %p1026, %s1031, 0.0
        %s1033 = sld [smem:[#allocation6 + %s1022]]
        %s1034 = smul.u32 %s1033, 4
        %s1035 = smul.addr %s1034, 4
        %s1036 = scalar_lea.vmem [#allocation2], %s1035
        %v1037 = vld [vmem:[%s1036] sm:$0xf]
        %v1038 = vld [vmem:[%s1036 + $0x4] sm:$0xf]
        %v1039 = vld [vmem:[%s1036 + $0x8] sm:$0xf]
        %v1040 = vld [vmem:[%s1036 + $0xc] sm:$0xf]
        %v1041 = vunpack.c.l.bf16 %v1037
        %v1042 = vunpack.c.l.bf16 %v1038
        %v1043 = vunpack.c.l.bf16 %v1039
        %v1044 = vunpack.c.l.bf16 %v1040
        %v1045 = vstv %s1032
        %v1046 = vmul.f32 %v1045, %v1041
        %v1047 = vmul.f32 %v1045, %v1042
        %v1048 = vmul.f32 %v1045, %v1043
        %v1049 = vmul.f32 %v1045, %v1044
        %s1050 = sld [smem:[#allocation7 + %s1022]]
        %s1051 = smul.u32 %s1050, 4
        %s1052 = smul.addr %s1051, 4
        %s1053 = scalar_lea.vmem [#allocation2], %s1052
        %v1054 = vld [vmem:[%s1053] sm:$0xf]
        %v1055 = vld [vmem:[%s1053 + $0x4] sm:$0xf]
        %v1056 = vld [vmem:[%s1053 + $0x8] sm:$0xf]
        %v1057 = vld [vmem:[%s1053 + $0xc] sm:$0xf]
        %v1058 = vunpack.c.l.bf16 %v1054
        %v1059 = vunpack.c.l.bf16 %v1055
        %v1060 = vunpack.c.l.bf16 %v1056
        %v1061 = vunpack.c.l.bf16 %v1057
        %v1062 = vstv %s1030
        %v1063 = vmul.f32 %v1062, %v1058
        %v1064 = vmul.f32 %v1062, %v1059
        %v1065 = vmul.f32 %v1062, %v1060
        %v1066 = vmul.f32 %v1062, %v1061
        %v1067 = vadd.f32 %v1046, %v1063
        %v1068 = vadd.f32 %v1047, %v1064
        %v1069 = vadd.f32 %v1048, %v1065
        %v1070 = vadd.f32 %v1049, %v1066
        %v1071 = vpack.c.bf16 %v1067, %v1067
        %v1072 = vpack.c.bf16 %v1068, %v1068
        %v1073 = vpack.c.bf16 %v1069, %v1069
        %v1074 = vpack.c.bf16 %v1070, %v1070
        %v1076 = vshrl.u32 %v1071, 16
        %v1078 = vrot.slane %v1076, 7
        %v1079 = vshll.u32 %v1071, 16
        %v1081 = vor.u32 %v1078, %v1079
        %v1082 = vrot.slane %v1078, 4
        %v1084 = vshrl.u32 %v1072, 16
        %v1086 = vrot.slane %v1084, 7
        %v1087 = vshll.u32 %v1072, 16
        %v1089 = vor.u32 %v1086, %v1087
        %v1090 = vsel %vm625, %v1082, %v1089
        %v1091 = vrot.slane %v1086, 4
        %v1093 = vshrl.u32 %v1073, 16
        %v1095 = vrot.slane %v1093, 7
        %v1096 = vshll.u32 %v1073, 16
        %v1098 = vor.u32 %v1095, %v1096
        %v1099 = vsel %vm625, %v1091, %v1098
        %v1100 = vrot.slane %v1095, 4
        %v1102 = vshrl.u32 %v1074, 16
        %v1104 = vrot.slane %v1102, 7
        %v1105 = vshll.u32 %v1074, 16
        %v1107 = vor.u32 %v1104, %v1105
        %v1108 = vsel %vm625, %v1100, %v1107
        %v1109 = vrot.slane %v1104, 4
        %v1115 = vld [vmem:[#allocation3 + $0x44] sm:$0xf]
        %v1116 = vsel %vm668, %v1081, %v1115
        %1117 = vst [vmem:[#allocation3 + $0x44] sm:$0xf] %v1116
        %1118 = vst [vmem:[#allocation3 + $0x48] sm:$0xf] %v1090
        %1119 = vst [vmem:[#allocation3 + $0x4c] sm:$0xf] %v1099
        %1120 = vst [vmem:[#allocation3 + $0x50] sm:$0xf] %v1108
        %v1121 = vld [vmem:[#allocation3 + $0x54] sm:$0x1]
        %v1122 = vsel %vm676, %v1109, %v1121
        %1123 = vst [vmem:[#allocation3 + $0x54] sm:$0x1] %v1122
        %s1124 = sadd.s32 %s569, 5
        %p1125 = scmp.ge.s32.totalorder %s909, 0
        %p1126 = scmp.le.s32.totalorder %s909, 31
        %p1127 = pnand %p1125, %p1126
        %p1128 = pneg %p1127
        %s1129 = sld [smem:[#allocation8 + %s1124]]
        %s1130 = scvt.s32.f32 %s1129
        %s1131 = smul.f32 %s1130, 0.032258064
        %s1132 = scalar_select %p1128, %s1131, 0.0
        %s1133 = ssub.f32 1.0, %s1131
        %s1134 = scalar_select %p1128, %s1133, 0.0
        %s1135 = sld [smem:[#allocation6 + %s1124]]
        %s1136 = smul.u32 %s1135, 4
        %s1137 = smul.addr %s1136, 4
        %s1138 = scalar_lea.vmem [#allocation2], %s1137
        %v1139 = vld [vmem:[%s1138] sm:$0xf]
        %v1140 = vld [vmem:[%s1138 + $0x4] sm:$0xf]
        %v1141 = vld [vmem:[%s1138 + $0x8] sm:$0xf]
        %v1142 = vld [vmem:[%s1138 + $0xc] sm:$0xf]
        %v1143 = vunpack.c.l.bf16 %v1139
        %v1144 = vunpack.c.l.bf16 %v1140
        %v1145 = vunpack.c.l.bf16 %v1141
        %v1146 = vunpack.c.l.bf16 %v1142
        %v1147 = vstv %s1134
        %v1148 = vmul.f32 %v1147, %v1143
        %v1149 = vmul.f32 %v1147, %v1144
        %v1150 = vmul.f32 %v1147, %v1145
        %v1151 = vmul.f32 %v1147, %v1146
        %s1152 = sld [smem:[#allocation7 + %s1124]]
        %s1153 = smul.u32 %s1152, 4
        %s1154 = smul.addr %s1153, 4
        %s1155 = scalar_lea.vmem [#allocation2], %s1154
        %v1156 = vld [vmem:[%s1155] sm:$0xf]
        %v1157 = vld [vmem:[%s1155 + $0x4] sm:$0xf]
        %v1158 = vld [vmem:[%s1155 + $0x8] sm:$0xf]
        %v1159 = vld [vmem:[%s1155 + $0xc] sm:$0xf]
        %v1160 = vunpack.c.l.bf16 %v1156
        %v1161 = vunpack.c.l.bf16 %v1157
        %v1162 = vunpack.c.l.bf16 %v1158
        %v1163 = vunpack.c.l.bf16 %v1159
        %v1164 = vstv %s1132
        %v1165 = vmul.f32 %v1164, %v1160
        %v1166 = vmul.f32 %v1164, %v1161
        %v1167 = vmul.f32 %v1164, %v1162
        %v1168 = vmul.f32 %v1164, %v1163
        %v1169 = vadd.f32 %v1148, %v1165
        %v1170 = vadd.f32 %v1149, %v1166
        %v1171 = vadd.f32 %v1150, %v1167
        %v1172 = vadd.f32 %v1151, %v1168
        %v1173 = vpack.c.bf16 %v1169, %v1169
        %v1174 = vpack.c.bf16 %v1170, %v1170
        %v1175 = vpack.c.bf16 %v1171, %v1171
        %v1176 = vpack.c.bf16 %v1172, %v1172
        %v1178 = vshrl.u32 %v1173, 16
        %v1180 = vrot.slane %v1178, 6
        %v1181 = vshll.u32 %v1173, 16
        %v1183 = vrot.slane %v1181, 7
        %v1184 = vor.u32 %v1180, %v1183
        %v1185 = vrot.slane %v1184, 4
        %v1187 = vshrl.u32 %v1174, 16
        %v1189 = vrot.slane %v1187, 6
        %v1190 = vshll.u32 %v1174, 16
        %v1192 = vrot.slane %v1190, 7
        %v1193 = vor.u32 %v1189, %v1192
        %v1194 = vsel %vm736, %v1185, %v1193
        %v1195 = vrot.slane %v1193, 4
        %v1197 = vshrl.u32 %v1175, 16
        %v1199 = vrot.slane %v1197, 6
        %v1200 = vshll.u32 %v1175, 16
        %v1202 = vrot.slane %v1200, 7
        %v1203 = vor.u32 %v1199, %v1202
        %v1204 = vsel %vm736, %v1195, %v1203
        %v1205 = vrot.slane %v1203, 4
        %v1207 = vshrl.u32 %v1176, 16
        %v1209 = vrot.slane %v1207, 6
        %v1210 = vshll.u32 %v1176, 16
        %v1212 = vrot.slane %v1210, 7
        %v1213 = vor.u32 %v1209, %v1212
        %v1214 = vsel %vm736, %v1205, %v1213
        %v1215 = vrot.slane %v1213, 4
        %v1221 = vld [vmem:[#allocation3 + $0x54] sm:$0xe]
        %v1222 = vsel %vm783, %v1184, %v1221
        %1223 = vst [vmem:[#allocation3 + $0x54] sm:$0xe] %v1222
        %1224 = vst [vmem:[#allocation3 + $0x58] sm:$0xf] %v1194
        %1225 = vst [vmem:[#allocation3 + $0x5c] sm:$0xf] %v1204
        %1226 = vst [vmem:[#allocation3 + $0x60] sm:$0xf] %v1214
        %v1227 = vld [vmem:[#allocation3 + $0x64] sm:$0x3]
        %v1228 = vsel %vm791, %v1215, %v1227
        %1229 = vst [vmem:[#allocation3 + $0x64] sm:$0x3] %v1228
        %s1230 = sadd.s32 %s569, 6
        %p1231 = scmp.ge.s32.totalorder %s1022, 0
        %p1232 = scmp.le.s32.totalorder %s1022, 31
        %p1233 = pnand %p1231, %p1232
        %p1234 = pneg %p1233
        %s1235 = sld [smem:[#allocation8 + %s1230]]
        %s1236 = scvt.s32.f32 %s1235
        %s1237 = smul.f32 %s1236, 0.032258064
        %s1238 = scalar_select %p1234, %s1237, 0.0
        %s1239 = ssub.f32 1.0, %s1237
        %s1240 = scalar_select %p1234, %s1239, 0.0
        %s1241 = sld [smem:[#allocation6 + %s1230]]
        %s1242 = smul.u32 %s1241, 4
        %s1243 = smul.addr %s1242, 4
        %s1244 = scalar_lea.vmem [#allocation2], %s1243
        %v1245 = vld [vmem:[%s1244] sm:$0xf]
        %v1246 = vld [vmem:[%s1244 + $0x4] sm:$0xf]
        %v1247 = vld [vmem:[%s1244 + $0x8] sm:$0xf]
        %v1248 = vld [vmem:[%s1244 + $0xc] sm:$0xf]
        %v1249 = vunpack.c.l.bf16 %v1245
        %v1250 = vunpack.c.l.bf16 %v1246
        %v1251 = vunpack.c.l.bf16 %v1247
        %v1252 = vunpack.c.l.bf16 %v1248
        %v1253 = vstv %s1240
        %v1254 = vmul.f32 %v1253, %v1249
        %v1255 = vmul.f32 %v1253, %v1250
        %v1256 = vmul.f32 %v1253, %v1251
        %v1257 = vmul.f32 %v1253, %v1252
        %s1258 = sld [smem:[#allocation7 + %s1230]]
        %s1259 = smul.u32 %s1258, 4
        %s1260 = smul.addr %s1259, 4
        %s1261 = scalar_lea.vmem [#allocation2], %s1260
        %v1262 = vld [vmem:[%s1261] sm:$0xf]
        %v1263 = vld [vmem:[%s1261 + $0x4] sm:$0xf]
        %v1264 = vld [vmem:[%s1261 + $0x8] sm:$0xf]
        %v1265 = vld [vmem:[%s1261 + $0xc] sm:$0xf]
        %v1266 = vunpack.c.l.bf16 %v1262
        %v1267 = vunpack.c.l.bf16 %v1263
        %v1268 = vunpack.c.l.bf16 %v1264
        %v1269 = vunpack.c.l.bf16 %v1265
        %v1270 = vstv %s1238
        %v1271 = vmul.f32 %v1270, %v1266
        %v1272 = vmul.f32 %v1270, %v1267
        %v1273 = vmul.f32 %v1270, %v1268
        %v1274 = vmul.f32 %v1270, %v1269
        %v1275 = vadd.f32 %v1254, %v1271
        %v1276 = vadd.f32 %v1255, %v1272
        %v1277 = vadd.f32 %v1256, %v1273
        %v1278 = vadd.f32 %v1257, %v1274
        %v1279 = vpack.c.bf16 %v1275, %v1275
        %v1280 = vpack.c.bf16 %v1276, %v1276
        %v1281 = vpack.c.bf16 %v1277, %v1277
        %v1282 = vpack.c.bf16 %v1278, %v1278
        %v1284 = vshrl.u32 %v1279, 16
        %v1286 = vrot.slane %v1284, 5
        %v1287 = vshll.u32 %v1279, 16
        %v1289 = vrot.slane %v1287, 6
        %v1290 = vor.u32 %v1286, %v1289
        %v1291 = vrot.slane %v1290, 4
        %v1293 = vshrl.u32 %v1280, 16
        %v1295 = vrot.slane %v1293, 5
        %v1296 = vshll.u32 %v1280, 16
        %v1298 = vrot.slane %v1296, 6
        %v1299 = vor.u32 %v1295, %v1298
        %v1300 = vsel %vm850, %v1291, %v1299
        %v1301 = vrot.slane %v1299, 4
        %v1303 = vshrl.u32 %v1281, 16
        %v1305 = vrot.slane %v1303, 5
        %v1306 = vshll.u32 %v1281, 16
        %v1308 = vrot.slane %v1306, 6
        %v1309 = vor.u32 %v1305, %v1308
        %v1310 = vsel %vm850, %v1301, %v1309
        %v1311 = vrot.slane %v1309, 4
        %v1313 = vshrl.u32 %v1282, 16
        %v1315 = vrot.slane %v1313, 5
        %v1316 = vshll.u32 %v1282, 16
        %v1318 = vrot.slane %v1316, 6
        %v1319 = vor.u32 %v1315, %v1318
        %v1320 = vsel %vm850, %v1311, %v1319
        %v1321 = vrot.slane %v1319, 4
        %v1327 = vld [vmem:[#allocation3 + $0x64] sm:$0xc]
        %v1328 = vsel %vm897, %v1290, %v1327
        %1329 = vst [vmem:[#allocation3 + $0x64] sm:$0xc] %v1328
        %1330 = vst [vmem:[#allocation3 + $0x68] sm:$0xf] %v1300
        %1331 = vst [vmem:[#allocation3 + $0x6c] sm:$0xf] %v1310
        %1332 = vst [vmem:[#allocation3 + $0x70] sm:$0xf] %v1320
        %v1333 = vld [vmem:[#allocation3 + $0x74] sm:$0x7]
        %v1334 = vsel %vm905, %v1321, %v1333
        %1335 = vst [vmem:[#allocation3 + $0x74] sm:$0x7] %v1334
        %s1336 = sadd.s32 %s569, 7
        %p1337 = scmp.ge.s32.totalorder %s1124, 0
        %p1338 = scmp.le.s32.totalorder %s1124, 31
        %p1339 = pnand %p1337, %p1338
        %p1340 = pneg %p1339
        %s1341 = sld [smem:[#allocation8 + %s1336]]
        %s1342 = scvt.s32.f32 %s1341
        %s1343 = smul.f32 %s1342, 0.032258064
        %s1344 = scalar_select %p1340, %s1343, 0.0
        %s1345 = ssub.f32 1.0, %s1343
        %s1346 = scalar_select %p1340, %s1345, 0.0
        %s1347 = sld [smem:[#allocation6 + %s1336]]
        %s1348 = smul.u32 %s1347, 4
        %s1349 = smul.addr %s1348, 4
        %s1350 = scalar_lea.vmem [#allocation2], %s1349
        %v1351 = vld [vmem:[%s1350] sm:$0xf]
        %v1352 = vld [vmem:[%s1350 + $0x4] sm:$0xf]
        %v1353 = vld [vmem:[%s1350 + $0x8] sm:$0xf]
        %v1354 = vld [vmem:[%s1350 + $0xc] sm:$0xf]
        %v1355 = vunpack.c.l.bf16 %v1351
        %v1356 = vunpack.c.l.bf16 %v1352
        %v1357 = vunpack.c.l.bf16 %v1353
        %v1358 = vunpack.c.l.bf16 %v1354
        %v1359 = vstv %s1346
        %v1360 = vmul.f32 %v1359, %v1355
        %v1361 = vmul.f32 %v1359, %v1356
        %v1362 = vmul.f32 %v1359, %v1357
        %v1363 = vmul.f32 %v1359, %v1358
        %s1364 = sld [smem:[#allocation7 + %s1336]]
        %s1365 = smul.u32 %s1364, 4
        %s1366 = smul.addr %s1365, 4
        %s1367 = scalar_lea.vmem [#allocation2], %s1366
        %v1368 = vld [vmem:[%s1367] sm:$0xf]
        %v1369 = vld [vmem:[%s1367 + $0x4] sm:$0xf]
        %v1370 = vld [vmem:[%s1367 + $0x8] sm:$0xf]
        %v1371 = vld [vmem:[%s1367 + $0xc] sm:$0xf]
        %v1372 = vunpack.c.l.bf16 %v1368
        %v1373 = vunpack.c.l.bf16 %v1369
        %v1374 = vunpack.c.l.bf16 %v1370
        %v1375 = vunpack.c.l.bf16 %v1371
        %v1376 = vstv %s1344
        %v1377 = vmul.f32 %v1376, %v1372
        %v1378 = vmul.f32 %v1376, %v1373
        %v1379 = vmul.f32 %v1376, %v1374
        %v1380 = vmul.f32 %v1376, %v1375
        %v1381 = vadd.f32 %v1360, %v1377
        %v1382 = vadd.f32 %v1361, %v1378
        %v1383 = vadd.f32 %v1362, %v1379
        %v1384 = vadd.f32 %v1363, %v1380
        %v1385 = vpack.c.bf16 %v1381, %v1381
        %v1386 = vpack.c.bf16 %v1382, %v1382
        %v1387 = vpack.c.bf16 %v1383, %v1383
        %v1388 = vpack.c.bf16 %v1384, %v1384
        %v1390 = vshll.u32 %v1385, 16
        %v1392 = vrot.slane %v1390, 5
        %v1393 = vshrl.u32 %v1385, 16
        %v1395 = vrot.slane %v1393, 4
        %v1396 = vor.u32 %v1395, %v1392
        %v1397 = vrot.slane %v1396, 4
        %v1399 = vshll.u32 %v1386, 16
        %v1401 = vrot.slane %v1399, 5
        %v1402 = vsel %vm964, %v1397, %v1401
        %v1403 = vshrl.u32 %v1386, 16
        %v1405 = vrot.slane %v1403, 4
        %v1406 = vor.u32 %v1405, %v1401
        %v1407 = vrot.slane %v1406, 4
        %v1409 = vshll.u32 %v1387, 16
        %v1411 = vrot.slane %v1409, 5
        %v1412 = vsel %vm964, %v1407, %v1411
        %v1413 = vshrl.u32 %v1387, 16
        %v1415 = vrot.slane %v1413, 4
        %v1416 = vor.u32 %v1415, %v1411
        %v1417 = vrot.slane %v1416, 4
        %v1419 = vshll.u32 %v1388, 16
        %v1421 = vrot.slane %v1419, 5
        %v1422 = vsel %vm964, %v1417, %v1421
        %v1423 = vshrl.u32 %v1388, 16
        %v1425 = vrot.slane %v1423, 4
        %v1426 = vor.u32 %v1425, %v1421
        %v1427 = vrot.slane %v1426, 4
        %v1433 = vld [vmem:[#allocation3 + $0x74] sm:$0x8]
        %v1434 = vsel %vm1011, %v1392, %v1433
        %1435 = vst [vmem:[#allocation3 + $0x74] sm:$0x8] %v1434
        %1436 = vst [vmem:[#allocation3 + $0x78] sm:$0xf] %v1402
        %1437 = vst [vmem:[#allocation3 + $0x7c] sm:$0xf] %v1412
        %1438 = vst [vmem:[#allocation3 + $0x80] sm:$0xf] %v1422
        %v1439 = vld [vmem:[#allocation3 + $0x84] sm:$0xf]
        %v1440 = vsel %vm1018, %v1427, %v1439
        %1441 = vst [vmem:[#allocation3 + $0x84] sm:$0xf] %v1440
        %s1442 = sadd.s32 %s569, 8
        %p1443 = scmp.ge.s32.totalorder %s1230, 0
        %p1444 = scmp.le.s32.totalorder %s1230, 31
        %p1445 = pnand %p1443, %p1444
        %p1446 = pneg %p1445
        %s1447 = sld [smem:[#allocation8 + %s1442]]
        %s1448 = scvt.s32.f32 %s1447
        %s1449 = smul.f32 %s1448, 0.032258064
        %s1450 = scalar_select %p1446, %s1449, 0.0
        %s1451 = ssub.f32 1.0, %s1449
        %s1452 = scalar_select %p1446, %s1451, 0.0
        %s1453 = sld [smem:[#allocation6 + %s1442]]
        %s1454 = smul.u32 %s1453, 4
        %s1455 = smul.addr %s1454, 4
        %s1456 = scalar_lea.vmem [#allocation2], %s1455
        %v1457 = vld [vmem:[%s1456] sm:$0xf]
        %v1458 = vld [vmem:[%s1456 + $0x4] sm:$0xf]
        %v1459 = vld [vmem:[%s1456 + $0x8] sm:$0xf]
        %v1460 = vld [vmem:[%s1456 + $0xc] sm:$0xf]
        %v1461 = vunpack.c.l.bf16 %v1457
        %v1462 = vunpack.c.l.bf16 %v1458
        %v1463 = vunpack.c.l.bf16 %v1459
        %v1464 = vunpack.c.l.bf16 %v1460
        %v1465 = vstv %s1452
        %v1466 = vmul.f32 %v1465, %v1461
        %v1467 = vmul.f32 %v1465, %v1462
        %v1468 = vmul.f32 %v1465, %v1463
        %v1469 = vmul.f32 %v1465, %v1464
        %s1470 = sld [smem:[#allocation7 + %s1442]]
        %s1471 = smul.u32 %s1470, 4
        %s1472 = smul.addr %s1471, 4
        %s1473 = scalar_lea.vmem [#allocation2], %s1472
        %v1474 = vld [vmem:[%s1473] sm:$0xf]
        %v1475 = vld [vmem:[%s1473 + $0x4] sm:$0xf]
        %v1476 = vld [vmem:[%s1473 + $0x8] sm:$0xf]
        %v1477 = vld [vmem:[%s1473 + $0xc] sm:$0xf]
        %v1478 = vunpack.c.l.bf16 %v1474
        %v1479 = vunpack.c.l.bf16 %v1475
        %v1480 = vunpack.c.l.bf16 %v1476
        %v1481 = vunpack.c.l.bf16 %v1477
        %v1482 = vstv %s1450
        %v1483 = vmul.f32 %v1482, %v1478
        %v1484 = vmul.f32 %v1482, %v1479
        %v1485 = vmul.f32 %v1482, %v1480
        %v1486 = vmul.f32 %v1482, %v1481
        %v1487 = vadd.f32 %v1466, %v1483
        %v1488 = vadd.f32 %v1467, %v1484
        %v1489 = vadd.f32 %v1468, %v1485
        %v1490 = vadd.f32 %v1469, %v1486
        %v1491 = vpack.c.bf16 %v1487, %v1487
        %v1492 = vpack.c.bf16 %v1488, %v1488
        %v1493 = vpack.c.bf16 %v1489, %v1489
        %v1494 = vpack.c.bf16 %v1490, %v1490
        %v1496 = vshrl.u32 %v1491, 16
        %v1498 = vrot.slane %v1496, 7
        %v1499 = vshll.u32 %v1491, 16
        %v1501 = vor.u32 %v1498, %v1499
        %v1502 = vrot.slane %v1498, 4
        %v1504 = vshrl.u32 %v1492, 16
        %v1506 = vrot.slane %v1504, 7
        %v1507 = vshll.u32 %v1492, 16
        %v1509 = vor.u32 %v1506, %v1507
        %v1510 = vsel %vm625, %v1502, %v1509
        %v1511 = vrot.slane %v1506, 4
        %v1513 = vshrl.u32 %v1493, 16
        %v1515 = vrot.slane %v1513, 7
        %v1516 = vshll.u32 %v1493, 16
        %v1518 = vor.u32 %v1515, %v1516
        %v1519 = vsel %vm625, %v1511, %v1518
        %v1520 = vrot.slane %v1515, 4
        %v1522 = vshrl.u32 %v1494, 16
        %v1524 = vrot.slane %v1522, 7
        %v1525 = vshll.u32 %v1494, 16
        %v1527 = vor.u32 %v1524, %v1525
        %v1528 = vsel %vm625, %v1520, %v1527
        %v1529 = vrot.slane %v1524, 4
        %v1535 = vld [vmem:[#allocation3 + $0x88] sm:$0xf]
        %v1536 = vsel %vm668, %v1501, %v1535
        %1537 = vst [vmem:[#allocation3 + $0x88] sm:$0xf] %v1536
        %1538 = vst [vmem:[#allocation3 + $0x8c] sm:$0xf] %v1510
        %1539 = vst [vmem:[#allocation3 + $0x90] sm:$0xf] %v1519
        %1540 = vst [vmem:[#allocation3 + $0x94] sm:$0xf] %v1528
        %v1541 = vld [vmem:[#allocation3 + $0x98] sm:$0x1]
        %v1542 = vsel %vm676, %v1529, %v1541
        %1543 = vst [vmem:[#allocation3 + $0x98] sm:$0x1] %v1542
        %s1544 = sadd.s32 %s569, 9
        %p1545 = scmp.ge.s32.totalorder %s1336, 0
        %p1546 = scmp.le.s32.totalorder %s1336, 31
        %p1547 = pnand %p1545, %p1546
        %p1548 = pneg %p1547
        %s1549 = sld [smem:[#allocation8 + %s1544]]
        %s1550 = scvt.s32.f32 %s1549
        %s1551 = smul.f32 %s1550, 0.032258064
        %s1552 = scalar_select %p1548, %s1551, 0.0
        %s1553 = ssub.f32 1.0, %s1551
        %s1554 = scalar_select %p1548, %s1553, 0.0
        %s1555 = sld [smem:[#allocation6 + %s1544]]
        %s1556 = smul.u32 %s1555, 4
        %s1557 = smul.addr %s1556, 4
        %s1558 = scalar_lea.vmem [#allocation2], %s1557
        %v1559 = vld [vmem:[%s1558] sm:$0xf]
        %v1560 = vld [vmem:[%s1558 + $0x4] sm:$0xf]
        %v1561 = vld [vmem:[%s1558 + $0x8] sm:$0xf]
        %v1562 = vld [vmem:[%s1558 + $0xc] sm:$0xf]
        %v1563 = vunpack.c.l.bf16 %v1559
        %v1564 = vunpack.c.l.bf16 %v1560
        %v1565 = vunpack.c.l.bf16 %v1561
        %v1566 = vunpack.c.l.bf16 %v1562
        %v1567 = vstv %s1554
        %v1568 = vmul.f32 %v1567, %v1563
        %v1569 = vmul.f32 %v1567, %v1564
        %v1570 = vmul.f32 %v1567, %v1565
        %v1571 = vmul.f32 %v1567, %v1566
        %s1572 = sld [smem:[#allocation7 + %s1544]]
        %s1573 = smul.u32 %s1572, 4
        %s1574 = smul.addr %s1573, 4
        %s1575 = scalar_lea.vmem [#allocation2], %s1574
        %v1576 = vld [vmem:[%s1575] sm:$0xf]
        %v1577 = vld [vmem:[%s1575 + $0x4] sm:$0xf]
        %v1578 = vld [vmem:[%s1575 + $0x8] sm:$0xf]
        %v1579 = vld [vmem:[%s1575 + $0xc] sm:$0xf]
        %v1580 = vunpack.c.l.bf16 %v1576
        %v1581 = vunpack.c.l.bf16 %v1577
        %v1582 = vunpack.c.l.bf16 %v1578
        %v1583 = vunpack.c.l.bf16 %v1579
        %v1584 = vstv %s1552
        %v1585 = vmul.f32 %v1584, %v1580
        %v1586 = vmul.f32 %v1584, %v1581
        %v1587 = vmul.f32 %v1584, %v1582
        %v1588 = vmul.f32 %v1584, %v1583
        %v1589 = vadd.f32 %v1568, %v1585
        %v1590 = vadd.f32 %v1569, %v1586
        %v1591 = vadd.f32 %v1570, %v1587
        %v1592 = vadd.f32 %v1571, %v1588
        %v1593 = vpack.c.bf16 %v1589, %v1589
        %v1594 = vpack.c.bf16 %v1590, %v1590
        %v1595 = vpack.c.bf16 %v1591, %v1591
        %v1596 = vpack.c.bf16 %v1592, %v1592
        %v1598 = vshrl.u32 %v1593, 16
        %v1600 = vrot.slane %v1598, 6
        %v1601 = vshll.u32 %v1593, 16
        %v1603 = vrot.slane %v1601, 7
        %v1604 = vor.u32 %v1600, %v1603
        %v1605 = vrot.slane %v1604, 4
        %v1607 = vshrl.u32 %v1594, 16
        %v1609 = vrot.slane %v1607, 6
        %v1610 = vshll.u32 %v1594, 16
        %v1612 = vrot.slane %v1610, 7
        %v1613 = vor.u32 %v1609, %v1612
        %v1614 = vsel %vm736, %v1605, %v1613
        %v1615 = vrot.slane %v1613, 4
        %v1617 = vshrl.u32 %v1595, 16
        %v1619 = vrot.slane %v1617, 6
        %v1620 = vshll.u32 %v1595, 16
        %v1622 = vrot.slane %v1620, 7
        %v1623 = vor.u32 %v1619, %v1622
        %v1624 = vsel %vm736, %v1615, %v1623
        %v1625 = vrot.slane %v1623, 4
        %v1627 = vshrl.u32 %v1596, 16
        %v1629 = vrot.slane %v1627, 6
        %v1630 = vshll.u32 %v1596, 16
        %v1632 = vrot.slane %v1630, 7
        %v1633 = vor.u32 %v1629, %v1632
        %v1634 = vsel %vm736, %v1625, %v1633
        %v1635 = vrot.slane %v1633, 4
        %v1641 = vld [vmem:[#allocation3 + $0x98] sm:$0xe]
        %v1642 = vsel %vm783, %v1604, %v1641
        %1643 = vst [vmem:[#allocation3 + $0x98] sm:$0xe] %v1642
        %1644 = vst [vmem:[#allocation3 + $0x9c] sm:$0xf] %v1614
        %1645 = vst [vmem:[#allocation3 + $0xa0] sm:$0xf] %v1624
        %1646 = vst [vmem:[#allocation3 + $0xa4] sm:$0xf] %v1634
        %v1647 = vld [vmem:[#allocation3 + $0xa8] sm:$0x3]
        %v1648 = vsel %vm791, %v1635, %v1647
        %1649 = vst [vmem:[#allocation3 + $0xa8] sm:$0x3] %v1648
        %s1650 = sadd.s32 %s569, 10
        %p1651 = scmp.ge.s32.totalorder %s1442, 0
        %p1652 = scmp.le.s32.totalorder %s1442, 31
        %p1653 = pnand %p1651, %p1652
        %p1654 = pneg %p1653
        %s1655 = sld [smem:[#allocation8 + %s1650]]
        %s1656 = scvt.s32.f32 %s1655
        %s1657 = smul.f32 %s1656, 0.032258064
        %s1658 = scalar_select %p1654, %s1657, 0.0
        %s1659 = ssub.f32 1.0, %s1657
        %s1660 = scalar_select %p1654, %s1659, 0.0
        %s1661 = sld [smem:[#allocation6 + %s1650]]
        %s1662 = smul.u32 %s1661, 4
        %s1663 = smul.addr %s1662, 4
        %s1664 = scalar_lea.vmem [#allocation2], %s1663
        %v1665 = vld [vmem:[%s1664] sm:$0xf]
        %v1666 = vld [vmem:[%s1664 + $0x4] sm:$0xf]
        %v1667 = vld [vmem:[%s1664 + $0x8] sm:$0xf]
        %v1668 = vld [vmem:[%s1664 + $0xc] sm:$0xf]
        %v1669 = vunpack.c.l.bf16 %v1665
        %v1670 = vunpack.c.l.bf16 %v1666
        %v1671 = vunpack.c.l.bf16 %v1667
        %v1672 = vunpack.c.l.bf16 %v1668
        %v1673 = vstv %s1660
        %v1674 = vmul.f32 %v1673, %v1669
        %v1675 = vmul.f32 %v1673, %v1670
        %v1676 = vmul.f32 %v1673, %v1671
        %v1677 = vmul.f32 %v1673, %v1672
        %s1678 = sld [smem:[#allocation7 + %s1650]]
        %s1679 = smul.u32 %s1678, 4
        %s1680 = smul.addr %s1679, 4
        %s1681 = scalar_lea.vmem [#allocation2], %s1680
        %v1682 = vld [vmem:[%s1681] sm:$0xf]
        %v1683 = vld [vmem:[%s1681 + $0x4] sm:$0xf]
        %v1684 = vld [vmem:[%s1681 + $0x8] sm:$0xf]
        %v1685 = vld [vmem:[%s1681 + $0xc] sm:$0xf]
        %v1686 = vunpack.c.l.bf16 %v1682
        %v1687 = vunpack.c.l.bf16 %v1683
        %v1688 = vunpack.c.l.bf16 %v1684
        %v1689 = vunpack.c.l.bf16 %v1685
        %v1690 = vstv %s1658
        %v1691 = vmul.f32 %v1690, %v1686
        %v1692 = vmul.f32 %v1690, %v1687
        %v1693 = vmul.f32 %v1690, %v1688
        %v1694 = vmul.f32 %v1690, %v1689
        %v1695 = vadd.f32 %v1674, %v1691
        %v1696 = vadd.f32 %v1675, %v1692
        %v1697 = vadd.f32 %v1676, %v1693
        %v1698 = vadd.f32 %v1677, %v1694
        %v1699 = vpack.c.bf16 %v1695, %v1695
        %v1700 = vpack.c.bf16 %v1696, %v1696
        %v1701 = vpack.c.bf16 %v1697, %v1697
        %v1702 = vpack.c.bf16 %v1698, %v1698
        %v1704 = vshrl.u32 %v1699, 16
        %v1706 = vrot.slane %v1704, 5
        %v1707 = vshll.u32 %v1699, 16
        %v1709 = vrot.slane %v1707, 6
        %v1710 = vor.u32 %v1706, %v1709
        %v1711 = vrot.slane %v1710, 4
        %v1713 = vshrl.u32 %v1700, 16
        %v1715 = vrot.slane %v1713, 5
        %v1716 = vshll.u32 %v1700, 16
        %v1718 = vrot.slane %v1716, 6
        %v1719 = vor.u32 %v1715, %v1718
        %v1720 = vsel %vm850, %v1711, %v1719
        %v1721 = vrot.slane %v1719, 4
        %v1723 = vshrl.u32 %v1701, 16
        %v1725 = vrot.slane %v1723, 5
        %v1726 = vshll.u32 %v1701, 16
        %v1728 = vrot.slane %v1726, 6
        %v1729 = vor.u32 %v1725, %v1728
        %v1730 = vsel %vm850, %v1721, %v1729
        %v1731 = vrot.slane %v1729, 4
        %v1733 = vshrl.u32 %v1702, 16
        %v1735 = vrot.slane %v1733, 5
        %v1736 = vshll.u32 %v1702, 16
        %v1738 = vrot.slane %v1736, 6
        %v1739 = vor.u32 %v1735, %v1738
        %v1740 = vsel %vm850, %v1731, %v1739
        %v1741 = vrot.slane %v1739, 4
        %v1747 = vld [vmem:[#allocation3 + $0xa8] sm:$0xc]
        %v1748 = vsel %vm897, %v1710, %v1747
        %1749 = vst [vmem:[#allocation3 + $0xa8] sm:$0xc] %v1748
        %1750 = vst [vmem:[#allocation3 + $0xac] sm:$0xf] %v1720
        %1751 = vst [vmem:[#allocation3 + $0xb0] sm:$0xf] %v1730
        %1752 = vst [vmem:[#allocation3 + $0xb4] sm:$0xf] %v1740
        %v1753 = vld [vmem:[#allocation3 + $0xb8] sm:$0x7]
        %v1754 = vsel %vm905, %v1741, %v1753
        %1755 = vst [vmem:[#allocation3 + $0xb8] sm:$0x7] %v1754
        %s1756 = sadd.s32 %s569, 11
        %p1757 = scmp.ge.s32.totalorder %s1544, 0
        %p1758 = scmp.le.s32.totalorder %s1544, 31
        %p1759 = pnand %p1757, %p1758
        %p1760 = pneg %p1759
        %s1761 = sld [smem:[#allocation8 + %s1756]]
        %s1762 = scvt.s32.f32 %s1761
        %s1763 = smul.f32 %s1762, 0.032258064
        %s1764 = scalar_select %p1760, %s1763, 0.0
        %s1765 = ssub.f32 1.0, %s1763
        %s1766 = scalar_select %p1760, %s1765, 0.0
        %s1767 = sld [smem:[#allocation6 + %s1756]]
        %s1768 = smul.u32 %s1767, 4
        %s1769 = smul.addr %s1768, 4
        %s1770 = scalar_lea.vmem [#allocation2], %s1769
        %v1771 = vld [vmem:[%s1770] sm:$0xf]
        %v1772 = vld [vmem:[%s1770 + $0x4] sm:$0xf]
        %v1773 = vld [vmem:[%s1770 + $0x8] sm:$0xf]
        %v1774 = vld [vmem:[%s1770 + $0xc] sm:$0xf]
        %v1775 = vunpack.c.l.bf16 %v1771
        %v1776 = vunpack.c.l.bf16 %v1772
        %v1777 = vunpack.c.l.bf16 %v1773
        %v1778 = vunpack.c.l.bf16 %v1774
        %v1779 = vstv %s1766
        %v1780 = vmul.f32 %v1779, %v1775
        %v1781 = vmul.f32 %v1779, %v1776
        %v1782 = vmul.f32 %v1779, %v1777
        %v1783 = vmul.f32 %v1779, %v1778
        %s1784 = sld [smem:[#allocation7 + %s1756]]
        %s1785 = smul.u32 %s1784, 4
        %s1786 = smul.addr %s1785, 4
        %s1787 = scalar_lea.vmem [#allocation2], %s1786
        %v1788 = vld [vmem:[%s1787] sm:$0xf]
        %v1789 = vld [vmem:[%s1787 + $0x4] sm:$0xf]
        %v1790 = vld [vmem:[%s1787 + $0x8] sm:$0xf]
        %v1791 = vld [vmem:[%s1787 + $0xc] sm:$0xf]
        %v1792 = vunpack.c.l.bf16 %v1788
        %v1793 = vunpack.c.l.bf16 %v1789
        %v1794 = vunpack.c.l.bf16 %v1790
        %v1795 = vunpack.c.l.bf16 %v1791
        %v1796 = vstv %s1764
        %v1797 = vmul.f32 %v1796, %v1792
        %v1798 = vmul.f32 %v1796, %v1793
        %v1799 = vmul.f32 %v1796, %v1794
        %v1800 = vmul.f32 %v1796, %v1795
        %v1801 = vadd.f32 %v1780, %v1797
        %v1802 = vadd.f32 %v1781, %v1798
        %v1803 = vadd.f32 %v1782, %v1799
        %v1804 = vadd.f32 %v1783, %v1800
        %v1805 = vpack.c.bf16 %v1801, %v1801
        %v1806 = vpack.c.bf16 %v1802, %v1802
        %v1807 = vpack.c.bf16 %v1803, %v1803
        %v1808 = vpack.c.bf16 %v1804, %v1804
        %v1810 = vshll.u32 %v1805, 16
        %v1812 = vrot.slane %v1810, 5
        %v1813 = vshrl.u32 %v1805, 16
        %v1815 = vrot.slane %v1813, 4
        %v1816 = vor.u32 %v1815, %v1812
        %v1817 = vrot.slane %v1816, 4
        %v1819 = vshll.u32 %v1806, 16
        %v1821 = vrot.slane %v1819, 5
        %v1822 = vsel %vm964, %v1817, %v1821
        %v1823 = vshrl.u32 %v1806, 16
        %v1825 = vrot.slane %v1823, 4
        %v1826 = vor.u32 %v1825, %v1821
        %v1827 = vrot.slane %v1826, 4
        %v1829 = vshll.u32 %v1807, 16
        %v1831 = vrot.slane %v1829, 5
        %v1832 = vsel %vm964, %v1827, %v1831
        %v1833 = vshrl.u32 %v1807, 16
        %v1835 = vrot.slane %v1833, 4
        %v1836 = vor.u32 %v1835, %v1831
        %v1837 = vrot.slane %v1836, 4
        %v1839 = vshll.u32 %v1808, 16
        %v1841 = vrot.slane %v1839, 5
        %v1842 = vsel %vm964, %v1837, %v1841
        %v1843 = vshrl.u32 %v1808, 16
        %v1845 = vrot.slane %v1843, 4
        %v1846 = vor.u32 %v1845, %v1841
        %v1847 = vrot.slane %v1846, 4
        %v1853 = vld [vmem:[#allocation3 + $0xb8] sm:$0x8]
        %v1854 = vsel %vm1011, %v1812, %v1853
        %1855 = vst [vmem:[#allocation3 + $0xb8] sm:$0x8] %v1854
        %1856 = vst [vmem:[#allocation3 + $0xbc] sm:$0xf] %v1822
        %1857 = vst [vmem:[#allocation3 + $0xc0] sm:$0xf] %v1832
        %1858 = vst [vmem:[#allocation3 + $0xc4] sm:$0xf] %v1842
        %v1859 = vld [vmem:[#allocation3 + $0xc8] sm:$0xf]
        %v1860 = vsel %vm1018, %v1847, %v1859
        %1861 = vst [vmem:[#allocation3 + $0xc8] sm:$0xf] %v1860
        %v1862 = vld [vmem:[#allocation3] sm:$0xf]
        %v1863 = vld [vmem:[#allocation3 + $0x4] sm:$0xf]
        %v1864 = vld [vmem:[#allocation3 + $0x8] sm:$0xf]
        %v1865 = vld [vmem:[#allocation3 + $0xc] sm:$0xf]
        %v1866 = vld [vmem:[#allocation3 + $0x10] sm:$0xf]
        %v1867 = vld [vmem:[#allocation3 + $0x14] sm:$0xf]
        %v1868 = vld [vmem:[#allocation3 + $0x18] sm:$0xf]
        %v1869 = vld [vmem:[#allocation3 + $0x1c] sm:$0xf]
        %v1870 = vld [vmem:[#allocation3 + $0x20] sm:$0xf]
        %v1871 = vld [vmem:[#allocation3 + $0x24] sm:$0xf]
        %v1872 = vld [vmem:[#allocation3 + $0x28] sm:$0xf]
        %v1873 = vld [vmem:[#allocation3 + $0x2c] sm:$0xf]
        %v1874 = vld [vmem:[#allocation3 + $0x30] sm:$0xf]
        %v1875 = vld [vmem:[#allocation3 + $0x34] sm:$0xf]
        %v1876 = vld [vmem:[#allocation3 + $0x38] sm:$0xf]
        %v1877 = vld [vmem:[#allocation3 + $0x3c] sm:$0xf]
        %v1878 = vld [vmem:[#allocation3 + $0x40] sm:$0xf]
        %v1879 = vld [vmem:[#allocation3 + $0x44] sm:$0xf]
        %v1880 = vld [vmem:[#allocation3 + $0x48] sm:$0xf]
        %v1881 = vld [vmem:[#allocation3 + $0x4c] sm:$0xf]
        %v1882 = vld [vmem:[#allocation3 + $0x50] sm:$0xf]
        %v1883 = vld [vmem:[#allocation3 + $0x54] sm:$0xf]
        %v1884 = vld [vmem:[#allocation3 + $0x58] sm:$0xf]
        %v1885 = vld [vmem:[#allocation3 + $0x5c] sm:$0xf]
        %v1886 = vld [vmem:[#allocation3 + $0x60] sm:$0xf]
        %v1887 = vld [vmem:[#allocation3 + $0x64] sm:$0xf]
        %v1888 = vld [vmem:[#allocation3 + $0x68] sm:$0xf]
        %v1889 = vld [vmem:[#allocation3 + $0x6c] sm:$0xf]
        %v1890 = vld [vmem:[#allocation3 + $0x70] sm:$0xf]
        %v1891 = vld [vmem:[#allocation3 + $0x74] sm:$0xf]
        %v1892 = vld [vmem:[#allocation3 + $0x78] sm:$0xf]
        %v1893 = vld [vmem:[#allocation3 + $0x7c] sm:$0xf]
        %v1894 = vld [vmem:[#allocation3 + $0x80] sm:$0xf]
        %v1895 = vld [vmem:[#allocation3 + $0x84] sm:$0xf]
        %v1896 = vld [vmem:[#allocation3 + $0x88] sm:$0xf]
        %v1897 = vld [vmem:[#allocation3 + $0x8c] sm:$0xf]
        %v1898 = vld [vmem:[#allocation3 + $0x90] sm:$0xf]
        %v1899 = vld [vmem:[#allocation3 + $0x94] sm:$0xf]
        %v1900 = vld [vmem:[#allocation3 + $0x98] sm:$0xf]
        %v1901 = vld [vmem:[#allocation3 + $0x9c] sm:$0xf]
        %v1902 = vld [vmem:[#allocation3 + $0xa0] sm:$0xf]
        %v1903 = vld [vmem:[#allocation3 + $0xa4] sm:$0xf]
        %v1904 = vld [vmem:[#allocation3 + $0xa8] sm:$0x3]
        %v1905 = vld [vmem:[#allocation12] sm:$0xf]
        %v1906 = vld [vmem:[#allocation12 + $0x4] sm:$0xf]
        %v1907 = vld [vmem:[#allocation12 + $0x8] sm:$0xf]
        %v1908 = vld [vmem:[#allocation12 + $0xc] sm:$0xf]
        %v1909 = vld [vmem:[#allocation12 + $0x10] sm:$0xf]
        %v1910 = vld [vmem:[#allocation12 + $0x14] sm:$0xf]
        %v1911 = vld [vmem:[#allocation12 + $0x18] sm:$0xf]
        %v1912 = vld [vmem:[#allocation12 + $0x1c] sm:$0xf]
        %v1913 = vld [vmem:[#allocation12 + $0x20] sm:$0xf]
        %v1914 = vld [vmem:[#allocation12 + $0x24] sm:$0xf]
        %v1915 = vld [vmem:[#allocation12 + $0x28] sm:$0xf]
        %v1916 = vld [vmem:[#allocation12 + $0x2c] sm:$0xf]
        %v1917 = vld [vmem:[#allocation12 + $0x30] sm:$0xf]
        %v1918 = vld [vmem:[#allocation12 + $0x34] sm:$0xf]
        %v1919 = vld [vmem:[#allocation12 + $0x38] sm:$0xf]
        %v1920 = vld [vmem:[#allocation12 + $0x3c] sm:$0xf]
        %v1921 = vld [vmem:[#allocation3 + $0xa8] sm:$0x7]
        %v1922 = vld [vmem:[#allocation12 + $0x40] sm:$0xf]
        %v1923 = vld [vmem:[#allocation12 + $0x44] sm:$0xf]
        %v1924 = vld [vmem:[#allocation12 + $0x48] sm:$0xf]
        %v1925 = vld [vmem:[#allocation12 + $0x4c] sm:$0xf]
        %v1926 = vld [vmem:[#allocation12 + $0x50] sm:$0xf]
        %v1927 = vld [vmem:[#allocation12 + $0x54] sm:$0xf]
        %v1928 = vld [vmem:[#allocation12 + $0x58] sm:$0xf]
        %v1929 = vld [vmem:[#allocation12 + $0x5c] sm:$0xf]
        %v1930 = vld [vmem:[#allocation12 + $0x60] sm:$0xf]
        %v1931 = vld [vmem:[#allocation12 + $0x64] sm:$0xf]
        %v1932 = vld [vmem:[#allocation12 + $0x68] sm:$0xf]
        %v1933 = vld [vmem:[#allocation12 + $0x6c] sm:$0xf]
        %v1934 = vld [vmem:[#allocation12 + $0x70] sm:$0xf]
        %v1935 = vld [vmem:[#allocation12 + $0x74] sm:$0xf]
        %v1936 = vld [vmem:[#allocation12 + $0x78] sm:$0xf]
        %v1937 = vld [vmem:[#allocation12 + $0x7c] sm:$0xf]
        %v1981 = vunpack.c.l.b16 %v1862
        %v1982 = vunpack.c.l.b16 %v1863
        %v1983 = vunpack.c.l.b16 %v1864
        %v1984 = vunpack.c.l.b16 %v1865
        %v1985 = vunpack.c.l.b16 %v1866
        %v1986 = vunpack.c.l.b16 %v1867
        %v1987 = vunpack.c.l.b16 %v1868
        %v1988 = vunpack.c.l.b16 %v1869
        %v1989 = vunpack.c.l.b16 %v1870
        %v1990 = vunpack.c.l.b16 %v1871
        %v1991 = vunpack.c.l.b16 %v1872
        %v1992 = vunpack.c.l.b16 %v1873
        %v1993 = vunpack.c.l.b16 %v1874
        %v1994 = vunpack.c.l.b16 %v1875
        %v1995 = vunpack.c.l.b16 %v1876
        %v1996 = vunpack.c.l.b16 %v1877
        %v1997 = vunpack.c.l.b16 %v1878
        %v1998 = vunpack.c.l.b16 %v1879
        %v1999 = vunpack.c.l.b16 %v1880
        %v2000 = vunpack.c.l.b16 %v1881
        %v2001 = vunpack.c.l.b16 %v1882
        %v2002 = vunpack.c.l.b16 %v1883
        %v2003 = vunpack.c.l.b16 %v1884
        %v2004 = vunpack.c.l.b16 %v1885
        %v2005 = vunpack.c.l.b16 %v1886
        %v2006 = vunpack.c.l.b16 %v1887
        %v2007 = vunpack.c.l.b16 %v1888
        %v2008 = vunpack.c.l.b16 %v1889
        %v2009 = vunpack.c.l.b16 %v1890
        %v2010 = vunpack.c.l.b16 %v1891
        %v2011 = vunpack.c.l.b16 %v1892
        %v2012 = vunpack.c.l.b16 %v1893
        %v2013 = vunpack.c.l.b16 %v1894
        %v2014 = vunpack.c.l.b16 %v1895
        %v2015 = vunpack.c.l.b16 %v1896
        %v2016 = vunpack.c.l.b16 %v1897
        %v2017 = vunpack.c.l.b16 %v1898
        %v2018 = vunpack.c.l.b16 %v1899
        %v2019 = vunpack.c.l.b16 %v1900
        %v2020 = vunpack.c.l.b16 %v1901
        %v2021 = vunpack.c.l.b16 %v1902
        %v2022 = vunpack.c.l.b16 %v1903
        %v2023 = vunpack.c.l.b16 %v1921
        %v2024 = vpack.c.b16 %v1982, %v1981
        %v2025 = vpack.c.b16 %v1984, %v1983
        %v2026 = vpack.c.b16 %v1986, %v1985
        %v2027 = vpack.c.b16 %v1988, %v1987
        %v2028 = vpack.c.b16 %v1990, %v1989
        %v2029 = vpack.c.b16 %v1992, %v1991
        %v2030 = vpack.c.b16 %v1994, %v1993
        %v2031 = vpack.c.b16 %v1996, %v1995
        %v2032 = vpack.c.b16 %v1998, %v1997
        %v2033 = vpack.c.b16 %v2000, %v1999
        %v2034 = vpack.c.b16 %v2002, %v2001
        %v2035 = vpack.c.b16 %v2004, %v2003
        %v2036 = vpack.c.b16 %v2006, %v2005
        %v2037 = vpack.c.b16 %v2008, %v2007
        %v2038 = vpack.c.b16 %v2010, %v2009
        %v2039 = vpack.c.b16 %v2012, %v2011
        %v2040 = vpack.c.b16 %v2014, %v2013
        %v2041 = vpack.c.b16 %v2016, %v2015
        %v2042 = vpack.c.b16 %v2018, %v2017
        %v2043 = vpack.c.b16 %v2020, %v2019
        %v2044 = vpack.c.b16 %v2022, %v2021
        %v2045 = vpack.c.b16 %v2023, %v2023
        %vm2046 = vsmask.f32 7424
        %v2048 = vshrl.u32 %v2024, 16
        %v2050 = vshll.u32 %v2024, 16
        %v2052 = vrot.slane %v2050, 1
        %v2053 = vor.u32 %v2048, %v2052
        %v2055 = vshll.u32 %v2025, 16
        %v2057 = vrot.slane %v2055, 1
        %v2058 = vsel %vm2046, %v2053, %v2057
        %v2059 = vshrl.u32 %v2025, 16
        %v2061 = vor.u32 %v2059, %v2057
        %v2063 = vshll.u32 %v2026, 16
        %v2065 = vrot.slane %v2063, 1
        %v2066 = vsel %vm2046, %v2061, %v2065
        %v2067 = vshrl.u32 %v2026, 16
        %v2069 = vor.u32 %v2067, %v2065
        %v2071 = vshll.u32 %v2027, 16
        %v2073 = vrot.slane %v2071, 1
        %v2074 = vsel %vm2046, %v2069, %v2073
        %v2075 = vshrl.u32 %v2027, 16
        %v2077 = vor.u32 %v2075, %v2073
        %v2079 = vshll.u32 %v2028, 16
        %v2081 = vrot.slane %v2079, 1
        %v2082 = vsel %vm2046, %v2077, %v2081
        %v2083 = vshrl.u32 %v2028, 16
        %v2085 = vor.u32 %v2083, %v2081
        %v2087 = vshll.u32 %v2029, 16
        %v2089 = vrot.slane %v2087, 1
        %v2090 = vsel %vm2046, %v2085, %v2089
        %v2091 = vshrl.u32 %v2029, 16
        %v2093 = vor.u32 %v2091, %v2089
        %v2095 = vshll.u32 %v2030, 16
        %v2097 = vrot.slane %v2095, 1
        %v2098 = vsel %vm2046, %v2093, %v2097
        %v2099 = vshrl.u32 %v2030, 16
        %v2101 = vor.u32 %v2099, %v2097
        %v2103 = vshll.u32 %v2031, 16
        %v2105 = vrot.slane %v2103, 1
        %v2106 = vsel %vm2046, %v2101, %v2105
        %v2107 = vshrl.u32 %v2031, 16
        %v2109 = vor.u32 %v2107, %v2105
        %v2111 = vshll.u32 %v2032, 16
        %v2113 = vrot.slane %v2111, 1
        %v2114 = vsel %vm2046, %v2109, %v2113
        %v2115 = vshrl.u32 %v2032, 16
        %v2117 = vor.u32 %v2115, %v2113
        %v2119 = vshll.u32 %v2033, 16
        %v2121 = vrot.slane %v2119, 1
        %v2122 = vsel %vm2046, %v2117, %v2121
        %v2123 = vshrl.u32 %v2033, 16
        %v2125 = vor.u32 %v2123, %v2121
        %v2127 = vshll.u32 %v2034, 16
        %v2129 = vrot.slane %v2127, 1
        %v2130 = vsel %vm2046, %v2125, %v2129
        %v2131 = vshrl.u32 %v2034, 16
        %v2133 = vor.u32 %v2131, %v2129
        %v2135 = vshll.u32 %v2035, 16
        %v2137 = vrot.slane %v2135, 1
        %v2138 = vsel %vm2046, %v2133, %v2137
        %v2139 = vshrl.u32 %v2035, 16
        %v2141 = vor.u32 %v2139, %v2137
        %v2143 = vshll.u32 %v2036, 16
        %v2145 = vrot.slane %v2143, 1
        %v2146 = vsel %vm2046, %v2141, %v2145
        %v2147 = vshrl.u32 %v2036, 16
        %v2149 = vor.u32 %v2147, %v2145
        %v2151 = vshll.u32 %v2037, 16
        %v2153 = vrot.slane %v2151, 1
        %v2154 = vsel %vm2046, %v2149, %v2153
        %v2155 = vshrl.u32 %v2037, 16
        %v2157 = vor.u32 %v2155, %v2153
        %v2159 = vshll.u32 %v2038, 16
        %v2161 = vrot.slane %v2159, 1
        %v2162 = vsel %vm2046, %v2157, %v2161
        %v2163 = vshrl.u32 %v2038, 16
        %v2165 = vor.u32 %v2163, %v2161
        %v2167 = vshll.u32 %v2039, 16
        %v2169 = vrot.slane %v2167, 1
        %v2170 = vsel %vm2046, %v2165, %v2169
        %v2171 = vshrl.u32 %v2039, 16
        %v2173 = vor.u32 %v2171, %v2169
        %v2175 = vshll.u32 %v2040, 16
        %v2177 = vrot.slane %v2175, 1
        %v2178 = vsel %vm2046, %v2173, %v2177
        %v2179 = vshrl.u32 %v2040, 16
        %v2181 = vor.u32 %v2179, %v2177
        %v2183 = vshll.u32 %v2041, 16
        %v2185 = vrot.slane %v2183, 1
        %v2186 = vsel %vm2046, %v2181, %v2185
        %v2187 = vshrl.u32 %v2041, 16
        %v2189 = vor.u32 %v2187, %v2185
        %v2191 = vshll.u32 %v2042, 16
        %v2193 = vrot.slane %v2191, 1
        %v2194 = vsel %vm2046, %v2189, %v2193
        %v2195 = vshrl.u32 %v2042, 16
        %v2197 = vor.u32 %v2195, %v2193
        %v2199 = vshll.u32 %v2043, 16
        %v2201 = vrot.slane %v2199, 1
        %v2202 = vsel %vm2046, %v2197, %v2201
        %v2203 = vshrl.u32 %v2043, 16
        %v2205 = vor.u32 %v2203, %v2201
        %v2207 = vshll.u32 %v2044, 16
        %v2209 = vrot.slane %v2207, 1
        %v2210 = vsel %vm2046, %v2205, %v2209
        %v2211 = vshrl.u32 %v2044, 16
        %v2213 = vor.u32 %v2211, %v2209
        %v2215 = vshll.u32 %v2045, 16
        %v2217 = vrot.slane %v2215, 1
        %v2218 = vsel %vm2046, %v2213, %v2217
        %v2219 = vshrl.u32 %v2045, 16
        %v2221 = vor.u32 %v2219, %v2217
        %v2260 = vunpack.c.l.b16 %v1922
        %v2261 = vunpack.c.l.b16 %v1923
        %v2262 = vunpack.c.l.b16 %v1924
        %v2263 = vunpack.c.l.b16 %v1925
        %v2264 = vunpack.c.l.b16 %v1926
        %v2265 = vunpack.c.l.b16 %v1927
        %v2266 = vunpack.c.l.b16 %v1928
        %v2267 = vunpack.c.l.b16 %v1929
        %v2268 = vunpack.c.l.b16 %v1930
        %v2269 = vunpack.c.l.b16 %v1931
        %v2270 = vunpack.c.l.b16 %v1932
        %v2271 = vunpack.c.l.b16 %v1933
        %v2272 = vunpack.c.l.b16 %v1934
        %v2273 = vunpack.c.l.b16 %v1935
        %v2274 = vunpack.c.l.b16 %v1936
        %v2275 = vunpack.c.l.b16 %v1937
        %v2276 = vpack.c.b16 %v2261, %v2260
        %v2277 = vpack.c.b16 %v2263, %v2262
        %v2278 = vpack.c.b16 %v2265, %v2264
        %v2279 = vpack.c.b16 %v2267, %v2266
        %v2280 = vpack.c.b16 %v2269, %v2268
        %v2281 = vpack.c.b16 %v2271, %v2270
        %v2282 = vpack.c.b16 %v2273, %v2272
        %v2283 = vpack.c.b16 %v2275, %v2274
        %2292 = vmatpush.bf16.msra.mxu0 %v2283
        %2293 = vmatpush.bf16.msra.mxu0 %v2282
        %2294 = vmatpush.bf16.msra.mxu0 %v2281
        %2295 = vmatpush.bf16.msra.mxu0 %v2280
        %2296 = vmatpush.bf16.msra.mxu0 %v2279
        %2297 = vmatpush.bf16.msra.mxu0 %v2278
        %2298 = vmatpush.bf16.msra.mxu0 %v2277
        %2299 = vmatpush.bf16.msra.mxu0 %v2276
        %2300 = vmatmul.bf16.gmra.mxu0 %v2058
        %v2301 = vpop.f32.mrf.mxu0
        %v2302 = vadd.f32 0.0, %v2301
        %v2303 = vpop.f32.mrf.mxu0
        %v2304 = vadd.f32 0.0, %v2303
        %2305 = vmatmul.bf16.gmra.mxu0 %v2066
        %v2306 = vpop.f32.mrf.mxu0
        %v2307 = vadd.f32 0.0, %v2306
        %v2308 = vpop.f32.mrf.mxu0
        %v2309 = vadd.f32 0.0, %v2308
        %2310 = vmatmul.bf16.gmra.mxu0 %v2074
        %v2311 = vpop.f32.mrf.mxu0
        %v2312 = vadd.f32 0.0, %v2311
        %v2313 = vpop.f32.mrf.mxu0
        %v2314 = vadd.f32 0.0, %v2313
        %2315 = vmatmul.bf16.gmra.mxu0 %v2082
        %v2316 = vpop.f32.mrf.mxu0
        %v2317 = vadd.f32 0.0, %v2316
        %v2318 = vpop.f32.mrf.mxu0
        %v2319 = vadd.f32 0.0, %v2318
        %2320 = vmatmul.bf16.gmra.mxu0 %v2090
        %v2321 = vpop.f32.mrf.mxu0
        %v2322 = vadd.f32 0.0, %v2321
        %v2323 = vpop.f32.mrf.mxu0
        %v2324 = vadd.f32 0.0, %v2323
        %2325 = vmatmul.bf16.gmra.mxu0 %v2098
        %v2326 = vpop.f32.mrf.mxu0
        %v2327 = vadd.f32 0.0, %v2326
        %v2328 = vpop.f32.mrf.mxu0
        %v2329 = vadd.f32 0.0, %v2328
        %2330 = vmatmul.bf16.gmra.mxu0 %v2106
        %v2331 = vpop.f32.mrf.mxu0
        %v2332 = vadd.f32 0.0, %v2331
        %v2333 = vpop.f32.mrf.mxu0
        %v2334 = vadd.f32 0.0, %v2333
        %2335 = vmatmul.bf16.gmra.mxu0 %v2114
        %v2336 = vpop.f32.mrf.mxu0
        %v2337 = vadd.f32 0.0, %v2336
        %v2338 = vpop.f32.mrf.mxu0
        %v2339 = vadd.f32 0.0, %v2338
        %2340 = vmatmul.bf16.gmra.mxu0 %v2122
        %v2341 = vpop.f32.mrf.mxu0
        %v2342 = vadd.f32 0.0, %v2341
        %v2343 = vpop.f32.mrf.mxu0
        %v2344 = vadd.f32 0.0, %v2343
        %2345 = vmatmul.bf16.gmra.mxu0 %v2130
        %v2346 = vpop.f32.mrf.mxu0
        %v2347 = vadd.f32 0.0, %v2346
        %v2348 = vpop.f32.mrf.mxu0
        %v2349 = vadd.f32 0.0, %v2348
        %2350 = vmatmul.bf16.gmra.mxu0 %v2138
        %v2351 = vpop.f32.mrf.mxu0
        %v2352 = vadd.f32 0.0, %v2351
        %v2353 = vpop.f32.mrf.mxu0
        %v2354 = vadd.f32 0.0, %v2353
        %2355 = vmatmul.bf16.gmra.mxu0 %v2146
        %v2356 = vpop.f32.mrf.mxu0
        %v2357 = vadd.f32 0.0, %v2356
        %v2358 = vpop.f32.mrf.mxu0
        %v2359 = vadd.f32 0.0, %v2358
        %2360 = vmatmul.bf16.gmra.mxu0 %v2154
        %v2361 = vpop.f32.mrf.mxu0
        %v2362 = vadd.f32 0.0, %v2361
        %v2363 = vpop.f32.mrf.mxu0
        %v2364 = vadd.f32 0.0, %v2363
        %2365 = vmatmul.bf16.gmra.mxu0 %v2162
        %v2366 = vpop.f32.mrf.mxu0
        %v2367 = vadd.f32 0.0, %v2366
        %v2368 = vpop.f32.mrf.mxu0
        %v2369 = vadd.f32 0.0, %v2368
        %2370 = vmatmul.bf16.gmra.mxu0 %v2170
        %v2371 = vpop.f32.mrf.mxu0
        %v2372 = vadd.f32 0.0, %v2371
        %v2373 = vpop.f32.mrf.mxu0
        %v2374 = vadd.f32 0.0, %v2373
        %2375 = vmatmul.bf16.gmra.mxu0 %v2178
        %v2376 = vpop.f32.mrf.mxu0
        %v2377 = vadd.f32 0.0, %v2376
        %v2378 = vpop.f32.mrf.mxu0
        %v2379 = vadd.f32 0.0, %v2378
        %2380 = vmatmul.bf16.gmra.mxu0 %v2186
        %v2381 = vpop.f32.mrf.mxu0
        %v2382 = vadd.f32 0.0, %v2381
        %v2383 = vpop.f32.mrf.mxu0
        %v2384 = vadd.f32 0.0, %v2383
        %2385 = vmatmul.bf16.gmra.mxu0 %v2194
        %v2386 = vpop.f32.mrf.mxu0
        %v2387 = vadd.f32 0.0, %v2386
        %v2388 = vpop.f32.mrf.mxu0
        %v2389 = vadd.f32 0.0, %v2388
        %2390 = vmatmul.bf16.gmra.mxu0 %v2202
        %v2391 = vpop.f32.mrf.mxu0
        %v2392 = vadd.f32 0.0, %v2391
        %v2393 = vpop.f32.mrf.mxu0
        %v2394 = vadd.f32 0.0, %v2393
        %2395 = vmatmul.bf16.gmra.mxu0 %v2210
        %v2396 = vpop.f32.mrf.mxu0
        %v2397 = vadd.f32 0.0, %v2396
        %v2398 = vpop.f32.mrf.mxu0
        %v2399 = vadd.f32 0.0, %v2398
        %2400 = vmatmul.bf16.gmra.mxu0 %v2218
        %v2401 = vpop.f32.mrf.mxu0
        %v2402 = vadd.f32 0.0, %v2401
        %v2403 = vpop.f32.mrf.mxu0
        %v2404 = vadd.f32 0.0, %v2403
        %2405 = vmatmul.bf16.gmra.mxu0 %v2221
        %v2406 = vpop.f32.mrf.mxu0
        %v2407 = vadd.f32 0.0, %v2406
        %v2408 = vpop.f32.mrf.mxu0
        %2409 = vdwg.mxu0
        %v2411 = vunpack.c.l.b16 %v1904
        %v2412 = vpack.c.b16 %v2411, %v2411
        %v2451 = vunpack.c.l.b16 %v1905
        %v2452 = vunpack.c.l.b16 %v1906
        %v2453 = vunpack.c.l.b16 %v1907
        %v2454 = vunpack.c.l.b16 %v1908
        %v2455 = vunpack.c.l.b16 %v1909
        %v2456 = vunpack.c.l.b16 %v1910
        %v2457 = vunpack.c.l.b16 %v1911
        %v2458 = vunpack.c.l.b16 %v1912
        %v2459 = vunpack.c.l.b16 %v1913
        %v2460 = vunpack.c.l.b16 %v1914
        %v2461 = vunpack.c.l.b16 %v1915
        %v2462 = vunpack.c.l.b16 %v1916
        %v2463 = vunpack.c.l.b16 %v1917
        %v2464 = vunpack.c.l.b16 %v1918
        %v2465 = vunpack.c.l.b16 %v1919
        %v2466 = vunpack.c.l.b16 %v1920
        %v2467 = vpack.c.b16 %v2452, %v2451
        %v2468 = vpack.c.b16 %v2454, %v2453
        %v2469 = vpack.c.b16 %v2456, %v2455
        %v2470 = vpack.c.b16 %v2458, %v2457
        %v2471 = vpack.c.b16 %v2460, %v2459
        %v2472 = vpack.c.b16 %v2462, %v2461
        %v2473 = vpack.c.b16 %v2464, %v2463
        %v2474 = vpack.c.b16 %v2466, %v2465
        %2483 = vmatpush.bf16.msra.mxu0 %v2474
        %2484 = vmatpush.bf16.msra.mxu0 %v2473
        %2485 = vmatpush.bf16.msra.mxu0 %v2472
        %2486 = vmatpush.bf16.msra.mxu0 %v2471
        %2487 = vmatpush.bf16.msra.mxu0 %v2470
        %2488 = vmatpush.bf16.msra.mxu0 %v2469
        %2489 = vmatpush.bf16.msra.mxu0 %v2468
        %2490 = vmatpush.bf16.msra.mxu0 %v2467
        %2491 = vmatmul.bf16.gmra.mxu0 %v2024
        %v2492 = vpop.f32.mrf.mxu0
        %v2493 = vadd.f32 %v2302, %v2492
        %v2494 = vpop.f32.mrf.mxu0
        %v2495 = vadd.f32 %v2304, %v2494
        %2496 = vmatmul.bf16.gmra.mxu0 %v2025
        %v2497 = vpop.f32.mrf.mxu0
        %v2498 = vadd.f32 %v2307, %v2497
        %v2499 = vpop.f32.mrf.mxu0
        %v2500 = vadd.f32 %v2309, %v2499
        %2501 = vmatmul.bf16.gmra.mxu0 %v2026
        %v2502 = vpop.f32.mrf.mxu0
        %v2503 = vadd.f32 %v2312, %v2502
        %v2504 = vpop.f32.mrf.mxu0
        %v2505 = vadd.f32 %v2314, %v2504
        %2506 = vmatmul.bf16.gmra.mxu0 %v2027
        %v2507 = vpop.f32.mrf.mxu0
        %v2508 = vadd.f32 %v2317, %v2507
        %v2509 = vpop.f32.mrf.mxu0
        %v2510 = vadd.f32 %v2319, %v2509
        %2511 = vmatmul.bf16.gmra.mxu0 %v2028
        %v2512 = vpop.f32.mrf.mxu0
        %v2513 = vadd.f32 %v2322, %v2512
        %v2514 = vpop.f32.mrf.mxu0
        %v2515 = vadd.f32 %v2324, %v2514
        %2516 = vmatmul.bf16.gmra.mxu0 %v2029
        %v2517 = vpop.f32.mrf.mxu0
        %v2518 = vadd.f32 %v2327, %v2517
        %v2519 = vpop.f32.mrf.mxu0
        %v2520 = vadd.f32 %v2329, %v2519
        %2521 = vmatmul.bf16.gmra.mxu0 %v2030
        %v2522 = vpop.f32.mrf.mxu0
        %v2523 = vadd.f32 %v2332, %v2522
        %v2524 = vpop.f32.mrf.mxu0
        %v2525 = vadd.f32 %v2334, %v2524
        %2526 = vmatmul.bf16.gmra.mxu0 %v2031
        %v2527 = vpop.f32.mrf.mxu0
        %v2528 = vadd.f32 %v2337, %v2527
        %v2529 = vpop.f32.mrf.mxu0
        %v2530 = vadd.f32 %v2339, %v2529
        %2531 = vmatmul.bf16.gmra.mxu0 %v2032
        %v2532 = vpop.f32.mrf.mxu0
        %v2533 = vadd.f32 %v2342, %v2532
        %v2534 = vpop.f32.mrf.mxu0
        %v2535 = vadd.f32 %v2344, %v2534
        %2536 = vmatmul.bf16.gmra.mxu0 %v2033
        %v2537 = vpop.f32.mrf.mxu0
        %v2538 = vadd.f32 %v2347, %v2537
        %v2539 = vpop.f32.mrf.mxu0
        %v2540 = vadd.f32 %v2349, %v2539
        %2541 = vmatmul.bf16.gmra.mxu0 %v2034
        %v2542 = vpop.f32.mrf.mxu0
        %v2543 = vadd.f32 %v2352, %v2542
        %v2544 = vpop.f32.mrf.mxu0
        %v2545 = vadd.f32 %v2354, %v2544
        %2546 = vmatmul.bf16.gmra.mxu0 %v2035
        %v2547 = vpop.f32.mrf.mxu0
        %v2548 = vadd.f32 %v2357, %v2547
        %v2549 = vpop.f32.mrf.mxu0
        %v2550 = vadd.f32 %v2359, %v2549
        %2551 = vmatmul.bf16.gmra.mxu0 %v2036
        %v2552 = vpop.f32.mrf.mxu0
        %v2553 = vadd.f32 %v2362, %v2552
        %v2554 = vpop.f32.mrf.mxu0
        %v2555 = vadd.f32 %v2364, %v2554
        %2556 = vmatmul.bf16.gmra.mxu0 %v2037
        %v2557 = vpop.f32.mrf.mxu0
        %v2558 = vadd.f32 %v2367, %v2557
        %v2559 = vpop.f32.mrf.mxu0
        %v2560 = vadd.f32 %v2369, %v2559
        %2561 = vmatmul.bf16.gmra.mxu0 %v2038
        %v2562 = vpop.f32.mrf.mxu0
        %v2563 = vadd.f32 %v2372, %v2562
        %v2564 = vpop.f32.mrf.mxu0
        %v2565 = vadd.f32 %v2374, %v2564
        %2566 = vmatmul.bf16.gmra.mxu0 %v2039
        %v2567 = vpop.f32.mrf.mxu0
        %v2568 = vadd.f32 %v2377, %v2567
        %v2569 = vpop.f32.mrf.mxu0
        %v2570 = vadd.f32 %v2379, %v2569
        %2571 = vmatmul.bf16.gmra.mxu0 %v2040
        %v2572 = vpop.f32.mrf.mxu0
        %v2573 = vadd.f32 %v2382, %v2572
        %v2574 = vpop.f32.mrf.mxu0
        %v2575 = vadd.f32 %v2384, %v2574
        %2576 = vmatmul.bf16.gmra.mxu0 %v2041
        %v2577 = vpop.f32.mrf.mxu0
        %v2578 = vadd.f32 %v2387, %v2577
        %v2579 = vpop.f32.mrf.mxu0
        %v2580 = vadd.f32 %v2389, %v2579
        %2581 = vmatmul.bf16.gmra.mxu0 %v2042
        %v2582 = vpop.f32.mrf.mxu0
        %v2583 = vadd.f32 %v2392, %v2582
        %v2584 = vpop.f32.mrf.mxu0
        %v2585 = vadd.f32 %v2394, %v2584
        %2586 = vmatmul.bf16.gmra.mxu0 %v2043
        %v2587 = vpop.f32.mrf.mxu0
        %v2588 = vadd.f32 %v2397, %v2587
        %v2589 = vpop.f32.mrf.mxu0
        %v2590 = vadd.f32 %v2399, %v2589
        %2591 = vmatmul.bf16.gmra.mxu0 %v2044
        %v2592 = vpop.f32.mrf.mxu0
        %v2593 = vadd.f32 %v2402, %v2592
        %v2594 = vpop.f32.mrf.mxu0
        %v2595 = vadd.f32 %v2404, %v2594
        %2596 = vmatmul.bf16.gmra.mxu0 %v2412
        %v2597 = vpop.f32.mrf.mxu0
        %v2598 = vadd.f32 %v2407, %v2597
        %v2599 = vpop.f32.mrf.mxu0
        %2600 = vdwg.mxu0
        %v2601 = vld [vmem:[#allocation3] sm:$0xe]
        %v2602 = vld [vmem:[#allocation12 + $0x80] sm:$0xf]
        %v2603 = vld [vmem:[#allocation12 + $0x84] sm:$0xf]
        %v2604 = vld [vmem:[#allocation12 + $0x88] sm:$0xf]
        %v2605 = vld [vmem:[#allocation12 + $0x8c] sm:$0xf]
        %v2606 = vld [vmem:[#allocation12 + $0x90] sm:$0xf]
        %v2607 = vld [vmem:[#allocation12 + $0x94] sm:$0xf]
        %v2608 = vld [vmem:[#allocation12 + $0x98] sm:$0xf]
        %v2609 = vld [vmem:[#allocation12 + $0x9c] sm:$0xf]
        %v2610 = vld [vmem:[#allocation12 + $0xa0] sm:$0xf]
        %v2611 = vld [vmem:[#allocation12 + $0xa4] sm:$0xf]
        %v2612 = vld [vmem:[#allocation12 + $0xa8] sm:$0xf]
        %v2613 = vld [vmem:[#allocation12 + $0xac] sm:$0xf]
        %v2614 = vld [vmem:[#allocation12 + $0xb0] sm:$0xf]
        %v2615 = vld [vmem:[#allocation12 + $0xb4] sm:$0xf]
        %v2616 = vld [vmem:[#allocation12 + $0xb8] sm:$0xf]
        %v2617 = vld [vmem:[#allocation12 + $0xbc] sm:$0xf]
        %v2619 = vunpack.c.l.b16 %v2601
        %v2620 = vpack.c.b16 %v1982, %v2619
        %vm2621 = vcmask 1046528
        %v2622 = vrot.slane %v2620, 1
        %v2623 = vrot.slane %v2025, 1
        %v2624 = vsel %vm2621, %v2622, %v2623
        %v2625 = vrot.slane %v2026, 1
        %v2626 = vsel %vm2621, %v2623, %v2625
        %v2627 = vrot.slane %v2027, 1
        %v2628 = vsel %vm2621, %v2625, %v2627
        %v2629 = vrot.slane %v2028, 1
        %v2630 = vsel %vm2621, %v2627, %v2629
        %v2631 = vrot.slane %v2029, 1
        %v2632 = vsel %vm2621, %v2629, %v2631
        %v2633 = vrot.slane %v2030, 1
        %v2634 = vsel %vm2621, %v2631, %v2633
        %v2635 = vrot.slane %v2031, 1
        %v2636 = vsel %vm2621, %v2633, %v2635
        %v2637 = vrot.slane %v2032, 1
        %v2638 = vsel %vm2621, %v2635, %v2637
        %v2639 = vrot.slane %v2033, 1
        %v2640 = vsel %vm2621, %v2637, %v2639
        %v2641 = vrot.slane %v2034, 1
        %v2642 = vsel %vm2621, %v2639, %v2641
        %v2643 = vrot.slane %v2035, 1
        %v2644 = vsel %vm2621, %v2641, %v2643
        %v2645 = vrot.slane %v2036, 1
        %v2646 = vsel %vm2621, %v2643, %v2645
        %v2647 = vrot.slane %v2037, 1
        %v2648 = vsel %vm2621, %v2645, %v2647
        %v2649 = vrot.slane %v2038, 1
        %v2650 = vsel %vm2621, %v2647, %v2649
        %v2651 = vrot.slane %v2039, 1
        %v2652 = vsel %vm2621, %v2649, %v2651
        %v2653 = vrot.slane %v2040, 1
        %v2654 = vsel %vm2621, %v2651, %v2653
        %v2655 = vrot.slane %v2041, 1
        %v2656 = vsel %vm2621, %v2653, %v2655
        %v2657 = vrot.slane %v2042, 1
        %v2658 = vsel %vm2621, %v2655, %v2657
        %v2659 = vrot.slane %v2043, 1
        %v2660 = vsel %vm2621, %v2657, %v2659
        %v2661 = vrot.slane %v2044, 1
        %v2662 = vsel %vm2621, %v2659, %v2661
        %v2663 = vrot.slane %v2045, 1
        %v2664 = vsel %vm2621, %v2661, %v2663
        %v2703 = vunpack.c.l.b16 %v2602
        %v2704 = vunpack.c.l.b16 %v2603
        %v2705 = vunpack.c.l.b16 %v2604
        %v2706 = vunpack.c.l.b16 %v2605
        %v2707 = vunpack.c.l.b16 %v2606
        %v2708 = vunpack.c.l.b16 %v2607
        %v2709 = vunpack.c.l.b16 %v2608
        %v2710 = vunpack.c.l.b16 %v2609
        %v2711 = vunpack.c.l.b16 %v2610
        %v2712 = vunpack.c.l.b16 %v2611
        %v2713 = vunpack.c.l.b16 %v2612
        %v2714 = vunpack.c.l.b16 %v2613
        %v2715 = vunpack.c.l.b16 %v2614
        %v2716 = vunpack.c.l.b16 %v2615
        %v2717 = vunpack.c.l.b16 %v2616
        %v2718 = vunpack.c.l.b16 %v2617
        %v2719 = vpack.c.b16 %v2704, %v2703
        %v2720 = vpack.c.b16 %v2706, %v2705
        %v2721 = vpack.c.b16 %v2708, %v2707
        %v2722 = vpack.c.b16 %v2710, %v2709
        %v2723 = vpack.c.b16 %v2712, %v2711
        %v2724 = vpack.c.b16 %v2714, %v2713
        %v2725 = vpack.c.b16 %v2716, %v2715
        %v2726 = vpack.c.b16 %v2718, %v2717
        %2735 = vmatpush.bf16.msra.mxu0 %v2726
        %2736 = vmatpush.bf16.msra.mxu0 %v2725
        %2737 = vmatpush.bf16.msra.mxu0 %v2724
        %2738 = vmatpush.bf16.msra.mxu0 %v2723
        %2739 = vmatpush.bf16.msra.mxu0 %v2722
        %2740 = vmatpush.bf16.msra.mxu0 %v2721
        %2741 = vmatpush.bf16.msra.mxu0 %v2720
        %2742 = vmatpush.bf16.msra.mxu0 %v2719
        %2743 = vmatmul.bf16.gmra.mxu0 %v2624
        %v2744 = vpop.f32.mrf.mxu0
        %v2745 = vadd.f32 0.0, %v2744
        %v2746 = vpop.f32.mrf.mxu0
        %v2747 = vadd.f32 0.0, %v2746
        %2748 = vmatmul.bf16.gmra.mxu0 %v2626
        %v2749 = vpop.f32.mrf.mxu0
        %v2750 = vadd.f32 0.0, %v2749
        %v2751 = vpop.f32.mrf.mxu0
        %v2752 = vadd.f32 0.0, %v2751
        %2753 = vmatmul.bf16.gmra.mxu0 %v2628
        %v2754 = vpop.f32.mrf.mxu0
        %v2755 = vadd.f32 0.0, %v2754
        %v2756 = vpop.f32.mrf.mxu0
        %v2757 = vadd.f32 0.0, %v2756
        %2758 = vmatmul.bf16.gmra.mxu0 %v2630
        %v2759 = vpop.f32.mrf.mxu0
        %v2760 = vadd.f32 0.0, %v2759
        %v2761 = vpop.f32.mrf.mxu0
        %v2762 = vadd.f32 0.0, %v2761
        %2763 = vmatmul.bf16.gmra.mxu0 %v2632
        %v2764 = vpop.f32.mrf.mxu0
        %v2765 = vadd.f32 0.0, %v2764
        %v2766 = vpop.f32.mrf.mxu0
        %v2767 = vadd.f32 0.0, %v2766
        %2768 = vmatmul.bf16.gmra.mxu0 %v2634
        %v2769 = vpop.f32.mrf.mxu0
        %v2770 = vadd.f32 0.0, %v2769
        %v2771 = vpop.f32.mrf.mxu0
        %v2772 = vadd.f32 0.0, %v2771
        %2773 = vmatmul.bf16.gmra.mxu0 %v2636
        %v2774 = vpop.f32.mrf.mxu0
        %v2775 = vadd.f32 0.0, %v2774
        %v2776 = vpop.f32.mrf.mxu0
        %v2777 = vadd.f32 0.0, %v2776
        %2778 = vmatmul.bf16.gmra.mxu0 %v2638
        %v2779 = vpop.f32.mrf.mxu0
        %v2780 = vadd.f32 0.0, %v2779
        %v2781 = vpop.f32.mrf.mxu0
        %v2782 = vadd.f32 0.0, %v2781
        %2783 = vmatmul.bf16.gmra.mxu0 %v2640
        %v2784 = vpop.f32.mrf.mxu0
        %v2785 = vadd.f32 0.0, %v2784
        %v2786 = vpop.f32.mrf.mxu0
        %v2787 = vadd.f32 0.0, %v2786
        %2788 = vmatmul.bf16.gmra.mxu0 %v2642
        %v2789 = vpop.f32.mrf.mxu0
        %v2790 = vadd.f32 0.0, %v2789
        %v2791 = vpop.f32.mrf.mxu0
        %v2792 = vadd.f32 0.0, %v2791
        %2793 = vmatmul.bf16.gmra.mxu0 %v2644
        %v2794 = vpop.f32.mrf.mxu0
        %v2795 = vadd.f32 0.0, %v2794
        %v2796 = vpop.f32.mrf.mxu0
        %v2797 = vadd.f32 0.0, %v2796
        %2798 = vmatmul.bf16.gmra.mxu0 %v2646
        %v2799 = vpop.f32.mrf.mxu0
        %v2800 = vadd.f32 0.0, %v2799
        %v2801 = vpop.f32.mrf.mxu0
        %v2802 = vadd.f32 0.0, %v2801
        %2803 = vmatmul.bf16.gmra.mxu0 %v2648
        %v2804 = vpop.f32.mrf.mxu0
        %v2805 = vadd.f32 0.0, %v2804
        %v2806 = vpop.f32.mrf.mxu0
        %v2807 = vadd.f32 0.0, %v2806
        %2808 = vmatmul.bf16.gmra.mxu0 %v2650
        %v2809 = vpop.f32.mrf.mxu0
        %v2810 = vadd.f32 0.0, %v2809
        %v2811 = vpop.f32.mrf.mxu0
        %v2812 = vadd.f32 0.0, %v2811
        %2813 = vmatmul.bf16.gmra.mxu0 %v2652
        %v2814 = vpop.f32.mrf.mxu0
        %v2815 = vadd.f32 0.0, %v2814
        %v2816 = vpop.f32.mrf.mxu0
        %v2817 = vadd.f32 0.0, %v2816
        %2818 = vmatmul.bf16.gmra.mxu0 %v2654
        %v2819 = vpop.f32.mrf.mxu0
        %v2820 = vadd.f32 0.0, %v2819
        %v2821 = vpop.f32.mrf.mxu0
        %v2822 = vadd.f32 0.0, %v2821
        %2823 = vmatmul.bf16.gmra.mxu0 %v2656
        %v2824 = vpop.f32.mrf.mxu0
        %v2825 = vadd.f32 0.0, %v2824
        %v2826 = vpop.f32.mrf.mxu0
        %v2827 = vadd.f32 0.0, %v2826
        %2828 = vmatmul.bf16.gmra.mxu0 %v2658
        %v2829 = vpop.f32.mrf.mxu0
        %v2830 = vadd.f32 0.0, %v2829
        %v2831 = vpop.f32.mrf.mxu0
        %v2832 = vadd.f32 0.0, %v2831
        %2833 = vmatmul.bf16.gmra.mxu0 %v2660
        %v2834 = vpop.f32.mrf.mxu0
        %v2835 = vadd.f32 0.0, %v2834
        %v2836 = vpop.f32.mrf.mxu0
        %v2837 = vadd.f32 0.0, %v2836
        %2838 = vmatmul.bf16.gmra.mxu0 %v2662
        %v2839 = vpop.f32.mrf.mxu0
        %v2840 = vadd.f32 0.0, %v2839
        %v2841 = vpop.f32.mrf.mxu0
        %v2842 = vadd.f32 0.0, %v2841
        %2843 = vmatmul.bf16.gmra.mxu0 %v2664
        %v2844 = vpop.f32.mrf.mxu0
        %v2845 = vadd.f32 0.0, %v2844
        %v2846 = vpop.f32.mrf.mxu0
        %v2847 = vadd.f32 0.0, %v2846
        %2848 = vmatmul.bf16.gmra.mxu0 %v2663
        %v2849 = vpop.f32.mrf.mxu0
        %v2850 = vadd.f32 0.0, %v2849
        %v2851 = vpop.f32.mrf.mxu0
        %2852 = vdwg.mxu0
        %v2853 = vadd.f32 %v2493, %v2745
        %v2854 = vadd.f32 %v2495, %v2747
        %v2855 = vadd.f32 %v2498, %v2750
        %v2856 = vadd.f32 %v2500, %v2752
        %v2857 = vadd.f32 %v2503, %v2755
        %v2858 = vadd.f32 %v2505, %v2757
        %v2859 = vadd.f32 %v2508, %v2760
        %v2860 = vadd.f32 %v2510, %v2762
        %v2861 = vadd.f32 %v2513, %v2765
        %v2862 = vadd.f32 %v2515, %v2767
        %v2863 = vadd.f32 %v2518, %v2770
        %v2864 = vadd.f32 %v2520, %v2772
        %v2865 = vadd.f32 %v2523, %v2775
        %v2866 = vadd.f32 %v2525, %v2777
        %v2867 = vadd.f32 %v2528, %v2780
        %v2868 = vadd.f32 %v2530, %v2782
        %v2869 = vadd.f32 %v2533, %v2785
        %v2870 = vadd.f32 %v2535, %v2787
        %v2871 = vadd.f32 %v2538, %v2790
        %v2872 = vadd.f32 %v2540, %v2792
        %v2873 = vadd.f32 %v2543, %v2795
        %v2874 = vadd.f32 %v2545, %v2797
        %v2875 = vadd.f32 %v2548, %v2800
        %v2876 = vadd.f32 %v2550, %v2802
        %v2877 = vadd.f32 %v2553, %v2805
        %v2878 = vadd.f32 %v2555, %v2807
        %v2879 = vadd.f32 %v2558, %v2810
        %v2880 = vadd.f32 %v2560, %v2812
        %v2881 = vadd.f32 %v2563, %v2815
        %v2882 = vadd.f32 %v2565, %v2817
        %v2883 = vadd.f32 %v2568, %v2820
        %v2884 = vadd.f32 %v2570, %v2822
        %v2885 = vadd.f32 %v2573, %v2825
        %v2886 = vadd.f32 %v2575, %v2827
        %v2887 = vadd.f32 %v2578, %v2830
        %v2888 = vadd.f32 %v2580, %v2832
        %v2889 = vadd.f32 %v2583, %v2835
        %v2890 = vadd.f32 %v2585, %v2837
        %v2891 = vadd.f32 %v2588, %v2840
        %v2892 = vadd.f32 %v2590, %v2842
        %v2893 = vadd.f32 %v2593, %v2845
        %v2894 = vadd.f32 %v2595, %v2847
        %v2895 = vadd.f32 %v2598, %v2850
        %v2896 = vld [vmem:[#allocation3 + $0x10] sm:$0xe]
        %v2897 = vld [vmem:[#allocation3 + $0x14] sm:$0xf]
        %v2898 = vld [vmem:[#allocation3 + $0x18] sm:$0xf]
        %v2899 = vld [vmem:[#allocation3 + $0x1c] sm:$0xf]
        %v2900 = vld [vmem:[#allocation3 + $0x20] sm:$0xf]
        %v2901 = vld [vmem:[#allocation3 + $0x24] sm:$0xf]
        %v2902 = vld [vmem:[#allocation3 + $0x28] sm:$0xf]
        %v2903 = vld [vmem:[#allocation3 + $0x2c] sm:$0xf]
        %v2904 = vld [vmem:[#allocation3 + $0x30] sm:$0xf]
        %v2905 = vld [vmem:[#allocation3 + $0x34] sm:$0xf]
        %v2906 = vld [vmem:[#allocation3 + $0x38] sm:$0xf]
        %v2907 = vld [vmem:[#allocation3 + $0x3c] sm:$0xf]
        %v2908 = vld [vmem:[#allocation3 + $0x40] sm:$0xf]
        %v2909 = vld [vmem:[#allocation3 + $0x44] sm:$0xf]
        %v2910 = vld [vmem:[#allocation3 + $0x48] sm:$0xf]
        %v2911 = vld [vmem:[#allocation3 + $0x4c] sm:$0xf]
        %v2912 = vld [vmem:[#allocation3 + $0x50] sm:$0xf]
        %v2913 = vld [vmem:[#allocation3 + $0x54] sm:$0xf]
        %v2914 = vld [vmem:[#allocation3 + $0x58] sm:$0xf]
        %v2915 = vld [vmem:[#allocation3 + $0x5c] sm:$0xf]
        %v2916 = vld [vmem:[#allocation3 + $0x60] sm:$0xf]
        %v2917 = vld [vmem:[#allocation3 + $0x64] sm:$0xf]
        %v2918 = vld [vmem:[#allocation3 + $0x68] sm:$0xf]
        %v2919 = vld [vmem:[#allocation3 + $0x6c] sm:$0xf]
        %v2920 = vld [vmem:[#allocation3 + $0x70] sm:$0xf]
        %v2921 = vld [vmem:[#allocation3 + $0x74] sm:$0xf]
        %v2922 = vld [vmem:[#allocation3 + $0x78] sm:$0xf]
        %v2923 = vld [vmem:[#allocation3 + $0x7c] sm:$0xf]
        %v2924 = vld [vmem:[#allocation3 + $0x80] sm:$0xf]
        %v2925 = vld [vmem:[#allocation3 + $0x84] sm:$0xf]
        %v2926 = vld [vmem:[#allocation3 + $0x88] sm:$0xf]
        %v2927 = vld [vmem:[#allocation3 + $0x8c] sm:$0xf]
        %v2928 = vld [vmem:[#allocation3 + $0x90] sm:$0xf]
        %v2929 = vld [vmem:[#allocation3 + $0x94] sm:$0xf]
        %v2930 = vld [vmem:[#allocation3 + $0x98] sm:$0xf]
        %v2931 = vld [vmem:[#allocation3 + $0x9c] sm:$0xf]
        %v2932 = vld [vmem:[#allocation3 + $0xa0] sm:$0xf]
        %v2933 = vld [vmem:[#allocation3 + $0xa4] sm:$0xf]
        %v2934 = vld [vmem:[#allocation3 + $0xa8] sm:$0xf]
        %v2935 = vld [vmem:[#allocation3 + $0xac] sm:$0xf]
        %v2936 = vld [vmem:[#allocation3 + $0xb0] sm:$0xf]
        %v2937 = vld [vmem:[#allocation3 + $0xb4] sm:$0xf]
        %v2938 = vld [vmem:[#allocation3 + $0xb8] sm:$0x7]
        %v2939 = vld [vmem:[#allocation12 + $0xc0] sm:$0xf]
        %v2940 = vld [vmem:[#allocation12 + $0xc4] sm:$0xf]
        %v2941 = vld [vmem:[#allocation12 + $0xc8] sm:$0xf]
        %v2942 = vld [vmem:[#allocation12 + $0xcc] sm:$0xf]
        %v2943 = vld [vmem:[#allocation12 + $0xd0] sm:$0xf]
        %v2944 = vld [vmem:[#allocation12 + $0xd4] sm:$0xf]
        %v2945 = vld [vmem:[#allocation12 + $0xd8] sm:$0xf]
        %v2946 = vld [vmem:[#allocation12 + $0xdc] sm:$0xf]
        %v2947 = vld [vmem:[#allocation12 + $0xe0] sm:$0xf]
        %v2948 = vld [vmem:[#allocation12 + $0xe4] sm:$0xf]
        %v2949 = vld [vmem:[#allocation12 + $0xe8] sm:$0xf]
        %v2950 = vld [vmem:[#allocation12 + $0xec] sm:$0xf]
        %v2951 = vld [vmem:[#allocation12 + $0xf0] sm:$0xf]
        %v2952 = vld [vmem:[#allocation12 + $0xf4] sm:$0xf]
        %v2953 = vld [vmem:[#allocation12 + $0xf8] sm:$0xf]
        %v2954 = vld [vmem:[#allocation12 + $0xfc] sm:$0xf]
        %v2998 = vunpack.c.l.b16 %v2896
        %v2999 = vunpack.c.l.b16 %v2897
        %v3000 = vunpack.c.l.b16 %v2898
        %v3001 = vunpack.c.l.b16 %v2899
        %v3002 = vunpack.c.l.b16 %v2900
        %v3003 = vunpack.c.l.b16 %v2901
        %v3004 = vunpack.c.l.b16 %v2902
        %v3005 = vunpack.c.l.b16 %v2903
        %v3006 = vunpack.c.l.b16 %v2904
        %v3007 = vunpack.c.l.b16 %v2905
        %v3008 = vunpack.c.l.b16 %v2906
        %v3009 = vunpack.c.l.b16 %v2907
        %v3010 = vunpack.c.l.b16 %v2908
        %v3011 = vunpack.c.l.b16 %v2909
        %v3012 = vunpack.c.l.b16 %v2910
        %v3013 = vunpack.c.l.b16 %v2911
        %v3014 = vunpack.c.l.b16 %v2912
        %v3015 = vunpack.c.l.b16 %v2913
        %v3016 = vunpack.c.l.b16 %v2914
        %v3017 = vunpack.c.l.b16 %v2915
        %v3018 = vunpack.c.l.b16 %v2916
        %v3019 = vunpack.c.l.b16 %v2917
        %v3020 = vunpack.c.l.b16 %v2918
        %v3021 = vunpack.c.l.b16 %v2919
        %v3022 = vunpack.c.l.b16 %v2920
        %v3023 = vunpack.c.l.b16 %v2921
        %v3024 = vunpack.c.l.b16 %v2922
        %v3025 = vunpack.c.l.b16 %v2923
        %v3026 = vunpack.c.l.b16 %v2924
        %v3027 = vunpack.c.l.b16 %v2925
        %v3028 = vunpack.c.l.b16 %v2926
        %v3029 = vunpack.c.l.b16 %v2927
        %v3030 = vunpack.c.l.b16 %v2928
        %v3031 = vunpack.c.l.b16 %v2929
        %v3032 = vunpack.c.l.b16 %v2930
        %v3033 = vunpack.c.l.b16 %v2931
        %v3034 = vunpack.c.l.b16 %v2932
        %v3035 = vunpack.c.l.b16 %v2933
        %v3036 = vunpack.c.l.b16 %v2934
        %v3037 = vunpack.c.l.b16 %v2935
        %v3038 = vunpack.c.l.b16 %v2936
        %v3039 = vunpack.c.l.b16 %v2937
        %v3040 = vunpack.c.l.b16 %v2938
        %v3041 = vpack.c.b16 %v2999, %v2998
        %v3042 = vpack.c.b16 %v3001, %v3000
        %v3043 = vpack.c.b16 %v3003, %v3002
        %v3044 = vpack.c.b16 %v3005, %v3004
        %v3045 = vpack.c.b16 %v3007, %v3006
        %v3046 = vpack.c.b16 %v3009, %v3008
        %v3047 = vpack.c.b16 %v3011, %v3010
        %v3048 = vpack.c.b16 %v3013, %v3012
        %v3049 = vpack.c.b16 %v3015, %v3014
        %v3050 = vpack.c.b16 %v3017, %v3016
        %v3051 = vpack.c.b16 %v3019, %v3018
        %v3052 = vpack.c.b16 %v3021, %v3020
        %v3053 = vpack.c.b16 %v3023, %v3022
        %v3054 = vpack.c.b16 %v3025, %v3024
        %v3055 = vpack.c.b16 %v3027, %v3026
        %v3056 = vpack.c.b16 %v3029, %v3028
        %v3057 = vpack.c.b16 %v3031, %v3030
        %v3058 = vpack.c.b16 %v3033, %v3032
        %v3059 = vpack.c.b16 %v3035, %v3034
        %v3060 = vpack.c.b16 %v3037, %v3036
        %v3061 = vpack.c.b16 %v3039, %v3038
        %v3062 = vpack.c.b16 %v3040, %v3040
        %v3063 = vrot.slane %v3041, 1
        %v3064 = vrot.slane %v3042, 1
        %v3065 = vsel %vm2621, %v3063, %v3064
        %v3066 = vrot.slane %v3043, 1
        %v3067 = vsel %vm2621, %v3064, %v3066
        %v3068 = vrot.slane %v3044, 1
        %v3069 = vsel %vm2621, %v3066, %v3068
        %v3070 = vrot.slane %v3045, 1
        %v3071 = vsel %vm2621, %v3068, %v3070
        %v3072 = vrot.slane %v3046, 1
        %v3073 = vsel %vm2621, %v3070, %v3072
        %v3074 = vrot.slane %v3047, 1
        %v3075 = vsel %vm2621, %v3072, %v3074
        %v3076 = vrot.slane %v3048, 1
        %v3077 = vsel %vm2621, %v3074, %v3076
        %v3078 = vrot.slane %v3049, 1
        %v3079 = vsel %vm2621, %v3076, %v3078
        %v3080 = vrot.slane %v3050, 1
        %v3081 = vsel %vm2621, %v3078, %v3080
        %v3082 = vrot.slane %v3051, 1
        %v3083 = vsel %vm2621, %v3080, %v3082
        %v3084 = vrot.slane %v3052, 1
        %v3085 = vsel %vm2621, %v3082, %v3084
        %v3086 = vrot.slane %v3053, 1
        %v3087 = vsel %vm2621, %v3084, %v3086
        %v3088 = vrot.slane %v3054, 1
        %v3089 = vsel %vm2621, %v3086, %v3088
        %v3090 = vrot.slane %v3055, 1
        %v3091 = vsel %vm2621, %v3088, %v3090
        %v3092 = vrot.slane %v3056, 1
        %v3093 = vsel %vm2621, %v3090, %v3092
        %v3094 = vrot.slane %v3057, 1
        %v3095 = vsel %vm2621, %v3092, %v3094
        %v3096 = vrot.slane %v3058, 1
        %v3097 = vsel %vm2621, %v3094, %v3096
        %v3098 = vrot.slane %v3059, 1
        %v3099 = vsel %vm2621, %v3096, %v3098
        %v3100 = vrot.slane %v3060, 1
        %v3101 = vsel %vm2621, %v3098, %v3100
        %v3102 = vrot.slane %v3061, 1
        %v3103 = vsel %vm2621, %v3100, %v3102
        %v3104 = vrot.slane %v3062, 1
        %v3105 = vsel %vm2621, %v3102, %v3104
        %v3144 = vunpack.c.l.b16 %v2939
        %v3145 = vunpack.c.l.b16 %v2940
        %v3146 = vunpack.c.l.b16 %v2941
        %v3147 = vunpack.c.l.b16 %v2942
        %v3148 = vunpack.c.l.b16 %v2943
        %v3149 = vunpack.c.l.b16 %v2944
        %v3150 = vunpack.c.l.b16 %v2945
        %v3151 = vunpack.c.l.b16 %v2946
        %v3152 = vunpack.c.l.b16 %v2947
        %v3153 = vunpack.c.l.b16 %v2948
        %v3154 = vunpack.c.l.b16 %v2949
        %v3155 = vunpack.c.l.b16 %v2950
        %v3156 = vunpack.c.l.b16 %v2951
        %v3157 = vunpack.c.l.b16 %v2952
        %v3158 = vunpack.c.l.b16 %v2953
        %v3159 = vunpack.c.l.b16 %v2954
        %v3160 = vpack.c.b16 %v3145, %v3144
        %v3161 = vpack.c.b16 %v3147, %v3146
        %v3162 = vpack.c.b16 %v3149, %v3148
        %v3163 = vpack.c.b16 %v3151, %v3150
        %v3164 = vpack.c.b16 %v3153, %v3152
        %v3165 = vpack.c.b16 %v3155, %v3154
        %v3166 = vpack.c.b16 %v3157, %v3156
        %v3167 = vpack.c.b16 %v3159, %v3158
        %3176 = vmatpush.bf16.msra.mxu0 %v3167
        %3177 = vmatpush.bf16.msra.mxu0 %v3166
        %3178 = vmatpush.bf16.msra.mxu0 %v3165
        %3179 = vmatpush.bf16.msra.mxu0 %v3164
        %3180 = vmatpush.bf16.msra.mxu0 %v3163
        %3181 = vmatpush.bf16.msra.mxu0 %v3162
        %3182 = vmatpush.bf16.msra.mxu0 %v3161
        %3183 = vmatpush.bf16.msra.mxu0 %v3160
        %3184 = vmatmul.bf16.gmra.mxu0 %v3065
        %v3185 = vpop.f32.mrf.mxu0
        %v3186 = vadd.f32 0.0, %v3185
        %v3187 = vpop.f32.mrf.mxu0
        %v3188 = vadd.f32 0.0, %v3187
        %3189 = vmatmul.bf16.gmra.mxu0 %v3067
        %v3190 = vpop.f32.mrf.mxu0
        %v3191 = vadd.f32 0.0, %v3190
        %v3192 = vpop.f32.mrf.mxu0
        %v3193 = vadd.f32 0.0, %v3192
        %3194 = vmatmul.bf16.gmra.mxu0 %v3069
        %v3195 = vpop.f32.mrf.mxu0
        %v3196 = vadd.f32 0.0, %v3195
        %v3197 = vpop.f32.mrf.mxu0
        %v3198 = vadd.f32 0.0, %v3197
        %3199 = vmatmul.bf16.gmra.mxu0 %v3071
        %v3200 = vpop.f32.mrf.mxu0
        %v3201 = vadd.f32 0.0, %v3200
        %v3202 = vpop.f32.mrf.mxu0
        %v3203 = vadd.f32 0.0, %v3202
        %3204 = vmatmul.bf16.gmra.mxu0 %v3073
        %v3205 = vpop.f32.mrf.mxu0
        %v3206 = vadd.f32 0.0, %v3205
        %v3207 = vpop.f32.mrf.mxu0
        %v3208 = vadd.f32 0.0, %v3207
        %3209 = vmatmul.bf16.gmra.mxu0 %v3075
        %v3210 = vpop.f32.mrf.mxu0
        %v3211 = vadd.f32 0.0, %v3210
        %v3212 = vpop.f32.mrf.mxu0
        %v3213 = vadd.f32 0.0, %v3212
        %3214 = vmatmul.bf16.gmra.mxu0 %v3077
        %v3215 = vpop.f32.mrf.mxu0
        %v3216 = vadd.f32 0.0, %v3215
        %v3217 = vpop.f32.mrf.mxu0
        %v3218 = vadd.f32 0.0, %v3217
        %3219 = vmatmul.bf16.gmra.mxu0 %v3079
        %v3220 = vpop.f32.mrf.mxu0
        %v3221 = vadd.f32 0.0, %v3220
        %v3222 = vpop.f32.mrf.mxu0
        %v3223 = vadd.f32 0.0, %v3222
        %3224 = vmatmul.bf16.gmra.mxu0 %v3081
        %v3225 = vpop.f32.mrf.mxu0
        %v3226 = vadd.f32 0.0, %v3225
        %v3227 = vpop.f32.mrf.mxu0
        %v3228 = vadd.f32 0.0, %v3227
        %3229 = vmatmul.bf16.gmra.mxu0 %v3083
        %v3230 = vpop.f32.mrf.mxu0
        %v3231 = vadd.f32 0.0, %v3230
        %v3232 = vpop.f32.mrf.mxu0
        %v3233 = vadd.f32 0.0, %v3232
        %3234 = vmatmul.bf16.gmra.mxu0 %v3085
        %v3235 = vpop.f32.mrf.mxu0
        %v3236 = vadd.f32 0.0, %v3235
        %v3237 = vpop.f32.mrf.mxu0
        %v3238 = vadd.f32 0.0, %v3237
        %3239 = vmatmul.bf16.gmra.mxu0 %v3087
        %v3240 = vpop.f32.mrf.mxu0
        %v3241 = vadd.f32 0.0, %v3240
        %v3242 = vpop.f32.mrf.mxu0
        %v3243 = vadd.f32 0.0, %v3242
        %3244 = vmatmul.bf16.gmra.mxu0 %v3089
        %v3245 = vpop.f32.mrf.mxu0
        %v3246 = vadd.f32 0.0, %v3245
        %v3247 = vpop.f32.mrf.mxu0
        %v3248 = vadd.f32 0.0, %v3247
        %3249 = vmatmul.bf16.gmra.mxu0 %v3091
        %v3250 = vpop.f32.mrf.mxu0
        %v3251 = vadd.f32 0.0, %v3250
        %v3252 = vpop.f32.mrf.mxu0
        %v3253 = vadd.f32 0.0, %v3252
        %3254 = vmatmul.bf16.gmra.mxu0 %v3093
        %v3255 = vpop.f32.mrf.mxu0
        %v3256 = vadd.f32 0.0, %v3255
        %v3257 = vpop.f32.mrf.mxu0
        %v3258 = vadd.f32 0.0, %v3257
        %3259 = vmatmul.bf16.gmra.mxu0 %v3095
        %v3260 = vpop.f32.mrf.mxu0
        %v3261 = vadd.f32 0.0, %v3260
        %v3262 = vpop.f32.mrf.mxu0
        %v3263 = vadd.f32 0.0, %v3262
        %3264 = vmatmul.bf16.gmra.mxu0 %v3097
        %v3265 = vpop.f32.mrf.mxu0
        %v3266 = vadd.f32 0.0, %v3265
        %v3267 = vpop.f32.mrf.mxu0
        %v3268 = vadd.f32 0.0, %v3267
        %3269 = vmatmul.bf16.gmra.mxu0 %v3099
        %v3270 = vpop.f32.mrf.mxu0
        %v3271 = vadd.f32 0.0, %v3270
        %v3272 = vpop.f32.mrf.mxu0
        %v3273 = vadd.f32 0.0, %v3272
        %3274 = vmatmul.bf16.gmra.mxu0 %v3101
        %v3275 = vpop.f32.mrf.mxu0
        %v3276 = vadd.f32 0.0, %v3275
        %v3277 = vpop.f32.mrf.mxu0
        %v3278 = vadd.f32 0.0, %v3277
        %3279 = vmatmul.bf16.gmra.mxu0 %v3103
        %v3280 = vpop.f32.mrf.mxu0
        %v3281 = vadd.f32 0.0, %v3280
        %v3282 = vpop.f32.mrf.mxu0
        %v3283 = vadd.f32 0.0, %v3282
        %3284 = vmatmul.bf16.gmra.mxu0 %v3105
        %v3285 = vpop.f32.mrf.mxu0
        %v3286 = vadd.f32 0.0, %v3285
        %v3287 = vpop.f32.mrf.mxu0
        %v3288 = vadd.f32 0.0, %v3287
        %3289 = vmatmul.bf16.gmra.mxu0 %v3104
        %v3290 = vpop.f32.mrf.mxu0
        %v3291 = vadd.f32 0.0, %v3290
        %v3292 = vpop.f32.mrf.mxu0
        %3293 = vdwg.mxu0
        %v3294 = vadd.f32 %v2853, %v3186
        %v3295 = vadd.f32 %v2854, %v3188
        %v3296 = vadd.f32 %v2855, %v3191
        %v3297 = vadd.f32 %v2856, %v3193
        %v3298 = vadd.f32 %v2857, %v3196
        %v3299 = vadd.f32 %v2858, %v3198
        %v3300 = vadd.f32 %v2859, %v3201
        %v3301 = vadd.f32 %v2860, %v3203
        %v3302 = vadd.f32 %v2861, %v3206
        %v3303 = vadd.f32 %v2862, %v3208
        %v3304 = vadd.f32 %v2863, %v3211
        %v3305 = vadd.f32 %v2864, %v3213
        %v3306 = vadd.f32 %v2865, %v3216
        %v3307 = vadd.f32 %v2866, %v3218
        %v3308 = vadd.f32 %v2867, %v3221
        %v3309 = vadd.f32 %v2868, %v3223
        %v3310 = vadd.f32 %v2869, %v3226
        %v3311 = vadd.f32 %v2870, %v3228
        %v3312 = vadd.f32 %v2871, %v3231
        %v3313 = vadd.f32 %v2872, %v3233
        %v3314 = vadd.f32 %v2873, %v3236
        %v3315 = vadd.f32 %v2874, %v3238
        %v3316 = vadd.f32 %v2875, %v3241
        %v3317 = vadd.f32 %v2876, %v3243
        %v3318 = vadd.f32 %v2877, %v3246
        %v3319 = vadd.f32 %v2878, %v3248
        %v3320 = vadd.f32 %v2879, %v3251
        %v3321 = vadd.f32 %v2880, %v3253
        %v3322 = vadd.f32 %v2881, %v3256
        %v3323 = vadd.f32 %v2882, %v3258
        %v3324 = vadd.f32 %v2883, %v3261
        %v3325 = vadd.f32 %v2884, %v3263
        %v3326 = vadd.f32 %v2885, %v3266
        %v3327 = vadd.f32 %v2886, %v3268
        %v3328 = vadd.f32 %v2887, %v3271
        %v3329 = vadd.f32 %v2888, %v3273
        %v3330 = vadd.f32 %v2889, %v3276
        %v3331 = vadd.f32 %v2890, %v3278
        %v3332 = vadd.f32 %v2891, %v3281
        %v3333 = vadd.f32 %v2892, %v3283
        %v3334 = vadd.f32 %v2893, %v3286
        %v3335 = vadd.f32 %v2894, %v3288
        %v3336 = vadd.f32 %v2895, %v3291
        %v3337 = vld [vmem:[#allocation3 + $0xb8] sm:$0xf]
        %v3338 = vld [vmem:[#allocation12 + $0x100] sm:$0xf]
        %v3339 = vld [vmem:[#allocation12 + $0x104] sm:$0xf]
        %v3340 = vld [vmem:[#allocation12 + $0x108] sm:$0xf]
        %v3341 = vld [vmem:[#allocation12 + $0x10c] sm:$0xf]
        %v3342 = vld [vmem:[#allocation12 + $0x110] sm:$0xf]
        %v3343 = vld [vmem:[#allocation12 + $0x114] sm:$0xf]
        %v3344 = vld [vmem:[#allocation12 + $0x118] sm:$0xf]
        %v3345 = vld [vmem:[#allocation12 + $0x11c] sm:$0xf]
        %v3346 = vld [vmem:[#allocation12 + $0x120] sm:$0xf]
        %v3347 = vld [vmem:[#allocation12 + $0x124] sm:$0xf]
        %v3348 = vld [vmem:[#allocation12 + $0x128] sm:$0xf]
        %v3349 = vld [vmem:[#allocation12 + $0x12c] sm:$0xf]
        %v3350 = vld [vmem:[#allocation12 + $0x130] sm:$0xf]
        %v3351 = vld [vmem:[#allocation12 + $0x134] sm:$0xf]
        %v3352 = vld [vmem:[#allocation12 + $0x138] sm:$0xf]
        %v3353 = vld [vmem:[#allocation12 + $0x13c] sm:$0xf]
        %v3355 = vunpack.c.l.b16 %v3337
        %v3356 = vpack.c.b16 %v3355, %v3355
        %vm3357 = vsmask.f32 6400
        %v3359 = vshrl.u32 %v3041, 16
        %v3361 = vrot.slane %v3359, 1
        %v3362 = vshll.u32 %v3041, 16
        %v3364 = vrot.slane %v3362, 2
        %v3365 = vor.u32 %v3361, %v3364
        %v3367 = vshrl.u32 %v3042, 16
        %v3369 = vrot.slane %v3367, 1
        %v3370 = vshll.u32 %v3042, 16
        %v3372 = vrot.slane %v3370, 2
        %v3373 = vor.u32 %v3369, %v3372
        %v3374 = vsel %vm3357, %v3365, %v3373
        %v3376 = vshrl.u32 %v3043, 16
        %v3378 = vrot.slane %v3376, 1
        %v3379 = vshll.u32 %v3043, 16
        %v3381 = vrot.slane %v3379, 2
        %v3382 = vor.u32 %v3378, %v3381
        %v3383 = vsel %vm3357, %v3373, %v3382
        %v3385 = vshrl.u32 %v3044, 16
        %v3387 = vrot.slane %v3385, 1
        %v3388 = vshll.u32 %v3044, 16
        %v3390 = vrot.slane %v3388, 2
        %v3391 = vor.u32 %v3387, %v3390
        %v3392 = vsel %vm3357, %v3382, %v3391
        %v3394 = vshrl.u32 %v3045, 16
        %v3396 = vrot.slane %v3394, 1
        %v3397 = vshll.u32 %v3045, 16
        %v3399 = vrot.slane %v3397, 2
        %v3400 = vor.u32 %v3396, %v3399
        %v3401 = vsel %vm3357, %v3391, %v3400
        %v3403 = vshrl.u32 %v3046, 16
        %v3405 = vrot.slane %v3403, 1
        %v3406 = vshll.u32 %v3046, 16
        %v3408 = vrot.slane %v3406, 2
        %v3409 = vor.u32 %v3405, %v3408
        %v3410 = vsel %vm3357, %v3400, %v3409
        %v3412 = vshrl.u32 %v3047, 16
        %v3414 = vrot.slane %v3412, 1
        %v3415 = vshll.u32 %v3047, 16
        %v3417 = vrot.slane %v3415, 2
        %v3418 = vor.u32 %v3414, %v3417
        %v3419 = vsel %vm3357, %v3409, %v3418
        %v3421 = vshrl.u32 %v3048, 16
        %v3423 = vrot.slane %v3421, 1
        %v3424 = vshll.u32 %v3048, 16
        %v3426 = vrot.slane %v3424, 2
        %v3427 = vor.u32 %v3423, %v3426
        %v3428 = vsel %vm3357, %v3418, %v3427
        %v3430 = vshrl.u32 %v3049, 16
        %v3432 = vrot.slane %v3430, 1
        %v3433 = vshll.u32 %v3049, 16
        %v3435 = vrot.slane %v3433, 2
        %v3436 = vor.u32 %v3432, %v3435
        %v3437 = vsel %vm3357, %v3427, %v3436
        %v3439 = vshrl.u32 %v3050, 16
        %v3441 = vrot.slane %v3439, 1
        %v3442 = vshll.u32 %v3050, 16
        %v3444 = vrot.slane %v3442, 2
        %v3445 = vor.u32 %v3441, %v3444
        %v3446 = vsel %vm3357, %v3436, %v3445
        %v3448 = vshrl.u32 %v3051, 16
        %v3450 = vrot.slane %v3448, 1
        %v3451 = vshll.u32 %v3051, 16
        %v3453 = vrot.slane %v3451, 2
        %v3454 = vor.u32 %v3450, %v3453
        %v3455 = vsel %vm3357, %v3445, %v3454
        %v3457 = vshrl.u32 %v3052, 16
        %v3459 = vrot.slane %v3457, 1
        %v3460 = vshll.u32 %v3052, 16
        %v3462 = vrot.slane %v3460, 2
        %v3463 = vor.u32 %v3459, %v3462
        %v3464 = vsel %vm3357, %v3454, %v3463
        %v3466 = vshrl.u32 %v3053, 16
        %v3468 = vrot.slane %v3466, 1
        %v3469 = vshll.u32 %v3053, 16
        %v3471 = vrot.slane %v3469, 2
        %v3472 = vor.u32 %v3468, %v3471
        %v3473 = vsel %vm3357, %v3463, %v3472
        %v3475 = vshrl.u32 %v3054, 16
        %v3477 = vrot.slane %v3475, 1
        %v3478 = vshll.u32 %v3054, 16
        %v3480 = vrot.slane %v3478, 2
        %v3481 = vor.u32 %v3477, %v3480
        %v3482 = vsel %vm3357, %v3472, %v3481
        %v3484 = vshrl.u32 %v3055, 16
        %v3486 = vrot.slane %v3484, 1
        %v3487 = vshll.u32 %v3055, 16
        %v3489 = vrot.slane %v3487, 2
        %v3490 = vor.u32 %v3486, %v3489
        %v3491 = vsel %vm3357, %v3481, %v3490
        %v3493 = vshrl.u32 %v3056, 16
        %v3495 = vrot.slane %v3493, 1
        %v3496 = vshll.u32 %v3056, 16
        %v3498 = vrot.slane %v3496, 2
        %v3499 = vor.u32 %v3495, %v3498
        %v3500 = vsel %vm3357, %v3490, %v3499
        %v3502 = vshrl.u32 %v3057, 16
        %v3504 = vrot.slane %v3502, 1
        %v3505 = vshll.u32 %v3057, 16
        %v3507 = vrot.slane %v3505, 2
        %v3508 = vor.u32 %v3504, %v3507
        %v3509 = vsel %vm3357, %v3499, %v3508
        %v3511 = vshrl.u32 %v3058, 16
        %v3513 = vrot.slane %v3511, 1
        %v3514 = vshll.u32 %v3058, 16
        %v3516 = vrot.slane %v3514, 2
        %v3517 = vor.u32 %v3513, %v3516
        %v3518 = vsel %vm3357, %v3508, %v3517
        %v3520 = vshrl.u32 %v3059, 16
        %v3522 = vrot.slane %v3520, 1
        %v3523 = vshll.u32 %v3059, 16
        %v3525 = vrot.slane %v3523, 2
        %v3526 = vor.u32 %v3522, %v3525
        %v3527 = vsel %vm3357, %v3517, %v3526
        %v3529 = vshrl.u32 %v3060, 16
        %v3531 = vrot.slane %v3529, 1
        %v3532 = vshll.u32 %v3060, 16
        %v3534 = vrot.slane %v3532, 2
        %v3535 = vor.u32 %v3531, %v3534
        %v3536 = vsel %vm3357, %v3526, %v3535
        %v3538 = vshrl.u32 %v3061, 16
        %v3540 = vrot.slane %v3538, 1
        %v3541 = vshll.u32 %v3061, 16
        %v3543 = vrot.slane %v3541, 2
        %v3544 = vor.u32 %v3540, %v3543
        %v3545 = vsel %vm3357, %v3535, %v3544
        %v3547 = vshrl.u32 %v3356, 16
        %v3549 = vrot.slane %v3547, 1
        %v3550 = vshll.u32 %v3356, 16
        %v3552 = vrot.slane %v3550, 2
        %v3553 = vor.u32 %v3549, %v3552
        %v3554 = vsel %vm3357, %v3544, %v3553
        %v3593 = vunpack.c.l.b16 %v3338
        %v3594 = vunpack.c.l.b16 %v3339
        %v3595 = vunpack.c.l.b16 %v3340
        %v3596 = vunpack.c.l.b16 %v3341
        %v3597 = vunpack.c.l.b16 %v3342
        %v3598 = vunpack.c.l.b16 %v3343
        %v3599 = vunpack.c.l.b16 %v3344
        %v3600 = vunpack.c.l.b16 %v3345
        %v3601 = vunpack.c.l.b16 %v3346
        %v3602 = vunpack.c.l.b16 %v3347
        %v3603 = vunpack.c.l.b16 %v3348
        %v3604 = vunpack.c.l.b16 %v3349
        %v3605 = vunpack.c.l.b16 %v3350
        %v3606 = vunpack.c.l.b16 %v3351
        %v3607 = vunpack.c.l.b16 %v3352
        %v3608 = vunpack.c.l.b16 %v3353
        %v3609 = vpack.c.b16 %v3594, %v3593
        %v3610 = vpack.c.b16 %v3596, %v3595
        %v3611 = vpack.c.b16 %v3598, %v3597
        %v3612 = vpack.c.b16 %v3600, %v3599
        %v3613 = vpack.c.b16 %v3602, %v3601
        %v3614 = vpack.c.b16 %v3604, %v3603
        %v3615 = vpack.c.b16 %v3606, %v3605
        %v3616 = vpack.c.b16 %v3608, %v3607
        %3625 = vmatpush.bf16.msra.mxu0 %v3616
        %3626 = vmatpush.bf16.msra.mxu0 %v3615
        %3627 = vmatpush.bf16.msra.mxu0 %v3614
        %3628 = vmatpush.bf16.msra.mxu0 %v3613
        %3629 = vmatpush.bf16.msra.mxu0 %v3612
        %3630 = vmatpush.bf16.msra.mxu0 %v3611
        %3631 = vmatpush.bf16.msra.mxu0 %v3610
        %3632 = vmatpush.bf16.msra.mxu0 %v3609
        %3633 = vmatmul.bf16.gmra.mxu0 %v3374
        %v3634 = vpop.f32.mrf.mxu0
        %v3635 = vadd.f32 0.0, %v3634
        %v3636 = vpop.f32.mrf.mxu0
        %v3637 = vadd.f32 0.0, %v3636
        %3638 = vmatmul.bf16.gmra.mxu0 %v3383
        %v3639 = vpop.f32.mrf.mxu0
        %v3640 = vadd.f32 0.0, %v3639
        %v3641 = vpop.f32.mrf.mxu0
        %v3642 = vadd.f32 0.0, %v3641
        %3643 = vmatmul.bf16.gmra.mxu0 %v3392
        %v3644 = vpop.f32.mrf.mxu0
        %v3645 = vadd.f32 0.0, %v3644
        %v3646 = vpop.f32.mrf.mxu0
        %v3647 = vadd.f32 0.0, %v3646
        %3648 = vmatmul.bf16.gmra.mxu0 %v3401
        %v3649 = vpop.f32.mrf.mxu0
        %v3650 = vadd.f32 0.0, %v3649
        %v3651 = vpop.f32.mrf.mxu0
        %v3652 = vadd.f32 0.0, %v3651
        %3653 = vmatmul.bf16.gmra.mxu0 %v3410
        %v3654 = vpop.f32.mrf.mxu0
        %v3655 = vadd.f32 0.0, %v3654
        %v3656 = vpop.f32.mrf.mxu0
        %v3657 = vadd.f32 0.0, %v3656
        %3658 = vmatmul.bf16.gmra.mxu0 %v3419
        %v3659 = vpop.f32.mrf.mxu0
        %v3660 = vadd.f32 0.0, %v3659
        %v3661 = vpop.f32.mrf.mxu0
        %v3662 = vadd.f32 0.0, %v3661
        %3663 = vmatmul.bf16.gmra.mxu0 %v3428
        %v3664 = vpop.f32.mrf.mxu0
        %v3665 = vadd.f32 0.0, %v3664
        %v3666 = vpop.f32.mrf.mxu0
        %v3667 = vadd.f32 0.0, %v3666
        %3668 = vmatmul.bf16.gmra.mxu0 %v3437
        %v3669 = vpop.f32.mrf.mxu0
        %v3670 = vadd.f32 0.0, %v3669
        %v3671 = vpop.f32.mrf.mxu0
        %v3672 = vadd.f32 0.0, %v3671
        %3673 = vmatmul.bf16.gmra.mxu0 %v3446
        %v3674 = vpop.f32.mrf.mxu0
        %v3675 = vadd.f32 0.0, %v3674
        %v3676 = vpop.f32.mrf.mxu0
        %v3677 = vadd.f32 0.0, %v3676
        %3678 = vmatmul.bf16.gmra.mxu0 %v3455
        %v3679 = vpop.f32.mrf.mxu0
        %v3680 = vadd.f32 0.0, %v3679
        %v3681 = vpop.f32.mrf.mxu0
        %v3682 = vadd.f32 0.0, %v3681
        %3683 = vmatmul.bf16.gmra.mxu0 %v3464
        %v3684 = vpop.f32.mrf.mxu0
        %v3685 = vadd.f32 0.0, %v3684
        %v3686 = vpop.f32.mrf.mxu0
        %v3687 = vadd.f32 0.0, %v3686
        %3688 = vmatmul.bf16.gmra.mxu0 %v3473
        %v3689 = vpop.f32.mrf.mxu0
        %v3690 = vadd.f32 0.0, %v3689
        %v3691 = vpop.f32.mrf.mxu0
        %v3692 = vadd.f32 0.0, %v3691
        %3693 = vmatmul.bf16.gmra.mxu0 %v3482
        %v3694 = vpop.f32.mrf.mxu0
        %v3695 = vadd.f32 0.0, %v3694
        %v3696 = vpop.f32.mrf.mxu0
        %v3697 = vadd.f32 0.0, %v3696
        %3698 = vmatmul.bf16.gmra.mxu0 %v3491
        %v3699 = vpop.f32.mrf.mxu0
        %v3700 = vadd.f32 0.0, %v3699
        %v3701 = vpop.f32.mrf.mxu0
        %v3702 = vadd.f32 0.0, %v3701
        %3703 = vmatmul.bf16.gmra.mxu0 %v3500
        %v3704 = vpop.f32.mrf.mxu0
        %v3705 = vadd.f32 0.0, %v3704
        %v3706 = vpop.f32.mrf.mxu0
        %v3707 = vadd.f32 0.0, %v3706
        %3708 = vmatmul.bf16.gmra.mxu0 %v3509
        %v3709 = vpop.f32.mrf.mxu0
        %v3710 = vadd.f32 0.0, %v3709
        %v3711 = vpop.f32.mrf.mxu0
        %v3712 = vadd.f32 0.0, %v3711
        %3713 = vmatmul.bf16.gmra.mxu0 %v3518
        %v3714 = vpop.f32.mrf.mxu0
        %v3715 = vadd.f32 0.0, %v3714
        %v3716 = vpop.f32.mrf.mxu0
        %v3717 = vadd.f32 0.0, %v3716
        %3718 = vmatmul.bf16.gmra.mxu0 %v3527
        %v3719 = vpop.f32.mrf.mxu0
        %v3720 = vadd.f32 0.0, %v3719
        %v3721 = vpop.f32.mrf.mxu0
        %v3722 = vadd.f32 0.0, %v3721
        %3723 = vmatmul.bf16.gmra.mxu0 %v3536
        %v3724 = vpop.f32.mrf.mxu0
        %v3725 = vadd.f32 0.0, %v3724
        %v3726 = vpop.f32.mrf.mxu0
        %v3727 = vadd.f32 0.0, %v3726
        %3728 = vmatmul.bf16.gmra.mxu0 %v3545
        %v3729 = vpop.f32.mrf.mxu0
        %v3730 = vadd.f32 0.0, %v3729
        %v3731 = vpop.f32.mrf.mxu0
        %v3732 = vadd.f32 0.0, %v3731
        %3733 = vmatmul.bf16.gmra.mxu0 %v3554
        %v3734 = vpop.f32.mrf.mxu0
        %v3735 = vadd.f32 0.0, %v3734
        %v3736 = vpop.f32.mrf.mxu0
        %v3737 = vadd.f32 0.0, %v3736
        %3738 = vmatmul.bf16.gmra.mxu0 %v3553
        %v3739 = vpop.f32.mrf.mxu0
        %v3740 = vadd.f32 0.0, %v3739
        %v3741 = vpop.f32.mrf.mxu0
        %3742 = vdwg.mxu0
        %v3743 = vadd.f32 %v3294, %v3635
        %v3744 = vadd.f32 %v3295, %v3637
        %v3745 = vadd.f32 %v3296, %v3640
        %v3746 = vadd.f32 %v3297, %v3642
        %v3747 = vadd.f32 %v3298, %v3645
        %v3748 = vadd.f32 %v3299, %v3647
        %v3749 = vadd.f32 %v3300, %v3650
        %v3750 = vadd.f32 %v3301, %v3652
        %v3751 = vadd.f32 %v3302, %v3655
        %v3752 = vadd.f32 %v3303, %v3657
        %v3753 = vadd.f32 %v3304, %v3660
        %v3754 = vadd.f32 %v3305, %v3662
        %v3755 = vadd.f32 %v3306, %v3665
        %v3756 = vadd.f32 %v3307, %v3667
        %v3757 = vadd.f32 %v3308, %v3670
        %v3758 = vadd.f32 %v3309, %v3672
        %v3759 = vadd.f32 %v3310, %v3675
        %v3760 = vadd.f32 %v3311, %v3677
        %v3761 = vadd.f32 %v3312, %v3680
        %v3762 = vadd.f32 %v3313, %v3682
        %v3763 = vadd.f32 %v3314, %v3685
        %v3764 = vadd.f32 %v3315, %v3687
        %v3765 = vadd.f32 %v3316, %v3690
        %v3766 = vadd.f32 %v3317, %v3692
        %v3767 = vadd.f32 %v3318, %v3695
        %v3768 = vadd.f32 %v3319, %v3697
        %v3769 = vadd.f32 %v3320, %v3700
        %v3770 = vadd.f32 %v3321, %v3702
        %v3771 = vadd.f32 %v3322, %v3705
        %v3772 = vadd.f32 %v3323, %v3707
        %v3773 = vadd.f32 %v3324, %v3710
        %v3774 = vadd.f32 %v3325, %v3712
        %v3775 = vadd.f32 %v3326, %v3715
        %v3776 = vadd.f32 %v3327, %v3717
        %v3777 = vadd.f32 %v3328, %v3720
        %v3778 = vadd.f32 %v3329, %v3722
        %v3779 = vadd.f32 %v3330, %v3725
        %v3780 = vadd.f32 %v3331, %v3727
        %v3781 = vadd.f32 %v3332, %v3730
        %v3782 = vadd.f32 %v3333, %v3732
        %v3783 = vadd.f32 %v3334, %v3735
        %v3784 = vadd.f32 %v3335, %v3737
        %v3785 = vadd.f32 %v3336, %v3740
        %v3786 = vld [vmem:[#allocation3 + $0x10] sm:$0xc]
        %v3787 = vld [vmem:[#allocation12 + $0x140] sm:$0xf]
        %v3788 = vld [vmem:[#allocation12 + $0x144] sm:$0xf]
        %v3789 = vld [vmem:[#allocation12 + $0x148] sm:$0xf]
        %v3790 = vld [vmem:[#allocation12 + $0x14c] sm:$0xf]
        %v3791 = vld [vmem:[#allocation12 + $0x150] sm:$0xf]
        %v3792 = vld [vmem:[#allocation12 + $0x154] sm:$0xf]
        %v3793 = vld [vmem:[#allocation12 + $0x158] sm:$0xf]
        %v3794 = vld [vmem:[#allocation12 + $0x15c] sm:$0xf]
        %v3795 = vld [vmem:[#allocation12 + $0x160] sm:$0xf]
        %v3796 = vld [vmem:[#allocation12 + $0x164] sm:$0xf]
        %v3797 = vld [vmem:[#allocation12 + $0x168] sm:$0xf]
        %v3798 = vld [vmem:[#allocation12 + $0x16c] sm:$0xf]
        %v3799 = vld [vmem:[#allocation12 + $0x170] sm:$0xf]
        %v3800 = vld [vmem:[#allocation12 + $0x174] sm:$0xf]
        %v3801 = vld [vmem:[#allocation12 + $0x178] sm:$0xf]
        %v3802 = vld [vmem:[#allocation12 + $0x17c] sm:$0xf]
        %v3804 = vunpack.c.l.b16 %v3786
        %v3805 = vpack.c.b16 %v2999, %v3804
        %vm3806 = vcmask 1045504
        %v3807 = vrot.slane %v3805, 2
        %v3808 = vrot.slane %v3042, 2
        %v3809 = vsel %vm3806, %v3807, %v3808
        %v3810 = vrot.slane %v3043, 2
        %v3811 = vsel %vm3806, %v3808, %v3810
        %v3812 = vrot.slane %v3044, 2
        %v3813 = vsel %vm3806, %v3810, %v3812
        %v3814 = vrot.slane %v3045, 2
        %v3815 = vsel %vm3806, %v3812, %v3814
        %v3816 = vrot.slane %v3046, 2
        %v3817 = vsel %vm3806, %v3814, %v3816
        %v3818 = vrot.slane %v3047, 2
        %v3819 = vsel %vm3806, %v3816, %v3818
        %v3820 = vrot.slane %v3048, 2
        %v3821 = vsel %vm3806, %v3818, %v3820
        %v3822 = vrot.slane %v3049, 2
        %v3823 = vsel %vm3806, %v3820, %v3822
        %v3824 = vrot.slane %v3050, 2
        %v3825 = vsel %vm3806, %v3822, %v3824
        %v3826 = vrot.slane %v3051, 2
        %v3827 = vsel %vm3806, %v3824, %v3826
        %v3828 = vrot.slane %v3052, 2
        %v3829 = vsel %vm3806, %v3826, %v3828
        %v3830 = vrot.slane %v3053, 2
        %v3831 = vsel %vm3806, %v3828, %v3830
        %v3832 = vrot.slane %v3054, 2
        %v3833 = vsel %vm3806, %v3830, %v3832
        %v3834 = vrot.slane %v3055, 2
        %v3835 = vsel %vm3806, %v3832, %v3834
        %v3836 = vrot.slane %v3056, 2
        %v3837 = vsel %vm3806, %v3834, %v3836
        %v3838 = vrot.slane %v3057, 2
        %v3839 = vsel %vm3806, %v3836, %v3838
        %v3840 = vrot.slane %v3058, 2
        %v3841 = vsel %vm3806, %v3838, %v3840
        %v3842 = vrot.slane %v3059, 2
        %v3843 = vsel %vm3806, %v3840, %v3842
        %v3844 = vrot.slane %v3060, 2
        %v3845 = vsel %vm3806, %v3842, %v3844
        %v3846 = vrot.slane %v3061, 2
        %v3847 = vsel %vm3806, %v3844, %v3846
        %v3848 = vrot.slane %v3356, 2
        %v3849 = vsel %vm3806, %v3846, %v3848
        %v3888 = vunpack.c.l.b16 %v3787
        %v3889 = vunpack.c.l.b16 %v3788
        %v3890 = vunpack.c.l.b16 %v3789
        %v3891 = vunpack.c.l.b16 %v3790
        %v3892 = vunpack.c.l.b16 %v3791
        %v3893 = vunpack.c.l.b16 %v3792
        %v3894 = vunpack.c.l.b16 %v3793
        %v3895 = vunpack.c.l.b16 %v3794
        %v3896 = vunpack.c.l.b16 %v3795
        %v3897 = vunpack.c.l.b16 %v3796
        %v3898 = vunpack.c.l.b16 %v3797
        %v3899 = vunpack.c.l.b16 %v3798
        %v3900 = vunpack.c.l.b16 %v3799
        %v3901 = vunpack.c.l.b16 %v3800
        %v3902 = vunpack.c.l.b16 %v3801
        %v3903 = vunpack.c.l.b16 %v3802
        %v3904 = vpack.c.b16 %v3889, %v3888
        %v3905 = vpack.c.b16 %v3891, %v3890
        %v3906 = vpack.c.b16 %v3893, %v3892
        %v3907 = vpack.c.b16 %v3895, %v3894
        %v3908 = vpack.c.b16 %v3897, %v3896
        %v3909 = vpack.c.b16 %v3899, %v3898
        %v3910 = vpack.c.b16 %v3901, %v3900
        %v3911 = vpack.c.b16 %v3903, %v3902
        %3920 = vmatpush.bf16.msra.mxu0 %v3911
        %3921 = vmatpush.bf16.msra.mxu0 %v3910
        %3922 = vmatpush.bf16.msra.mxu0 %v3909
        %3923 = vmatpush.bf16.msra.mxu0 %v3908
        %3924 = vmatpush.bf16.msra.mxu0 %v3907
        %3925 = vmatpush.bf16.msra.mxu0 %v3906
        %3926 = vmatpush.bf16.msra.mxu0 %v3905
        %3927 = vmatpush.bf16.msra.mxu0 %v3904
        %3928 = vmatmul.bf16.gmra.mxu0 %v3809
        %v3929 = vpop.f32.mrf.mxu0
        %v3930 = vadd.f32 0.0, %v3929
        %v3931 = vpop.f32.mrf.mxu0
        %v3932 = vadd.f32 0.0, %v3931
        %3933 = vmatmul.bf16.gmra.mxu0 %v3811
        %v3934 = vpop.f32.mrf.mxu0
        %v3935 = vadd.f32 0.0, %v3934
        %v3936 = vpop.f32.mrf.mxu0
        %v3937 = vadd.f32 0.0, %v3936
        %3938 = vmatmul.bf16.gmra.mxu0 %v3813
        %v3939 = vpop.f32.mrf.mxu0
        %v3940 = vadd.f32 0.0, %v3939
        %v3941 = vpop.f32.mrf.mxu0
        %v3942 = vadd.f32 0.0, %v3941
        %3943 = vmatmul.bf16.gmra.mxu0 %v3815
        %v3944 = vpop.f32.mrf.mxu0
        %v3945 = vadd.f32 0.0, %v3944
        %v3946 = vpop.f32.mrf.mxu0
        %v3947 = vadd.f32 0.0, %v3946
        %3948 = vmatmul.bf16.gmra.mxu0 %v3817
        %v3949 = vpop.f32.mrf.mxu0
        %v3950 = vadd.f32 0.0, %v3949
        %v3951 = vpop.f32.mrf.mxu0
        %v3952 = vadd.f32 0.0, %v3951
        %3953 = vmatmul.bf16.gmra.mxu0 %v3819
        %v3954 = vpop.f32.mrf.mxu0
        %v3955 = vadd.f32 0.0, %v3954
        %v3956 = vpop.f32.mrf.mxu0
        %v3957 = vadd.f32 0.0, %v3956
        %3958 = vmatmul.bf16.gmra.mxu0 %v3821
        %v3959 = vpop.f32.mrf.mxu0
        %v3960 = vadd.f32 0.0, %v3959
        %v3961 = vpop.f32.mrf.mxu0
        %v3962 = vadd.f32 0.0, %v3961
        %3963 = vmatmul.bf16.gmra.mxu0 %v3823
        %v3964 = vpop.f32.mrf.mxu0
        %v3965 = vadd.f32 0.0, %v3964
        %v3966 = vpop.f32.mrf.mxu0
        %v3967 = vadd.f32 0.0, %v3966
        %3968 = vmatmul.bf16.gmra.mxu0 %v3825
        %v3969 = vpop.f32.mrf.mxu0
        %v3970 = vadd.f32 0.0, %v3969
        %v3971 = vpop.f32.mrf.mxu0
        %v3972 = vadd.f32 0.0, %v3971
        %3973 = vmatmul.bf16.gmra.mxu0 %v3827
        %v3974 = vpop.f32.mrf.mxu0
        %v3975 = vadd.f32 0.0, %v3974
        %v3976 = vpop.f32.mrf.mxu0
        %v3977 = vadd.f32 0.0, %v3976
        %3978 = vmatmul.bf16.gmra.mxu0 %v3829
        %v3979 = vpop.f32.mrf.mxu0
        %v3980 = vadd.f32 0.0, %v3979
        %v3981 = vpop.f32.mrf.mxu0
        %v3982 = vadd.f32 0.0, %v3981
        %3983 = vmatmul.bf16.gmra.mxu0 %v3831
        %v3984 = vpop.f32.mrf.mxu0
        %v3985 = vadd.f32 0.0, %v3984
        %v3986 = vpop.f32.mrf.mxu0
        %v3987 = vadd.f32 0.0, %v3986
        %3988 = vmatmul.bf16.gmra.mxu0 %v3833
        %v3989 = vpop.f32.mrf.mxu0
        %v3990 = vadd.f32 0.0, %v3989
        %v3991 = vpop.f32.mrf.mxu0
        %v3992 = vadd.f32 0.0, %v3991
        %3993 = vmatmul.bf16.gmra.mxu0 %v3835
        %v3994 = vpop.f32.mrf.mxu0
        %v3995 = vadd.f32 0.0, %v3994
        %v3996 = vpop.f32.mrf.mxu0
        %v3997 = vadd.f32 0.0, %v3996
        %3998 = vmatmul.bf16.gmra.mxu0 %v3837
        %v3999 = vpop.f32.mrf.mxu0
        %v4000 = vadd.f32 0.0, %v3999
        %v4001 = vpop.f32.mrf.mxu0
        %v4002 = vadd.f32 0.0, %v4001
        %4003 = vmatmul.bf16.gmra.mxu0 %v3839
        %v4004 = vpop.f32.mrf.mxu0
        %v4005 = vadd.f32 0.0, %v4004
        %v4006 = vpop.f32.mrf.mxu0
        %v4007 = vadd.f32 0.0, %v4006
        %4008 = vmatmul.bf16.gmra.mxu0 %v3841
        %v4009 = vpop.f32.mrf.mxu0
        %v4010 = vadd.f32 0.0, %v4009
        %v4011 = vpop.f32.mrf.mxu0
        %v4012 = vadd.f32 0.0, %v4011
        %4013 = vmatmul.bf16.gmra.mxu0 %v3843
        %v4014 = vpop.f32.mrf.mxu0
        %v4015 = vadd.f32 0.0, %v4014
        %v4016 = vpop.f32.mrf.mxu0
        %v4017 = vadd.f32 0.0, %v4016
        %4018 = vmatmul.bf16.gmra.mxu0 %v3845
        %v4019 = vpop.f32.mrf.mxu0
        %v4020 = vadd.f32 0.0, %v4019
        %v4021 = vpop.f32.mrf.mxu0
        %v4022 = vadd.f32 0.0, %v4021
        %4023 = vmatmul.bf16.gmra.mxu0 %v3847
        %v4024 = vpop.f32.mrf.mxu0
        %v4025 = vadd.f32 0.0, %v4024
        %v4026 = vpop.f32.mrf.mxu0
        %v4027 = vadd.f32 0.0, %v4026
        %4028 = vmatmul.bf16.gmra.mxu0 %v3849
        %v4029 = vpop.f32.mrf.mxu0
        %v4030 = vadd.f32 0.0, %v4029
        %v4031 = vpop.f32.mrf.mxu0
        %v4032 = vadd.f32 0.0, %v4031
        %4033 = vmatmul.bf16.gmra.mxu0 %v3848
        %v4034 = vpop.f32.mrf.mxu0
        %v4035 = vadd.f32 0.0, %v4034
        %v4036 = vpop.f32.mrf.mxu0
        %4037 = vdwg.mxu0
        %v4038 = vadd.f32 %v3743, %v3930
        %v4039 = vadd.f32 %v3744, %v3932
        %v4040 = vadd.f32 %v3745, %v3935
        %v4041 = vadd.f32 %v3746, %v3937
        %v4042 = vadd.f32 %v3747, %v3940
        %v4043 = vadd.f32 %v3748, %v3942
        %v4044 = vadd.f32 %v3749, %v3945
        %v4045 = vadd.f32 %v3750, %v3947
        %v4046 = vadd.f32 %v3751, %v3950
        %v4047 = vadd.f32 %v3752, %v3952
        %v4048 = vadd.f32 %v3753, %v3955
        %v4049 = vadd.f32 %v3754, %v3957
        %v4050 = vadd.f32 %v3755, %v3960
        %v4051 = vadd.f32 %v3756, %v3962
        %v4052 = vadd.f32 %v3757, %v3965
        %v4053 = vadd.f32 %v3758, %v3967
        %v4054 = vadd.f32 %v3759, %v3970
        %v4055 = vadd.f32 %v3760, %v3972
        %v4056 = vadd.f32 %v3761, %v3975
        %v4057 = vadd.f32 %v3762, %v3977
        %v4058 = vadd.f32 %v3763, %v3980
        %v4059 = vadd.f32 %v3764, %v3982
        %v4060 = vadd.f32 %v3765, %v3985
        %v4061 = vadd.f32 %v3766, %v3987
        %v4062 = vadd.f32 %v3767, %v3990
        %v4063 = vadd.f32 %v3768, %v3992
        %v4064 = vadd.f32 %v3769, %v3995
        %v4065 = vadd.f32 %v3770, %v3997
        %v4066 = vadd.f32 %v3771, %v4000
        %v4067 = vadd.f32 %v3772, %v4002
        %v4068 = vadd.f32 %v3773, %v4005
        %v4069 = vadd.f32 %v3774, %v4007
        %v4070 = vadd.f32 %v3775, %v4010
        %v4071 = vadd.f32 %v3776, %v4012
        %v4072 = vadd.f32 %v3777, %v4015
        %v4073 = vadd.f32 %v3778, %v4017
        %v4074 = vadd.f32 %v3779, %v4020
        %v4075 = vadd.f32 %v3780, %v4022
        %v4076 = vadd.f32 %v3781, %v4025
        %v4077 = vadd.f32 %v3782, %v4027
        %v4078 = vadd.f32 %v3783, %v4030
        %v4079 = vadd.f32 %v3784, %v4032
        %v4080 = vadd.f32 %v3785, %v4035
        %v4081 = vld [vmem:[#allocation3 + $0x20] sm:$0xc]
        %v4082 = vld [vmem:[#allocation3 + $0x24] sm:$0xf]
        %v4083 = vld [vmem:[#allocation3 + $0x28] sm:$0xf]
        %v4084 = vld [vmem:[#allocation3 + $0x2c] sm:$0xf]
        %v4085 = vld [vmem:[#allocation3 + $0x30] sm:$0xf]
        %v4086 = vld [vmem:[#allocation3 + $0x34] sm:$0xf]
        %v4087 = vld [vmem:[#allocation3 + $0x38] sm:$0xf]
        %v4088 = vld [vmem:[#allocation3 + $0x3c] sm:$0xf]
        %v4089 = vld [vmem:[#allocation3 + $0x40] sm:$0xf]
        %v4090 = vld [vmem:[#allocation3 + $0x44] sm:$0xf]
        %v4091 = vld [vmem:[#allocation3 + $0x48] sm:$0xf]
        %v4092 = vld [vmem:[#allocation3 + $0x4c] sm:$0xf]
        %v4093 = vld [vmem:[#allocation3 + $0x50] sm:$0xf]
        %v4094 = vld [vmem:[#allocation3 + $0x54] sm:$0xf]
        %v4095 = vld [vmem:[#allocation3 + $0x58] sm:$0xf]
        %v4096 = vld [vmem:[#allocation3 + $0x5c] sm:$0xf]
        %v4097 = vld [vmem:[#allocation3 + $0x60] sm:$0xf]
        %v4098 = vld [vmem:[#allocation3 + $0x64] sm:$0xf]
        %v4099 = vld [vmem:[#allocation3 + $0x68] sm:$0xf]
        %v4100 = vld [vmem:[#allocation3 + $0x6c] sm:$0xf]
        %v4101 = vld [vmem:[#allocation3 + $0x70] sm:$0xf]
        %v4102 = vld [vmem:[#allocation3 + $0x74] sm:$0xf]
        %v4103 = vld [vmem:[#allocation3 + $0x78] sm:$0xf]
        %v4104 = vld [vmem:[#allocation3 + $0x7c] sm:$0xf]
        %v4105 = vld [vmem:[#allocation3 + $0x80] sm:$0xf]
        %v4106 = vld [vmem:[#allocation3 + $0x84] sm:$0xf]
        %v4107 = vld [vmem:[#allocation3 + $0x88] sm:$0xf]
        %v4108 = vld [vmem:[#allocation3 + $0x8c] sm:$0xf]
        %v4109 = vld [vmem:[#allocation3 + $0x90] sm:$0xf]
        %v4110 = vld [vmem:[#allocation3 + $0x94] sm:$0xf]
        %v4111 = vld [vmem:[#allocation3 + $0x98] sm:$0xf]
        %v4112 = vld [vmem:[#allocation3 + $0x9c] sm:$0xf]
        %v4113 = vld [vmem:[#allocation3 + $0xa0] sm:$0xf]
        %v4114 = vld [vmem:[#allocation3 + $0xa4] sm:$0xf]
        %v4115 = vld [vmem:[#allocation3 + $0xa8] sm:$0xf]
        %v4116 = vld [vmem:[#allocation3 + $0xac] sm:$0xf]
        %v4117 = vld [vmem:[#allocation3 + $0xb0] sm:$0xf]
        %v4118 = vld [vmem:[#allocation3 + $0xb4] sm:$0xf]
        %v4119 = vld [vmem:[#allocation3 + $0xb8] sm:$0xf]
        %v4120 = vld [vmem:[#allocation3 + $0xbc] sm:$0xf]
        %v4121 = vld [vmem:[#allocation3 + $0xc0] sm:$0xf]
        %v4122 = vld [vmem:[#allocation3 + $0xc4] sm:$0xf]
        %v4123 = vld [vmem:[#allocation3 + $0xc8] sm:$0xf]
        %v4124 = vld [vmem:[#allocation12 + $0x180] sm:$0xf]
        %v4125 = vld [vmem:[#allocation12 + $0x184] sm:$0xf]
        %v4126 = vld [vmem:[#allocation12 + $0x188] sm:$0xf]
        %v4127 = vld [vmem:[#allocation12 + $0x18c] sm:$0xf]
        %v4128 = vld [vmem:[#allocation12 + $0x190] sm:$0xf]
        %v4129 = vld [vmem:[#allocation12 + $0x194] sm:$0xf]
        %v4130 = vld [vmem:[#allocation12 + $0x198] sm:$0xf]
        %v4131 = vld [vmem:[#allocation12 + $0x19c] sm:$0xf]
        %v4132 = vld [vmem:[#allocation12 + $0x1a0] sm:$0xf]
        %v4133 = vld [vmem:[#allocation12 + $0x1a4] sm:$0xf]
        %v4134 = vld [vmem:[#allocation12 + $0x1a8] sm:$0xf]
        %v4135 = vld [vmem:[#allocation12 + $0x1ac] sm:$0xf]
        %v4136 = vld [vmem:[#allocation12 + $0x1b0] sm:$0xf]
        %v4137 = vld [vmem:[#allocation12 + $0x1b4] sm:$0xf]
        %v4138 = vld [vmem:[#allocation12 + $0x1b8] sm:$0xf]
        %v4139 = vld [vmem:[#allocation12 + $0x1bc] sm:$0xf]
        %v4183 = vunpack.c.l.b16 %v4081
        %v4184 = vunpack.c.l.b16 %v4082
        %v4185 = vunpack.c.l.b16 %v4083
        %v4186 = vunpack.c.l.b16 %v4084
        %v4187 = vunpack.c.l.b16 %v4085
        %v4188 = vunpack.c.l.b16 %v4086
        %v4189 = vunpack.c.l.b16 %v4087
        %v4190 = vunpack.c.l.b16 %v4088
        %v4191 = vunpack.c.l.b16 %v4089
        %v4192 = vunpack.c.l.b16 %v4090
        %v4193 = vunpack.c.l.b16 %v4091
        %v4194 = vunpack.c.l.b16 %v4092
        %v4195 = vunpack.c.l.b16 %v4093
        %v4196 = vunpack.c.l.b16 %v4094
        %v4197 = vunpack.c.l.b16 %v4095
        %v4198 = vunpack.c.l.b16 %v4096
        %v4199 = vunpack.c.l.b16 %v4097
        %v4200 = vunpack.c.l.b16 %v4098
        %v4201 = vunpack.c.l.b16 %v4099
        %v4202 = vunpack.c.l.b16 %v4100
        %v4203 = vunpack.c.l.b16 %v4101
        %v4204 = vunpack.c.l.b16 %v4102
        %v4205 = vunpack.c.l.b16 %v4103
        %v4206 = vunpack.c.l.b16 %v4104
        %v4207 = vunpack.c.l.b16 %v4105
        %v4208 = vunpack.c.l.b16 %v4106
        %v4209 = vunpack.c.l.b16 %v4107
        %v4210 = vunpack.c.l.b16 %v4108
        %v4211 = vunpack.c.l.b16 %v4109
        %v4212 = vunpack.c.l.b16 %v4110
        %v4213 = vunpack.c.l.b16 %v4111
        %v4214 = vunpack.c.l.b16 %v4112
        %v4215 = vunpack.c.l.b16 %v4113
        %v4216 = vunpack.c.l.b16 %v4114
        %v4217 = vunpack.c.l.b16 %v4115
        %v4218 = vunpack.c.l.b16 %v4116
        %v4219 = vunpack.c.l.b16 %v4117
        %v4220 = vunpack.c.l.b16 %v4118
        %v4221 = vunpack.c.l.b16 %v4119
        %v4222 = vunpack.c.l.b16 %v4120
        %v4223 = vunpack.c.l.b16 %v4121
        %v4224 = vunpack.c.l.b16 %v4122
        %v4225 = vunpack.c.l.b16 %v4123
        %v4226 = vpack.c.b16 %v4184, %v4183
        %v4227 = vpack.c.b16 %v4186, %v4185
        %v4228 = vpack.c.b16 %v4188, %v4187
        %v4229 = vpack.c.b16 %v4190, %v4189
        %v4230 = vpack.c.b16 %v4192, %v4191
        %v4231 = vpack.c.b16 %v4194, %v4193
        %v4232 = vpack.c.b16 %v4196, %v4195
        %v4233 = vpack.c.b16 %v4198, %v4197
        %v4234 = vpack.c.b16 %v4200, %v4199
        %v4235 = vpack.c.b16 %v4202, %v4201
        %v4236 = vpack.c.b16 %v4204, %v4203
        %v4237 = vpack.c.b16 %v4206, %v4205
        %v4238 = vpack.c.b16 %v4208, %v4207
        %v4239 = vpack.c.b16 %v4210, %v4209
        %v4240 = vpack.c.b16 %v4212, %v4211
        %v4241 = vpack.c.b16 %v4214, %v4213
        %v4242 = vpack.c.b16 %v4216, %v4215
        %v4243 = vpack.c.b16 %v4218, %v4217
        %v4244 = vpack.c.b16 %v4220, %v4219
        %v4245 = vpack.c.b16 %v4222, %v4221
        %v4246 = vpack.c.b16 %v4224, %v4223
        %v4247 = vpack.c.b16 %v4225, %v4225
        %v4248 = vrot.slane %v4226, 2
        %v4249 = vrot.slane %v4227, 2
        %v4250 = vsel %vm3806, %v4248, %v4249
        %v4251 = vrot.slane %v4228, 2
        %v4252 = vsel %vm3806, %v4249, %v4251
        %v4253 = vrot.slane %v4229, 2
        %v4254 = vsel %vm3806, %v4251, %v4253
        %v4255 = vrot.slane %v4230, 2
        %v4256 = vsel %vm3806, %v4253, %v4255
        %v4257 = vrot.slane %v4231, 2
        %v4258 = vsel %vm3806, %v4255, %v4257
        %v4259 = vrot.slane %v4232, 2
        %v4260 = vsel %vm3806, %v4257, %v4259
        %v4261 = vrot.slane %v4233, 2
        %v4262 = vsel %vm3806, %v4259, %v4261
        %v4263 = vrot.slane %v4234, 2
        %v4264 = vsel %vm3806, %v4261, %v4263
        %v4265 = vrot.slane %v4235, 2
        %v4266 = vsel %vm3806, %v4263, %v4265
        %v4267 = vrot.slane %v4236, 2
        %v4268 = vsel %vm3806, %v4265, %v4267
        %v4269 = vrot.slane %v4237, 2
        %v4270 = vsel %vm3806, %v4267, %v4269
        %v4271 = vrot.slane %v4238, 2
        %v4272 = vsel %vm3806, %v4269, %v4271
        %v4273 = vrot.slane %v4239, 2
        %v4274 = vsel %vm3806, %v4271, %v4273
        %v4275 = vrot.slane %v4240, 2
        %v4276 = vsel %vm3806, %v4273, %v4275
        %v4277 = vrot.slane %v4241, 2
        %v4278 = vsel %vm3806, %v4275, %v4277
        %v4279 = vrot.slane %v4242, 2
        %v4280 = vsel %vm3806, %v4277, %v4279
        %v4281 = vrot.slane %v4243, 2
        %v4282 = vsel %vm3806, %v4279, %v4281
        %v4283 = vrot.slane %v4244, 2
        %v4284 = vsel %vm3806, %v4281, %v4283
        %v4285 = vrot.slane %v4245, 2
        %v4286 = vsel %vm3806, %v4283, %v4285
        %v4287 = vrot.slane %v4246, 2
        %v4288 = vsel %vm3806, %v4285, %v4287
        %v4289 = vrot.slane %v4247, 2
        %v4290 = vsel %vm3806, %v4287, %v4289
        %v4329 = vunpack.c.l.b16 %v4124
        %v4330 = vunpack.c.l.b16 %v4125
        %v4331 = vunpack.c.l.b16 %v4126
        %v4332 = vunpack.c.l.b16 %v4127
        %v4333 = vunpack.c.l.b16 %v4128
        %v4334 = vunpack.c.l.b16 %v4129
        %v4335 = vunpack.c.l.b16 %v4130
        %v4336 = vunpack.c.l.b16 %v4131
        %v4337 = vunpack.c.l.b16 %v4132
        %v4338 = vunpack.c.l.b16 %v4133
        %v4339 = vunpack.c.l.b16 %v4134
        %v4340 = vunpack.c.l.b16 %v4135
        %v4341 = vunpack.c.l.b16 %v4136
        %v4342 = vunpack.c.l.b16 %v4137
        %v4343 = vunpack.c.l.b16 %v4138
        %v4344 = vunpack.c.l.b16 %v4139
        %v4345 = vpack.c.b16 %v4330, %v4329
        %v4346 = vpack.c.b16 %v4332, %v4331
        %v4347 = vpack.c.b16 %v4334, %v4333
        %v4348 = vpack.c.b16 %v4336, %v4335
        %v4349 = vpack.c.b16 %v4338, %v4337
        %v4350 = vpack.c.b16 %v4340, %v4339
        %v4351 = vpack.c.b16 %v4342, %v4341
        %v4352 = vpack.c.b16 %v4344, %v4343
        %4361 = vmatpush.bf16.msra.mxu0 %v4352
        %4362 = vmatpush.bf16.msra.mxu0 %v4351
        %4363 = vmatpush.bf16.msra.mxu0 %v4350
        %4364 = vmatpush.bf16.msra.mxu0 %v4349
        %4365 = vmatpush.bf16.msra.mxu0 %v4348
        %4366 = vmatpush.bf16.msra.mxu0 %v4347
        %4367 = vmatpush.bf16.msra.mxu0 %v4346
        %4368 = vmatpush.bf16.msra.mxu0 %v4345
        %4369 = vmatmul.bf16.gmra.mxu0 %v4250
        %v4370 = vpop.f32.mrf.mxu0
        %v4371 = vadd.f32 0.0, %v4370
        %v4372 = vpop.f32.mrf.mxu0
        %v4373 = vadd.f32 0.0, %v4372
        %4374 = vmatmul.bf16.gmra.mxu0 %v4252
        %v4375 = vpop.f32.mrf.mxu0
        %v4376 = vadd.f32 0.0, %v4375
        %v4377 = vpop.f32.mrf.mxu0
        %v4378 = vadd.f32 0.0, %v4377
        %4379 = vmatmul.bf16.gmra.mxu0 %v4254
        %v4380 = vpop.f32.mrf.mxu0
        %v4381 = vadd.f32 0.0, %v4380
        %v4382 = vpop.f32.mrf.mxu0
        %v4383 = vadd.f32 0.0, %v4382
        %4384 = vmatmul.bf16.gmra.mxu0 %v4256
        %v4385 = vpop.f32.mrf.mxu0
        %v4386 = vadd.f32 0.0, %v4385
        %v4387 = vpop.f32.mrf.mxu0
        %v4388 = vadd.f32 0.0, %v4387
        %4389 = vmatmul.bf16.gmra.mxu0 %v4258
        %v4390 = vpop.f32.mrf.mxu0
        %v4391 = vadd.f32 0.0, %v4390
        %v4392 = vpop.f32.mrf.mxu0
        %v4393 = vadd.f32 0.0, %v4392
        %4394 = vmatmul.bf16.gmra.mxu0 %v4260
        %v4395 = vpop.f32.mrf.mxu0
        %v4396 = vadd.f32 0.0, %v4395
        %v4397 = vpop.f32.mrf.mxu0
        %v4398 = vadd.f32 0.0, %v4397
        %4399 = vmatmul.bf16.gmra.mxu0 %v4262
        %v4400 = vpop.f32.mrf.mxu0
        %v4401 = vadd.f32 0.0, %v4400
        %v4402 = vpop.f32.mrf.mxu0
        %v4403 = vadd.f32 0.0, %v4402
        %4404 = vmatmul.bf16.gmra.mxu0 %v4264
        %v4405 = vpop.f32.mrf.mxu0
        %v4406 = vadd.f32 0.0, %v4405
        %v4407 = vpop.f32.mrf.mxu0
        %v4408 = vadd.f32 0.0, %v4407
        %4409 = vmatmul.bf16.gmra.mxu0 %v4266
        %v4410 = vpop.f32.mrf.mxu0
        %v4411 = vadd.f32 0.0, %v4410
        %v4412 = vpop.f32.mrf.mxu0
        %v4413 = vadd.f32 0.0, %v4412
        %4414 = vmatmul.bf16.gmra.mxu0 %v4268
        %v4415 = vpop.f32.mrf.mxu0
        %v4416 = vadd.f32 0.0, %v4415
        %v4417 = vpop.f32.mrf.mxu0
        %v4418 = vadd.f32 0.0, %v4417
        %4419 = vmatmul.bf16.gmra.mxu0 %v4270
        %v4420 = vpop.f32.mrf.mxu0
        %v4421 = vadd.f32 0.0, %v4420
        %v4422 = vpop.f32.mrf.mxu0
        %v4423 = vadd.f32 0.0, %v4422
        %4424 = vmatmul.bf16.gmra.mxu0 %v4272
        %v4425 = vpop.f32.mrf.mxu0
        %v4426 = vadd.f32 0.0, %v4425
        %v4427 = vpop.f32.mrf.mxu0
        %v4428 = vadd.f32 0.0, %v4427
        %4429 = vmatmul.bf16.gmra.mxu0 %v4274
        %v4430 = vpop.f32.mrf.mxu0
        %v4431 = vadd.f32 0.0, %v4430
        %v4432 = vpop.f32.mrf.mxu0
        %v4433 = vadd.f32 0.0, %v4432
        %4434 = vmatmul.bf16.gmra.mxu0 %v4276
        %v4435 = vpop.f32.mrf.mxu0
        %v4436 = vadd.f32 0.0, %v4435
        %v4437 = vpop.f32.mrf.mxu0
        %v4438 = vadd.f32 0.0, %v4437
        %4439 = vmatmul.bf16.gmra.mxu0 %v4278
        %v4440 = vpop.f32.mrf.mxu0
        %v4441 = vadd.f32 0.0, %v4440
        %v4442 = vpop.f32.mrf.mxu0
        %v4443 = vadd.f32 0.0, %v4442
        %4444 = vmatmul.bf16.gmra.mxu0 %v4280
        %v4445 = vpop.f32.mrf.mxu0
        %v4446 = vadd.f32 0.0, %v4445
        %v4447 = vpop.f32.mrf.mxu0
        %v4448 = vadd.f32 0.0, %v4447
        %4449 = vmatmul.bf16.gmra.mxu0 %v4282
        %v4450 = vpop.f32.mrf.mxu0
        %v4451 = vadd.f32 0.0, %v4450
        %v4452 = vpop.f32.mrf.mxu0
        %v4453 = vadd.f32 0.0, %v4452
        %4454 = vmatmul.bf16.gmra.mxu0 %v4284
        %v4455 = vpop.f32.mrf.mxu0
        %v4456 = vadd.f32 0.0, %v4455
        %v4457 = vpop.f32.mrf.mxu0
        %v4458 = vadd.f32 0.0, %v4457
        %4459 = vmatmul.bf16.gmra.mxu0 %v4286
        %v4460 = vpop.f32.mrf.mxu0
        %v4461 = vadd.f32 0.0, %v4460
        %v4462 = vpop.f32.mrf.mxu0
        %v4463 = vadd.f32 0.0, %v4462
        %4464 = vmatmul.bf16.gmra.mxu0 %v4288
        %v4465 = vpop.f32.mrf.mxu0
        %v4466 = vadd.f32 0.0, %v4465
        %v4467 = vpop.f32.mrf.mxu0
        %v4468 = vadd.f32 0.0, %v4467
        %4469 = vmatmul.bf16.gmra.mxu0 %v4290
        %v4470 = vpop.f32.mrf.mxu0
        %v4471 = vadd.f32 0.0, %v4470
        %v4472 = vpop.f32.mrf.mxu0
        %v4473 = vadd.f32 0.0, %v4472
        %4474 = vmatmul.bf16.gmra.mxu0 %v4289
        %v4475 = vpop.f32.mrf.mxu0
        %v4476 = vadd.f32 0.0, %v4475
        %v4477 = vpop.f32.mrf.mxu0
        %4478 = vdwg.mxu0
        %v4479 = vadd.f32 %v4038, %v4371
        %v4480 = vadd.f32 %v4039, %v4373
        %v4481 = vadd.f32 %v4040, %v4376
        %v4482 = vadd.f32 %v4041, %v4378
        %v4483 = vadd.f32 %v4042, %v4381
        %v4484 = vadd.f32 %v4043, %v4383
        %v4485 = vadd.f32 %v4044, %v4386
        %v4486 = vadd.f32 %v4045, %v4388
        %v4487 = vadd.f32 %v4046, %v4391
        %v4488 = vadd.f32 %v4047, %v4393
        %v4489 = vadd.f32 %v4048, %v4396
        %v4490 = vadd.f32 %v4049, %v4398
        %v4491 = vadd.f32 %v4050, %v4401
        %v4492 = vadd.f32 %v4051, %v4403
        %v4493 = vadd.f32 %v4052, %v4406
        %v4494 = vadd.f32 %v4053, %v4408
        %v4495 = vadd.f32 %v4054, %v4411
        %v4496 = vadd.f32 %v4055, %v4413
        %v4497 = vadd.f32 %v4056, %v4416
        %v4498 = vadd.f32 %v4057, %v4418
        %v4499 = vadd.f32 %v4058, %v4421
        %v4500 = vadd.f32 %v4059, %v4423
        %v4501 = vadd.f32 %v4060, %v4426
        %v4502 = vadd.f32 %v4061, %v4428
        %v4503 = vadd.f32 %v4062, %v4431
        %v4504 = vadd.f32 %v4063, %v4433
        %v4505 = vadd.f32 %v4064, %v4436
        %v4506 = vadd.f32 %v4065, %v4438
        %v4507 = vadd.f32 %v4066, %v4441
        %v4508 = vadd.f32 %v4067, %v4443
        %v4509 = vadd.f32 %v4068, %v4446
        %v4510 = vadd.f32 %v4069, %v4448
        %v4511 = vadd.f32 %v4070, %v4451
        %v4512 = vadd.f32 %v4071, %v4453
        %v4513 = vadd.f32 %v4072, %v4456
        %v4514 = vadd.f32 %v4073, %v4458
        %v4515 = vadd.f32 %v4074, %v4461
        %v4516 = vadd.f32 %v4075, %v4463
        %v4517 = vadd.f32 %v4076, %v4466
        %v4518 = vadd.f32 %v4077, %v4468
        %v4519 = vadd.f32 %v4078, %v4471
        %v4520 = vadd.f32 %v4079, %v4473
        %v4521 = vadd.f32 %v4080, %v4476
        %v4522 = vld [vmem:[#allocation3 + $0x20] sm:$0xc]
        %v4523 = vld [vmem:[#allocation3 + $0x24] sm:$0xf]
        %v4524 = vld [vmem:[#allocation3 + $0x28] sm:$0xf]
        %v4525 = vld [vmem:[#allocation3 + $0x2c] sm:$0xf]
        %v4526 = vld [vmem:[#allocation3 + $0x30] sm:$0xf]
        %v4527 = vld [vmem:[#allocation3 + $0x34] sm:$0xf]
        %v4528 = vld [vmem:[#allocation3 + $0x38] sm:$0xf]
        %v4529 = vld [vmem:[#allocation3 + $0x3c] sm:$0xf]
        %v4530 = vld [vmem:[#allocation3 + $0x40] sm:$0xf]
        %v4531 = vld [vmem:[#allocation3 + $0x44] sm:$0xf]
        %v4532 = vld [vmem:[#allocation3 + $0x48] sm:$0xf]
        %v4533 = vld [vmem:[#allocation3 + $0x4c] sm:$0xf]
        %v4534 = vld [vmem:[#allocation3 + $0x50] sm:$0xf]
        %v4535 = vld [vmem:[#allocation3 + $0x54] sm:$0xf]
        %v4536 = vld [vmem:[#allocation3 + $0x58] sm:$0xf]
        %v4537 = vld [vmem:[#allocation3 + $0x5c] sm:$0xf]
        %v4538 = vld [vmem:[#allocation3 + $0x60] sm:$0xf]
        %v4539 = vld [vmem:[#allocation3 + $0x64] sm:$0xf]
        %v4540 = vld [vmem:[#allocation3 + $0x68] sm:$0xf]
        %v4541 = vld [vmem:[#allocation3 + $0x6c] sm:$0xf]
        %v4542 = vld [vmem:[#allocation3 + $0x70] sm:$0xf]
        %v4543 = vld [vmem:[#allocation3 + $0x74] sm:$0xf]
        %v4544 = vld [vmem:[#allocation3 + $0x78] sm:$0xf]
        %v4545 = vld [vmem:[#allocation3 + $0x7c] sm:$0xf]
        %v4546 = vld [vmem:[#allocation3 + $0x80] sm:$0xf]
        %v4547 = vld [vmem:[#allocation3 + $0x84] sm:$0xf]
        %v4548 = vld [vmem:[#allocation3 + $0x88] sm:$0xf]
        %v4549 = vld [vmem:[#allocation3 + $0x8c] sm:$0xf]
        %v4550 = vld [vmem:[#allocation3 + $0x90] sm:$0xf]
        %v4551 = vld [vmem:[#allocation3 + $0x94] sm:$0xf]
        %v4552 = vld [vmem:[#allocation3 + $0x98] sm:$0xf]
        %v4553 = vld [vmem:[#allocation3 + $0x9c] sm:$0xf]
        %v4554 = vld [vmem:[#allocation3 + $0xa0] sm:$0xf]
        %v4555 = vld [vmem:[#allocation3 + $0xa4] sm:$0xf]
        %v4556 = vld [vmem:[#allocation3 + $0xa8] sm:$0xf]
        %v4557 = vld [vmem:[#allocation3 + $0xac] sm:$0xf]
        %v4558 = vld [vmem:[#allocation3 + $0xb0] sm:$0xf]
        %v4559 = vld [vmem:[#allocation3 + $0xb4] sm:$0xf]
        %v4560 = vld [vmem:[#allocation3 + $0xb8] sm:$0xf]
        %v4561 = vld [vmem:[#allocation3 + $0xbc] sm:$0xf]
        %v4562 = vld [vmem:[#allocation3 + $0xc0] sm:$0xf]
        %v4563 = vld [vmem:[#allocation3 + $0xc4] sm:$0xf]
        %v4564 = vld [vmem:[#allocation3 + $0xc8] sm:$0xf]
        %v4565 = vld [vmem:[#allocation3 + $0xcc] sm:$0x1]
        %v4566 = vld [vmem:[#allocation12 + $0x1c0] sm:$0xf]
        %v4567 = vld [vmem:[#allocation12 + $0x1c4] sm:$0xf]
        %v4568 = vld [vmem:[#allocation12 + $0x1c8] sm:$0xf]
        %v4569 = vld [vmem:[#allocation12 + $0x1cc] sm:$0xf]
        %v4570 = vld [vmem:[#allocation12 + $0x1d0] sm:$0xf]
        %v4571 = vld [vmem:[#allocation12 + $0x1d4] sm:$0xf]
        %v4572 = vld [vmem:[#allocation12 + $0x1d8] sm:$0xf]
        %v4573 = vld [vmem:[#allocation12 + $0x1dc] sm:$0xf]
        %v4574 = vld [vmem:[#allocation12 + $0x1e0] sm:$0xf]
        %v4575 = vld [vmem:[#allocation12 + $0x1e4] sm:$0xf]
        %v4576 = vld [vmem:[#allocation12 + $0x1e8] sm:$0xf]
        %v4577 = vld [vmem:[#allocation12 + $0x1ec] sm:$0xf]
        %v4578 = vld [vmem:[#allocation12 + $0x1f0] sm:$0xf]
        %v4579 = vld [vmem:[#allocation12 + $0x1f4] sm:$0xf]
        %v4580 = vld [vmem:[#allocation12 + $0x1f8] sm:$0xf]
        %v4581 = vld [vmem:[#allocation12 + $0x1fc] sm:$0xf]
        %v4626 = vunpack.c.l.b16 %v4522
        %v4627 = vunpack.c.l.b16 %v4523
        %v4628 = vunpack.c.l.b16 %v4524
        %v4629 = vunpack.c.l.b16 %v4525
        %v4630 = vunpack.c.l.b16 %v4526
        %v4631 = vunpack.c.l.b16 %v4527
        %v4632 = vunpack.c.l.b16 %v4528
        %v4633 = vunpack.c.l.b16 %v4529
        %v4634 = vunpack.c.l.b16 %v4530
        %v4635 = vunpack.c.l.b16 %v4531
        %v4636 = vunpack.c.l.b16 %v4532
        %v4637 = vunpack.c.l.b16 %v4533
        %v4638 = vunpack.c.l.b16 %v4534
        %v4639 = vunpack.c.l.b16 %v4535
        %v4640 = vunpack.c.l.b16 %v4536
        %v4641 = vunpack.c.l.b16 %v4537
        %v4642 = vunpack.c.l.b16 %v4538
        %v4643 = vunpack.c.l.b16 %v4539
        %v4644 = vunpack.c.l.b16 %v4540
        %v4645 = vunpack.c.l.b16 %v4541
        %v4646 = vunpack.c.l.b16 %v4542
        %v4647 = vunpack.c.l.b16 %v4543
        %v4648 = vunpack.c.l.b16 %v4544
        %v4649 = vunpack.c.l.b16 %v4545
        %v4650 = vunpack.c.l.b16 %v4546
        %v4651 = vunpack.c.l.b16 %v4547
        %v4652 = vunpack.c.l.b16 %v4548
        %v4653 = vunpack.c.l.b16 %v4549
        %v4654 = vunpack.c.l.b16 %v4550
        %v4655 = vunpack.c.l.b16 %v4551
        %v4656 = vunpack.c.l.b16 %v4552
        %v4657 = vunpack.c.l.b16 %v4553
        %v4658 = vunpack.c.l.b16 %v4554
        %v4659 = vunpack.c.l.b16 %v4555
        %v4660 = vunpack.c.l.b16 %v4556
        %v4661 = vunpack.c.l.b16 %v4557
        %v4662 = vunpack.c.l.b16 %v4558
        %v4663 = vunpack.c.l.b16 %v4559
        %v4664 = vunpack.c.l.b16 %v4560
        %v4665 = vunpack.c.l.b16 %v4561
        %v4666 = vunpack.c.l.b16 %v4562
        %v4667 = vunpack.c.l.b16 %v4563
        %v4668 = vunpack.c.l.b16 %v4564
        %v4669 = vunpack.c.l.b16 %v4565
        %v4670 = vpack.c.b16 %v4627, %v4626
        %v4671 = vpack.c.b16 %v4629, %v4628
        %v4672 = vpack.c.b16 %v4631, %v4630
        %v4673 = vpack.c.b16 %v4633, %v4632
        %v4674 = vpack.c.b16 %v4635, %v4634
        %v4675 = vpack.c.b16 %v4637, %v4636
        %v4676 = vpack.c.b16 %v4639, %v4638
        %v4677 = vpack.c.b16 %v4641, %v4640
        %v4678 = vpack.c.b16 %v4643, %v4642
        %v4679 = vpack.c.b16 %v4645, %v4644
        %v4680 = vpack.c.b16 %v4647, %v4646
        %v4681 = vpack.c.b16 %v4649, %v4648
        %v4682 = vpack.c.b16 %v4651, %v4650
        %v4683 = vpack.c.b16 %v4653, %v4652
        %v4684 = vpack.c.b16 %v4655, %v4654
        %v4685 = vpack.c.b16 %v4657, %v4656
        %v4686 = vpack.c.b16 %v4659, %v4658
        %v4687 = vpack.c.b16 %v4661, %v4660
        %v4688 = vpack.c.b16 %v4663, %v4662
        %v4689 = vpack.c.b16 %v4665, %v4664
        %v4690 = vpack.c.b16 %v4667, %v4666
        %v4691 = vpack.c.b16 %v4669, %v4668
        %vm4692 = vsmask.f32 5376
        %v4694 = vshrl.u32 %v4670, 16
        %v4696 = vrot.slane %v4694, 2
        %v4697 = vshll.u32 %v4670, 16
        %v4699 = vrot.slane %v4697, 3
        %v4700 = vor.u32 %v4696, %v4699
        %v4702 = vshrl.u32 %v4671, 16
        %v4704 = vrot.slane %v4702, 2
        %v4705 = vshll.u32 %v4671, 16
        %v4707 = vrot.slane %v4705, 3
        %v4708 = vor.u32 %v4704, %v4707
        %v4709 = vsel %vm4692, %v4700, %v4708
        %v4711 = vshrl.u32 %v4672, 16
        %v4713 = vrot.slane %v4711, 2
        %v4714 = vshll.u32 %v4672, 16
        %v4716 = vrot.slane %v4714, 3
        %v4717 = vor.u32 %v4713, %v4716
        %v4718 = vsel %vm4692, %v4708, %v4717
        %v4720 = vshrl.u32 %v4673, 16
        %v4722 = vrot.slane %v4720, 2
        %v4723 = vshll.u32 %v4673, 16
        %v4725 = vrot.slane %v4723, 3
        %v4726 = vor.u32 %v4722, %v4725
        %v4727 = vsel %vm4692, %v4717, %v4726
        %v4729 = vshrl.u32 %v4674, 16
        %v4731 = vrot.slane %v4729, 2
        %v4732 = vshll.u32 %v4674, 16
        %v4734 = vrot.slane %v4732, 3
        %v4735 = vor.u32 %v4731, %v4734
        %v4736 = vsel %vm4692, %v4726, %v4735
        %v4738 = vshrl.u32 %v4675, 16
        %v4740 = vrot.slane %v4738, 2
        %v4741 = vshll.u32 %v4675, 16
        %v4743 = vrot.slane %v4741, 3
        %v4744 = vor.u32 %v4740, %v4743
        %v4745 = vsel %vm4692, %v4735, %v4744
        %v4747 = vshrl.u32 %v4676, 16
        %v4749 = vrot.slane %v4747, 2
        %v4750 = vshll.u32 %v4676, 16
        %v4752 = vrot.slane %v4750, 3
        %v4753 = vor.u32 %v4749, %v4752
        %v4754 = vsel %vm4692, %v4744, %v4753
        %v4756 = vshrl.u32 %v4677, 16
        %v4758 = vrot.slane %v4756, 2
        %v4759 = vshll.u32 %v4677, 16
        %v4761 = vrot.slane %v4759, 3
        %v4762 = vor.u32 %v4758, %v4761
        %v4763 = vsel %vm4692, %v4753, %v4762
        %v4765 = vshrl.u32 %v4678, 16
        %v4767 = vrot.slane %v4765, 2
        %v4768 = vshll.u32 %v4678, 16
        %v4770 = vrot.slane %v4768, 3
        %v4771 = vor.u32 %v4767, %v4770
        %v4772 = vsel %vm4692, %v4762, %v4771
        %v4774 = vshrl.u32 %v4679, 16
        %v4776 = vrot.slane %v4774, 2
        %v4777 = vshll.u32 %v4679, 16
        %v4779 = vrot.slane %v4777, 3
        %v4780 = vor.u32 %v4776, %v4779
        %v4781 = vsel %vm4692, %v4771, %v4780
        %v4783 = vshrl.u32 %v4680, 16
        %v4785 = vrot.slane %v4783, 2
        %v4786 = vshll.u32 %v4680, 16
        %v4788 = vrot.slane %v4786, 3
        %v4789 = vor.u32 %v4785, %v4788
        %v4790 = vsel %vm4692, %v4780, %v4789
        %v4792 = vshrl.u32 %v4681, 16
        %v4794 = vrot.slane %v4792, 2
        %v4795 = vshll.u32 %v4681, 16
        %v4797 = vrot.slane %v4795, 3
        %v4798 = vor.u32 %v4794, %v4797
        %v4799 = vsel %vm4692, %v4789, %v4798
        %v4801 = vshrl.u32 %v4682, 16
        %v4803 = vrot.slane %v4801, 2
        %v4804 = vshll.u32 %v4682, 16
        %v4806 = vrot.slane %v4804, 3
        %v4807 = vor.u32 %v4803, %v4806
        %v4808 = vsel %vm4692, %v4798, %v4807
        %v4810 = vshrl.u32 %v4683, 16
        %v4812 = vrot.slane %v4810, 2
        %v4813 = vshll.u32 %v4683, 16
        %v4815 = vrot.slane %v4813, 3
        %v4816 = vor.u32 %v4812, %v4815
        %v4817 = vsel %vm4692, %v4807, %v4816
        %v4819 = vshrl.u32 %v4684, 16
        %v4821 = vrot.slane %v4819, 2
        %v4822 = vshll.u32 %v4684, 16
        %v4824 = vrot.slane %v4822, 3
        %v4825 = vor.u32 %v4821, %v4824
        %v4826 = vsel %vm4692, %v4816, %v4825
        %v4828 = vshrl.u32 %v4685, 16
        %v4830 = vrot.slane %v4828, 2
        %v4831 = vshll.u32 %v4685, 16
        %v4833 = vrot.slane %v4831, 3
        %v4834 = vor.u32 %v4830, %v4833
        %v4835 = vsel %vm4692, %v4825, %v4834
        %v4837 = vshrl.u32 %v4686, 16
        %v4839 = vrot.slane %v4837, 2
        %v4840 = vshll.u32 %v4686, 16
        %v4842 = vrot.slane %v4840, 3
        %v4843 = vor.u32 %v4839, %v4842
        %v4844 = vsel %vm4692, %v4834, %v4843
        %v4846 = vshrl.u32 %v4687, 16
        %v4848 = vrot.slane %v4846, 2
        %v4849 = vshll.u32 %v4687, 16
        %v4851 = vrot.slane %v4849, 3
        %v4852 = vor.u32 %v4848, %v4851
        %v4853 = vsel %vm4692, %v4843, %v4852
        %v4855 = vshrl.u32 %v4688, 16
        %v4857 = vrot.slane %v4855, 2
        %v4858 = vshll.u32 %v4688, 16
        %v4860 = vrot.slane %v4858, 3
        %v4861 = vor.u32 %v4857, %v4860
        %v4862 = vsel %vm4692, %v4852, %v4861
        %v4864 = vshrl.u32 %v4689, 16
        %v4866 = vrot.slane %v4864, 2
        %v4867 = vshll.u32 %v4689, 16
        %v4869 = vrot.slane %v4867, 3
        %v4870 = vor.u32 %v4866, %v4869
        %v4871 = vsel %vm4692, %v4861, %v4870
        %v4873 = vshrl.u32 %v4690, 16
        %v4875 = vrot.slane %v4873, 2
        %v4876 = vshll.u32 %v4690, 16
        %v4878 = vrot.slane %v4876, 3
        %v4879 = vor.u32 %v4875, %v4878
        %v4880 = vsel %vm4692, %v4870, %v4879
        %v4882 = vshrl.u32 %v4691, 16
        %v4884 = vrot.slane %v4882, 2
        %v4885 = vshll.u32 %v4691, 16
        %v4887 = vrot.slane %v4885, 3
        %v4888 = vor.u32 %v4884, %v4887
        %v4889 = vsel %vm4692, %v4879, %v4888
        %v4928 = vunpack.c.l.b16 %v4566
        %v4929 = vunpack.c.l.b16 %v4567
        %v4930 = vunpack.c.l.b16 %v4568
        %v4931 = vunpack.c.l.b16 %v4569
        %v4932 = vunpack.c.l.b16 %v4570
        %v4933 = vunpack.c.l.b16 %v4571
        %v4934 = vunpack.c.l.b16 %v4572
        %v4935 = vunpack.c.l.b16 %v4573
        %v4936 = vunpack.c.l.b16 %v4574
        %v4937 = vunpack.c.l.b16 %v4575
        %v4938 = vunpack.c.l.b16 %v4576
        %v4939 = vunpack.c.l.b16 %v4577
        %v4940 = vunpack.c.l.b16 %v4578
        %v4941 = vunpack.c.l.b16 %v4579
        %v4942 = vunpack.c.l.b16 %v4580
        %v4943 = vunpack.c.l.b16 %v4581
        %v4944 = vpack.c.b16 %v4929, %v4928
        %v4945 = vpack.c.b16 %v4931, %v4930
        %v4946 = vpack.c.b16 %v4933, %v4932
        %v4947 = vpack.c.b16 %v4935, %v4934
        %v4948 = vpack.c.b16 %v4937, %v4936
        %v4949 = vpack.c.b16 %v4939, %v4938
        %v4950 = vpack.c.b16 %v4941, %v4940
        %v4951 = vpack.c.b16 %v4943, %v4942
        %4960 = vmatpush.bf16.msra.mxu0 %v4951
        %4961 = vmatpush.bf16.msra.mxu0 %v4950
        %4962 = vmatpush.bf16.msra.mxu0 %v4949
        %4963 = vmatpush.bf16.msra.mxu0 %v4948
        %4964 = vmatpush.bf16.msra.mxu0 %v4947
        %4965 = vmatpush.bf16.msra.mxu0 %v4946
        %4966 = vmatpush.bf16.msra.mxu0 %v4945
        %4967 = vmatpush.bf16.msra.mxu0 %v4944
        %4968 = vmatmul.bf16.gmra.mxu0 %v4709
        %v4969 = vpop.f32.mrf.mxu0
        %v4970 = vadd.f32 0.0, %v4969
        %v4971 = vpop.f32.mrf.mxu0
        %v4972 = vadd.f32 0.0, %v4971
        %4973 = vmatmul.bf16.gmra.mxu0 %v4718
        %v4974 = vpop.f32.mrf.mxu0
        %v4975 = vadd.f32 0.0, %v4974
        %v4976 = vpop.f32.mrf.mxu0
        %v4977 = vadd.f32 0.0, %v4976
        %4978 = vmatmul.bf16.gmra.mxu0 %v4727
        %v4979 = vpop.f32.mrf.mxu0
        %v4980 = vadd.f32 0.0, %v4979
        %v4981 = vpop.f32.mrf.mxu0
        %v4982 = vadd.f32 0.0, %v4981
        %4983 = vmatmul.bf16.gmra.mxu0 %v4736
        %v4984 = vpop.f32.mrf.mxu0
        %v4985 = vadd.f32 0.0, %v4984
        %v4986 = vpop.f32.mrf.mxu0
        %v4987 = vadd.f32 0.0, %v4986
        %4988 = vmatmul.bf16.gmra.mxu0 %v4745
        %v4989 = vpop.f32.mrf.mxu0
        %v4990 = vadd.f32 0.0, %v4989
        %v4991 = vpop.f32.mrf.mxu0
        %v4992 = vadd.f32 0.0, %v4991
        %4993 = vmatmul.bf16.gmra.mxu0 %v4754
        %v4994 = vpop.f32.mrf.mxu0
        %v4995 = vadd.f32 0.0, %v4994
        %v4996 = vpop.f32.mrf.mxu0
        %v4997 = vadd.f32 0.0, %v4996
        %4998 = vmatmul.bf16.gmra.mxu0 %v4763
        %v4999 = vpop.f32.mrf.mxu0
        %v5000 = vadd.f32 0.0, %v4999
        %v5001 = vpop.f32.mrf.mxu0
        %v5002 = vadd.f32 0.0, %v5001
        %5003 = vmatmul.bf16.gmra.mxu0 %v4772
        %v5004 = vpop.f32.mrf.mxu0
        %v5005 = vadd.f32 0.0, %v5004
        %v5006 = vpop.f32.mrf.mxu0
        %v5007 = vadd.f32 0.0, %v5006
        %5008 = vmatmul.bf16.gmra.mxu0 %v4781
        %v5009 = vpop.f32.mrf.mxu0
        %v5010 = vadd.f32 0.0, %v5009
        %v5011 = vpop.f32.mrf.mxu0
        %v5012 = vadd.f32 0.0, %v5011
        %5013 = vmatmul.bf16.gmra.mxu0 %v4790
        %v5014 = vpop.f32.mrf.mxu0
        %v5015 = vadd.f32 0.0, %v5014
        %v5016 = vpop.f32.mrf.mxu0
        %v5017 = vadd.f32 0.0, %v5016
        %5018 = vmatmul.bf16.gmra.mxu0 %v4799
        %v5019 = vpop.f32.mrf.mxu0
        %v5020 = vadd.f32 0.0, %v5019
        %v5021 = vpop.f32.mrf.mxu0
        %v5022 = vadd.f32 0.0, %v5021
        %5023 = vmatmul.bf16.gmra.mxu0 %v4808
        %v5024 = vpop.f32.mrf.mxu0
        %v5025 = vadd.f32 0.0, %v5024
        %v5026 = vpop.f32.mrf.mxu0
        %v5027 = vadd.f32 0.0, %v5026
        %5028 = vmatmul.bf16.gmra.mxu0 %v4817
        %v5029 = vpop.f32.mrf.mxu0
        %v5030 = vadd.f32 0.0, %v5029
        %v5031 = vpop.f32.mrf.mxu0
        %v5032 = vadd.f32 0.0, %v5031
        %5033 = vmatmul.bf16.gmra.mxu0 %v4826
        %v5034 = vpop.f32.mrf.mxu0
        %v5035 = vadd.f32 0.0, %v5034
        %v5036 = vpop.f32.mrf.mxu0
        %v5037 = vadd.f32 0.0, %v5036
        %5038 = vmatmul.bf16.gmra.mxu0 %v4835
        %v5039 = vpop.f32.mrf.mxu0
        %v5040 = vadd.f32 0.0, %v5039
        %v5041 = vpop.f32.mrf.mxu0
        %v5042 = vadd.f32 0.0, %v5041
        %5043 = vmatmul.bf16.gmra.mxu0 %v4844
        %v5044 = vpop.f32.mrf.mxu0
        %v5045 = vadd.f32 0.0, %v5044
        %v5046 = vpop.f32.mrf.mxu0
        %v5047 = vadd.f32 0.0, %v5046
        %5048 = vmatmul.bf16.gmra.mxu0 %v4853
        %v5049 = vpop.f32.mrf.mxu0
        %v5050 = vadd.f32 0.0, %v5049
        %v5051 = vpop.f32.mrf.mxu0
        %v5052 = vadd.f32 0.0, %v5051
        %5053 = vmatmul.bf16.gmra.mxu0 %v4862
        %v5054 = vpop.f32.mrf.mxu0
        %v5055 = vadd.f32 0.0, %v5054
        %v5056 = vpop.f32.mrf.mxu0
        %v5057 = vadd.f32 0.0, %v5056
        %5058 = vmatmul.bf16.gmra.mxu0 %v4871
        %v5059 = vpop.f32.mrf.mxu0
        %v5060 = vadd.f32 0.0, %v5059
        %v5061 = vpop.f32.mrf.mxu0
        %v5062 = vadd.f32 0.0, %v5061
        %5063 = vmatmul.bf16.gmra.mxu0 %v4880
        %v5064 = vpop.f32.mrf.mxu0
        %v5065 = vadd.f32 0.0, %v5064
        %v5066 = vpop.f32.mrf.mxu0
        %v5067 = vadd.f32 0.0, %v5066
        %5068 = vmatmul.bf16.gmra.mxu0 %v4889
        %v5069 = vpop.f32.mrf.mxu0
        %v5070 = vadd.f32 0.0, %v5069
        %v5071 = vpop.f32.mrf.mxu0
        %v5072 = vadd.f32 0.0, %v5071
        %5073 = vmatmul.bf16.gmra.mxu0 %v4888
        %v5074 = vpop.f32.mrf.mxu0
        %v5075 = vadd.f32 0.0, %v5074
        %v5076 = vpop.f32.mrf.mxu0
        %5077 = vdwg.mxu0
        %v5078 = vadd.f32 %v4479, %v4970
        %v5079 = vadd.f32 %v4480, %v4972
        %v5080 = vadd.f32 %v4481, %v4975
        %v5081 = vadd.f32 %v4482, %v4977
        %v5082 = vadd.f32 %v4483, %v4980
        %v5083 = vadd.f32 %v4484, %v4982
        %v5084 = vadd.f32 %v4485, %v4985
        %v5085 = vadd.f32 %v4486, %v4987
        %v5086 = vadd.f32 %v4487, %v4990
        %v5087 = vadd.f32 %v4488, %v4992
        %v5088 = vadd.f32 %v4489, %v4995
        %v5089 = vadd.f32 %v4490, %v4997
        %v5090 = vadd.f32 %v4491, %v5000
        %v5091 = vadd.f32 %v4492, %v5002
        %v5092 = vadd.f32 %v4493, %v5005
        %v5093 = vadd.f32 %v4494, %v5007
        %v5094 = vadd.f32 %v4495, %v5010
        %v5095 = vadd.f32 %v4496, %v5012
        %v5096 = vadd.f32 %v4497, %v5015
        %v5097 = vadd.f32 %v4498, %v5017
        %v5098 = vadd.f32 %v4499, %v5020
        %v5099 = vadd.f32 %v4500, %v5022
        %v5100 = vadd.f32 %v4501, %v5025
        %v5101 = vadd.f32 %v4502, %v5027
        %v5102 = vadd.f32 %v4503, %v5030
        %v5103 = vadd.f32 %v4504, %v5032
        %v5104 = vadd.f32 %v4505, %v5035
        %v5105 = vadd.f32 %v4506, %v5037
        %v5106 = vadd.f32 %v4507, %v5040
        %v5107 = vadd.f32 %v4508, %v5042
        %v5108 = vadd.f32 %v4509, %v5045
        %v5109 = vadd.f32 %v4510, %v5047
        %v5110 = vadd.f32 %v4511, %v5050
        %v5111 = vadd.f32 %v4512, %v5052
        %v5112 = vadd.f32 %v4513, %v5055
        %v5113 = vadd.f32 %v4514, %v5057
        %v5114 = vadd.f32 %v4515, %v5060
        %v5115 = vadd.f32 %v4516, %v5062
        %v5116 = vadd.f32 %v4517, %v5065
        %v5117 = vadd.f32 %v4518, %v5067
        %v5118 = vadd.f32 %v4519, %v5070
        %v5119 = vadd.f32 %v4520, %v5072
        %v5120 = vadd.f32 %v4521, %v5075
        %v5121 = vld [vmem:[#allocation3 + $0x20] sm:$0x8]
        %v5122 = vld [vmem:[#allocation12 + $0x200] sm:$0xf]
        %v5123 = vld [vmem:[#allocation12 + $0x204] sm:$0xf]
        %v5124 = vld [vmem:[#allocation12 + $0x208] sm:$0xf]
        %v5125 = vld [vmem:[#allocation12 + $0x20c] sm:$0xf]
        %v5126 = vld [vmem:[#allocation12 + $0x210] sm:$0xf]
        %v5127 = vld [vmem:[#allocation12 + $0x214] sm:$0xf]
        %v5128 = vld [vmem:[#allocation12 + $0x218] sm:$0xf]
        %v5129 = vld [vmem:[#allocation12 + $0x21c] sm:$0xf]
        %v5130 = vld [vmem:[#allocation12 + $0x220] sm:$0xf]
        %v5131 = vld [vmem:[#allocation12 + $0x224] sm:$0xf]
        %v5132 = vld [vmem:[#allocation12 + $0x228] sm:$0xf]
        %v5133 = vld [vmem:[#allocation12 + $0x22c] sm:$0xf]
        %v5134 = vld [vmem:[#allocation12 + $0x230] sm:$0xf]
        %v5135 = vld [vmem:[#allocation12 + $0x234] sm:$0xf]
        %v5136 = vld [vmem:[#allocation12 + $0x238] sm:$0xf]
        %v5137 = vld [vmem:[#allocation12 + $0x23c] sm:$0xf]
        %v5139 = vunpack.c.l.b16 %v5121
        %v5140 = vpack.c.b16 %v4627, %v5139
        %vm5141 = vcmask 1044480
        %v5142 = vrot.slane %v5140, 3
        %v5143 = vrot.slane %v4671, 3
        %v5144 = vsel %vm5141, %v5142, %v5143
        %v5145 = vrot.slane %v4672, 3
        %v5146 = vsel %vm5141, %v5143, %v5145
        %v5147 = vrot.slane %v4673, 3
        %v5148 = vsel %vm5141, %v5145, %v5147
        %v5149 = vrot.slane %v4674, 3
        %v5150 = vsel %vm5141, %v5147, %v5149
        %v5151 = vrot.slane %v4675, 3
        %v5152 = vsel %vm5141, %v5149, %v5151
        %v5153 = vrot.slane %v4676, 3
        %v5154 = vsel %vm5141, %v5151, %v5153
        %v5155 = vrot.slane %v4677, 3
        %v5156 = vsel %vm5141, %v5153, %v5155
        %v5157 = vrot.slane %v4678, 3
        %v5158 = vsel %vm5141, %v5155, %v5157
        %v5159 = vrot.slane %v4679, 3
        %v5160 = vsel %vm5141, %v5157, %v5159
        %v5161 = vrot.slane %v4680, 3
        %v5162 = vsel %vm5141, %v5159, %v5161
        %v5163 = vrot.slane %v4681, 3
        %v5164 = vsel %vm5141, %v5161, %v5163
        %v5165 = vrot.slane %v4682, 3
        %v5166 = vsel %vm5141, %v5163, %v5165
        %v5167 = vrot.slane %v4683, 3
        %v5168 = vsel %vm5141, %v5165, %v5167
        %v5169 = vrot.slane %v4684, 3
        %v5170 = vsel %vm5141, %v5167, %v5169
        %v5171 = vrot.slane %v4685, 3
        %v5172 = vsel %vm5141, %v5169, %v5171
        %v5173 = vrot.slane %v4686, 3
        %v5174 = vsel %vm5141, %v5171, %v5173
        %v5175 = vrot.slane %v4687, 3
        %v5176 = vsel %vm5141, %v5173, %v5175
        %v5177 = vrot.slane %v4688, 3
        %v5178 = vsel %vm5141, %v5175, %v5177
        %v5179 = vrot.slane %v4689, 3
        %v5180 = vsel %vm5141, %v5177, %v5179
        %v5181 = vrot.slane %v4690, 3
        %v5182 = vsel %vm5141, %v5179, %v5181
        %v5183 = vrot.slane %v4691, 3
        %v5184 = vsel %vm5141, %v5181, %v5183
        %v5223 = vunpack.c.l.b16 %v5122
        %v5224 = vunpack.c.l.b16 %v5123
        %v5225 = vunpack.c.l.b16 %v5124
        %v5226 = vunpack.c.l.b16 %v5125
        %v5227 = vunpack.c.l.b16 %v5126
        %v5228 = vunpack.c.l.b16 %v5127
        %v5229 = vunpack.c.l.b16 %v5128
        %v5230 = vunpack.c.l.b16 %v5129
        %v5231 = vunpack.c.l.b16 %v5130
        %v5232 = vunpack.c.l.b16 %v5131
        %v5233 = vunpack.c.l.b16 %v5132
        %v5234 = vunpack.c.l.b16 %v5133
        %v5235 = vunpack.c.l.b16 %v5134
        %v5236 = vunpack.c.l.b16 %v5135
        %v5237 = vunpack.c.l.b16 %v5136
        %v5238 = vunpack.c.l.b16 %v5137
        %v5239 = vpack.c.b16 %v5224, %v5223
        %v5240 = vpack.c.b16 %v5226, %v5225
        %v5241 = vpack.c.b16 %v5228, %v5227
        %v5242 = vpack.c.b16 %v5230, %v5229
        %v5243 = vpack.c.b16 %v5232, %v5231
        %v5244 = vpack.c.b16 %v5234, %v5233
        %v5245 = vpack.c.b16 %v5236, %v5235
        %v5246 = vpack.c.b16 %v5238, %v5237
        %5255 = vmatpush.bf16.msra.mxu0 %v5246
        %5256 = vmatpush.bf16.msra.mxu0 %v5245
        %5257 = vmatpush.bf16.msra.mxu0 %v5244
        %5258 = vmatpush.bf16.msra.mxu0 %v5243
        %5259 = vmatpush.bf16.msra.mxu0 %v5242
        %5260 = vmatpush.bf16.msra.mxu0 %v5241
        %5261 = vmatpush.bf16.msra.mxu0 %v5240
        %5262 = vmatpush.bf16.msra.mxu0 %v5239
        %5263 = vmatmul.bf16.gmra.mxu0 %v5144
        %v5264 = vpop.f32.mrf.mxu0
        %v5265 = vadd.f32 0.0, %v5264
        %v5266 = vpop.f32.mrf.mxu0
        %v5267 = vadd.f32 0.0, %v5266
        %5268 = vmatmul.bf16.gmra.mxu0 %v5146
        %v5269 = vpop.f32.mrf.mxu0
        %v5270 = vadd.f32 0.0, %v5269
        %v5271 = vpop.f32.mrf.mxu0
        %v5272 = vadd.f32 0.0, %v5271
        %5273 = vmatmul.bf16.gmra.mxu0 %v5148
        %v5274 = vpop.f32.mrf.mxu0
        %v5275 = vadd.f32 0.0, %v5274
        %v5276 = vpop.f32.mrf.mxu0
        %v5277 = vadd.f32 0.0, %v5276
        %5278 = vmatmul.bf16.gmra.mxu0 %v5150
        %v5279 = vpop.f32.mrf.mxu0
        %v5280 = vadd.f32 0.0, %v5279
        %v5281 = vpop.f32.mrf.mxu0
        %v5282 = vadd.f32 0.0, %v5281
        %5283 = vmatmul.bf16.gmra.mxu0 %v5152
        %v5284 = vpop.f32.mrf.mxu0
        %v5285 = vadd.f32 0.0, %v5284
        %v5286 = vpop.f32.mrf.mxu0
        %v5287 = vadd.f32 0.0, %v5286
        %5288 = vmatmul.bf16.gmra.mxu0 %v5154
        %v5289 = vpop.f32.mrf.mxu0
        %v5290 = vadd.f32 0.0, %v5289
        %v5291 = vpop.f32.mrf.mxu0
        %v5292 = vadd.f32 0.0, %v5291
        %5293 = vmatmul.bf16.gmra.mxu0 %v5156
        %v5294 = vpop.f32.mrf.mxu0
        %v5295 = vadd.f32 0.0, %v5294
        %v5296 = vpop.f32.mrf.mxu0
        %v5297 = vadd.f32 0.0, %v5296
        %5298 = vmatmul.bf16.gmra.mxu0 %v5158
        %v5299 = vpop.f32.mrf.mxu0
        %v5300 = vadd.f32 0.0, %v5299
        %v5301 = vpop.f32.mrf.mxu0
        %v5302 = vadd.f32 0.0, %v5301
        %5303 = vmatmul.bf16.gmra.mxu0 %v5160
        %v5304 = vpop.f32.mrf.mxu0
        %v5305 = vadd.f32 0.0, %v5304
        %v5306 = vpop.f32.mrf.mxu0
        %v5307 = vadd.f32 0.0, %v5306
        %5308 = vmatmul.bf16.gmra.mxu0 %v5162
        %v5309 = vpop.f32.mrf.mxu0
        %v5310 = vadd.f32 0.0, %v5309
        %v5311 = vpop.f32.mrf.mxu0
        %v5312 = vadd.f32 0.0, %v5311
        %5313 = vmatmul.bf16.gmra.mxu0 %v5164
        %v5314 = vpop.f32.mrf.mxu0
        %v5315 = vadd.f32 0.0, %v5314
        %v5316 = vpop.f32.mrf.mxu0
        %v5317 = vadd.f32 0.0, %v5316
        %5318 = vmatmul.bf16.gmra.mxu0 %v5166
        %v5319 = vpop.f32.mrf.mxu0
        %v5320 = vadd.f32 0.0, %v5319
        %v5321 = vpop.f32.mrf.mxu0
        %v5322 = vadd.f32 0.0, %v5321
        %5323 = vmatmul.bf16.gmra.mxu0 %v5168
        %v5324 = vpop.f32.mrf.mxu0
        %v5325 = vadd.f32 0.0, %v5324
        %v5326 = vpop.f32.mrf.mxu0
        %v5327 = vadd.f32 0.0, %v5326
        %5328 = vmatmul.bf16.gmra.mxu0 %v5170
        %v5329 = vpop.f32.mrf.mxu0
        %v5330 = vadd.f32 0.0, %v5329
        %v5331 = vpop.f32.mrf.mxu0
        %v5332 = vadd.f32 0.0, %v5331
        %5333 = vmatmul.bf16.gmra.mxu0 %v5172
        %v5334 = vpop.f32.mrf.mxu0
        %v5335 = vadd.f32 0.0, %v5334
        %v5336 = vpop.f32.mrf.mxu0
        %v5337 = vadd.f32 0.0, %v5336
        %5338 = vmatmul.bf16.gmra.mxu0 %v5174
        %v5339 = vpop.f32.mrf.mxu0
        %v5340 = vadd.f32 0.0, %v5339
        %v5341 = vpop.f32.mrf.mxu0
        %v5342 = vadd.f32 0.0, %v5341
        %5343 = vmatmul.bf16.gmra.mxu0 %v5176
        %v5344 = vpop.f32.mrf.mxu0
        %v5345 = vadd.f32 0.0, %v5344
        %v5346 = vpop.f32.mrf.mxu0
        %v5347 = vadd.f32 0.0, %v5346
        %5348 = vmatmul.bf16.gmra.mxu0 %v5178
        %v5349 = vpop.f32.mrf.mxu0
        %v5350 = vadd.f32 0.0, %v5349
        %v5351 = vpop.f32.mrf.mxu0
        %v5352 = vadd.f32 0.0, %v5351
        %5353 = vmatmul.bf16.gmra.mxu0 %v5180
        %v5354 = vpop.f32.mrf.mxu0
        %v5355 = vadd.f32 0.0, %v5354
        %v5356 = vpop.f32.mrf.mxu0
        %v5357 = vadd.f32 0.0, %v5356
        %5358 = vmatmul.bf16.gmra.mxu0 %v5182
        %v5359 = vpop.f32.mrf.mxu0
        %v5360 = vadd.f32 0.0, %v5359
        %v5361 = vpop.f32.mrf.mxu0
        %v5362 = vadd.f32 0.0, %v5361
        %5363 = vmatmul.bf16.gmra.mxu0 %v5184
        %v5364 = vpop.f32.mrf.mxu0
        %v5365 = vadd.f32 0.0, %v5364
        %v5366 = vpop.f32.mrf.mxu0
        %v5367 = vadd.f32 0.0, %v5366
        %5368 = vmatmul.bf16.gmra.mxu0 %v5183
        %v5369 = vpop.f32.mrf.mxu0
        %v5370 = vadd.f32 0.0, %v5369
        %v5371 = vpop.f32.mrf.mxu0
        %5372 = vdwg.mxu0
        %v5373 = vadd.f32 %v5078, %v5265
        %v5374 = vadd.f32 %v5079, %v5267
        %v5375 = vadd.f32 %v5080, %v5270
        %v5376 = vadd.f32 %v5081, %v5272
        %v5377 = vadd.f32 %v5082, %v5275
        %v5378 = vadd.f32 %v5083, %v5277
        %v5379 = vadd.f32 %v5084, %v5280
        %v5380 = vadd.f32 %v5085, %v5282
        %v5381 = vadd.f32 %v5086, %v5285
        %v5382 = vadd.f32 %v5087, %v5287
        %v5383 = vadd.f32 %v5088, %v5290
        %v5384 = vadd.f32 %v5089, %v5292
        %v5385 = vadd.f32 %v5090, %v5295
        %v5386 = vadd.f32 %v5091, %v5297
        %v5387 = vadd.f32 %v5092, %v5300
        %v5388 = vadd.f32 %v5093, %v5302
        %v5389 = vadd.f32 %v5094, %v5305
        %v5390 = vadd.f32 %v5095, %v5307
        %v5391 = vadd.f32 %v5096, %v5310
        %v5392 = vadd.f32 %v5097, %v5312
        %v5393 = vadd.f32 %v5098, %v5315
        %v5394 = vadd.f32 %v5099, %v5317
        %v5395 = vadd.f32 %v5100, %v5320
        %v5396 = vadd.f32 %v5101, %v5322
        %v5397 = vadd.f32 %v5102, %v5325
        %v5398 = vadd.f32 %v5103, %v5327
        %v5399 = vadd.f32 %v5104, %v5330
        %v5400 = vadd.f32 %v5105, %v5332
        %v5401 = vadd.f32 %v5106, %v5335
        %v5402 = vadd.f32 %v5107, %v5337
        %v5403 = vadd.f32 %v5108, %v5340
        %v5404 = vadd.f32 %v5109, %v5342
        %v5405 = vadd.f32 %v5110, %v5345
        %v5406 = vadd.f32 %v5111, %v5347
        %v5407 = vadd.f32 %v5112, %v5350
        %v5408 = vadd.f32 %v5113, %v5352
        %v5409 = vadd.f32 %v5114, %v5355
        %v5410 = vadd.f32 %v5115, %v5357
        %v5411 = vadd.f32 %v5116, %v5360
        %v5412 = vadd.f32 %v5117, %v5362
        %v5413 = vadd.f32 %v5118, %v5365
        %v5414 = vadd.f32 %v5119, %v5367
        %v5415 = vadd.f32 %v5120, %v5370
        %v5416 = vld [vmem:[%s6] sm:$0x1]
        %v5418 = vperm.slane %v5416, 0
        %v5420 = vadd.f32 %v5373, %v5418
        %v5421 = vadd.f32 %v5374, %v5418
        %v5422 = vadd.f32 %v5375, %v5418
        %v5423 = vadd.f32 %v5376, %v5418
        %v5424 = vadd.f32 %v5377, %v5418
        %v5425 = vadd.f32 %v5378, %v5418
        %v5426 = vadd.f32 %v5379, %v5418
        %v5427 = vadd.f32 %v5380, %v5418
        %v5428 = vadd.f32 %v5381, %v5418
        %v5429 = vadd.f32 %v5382, %v5418
        %v5430 = vadd.f32 %v5383, %v5418
        %v5431 = vadd.f32 %v5384, %v5418
        %v5432 = vadd.f32 %v5385, %v5418
        %v5433 = vadd.f32 %v5386, %v5418
        %v5434 = vadd.f32 %v5387, %v5418
        %v5435 = vadd.f32 %v5388, %v5418
        %v5436 = vadd.f32 %v5389, %v5418
        %v5437 = vadd.f32 %v5390, %v5418
        %v5438 = vadd.f32 %v5391, %v5418
        %v5439 = vadd.f32 %v5392, %v5418
        %v5440 = vadd.f32 %v5393, %v5418
        %v5441 = vadd.f32 %v5394, %v5418
        %v5442 = vadd.f32 %v5395, %v5418
        %v5443 = vadd.f32 %v5396, %v5418
        %v5444 = vadd.f32 %v5397, %v5418
        %v5445 = vadd.f32 %v5398, %v5418
        %v5446 = vadd.f32 %v5399, %v5418
        %v5447 = vadd.f32 %v5400, %v5418
        %v5448 = vadd.f32 %v5401, %v5418
        %v5449 = vadd.f32 %v5402, %v5418
        %v5450 = vadd.f32 %v5403, %v5418
        %v5451 = vadd.f32 %v5404, %v5418
        %v5452 = vadd.f32 %v5405, %v5418
        %v5453 = vadd.f32 %v5406, %v5418
        %v5454 = vadd.f32 %v5407, %v5418
        %v5455 = vadd.f32 %v5408, %v5418
        %v5456 = vadd.f32 %v5409, %v5418
        %v5457 = vadd.f32 %v5410, %v5418
        %v5458 = vadd.f32 %v5411, %v5418
        %v5459 = vadd.f32 %v5412, %v5418
        %v5460 = vadd.f32 %v5413, %v5418
        %v5461 = vadd.f32 %v5414, %v5418
        %v5462 = vadd.f32 %v5415, %v5418
        %v5463 = vmax.f32 %v5420, 0.0
        %v5464 = vmax.f32 %v5421, 0.0
        %v5465 = vmax.f32 %v5422, 0.0
        %v5466 = vmax.f32 %v5423, 0.0
        %v5467 = vmax.f32 %v5424, 0.0
        %v5468 = vmax.f32 %v5425, 0.0
        %v5469 = vmax.f32 %v5426, 0.0
        %v5470 = vmax.f32 %v5427, 0.0
        %v5471 = vmax.f32 %v5428, 0.0
        %v5472 = vmax.f32 %v5429, 0.0
        %v5473 = vmax.f32 %v5430, 0.0
        %v5474 = vmax.f32 %v5431, 0.0
        %v5475 = vmax.f32 %v5432, 0.0
        %v5476 = vmax.f32 %v5433, 0.0
        %v5477 = vmax.f32 %v5434, 0.0
        %v5478 = vmax.f32 %v5435, 0.0
        %v5479 = vmax.f32 %v5436, 0.0
        %v5480 = vmax.f32 %v5437, 0.0
        %v5481 = vmax.f32 %v5438, 0.0
        %v5482 = vmax.f32 %v5439, 0.0
        %v5483 = vmax.f32 %v5440, 0.0
        %v5484 = vmax.f32 %v5441, 0.0
        %v5485 = vmax.f32 %v5442, 0.0
        %v5486 = vmax.f32 %v5443, 0.0
        %v5487 = vmax.f32 %v5444, 0.0
        %v5488 = vmax.f32 %v5445, 0.0
        %v5489 = vmax.f32 %v5446, 0.0
        %v5490 = vmax.f32 %v5447, 0.0
        %v5491 = vmax.f32 %v5448, 0.0
        %v5492 = vmax.f32 %v5449, 0.0
        %v5493 = vmax.f32 %v5450, 0.0
        %v5494 = vmax.f32 %v5451, 0.0
        %v5495 = vmax.f32 %v5452, 0.0
        %v5496 = vmax.f32 %v5453, 0.0
        %v5497 = vmax.f32 %v5454, 0.0
        %v5498 = vmax.f32 %v5455, 0.0
        %v5499 = vmax.f32 %v5456, 0.0
        %v5500 = vmax.f32 %v5457, 0.0
        %v5501 = vmax.f32 %v5458, 0.0
        %v5502 = vmax.f32 %v5459, 0.0
        %v5503 = vmax.f32 %v5460, 0.0
        %v5504 = vmax.f32 %v5461, 0.0
        %v5505 = vmax.f32 %v5462, 0.0
        %v5506 = vpack.c.bf16 %v5463, %v5463
        %v5507 = vpack.c.bf16 %v5464, %v5464
        %v5508 = vpack.c.bf16 %v5465, %v5465
        %v5509 = vpack.c.bf16 %v5466, %v5466
        %v5511 = vshrl.u32 %v5506, 16
        %v5513 = vrot.slane %v5511, 7
        %v5514 = vshll.u32 %v5506, 16
        %v5516 = vor.u32 %v5513, %v5514
        %v5517 = vrot.slane %v5513, 4
        %v5519 = vshrl.u32 %v5507, 16
        %v5521 = vrot.slane %v5519, 7
        %v5522 = vshll.u32 %v5507, 16
        %v5524 = vor.u32 %v5521, %v5522
        %v5525 = vsel %vm625, %v5517, %v5524
        %v5526 = vrot.slane %v5521, 4
        %v5528 = vshrl.u32 %v5508, 16
        %v5530 = vrot.slane %v5528, 7
        %v5531 = vshll.u32 %v5508, 16
        %v5533 = vor.u32 %v5530, %v5531
        %v5534 = vsel %vm625, %v5526, %v5533
        %v5535 = vrot.slane %v5530, 4
        %v5537 = vshrl.u32 %v5509, 16
        %v5539 = vrot.slane %v5537, 7
        %v5540 = vshll.u32 %v5509, 16
        %v5542 = vor.u32 %v5539, %v5540
        %v5543 = vsel %vm625, %v5535, %v5542
        %v5544 = vrot.slane %v5539, 4
        %v5550 = vld [vmem:[#allocation4] sm:$0xf]
        %v5551 = vsel %vm668, %v5516, %v5550
        %5552 = vst [vmem:[#allocation4] sm:$0xf] %v5551
        %5553 = vst [vmem:[#allocation4 + $0x4] sm:$0xf] %v5525
        %5554 = vst [vmem:[#allocation4 + $0x8] sm:$0xf] %v5534
        %5555 = vst [vmem:[#allocation4 + $0xc] sm:$0xf] %v5543
        %v5556 = vld [vmem:[#allocation4 + $0x10] sm:$0x1]
        %v5557 = vsel %vm676, %v5544, %v5556
        %5558 = vst [vmem:[#allocation4 + $0x10] sm:$0x1] %v5557
        %v5559 = vpack.c.bf16 %v5467, %v5467
        %v5560 = vpack.c.bf16 %v5468, %v5468
        %v5561 = vpack.c.bf16 %v5469, %v5469
        %v5562 = vpack.c.bf16 %v5470, %v5470
        %v5563 = vpack.c.bf16 %v5471, %v5471
        %v5565 = vshrl.u32 %v5559, 16
        %v5567 = vrot.slane %v5565, 7
        %v5568 = vshll.u32 %v5559, 16
        %v5570 = vor.u32 %v5567, %v5568
        %v5571 = vrot.slane %v5567, 4
        %v5573 = vshrl.u32 %v5560, 16
        %v5575 = vrot.slane %v5573, 7
        %v5576 = vshll.u32 %v5560, 16
        %v5578 = vor.u32 %v5575, %v5576
        %v5579 = vsel %vm625, %v5571, %v5578
        %v5580 = vrot.slane %v5575, 4
        %v5582 = vshrl.u32 %v5561, 16
        %v5584 = vrot.slane %v5582, 7
        %v5585 = vshll.u32 %v5561, 16
        %v5587 = vor.u32 %v5584, %v5585
        %v5588 = vsel %vm625, %v5580, %v5587
        %v5589 = vrot.slane %v5584, 4
        %v5591 = vshrl.u32 %v5562, 16
        %v5593 = vrot.slane %v5591, 7
        %v5594 = vshll.u32 %v5562, 16
        %v5596 = vor.u32 %v5593, %v5594
        %v5597 = vsel %vm625, %v5589, %v5596
        %v5598 = vrot.slane %v5593, 4
        %v5600 = vshrl.u32 %v5563, 16
        %v5602 = vrot.slane %v5600, 7
        %v5603 = vshll.u32 %v5563, 16
        %v5605 = vor.u32 %v5602, %v5603
        %v5606 = vsel %vm625, %v5598, %v5605
        %v5612 = vld [vmem:[#allocation4 + $0x10] sm:$0xe]
        %v5613 = vsel %vm783, %v5570, %v5612
        %5614 = vst [vmem:[#allocation4 + $0x10] sm:$0xe] %v5613
        %5615 = vst [vmem:[#allocation4 + $0x14] sm:$0xf] %v5579
        %5616 = vst [vmem:[#allocation4 + $0x18] sm:$0xf] %v5588
        %5617 = vst [vmem:[#allocation4 + $0x1c] sm:$0xf] %v5597
        %v5618 = vld [vmem:[#allocation4 + $0x20] sm:$0x3]
        %v5619 = vsel %vm791, %v5606, %v5618
        %5620 = vst [vmem:[#allocation4 + $0x20] sm:$0x3] %v5619
        %v5621 = vpack.c.bf16 %v5472, %v5472
        %v5622 = vpack.c.bf16 %v5473, %v5473
        %v5623 = vpack.c.bf16 %v5474, %v5474
        %v5624 = vpack.c.bf16 %v5475, %v5475
        %v5625 = vrot.slane %v5602, 4
        %v5627 = vshrl.u32 %v5621, 16
        %v5629 = vrot.slane %v5627, 7
        %v5630 = vshll.u32 %v5621, 16
        %v5632 = vor.u32 %v5629, %v5630
        %v5633 = vsel %vm625, %v5625, %v5632
        %v5634 = vrot.slane %v5629, 4
        %v5636 = vshrl.u32 %v5622, 16
        %v5638 = vrot.slane %v5636, 7
        %v5639 = vshll.u32 %v5622, 16
        %v5641 = vor.u32 %v5638, %v5639
        %v5642 = vsel %vm625, %v5634, %v5641
        %v5643 = vrot.slane %v5638, 4
        %v5645 = vshrl.u32 %v5623, 16
        %v5647 = vrot.slane %v5645, 7
        %v5648 = vshll.u32 %v5623, 16
        %v5650 = vor.u32 %v5647, %v5648
        %v5651 = vsel %vm625, %v5643, %v5650
        %v5652 = vrot.slane %v5647, 4
        %v5654 = vshrl.u32 %v5624, 16
        %v5656 = vrot.slane %v5654, 7
        %v5657 = vshll.u32 %v5624, 16
        %v5659 = vor.u32 %v5656, %v5657
        %v5660 = vsel %vm625, %v5652, %v5659
        %v5666 = vld [vmem:[#allocation4 + $0x20] sm:$0xc]
        %v5667 = vsel %vm897, %v5605, %v5666
        %5668 = vst [vmem:[#allocation4 + $0x20] sm:$0xc] %v5667
        %5669 = vst [vmem:[#allocation4 + $0x24] sm:$0xf] %v5633
        %5670 = vst [vmem:[#allocation4 + $0x28] sm:$0xf] %v5642
        %5671 = vst [vmem:[#allocation4 + $0x2c] sm:$0xf] %v5651
        %v5672 = vld [vmem:[#allocation4 + $0x30] sm:$0x7]
        %v5673 = vsel %vm905, %v5660, %v5672
        %5674 = vst [vmem:[#allocation4 + $0x30] sm:$0x7] %v5673
        %v5675 = vpack.c.bf16 %v5476, %v5476
        %v5676 = vpack.c.bf16 %v5477, %v5477
        %v5677 = vpack.c.bf16 %v5478, %v5478
        %v5678 = vpack.c.bf16 %v5479, %v5479
        %v5679 = vrot.slane %v5656, 4
        %v5681 = vshrl.u32 %v5675, 16
        %v5683 = vrot.slane %v5681, 7
        %v5684 = vshll.u32 %v5675, 16
        %v5686 = vor.u32 %v5683, %v5684
        %v5687 = vsel %vm625, %v5679, %v5686
        %v5688 = vrot.slane %v5683, 4
        %v5690 = vshrl.u32 %v5676, 16
        %v5692 = vrot.slane %v5690, 7
        %v5693 = vshll.u32 %v5676, 16
        %v5695 = vor.u32 %v5692, %v5693
        %v5696 = vsel %vm625, %v5688, %v5695
        %v5697 = vrot.slane %v5692, 4
        %v5699 = vshrl.u32 %v5677, 16
        %v5701 = vrot.slane %v5699, 7
        %v5702 = vshll.u32 %v5677, 16
        %v5704 = vor.u32 %v5701, %v5702
        %v5705 = vsel %vm625, %v5697, %v5704
        %v5706 = vrot.slane %v5701, 4
        %v5708 = vshrl.u32 %v5678, 16
        %v5710 = vrot.slane %v5708, 7
        %v5711 = vshll.u32 %v5678, 16
        %v5713 = vor.u32 %v5710, %v5711
        %v5714 = vsel %vm625, %v5706, %v5713
        %v5720 = vld [vmem:[#allocation4 + $0x30] sm:$0x8]
        %v5721 = vsel %vm1011, %v5657, %v5720
        %5722 = vst [vmem:[#allocation4 + $0x30] sm:$0x8] %v5721
        %5723 = vst [vmem:[#allocation4 + $0x34] sm:$0xf] %v5687
        %5724 = vst [vmem:[#allocation4 + $0x38] sm:$0xf] %v5696
        %5725 = vst [vmem:[#allocation4 + $0x3c] sm:$0xf] %v5705
        %v5726 = vld [vmem:[#allocation4 + $0x40] sm:$0xf]
        %v5727 = vsel %vm1018, %v5714, %v5726
        %5728 = vst [vmem:[#allocation4 + $0x40] sm:$0xf] %v5727
        %v5729 = vpack.c.bf16 %v5480, %v5480
        %v5730 = vpack.c.bf16 %v5481, %v5481
        %v5731 = vpack.c.bf16 %v5482, %v5482
        %v5732 = vpack.c.bf16 %v5483, %v5483
        %v5734 = vshrl.u32 %v5729, 16
        %v5736 = vrot.slane %v5734, 7
        %v5737 = vshll.u32 %v5729, 16
        %v5739 = vor.u32 %v5736, %v5737
        %v5740 = vrot.slane %v5736, 4
        %v5742 = vshrl.u32 %v5730, 16
        %v5744 = vrot.slane %v5742, 7
        %v5745 = vshll.u32 %v5730, 16
        %v5747 = vor.u32 %v5744, %v5745
        %v5748 = vsel %vm625, %v5740, %v5747
        %v5749 = vrot.slane %v5744, 4
        %v5751 = vshrl.u32 %v5731, 16
        %v5753 = vrot.slane %v5751, 7
        %v5754 = vshll.u32 %v5731, 16
        %v5756 = vor.u32 %v5753, %v5754
        %v5757 = vsel %vm625, %v5749, %v5756
        %v5758 = vrot.slane %v5753, 4
        %v5760 = vshrl.u32 %v5732, 16
        %v5762 = vrot.slane %v5760, 7
        %v5763 = vshll.u32 %v5732, 16
        %v5765 = vor.u32 %v5762, %v5763
        %v5766 = vsel %vm625, %v5758, %v5765
        %v5767 = vrot.slane %v5762, 4
        %v5773 = vld [vmem:[#allocation4 + $0x44] sm:$0xf]
        %v5774 = vsel %vm668, %v5739, %v5773
        %5775 = vst [vmem:[#allocation4 + $0x44] sm:$0xf] %v5774
        %5776 = vst [vmem:[#allocation4 + $0x48] sm:$0xf] %v5748
        %5777 = vst [vmem:[#allocation4 + $0x4c] sm:$0xf] %v5757
        %5778 = vst [vmem:[#allocation4 + $0x50] sm:$0xf] %v5766
        %v5779 = vld [vmem:[#allocation4 + $0x54] sm:$0x1]
        %v5780 = vsel %vm676, %v5767, %v5779
        %5781 = vst [vmem:[#allocation4 + $0x54] sm:$0x1] %v5780
        %v5782 = vpack.c.bf16 %v5484, %v5484
        %v5783 = vpack.c.bf16 %v5485, %v5485
        %v5784 = vpack.c.bf16 %v5486, %v5486
        %v5785 = vpack.c.bf16 %v5487, %v5487
        %v5786 = vpack.c.bf16 %v5488, %v5488
        %v5788 = vshrl.u32 %v5782, 16
        %v5790 = vrot.slane %v5788, 7
        %v5791 = vshll.u32 %v5782, 16
        %v5793 = vor.u32 %v5790, %v5791
        %v5794 = vrot.slane %v5790, 4
        %v5796 = vshrl.u32 %v5783, 16
        %v5798 = vrot.slane %v5796, 7
        %v5799 = vshll.u32 %v5783, 16
        %v5801 = vor.u32 %v5798, %v5799
        %v5802 = vsel %vm625, %v5794, %v5801
        %v5803 = vrot.slane %v5798, 4
        %v5805 = vshrl.u32 %v5784, 16
        %v5807 = vrot.slane %v5805, 7
        %v5808 = vshll.u32 %v5784, 16
        %v5810 = vor.u32 %v5807, %v5808
        %v5811 = vsel %vm625, %v5803, %v5810
        %v5812 = vrot.slane %v5807, 4
        %v5814 = vshrl.u32 %v5785, 16
        %v5816 = vrot.slane %v5814, 7
        %v5817 = vshll.u32 %v5785, 16
        %v5819 = vor.u32 %v5816, %v5817
        %v5820 = vsel %vm625, %v5812, %v5819
        %v5821 = vrot.slane %v5816, 4
        %v5823 = vshrl.u32 %v5786, 16
        %v5825 = vrot.slane %v5823, 7
        %v5826 = vshll.u32 %v5786, 16
        %v5828 = vor.u32 %v5825, %v5826
        %v5829 = vsel %vm625, %v5821, %v5828
        %v5835 = vld [vmem:[#allocation4 + $0x54] sm:$0xe]
        %v5836 = vsel %vm783, %v5793, %v5835
        %5837 = vst [vmem:[#allocation4 + $0x54] sm:$0xe] %v5836
        %5838 = vst [vmem:[#allocation4 + $0x58] sm:$0xf] %v5802
        %5839 = vst [vmem:[#allocation4 + $0x5c] sm:$0xf] %v5811
        %5840 = vst [vmem:[#allocation4 + $0x60] sm:$0xf] %v5820
        %v5841 = vld [vmem:[#allocation4 + $0x64] sm:$0x3]
        %v5842 = vsel %vm791, %v5829, %v5841
        %5843 = vst [vmem:[#allocation4 + $0x64] sm:$0x3] %v5842
        %v5844 = vpack.c.bf16 %v5489, %v5489
        %v5845 = vpack.c.bf16 %v5490, %v5490
        %v5846 = vpack.c.bf16 %v5491, %v5491
        %v5847 = vpack.c.bf16 %v5492, %v5492
        %v5848 = vrot.slane %v5825, 4
        %v5850 = vshrl.u32 %v5844, 16
        %v5852 = vrot.slane %v5850, 7
        %v5853 = vshll.u32 %v5844, 16
        %v5855 = vor.u32 %v5852, %v5853
        %v5856 = vsel %vm625, %v5848, %v5855
        %v5857 = vrot.slane %v5852, 4
        %v5859 = vshrl.u32 %v5845, 16
        %v5861 = vrot.slane %v5859, 7
        %v5862 = vshll.u32 %v5845, 16
        %v5864 = vor.u32 %v5861, %v5862
        %v5865 = vsel %vm625, %v5857, %v5864
        %v5866 = vrot.slane %v5861, 4
        %v5868 = vshrl.u32 %v5846, 16
        %v5870 = vrot.slane %v5868, 7
        %v5871 = vshll.u32 %v5846, 16
        %v5873 = vor.u32 %v5870, %v5871
        %v5874 = vsel %vm625, %v5866, %v5873
        %v5875 = vrot.slane %v5870, 4
        %v5877 = vshrl.u32 %v5847, 16
        %v5879 = vrot.slane %v5877, 7
        %v5880 = vshll.u32 %v5847, 16
        %v5882 = vor.u32 %v5879, %v5880
        %v5883 = vsel %vm625, %v5875, %v5882
        %v5889 = vld [vmem:[#allocation4 + $0x64] sm:$0xc]
        %v5890 = vsel %vm897, %v5828, %v5889
        %5891 = vst [vmem:[#allocation4 + $0x64] sm:$0xc] %v5890
        %5892 = vst [vmem:[#allocation4 + $0x68] sm:$0xf] %v5856
        %5893 = vst [vmem:[#allocation4 + $0x6c] sm:$0xf] %v5865
        %5894 = vst [vmem:[#allocation4 + $0x70] sm:$0xf] %v5874
        %v5895 = vld [vmem:[#allocation4 + $0x74] sm:$0x7]
        %v5896 = vsel %vm905, %v5883, %v5895
        %5897 = vst [vmem:[#allocation4 + $0x74] sm:$0x7] %v5896
        %v5898 = vpack.c.bf16 %v5493, %v5493
        %v5899 = vpack.c.bf16 %v5494, %v5494
        %v5900 = vpack.c.bf16 %v5495, %v5495
        %v5901 = vpack.c.bf16 %v5496, %v5496
        %v5902 = vrot.slane %v5879, 4
        %v5904 = vshrl.u32 %v5898, 16
        %v5906 = vrot.slane %v5904, 7
        %v5907 = vshll.u32 %v5898, 16
        %v5909 = vor.u32 %v5906, %v5907
        %v5910 = vsel %vm625, %v5902, %v5909
        %v5911 = vrot.slane %v5906, 4
        %v5913 = vshrl.u32 %v5899, 16
        %v5915 = vrot.slane %v5913, 7
        %v5916 = vshll.u32 %v5899, 16
        %v5918 = vor.u32 %v5915, %v5916
        %v5919 = vsel %vm625, %v5911, %v5918
        %v5920 = vrot.slane %v5915, 4
        %v5922 = vshrl.u32 %v5900, 16
        %v5924 = vrot.slane %v5922, 7
        %v5925 = vshll.u32 %v5900, 16
        %v5927 = vor.u32 %v5924, %v5925
        %v5928 = vsel %vm625, %v5920, %v5927
        %v5929 = vrot.slane %v5924, 4
        %v5931 = vshrl.u32 %v5901, 16
        %v5933 = vrot.slane %v5931, 7
        %v5934 = vshll.u32 %v5901, 16
        %v5936 = vor.u32 %v5933, %v5934
        %v5937 = vsel %vm625, %v5929, %v5936
        %v5943 = vld [vmem:[#allocation4 + $0x74] sm:$0x8]
        %v5944 = vsel %vm1011, %v5880, %v5943
        %5945 = vst [vmem:[#allocation4 + $0x74] sm:$0x8] %v5944
        %5946 = vst [vmem:[#allocation4 + $0x78] sm:$0xf] %v5910
        %5947 = vst [vmem:[#allocation4 + $0x7c] sm:$0xf] %v5919
        %5948 = vst [vmem:[#allocation4 + $0x80] sm:$0xf] %v5928
        %v5949 = vld [vmem:[#allocation4 + $0x84] sm:$0xf]
        %v5950 = vsel %vm1018, %v5937, %v5949
        %5951 = vst [vmem:[#allocation4 + $0x84] sm:$0xf] %v5950
        %v5952 = vpack.c.bf16 %v5497, %v5497
        %v5953 = vpack.c.bf16 %v5498, %v5498
        %v5954 = vpack.c.bf16 %v5499, %v5499
        %v5955 = vpack.c.bf16 %v5500, %v5500
        %v5957 = vshrl.u32 %v5952, 16
        %v5959 = vrot.slane %v5957, 7
        %v5960 = vshll.u32 %v5952, 16
        %v5962 = vor.u32 %v5959, %v5960
        %v5963 = vrot.slane %v5959, 4
        %v5965 = vshrl.u32 %v5953, 16
        %v5967 = vrot.slane %v5965, 7
        %v5968 = vshll.u32 %v5953, 16
        %v5970 = vor.u32 %v5967, %v5968
        %v5971 = vsel %vm625, %v5963, %v5970
        %v5972 = vrot.slane %v5967, 4
        %v5974 = vshrl.u32 %v5954, 16
        %v5976 = vrot.slane %v5974, 7
        %v5977 = vshll.u32 %v5954, 16
        %v5979 = vor.u32 %v5976, %v5977
        %v5980 = vsel %vm625, %v5972, %v5979
        %v5981 = vrot.slane %v5976, 4
        %v5983 = vshrl.u32 %v5955, 16
        %v5985 = vrot.slane %v5983, 7
        %v5986 = vshll.u32 %v5955, 16
        %v5988 = vor.u32 %v5985, %v5986
        %v5989 = vsel %vm625, %v5981, %v5988
        %v5990 = vrot.slane %v5985, 4
        %v5996 = vld [vmem:[#allocation4 + $0x88] sm:$0xf]
        %v5997 = vsel %vm668, %v5962, %v5996
        %5998 = vst [vmem:[#allocation4 + $0x88] sm:$0xf] %v5997
        %5999 = vst [vmem:[#allocation4 + $0x8c] sm:$0xf] %v5971
        %6000 = vst [vmem:[#allocation4 + $0x90] sm:$0xf] %v5980
        %6001 = vst [vmem:[#allocation4 + $0x94] sm:$0xf] %v5989
        %v6002 = vld [vmem:[#allocation4 + $0x98] sm:$0x1]
        %v6003 = vsel %vm676, %v5990, %v6002
        %6004 = vst [vmem:[#allocation4 + $0x98] sm:$0x1] %v6003
        %v6005 = vpack.c.bf16 %v5501, %v5501
        %v6006 = vpack.c.bf16 %v5502, %v5502
        %v6007 = vpack.c.bf16 %v5503, %v5503
        %v6008 = vpack.c.bf16 %v5504, %v5504
        %v6009 = vpack.c.bf16 %v5505, %v5505
        %v6011 = vshrl.u32 %v6005, 16
        %v6013 = vrot.slane %v6011, 7
        %v6014 = vshll.u32 %v6005, 16
        %v6016 = vor.u32 %v6013, %v6014
        %v6017 = vrot.slane %v6013, 4
        %v6019 = vshrl.u32 %v6006, 16
        %v6021 = vrot.slane %v6019, 7
        %v6022 = vshll.u32 %v6006, 16
        %v6024 = vor.u32 %v6021, %v6022
        %v6025 = vsel %vm625, %v6017, %v6024
        %v6026 = vrot.slane %v6021, 4
        %v6028 = vshrl.u32 %v6007, 16
        %v6030 = vrot.slane %v6028, 7
        %v6031 = vshll.u32 %v6007, 16
        %v6033 = vor.u32 %v6030, %v6031
        %v6034 = vsel %vm625, %v6026, %v6033
        %v6035 = vrot.slane %v6030, 4
        %v6037 = vshrl.u32 %v6008, 16
        %v6039 = vrot.slane %v6037, 7
        %v6040 = vshll.u32 %v6008, 16
        %v6042 = vor.u32 %v6039, %v6040
        %v6043 = vsel %vm625, %v6035, %v6042
        %v6044 = vrot.slane %v6039, 4
        %v6046 = vshrl.u32 %v6009, 16
        %v6048 = vrot.slane %v6046, 7
        %v6049 = vshll.u32 %v6009, 16
        %v6051 = vor.u32 %v6048, %v6049
        %v6052 = vsel %vm625, %v6044, %v6051
        %v6058 = vld [vmem:[#allocation4 + $0x98] sm:$0xe]
        %v6059 = vsel %vm783, %v6016, %v6058
        %6060 = vst [vmem:[#allocation4 + $0x98] sm:$0xe] %v6059
        %6061 = vst [vmem:[#allocation4 + $0x9c] sm:$0xf] %v6025
        %6062 = vst [vmem:[#allocation4 + $0xa0] sm:$0xf] %v6034
        %6063 = vst [vmem:[#allocation4 + $0xa4] sm:$0xf] %v6043
        %v6064 = vld [vmem:[#allocation4 + $0xa8] sm:$0x3]
        %v6065 = vsel %vm791, %v6052, %v6064
        %6066 = vst [vmem:[#allocation4 + $0xa8] sm:$0x3] %v6065
        // Predicated region
        $region68: #{tpu_custom_call.1} parent=43 // pred_check
          %p6067 = pneg %p342
        $region69: #{tpu_custom_call.1} parent=43 // pred_check_branch
          %6069 = sbr.rel (%p6067) target = $region71
        $region70: #{tpu_custom_call.1} parent=43 // pred_region
          %6070 = vst [vmem:[#allocation4] sm:$0xf] 0
          %6071 = vst [vmem:[#allocation4 + $0x4] sm:$0xf] 0
          %6072 = vst [vmem:[#allocation4 + $0x8] sm:$0xf] 0
          %6073 = vst [vmem:[#allocation4 + $0xc] sm:$0xf] 0
          %6074 = vst [vmem:[#allocation4 + $0x10] sm:$0x1] 0
        $region71: #{tpu_custom_call.1} parent=43 // pred_fallthru
          _
        %p6075 = scmp.eq.s32.totalorder %s50, 3
        // Predicated region
        $region72: #{tpu_custom_call.1} parent=43 // pred_check
          %p6076 = pneg %p6075
        $region73: #{tpu_custom_call.1} parent=43 // pred_check_branch
          %6078 = sbr.rel (%p6076) target = $region75
        $region74: #{tpu_custom_call.1} parent=43 // pred_region
          %6079 = vst [vmem:[#allocation4 + $0x98] sm:$0xe] 0
          %6080 = vst [vmem:[#allocation4 + $0x9c] sm:$0xf] 0
          %6081 = vst [vmem:[#allocation4 + $0xa0] sm:$0xf] 0
          %6082 = vst [vmem:[#allocation4 + $0xa4] sm:$0xf] 0
          %6083 = vst [vmem:[#allocation4 + $0xa8] sm:$0x3] 0
        $region75: #{tpu_custom_call.1} parent=43 // pred_fallthru
          _
        %v6084 = vld [vmem:[#allocation4] sm:$0xf]
        %v6085 = vld [vmem:[#allocation4 + $0x4] sm:$0xf]
        %v6086 = vld [vmem:[#allocation4 + $0x8] sm:$0xf]
        %v6087 = vld [vmem:[#allocation4 + $0xc] sm:$0xf]
        %v6088 = vld [vmem:[#allocation4 + $0x10] sm:$0xf]
        %v6089 = vld [vmem:[#allocation4 + $0x14] sm:$0xf]
        %v6090 = vld [vmem:[#allocation4 + $0x18] sm:$0xf]
        %v6091 = vld [vmem:[#allocation4 + $0x1c] sm:$0xf]
        %v6092 = vld [vmem:[#allocation4 + $0x20] sm:$0xf]
        %v6093 = vld [vmem:[#allocation4 + $0x24] sm:$0xf]
        %v6094 = vld [vmem:[#allocation4 + $0x28] sm:$0xf]
        %v6095 = vld [vmem:[#allocation4 + $0x2c] sm:$0xf]
        %v6096 = vld [vmem:[#allocation4 + $0x30] sm:$0xf]
        %v6097 = vld [vmem:[#allocation4 + $0x34] sm:$0xf]
        %v6098 = vld [vmem:[#allocation4 + $0x38] sm:$0xf]
        %v6099 = vld [vmem:[#allocation4 + $0x3c] sm:$0xf]
        %v6100 = vld [vmem:[#allocation4 + $0x40] sm:$0xf]
        %v6101 = vld [vmem:[#allocation4 + $0x44] sm:$0xf]
        %v6102 = vld [vmem:[#allocation4 + $0x48] sm:$0xf]
        %v6103 = vld [vmem:[#allocation4 + $0x4c] sm:$0xf]
        %v6104 = vld [vmem:[#allocation4 + $0x50] sm:$0xf]
        %v6105 = vld [vmem:[#allocation4 + $0x54] sm:$0xf]
        %v6106 = vld [vmem:[#allocation4 + $0x58] sm:$0xf]
        %v6107 = vld [vmem:[#allocation4 + $0x5c] sm:$0xf]
        %v6108 = vld [vmem:[#allocation4 + $0x60] sm:$0xf]
        %v6109 = vld [vmem:[#allocation4 + $0x64] sm:$0xf]
        %v6110 = vld [vmem:[#allocation4 + $0x68] sm:$0xf]
        %v6111 = vld [vmem:[#allocation4 + $0x6c] sm:$0xf]
        %v6112 = vld [vmem:[#allocation4 + $0x70] sm:$0xf]
        %v6113 = vld [vmem:[#allocation4 + $0x74] sm:$0xf]
        %v6114 = vld [vmem:[#allocation4 + $0x78] sm:$0xf]
        %v6115 = vld [vmem:[#allocation4 + $0x7c] sm:$0xf]
        %v6116 = vld [vmem:[#allocation4 + $0x80] sm:$0xf]
        %v6117 = vld [vmem:[#allocation4 + $0x84] sm:$0xf]
        %v6118 = vld [vmem:[#allocation14] sm:$0xf]
        %v6119 = vld [vmem:[#allocation14 + $0x4] sm:$0xf]
        %v6120 = vld [vmem:[#allocation14 + $0x8] sm:$0xf]
        %v6121 = vld [vmem:[#allocation14 + $0xc] sm:$0xf]
        %v6122 = vld [vmem:[#allocation14 + $0x10] sm:$0xf]
        %v6123 = vld [vmem:[#allocation14 + $0x14] sm:$0xf]
        %v6124 = vld [vmem:[#allocation14 + $0x18] sm:$0xf]
        %v6125 = vld [vmem:[#allocation14 + $0x1c] sm:$0xf]
        %v6126 = vld [vmem:[#allocation14 + $0x20] sm:$0xf]
        %v6127 = vld [vmem:[#allocation14 + $0x24] sm:$0xf]
        %v6128 = vld [vmem:[#allocation14 + $0x28] sm:$0xf]
        %v6129 = vld [vmem:[#allocation14 + $0x2c] sm:$0xf]
        %v6130 = vld [vmem:[#allocation14 + $0x30] sm:$0xf]
        %v6131 = vld [vmem:[#allocation14 + $0x34] sm:$0xf]
        %v6132 = vld [vmem:[#allocation14 + $0x38] sm:$0xf]
        %v6133 = vld [vmem:[#allocation14 + $0x3c] sm:$0xf]
        %v6134 = vld [vmem:[#allocation4 + $0x88] sm:$0x1]
        %v6135 = vld [vmem:[#allocation14 + $0x40] sm:$0xf]
        %v6136 = vld [vmem:[#allocation14 + $0x44] sm:$0xf]
        %v6137 = vld [vmem:[#allocation14 + $0x48] sm:$0xf]
        %v6138 = vld [vmem:[#allocation14 + $0x4c] sm:$0xf]
        %v6139 = vld [vmem:[#allocation14 + $0x50] sm:$0xf]
        %v6140 = vld [vmem:[#allocation14 + $0x54] sm:$0xf]
        %v6141 = vld [vmem:[#allocation14 + $0x58] sm:$0xf]
        %v6142 = vld [vmem:[#allocation14 + $0x5c] sm:$0xf]
        %v6143 = vld [vmem:[#allocation14 + $0x60] sm:$0xf]
        %v6144 = vld [vmem:[#allocation14 + $0x64] sm:$0xf]
        %v6145 = vld [vmem:[#allocation14 + $0x68] sm:$0xf]
        %v6146 = vld [vmem:[#allocation14 + $0x6c] sm:$0xf]
        %v6147 = vld [vmem:[#allocation14 + $0x70] sm:$0xf]
        %v6148 = vld [vmem:[#allocation14 + $0x74] sm:$0xf]
        %v6149 = vld [vmem:[#allocation14 + $0x78] sm:$0xf]
        %v6150 = vld [vmem:[#allocation14 + $0x7c] sm:$0xf]
        %v6186 = vunpack.c.l.b16 %v6084
        %v6187 = vunpack.c.l.b16 %v6085
        %v6188 = vunpack.c.l.b16 %v6086
        %v6189 = vunpack.c.l.b16 %v6087
        %v6190 = vunpack.c.l.b16 %v6088
        %v6191 = vunpack.c.l.b16 %v6089
        %v6192 = vunpack.c.l.b16 %v6090
        %v6193 = vunpack.c.l.b16 %v6091
        %v6194 = vunpack.c.l.b16 %v6092
        %v6195 = vunpack.c.l.b16 %v6093
        %v6196 = vunpack.c.l.b16 %v6094
        %v6197 = vunpack.c.l.b16 %v6095
        %v6198 = vunpack.c.l.b16 %v6096
        %v6199 = vunpack.c.l.b16 %v6097
        %v6200 = vunpack.c.l.b16 %v6098
        %v6201 = vunpack.c.l.b16 %v6099
        %v6202 = vunpack.c.l.b16 %v6100
        %v6203 = vunpack.c.l.b16 %v6101
        %v6204 = vunpack.c.l.b16 %v6102
        %v6205 = vunpack.c.l.b16 %v6103
        %v6206 = vunpack.c.l.b16 %v6104
        %v6207 = vunpack.c.l.b16 %v6105
        %v6208 = vunpack.c.l.b16 %v6106
        %v6209 = vunpack.c.l.b16 %v6107
        %v6210 = vunpack.c.l.b16 %v6108
        %v6211 = vunpack.c.l.b16 %v6109
        %v6212 = vunpack.c.l.b16 %v6110
        %v6213 = vunpack.c.l.b16 %v6111
        %v6214 = vunpack.c.l.b16 %v6112
        %v6215 = vunpack.c.l.b16 %v6113
        %v6216 = vunpack.c.l.b16 %v6114
        %v6217 = vunpack.c.l.b16 %v6115
        %v6218 = vunpack.c.l.b16 %v6116
        %v6219 = vunpack.c.l.b16 %v6117
        %v6220 = vunpack.c.l.b16 %v6134
        %v6221 = vpack.c.b16 %v6187, %v6186
        %v6222 = vpack.c.b16 %v6189, %v6188
        %v6223 = vpack.c.b16 %v6191, %v6190
        %v6224 = vpack.c.b16 %v6193, %v6192
        %v6225 = vpack.c.b16 %v6195, %v6194
        %v6226 = vpack.c.b16 %v6197, %v6196
        %v6227 = vpack.c.b16 %v6199, %v6198
        %v6228 = vpack.c.b16 %v6201, %v6200
        %v6229 = vpack.c.b16 %v6203, %v6202
        %v6230 = vpack.c.b16 %v6205, %v6204
        %v6231 = vpack.c.b16 %v6207, %v6206
        %v6232 = vpack.c.b16 %v6209, %v6208
        %v6233 = vpack.c.b16 %v6211, %v6210
        %v6234 = vpack.c.b16 %v6213, %v6212
        %v6235 = vpack.c.b16 %v6215, %v6214
        %v6236 = vpack.c.b16 %v6217, %v6216
        %v6237 = vpack.c.b16 %v6219, %v6218
        %v6238 = vpack.c.b16 %v6220, %v6220
        %v6240 = vshrl.u32 %v6221, 16
        %v6242 = vshll.u32 %v6221, 16
        %v6244 = vrot.slane %v6242, 1
        %v6245 = vor.u32 %v6240, %v6244
        %v6247 = vshll.u32 %v6222, 16
        %v6249 = vrot.slane %v6247, 1
        %v6250 = vsel %vm2046, %v6245, %v6249
        %v6251 = vshrl.u32 %v6222, 16
        %v6253 = vor.u32 %v6251, %v6249
        %v6255 = vshll.u32 %v6223, 16
        %v6257 = vrot.slane %v6255, 1
        %v6258 = vsel %vm2046, %v6253, %v6257
        %v6259 = vshrl.u32 %v6223, 16
        %v6261 = vor.u32 %v6259, %v6257
        %v6263 = vshll.u32 %v6224, 16
        %v6265 = vrot.slane %v6263, 1
        %v6266 = vsel %vm2046, %v6261, %v6265
        %v6267 = vshrl.u32 %v6224, 16
        %v6269 = vor.u32 %v6267, %v6265
        %v6271 = vshll.u32 %v6225, 16
        %v6273 = vrot.slane %v6271, 1
        %v6274 = vsel %vm2046, %v6269, %v6273
        %v6275 = vshrl.u32 %v6225, 16
        %v6277 = vor.u32 %v6275, %v6273
        %v6279 = vshll.u32 %v6226, 16
        %v6281 = vrot.slane %v6279, 1
        %v6282 = vsel %vm2046, %v6277, %v6281
        %v6283 = vshrl.u32 %v6226, 16
        %v6285 = vor.u32 %v6283, %v6281
        %v6287 = vshll.u32 %v6227, 16
        %v6289 = vrot.slane %v6287, 1
        %v6290 = vsel %vm2046, %v6285, %v6289
        %v6291 = vshrl.u32 %v6227, 16
        %v6293 = vor.u32 %v6291, %v6289
        %v6295 = vshll.u32 %v6228, 16
        %v6297 = vrot.slane %v6295, 1
        %v6298 = vsel %vm2046, %v6293, %v6297
        %v6299 = vshrl.u32 %v6228, 16
        %v6301 = vor.u32 %v6299, %v6297
        %v6303 = vshll.u32 %v6229, 16
        %v6305 = vrot.slane %v6303, 1
        %v6306 = vsel %vm2046, %v6301, %v6305
        %v6307 = vshrl.u32 %v6229, 16
        %v6309 = vor.u32 %v6307, %v6305
        %v6311 = vshll.u32 %v6230, 16
        %v6313 = vrot.slane %v6311, 1
        %v6314 = vsel %vm2046, %v6309, %v6313
        %v6315 = vshrl.u32 %v6230, 16
        %v6317 = vor.u32 %v6315, %v6313
        %v6319 = vshll.u32 %v6231, 16
        %v6321 = vrot.slane %v6319, 1
        %v6322 = vsel %vm2046, %v6317, %v6321
        %v6323 = vshrl.u32 %v6231, 16
        %v6325 = vor.u32 %v6323, %v6321
        %v6327 = vshll.u32 %v6232, 16
        %v6329 = vrot.slane %v6327, 1
        %v6330 = vsel %vm2046, %v6325, %v6329
        %v6331 = vshrl.u32 %v6232, 16
        %v6333 = vor.u32 %v6331, %v6329
        %v6335 = vshll.u32 %v6233, 16
        %v6337 = vrot.slane %v6335, 1
        %v6338 = vsel %vm2046, %v6333, %v6337
        %v6339 = vshrl.u32 %v6233, 16
        %v6341 = vor.u32 %v6339, %v6337
        %v6343 = vshll.u32 %v6234, 16
        %v6345 = vrot.slane %v6343, 1
        %v6346 = vsel %vm2046, %v6341, %v6345
        %v6347 = vshrl.u32 %v6234, 16
        %v6349 = vor.u32 %v6347, %v6345
        %v6351 = vshll.u32 %v6235, 16
        %v6353 = vrot.slane %v6351, 1
        %v6354 = vsel %vm2046, %v6349, %v6353
        %v6355 = vshrl.u32 %v6235, 16
        %v6357 = vor.u32 %v6355, %v6353
        %v6359 = vshll.u32 %v6236, 16
        %v6361 = vrot.slane %v6359, 1
        %v6362 = vsel %vm2046, %v6357, %v6361
        %v6363 = vshrl.u32 %v6236, 16
        %v6365 = vor.u32 %v6363, %v6361
        %v6367 = vshll.u32 %v6237, 16
        %v6369 = vrot.slane %v6367, 1
        %v6370 = vsel %vm2046, %v6365, %v6369
        %v6371 = vshrl.u32 %v6237, 16
        %v6373 = vor.u32 %v6371, %v6369
        %v6375 = vshll.u32 %v6238, 16
        %v6377 = vrot.slane %v6375, 1
        %v6378 = vsel %vm2046, %v6373, %v6377
        %v6412 = vunpack.c.l.b16 %v6135
        %v6413 = vunpack.c.l.b16 %v6136
        %v6414 = vunpack.c.l.b16 %v6137
        %v6415 = vunpack.c.l.b16 %v6138
        %v6416 = vunpack.c.l.b16 %v6139
        %v6417 = vunpack.c.l.b16 %v6140
        %v6418 = vunpack.c.l.b16 %v6141
        %v6419 = vunpack.c.l.b16 %v6142
        %v6420 = vunpack.c.l.b16 %v6143
        %v6421 = vunpack.c.l.b16 %v6144
        %v6422 = vunpack.c.l.b16 %v6145
        %v6423 = vunpack.c.l.b16 %v6146
        %v6424 = vunpack.c.l.b16 %v6147
        %v6425 = vunpack.c.l.b16 %v6148
        %v6426 = vunpack.c.l.b16 %v6149
        %v6427 = vunpack.c.l.b16 %v6150
        %v6428 = vpack.c.b16 %v6413, %v6412
        %v6429 = vpack.c.b16 %v6415, %v6414
        %v6430 = vpack.c.b16 %v6417, %v6416
        %v6431 = vpack.c.b16 %v6419, %v6418
        %v6432 = vpack.c.b16 %v6421, %v6420
        %v6433 = vpack.c.b16 %v6423, %v6422
        %v6434 = vpack.c.b16 %v6425, %v6424
        %v6435 = vpack.c.b16 %v6427, %v6426
        %6444 = vmatpush.bf16.msra.mxu0 %v6435
        %6445 = vmatpush.bf16.msra.mxu0 %v6434
        %6446 = vmatpush.bf16.msra.mxu0 %v6433
        %6447 = vmatpush.bf16.msra.mxu0 %v6432
        %6448 = vmatpush.bf16.msra.mxu0 %v6431
        %6449 = vmatpush.bf16.msra.mxu0 %v6430
        %6450 = vmatpush.bf16.msra.mxu0 %v6429
        %6451 = vmatpush.bf16.msra.mxu0 %v6428
        %6452 = vmatmul.bf16.gmra.mxu0 %v6250
        %v6453 = vpop.f32.mrf.mxu0
        %v6454 = vadd.f32 0.0, %v6453
        %v6455 = vpop.f32.mrf.mxu0
        %v6456 = vadd.f32 0.0, %v6455
        %6457 = vmatmul.bf16.gmra.mxu0 %v6258
        %v6458 = vpop.f32.mrf.mxu0
        %v6459 = vadd.f32 0.0, %v6458
        %v6460 = vpop.f32.mrf.mxu0
        %v6461 = vadd.f32 0.0, %v6460
        %6462 = vmatmul.bf16.gmra.mxu0 %v6266
        %v6463 = vpop.f32.mrf.mxu0
        %v6464 = vadd.f32 0.0, %v6463
        %v6465 = vpop.f32.mrf.mxu0
        %v6466 = vadd.f32 0.0, %v6465
        %6467 = vmatmul.bf16.gmra.mxu0 %v6274
        %v6468 = vpop.f32.mrf.mxu0
        %v6469 = vadd.f32 0.0, %v6468
        %v6470 = vpop.f32.mrf.mxu0
        %v6471 = vadd.f32 0.0, %v6470
        %6472 = vmatmul.bf16.gmra.mxu0 %v6282
        %v6473 = vpop.f32.mrf.mxu0
        %v6474 = vadd.f32 0.0, %v6473
        %v6475 = vpop.f32.mrf.mxu0
        %v6476 = vadd.f32 0.0, %v6475
        %6477 = vmatmul.bf16.gmra.mxu0 %v6290
        %v6478 = vpop.f32.mrf.mxu0
        %v6479 = vadd.f32 0.0, %v6478
        %v6480 = vpop.f32.mrf.mxu0
        %v6481 = vadd.f32 0.0, %v6480
        %6482 = vmatmul.bf16.gmra.mxu0 %v6298
        %v6483 = vpop.f32.mrf.mxu0
        %v6484 = vadd.f32 0.0, %v6483
        %v6485 = vpop.f32.mrf.mxu0
        %v6486 = vadd.f32 0.0, %v6485
        %6487 = vmatmul.bf16.gmra.mxu0 %v6306
        %v6488 = vpop.f32.mrf.mxu0
        %v6489 = vadd.f32 0.0, %v6488
        %v6490 = vpop.f32.mrf.mxu0
        %v6491 = vadd.f32 0.0, %v6490
        %6492 = vmatmul.bf16.gmra.mxu0 %v6314
        %v6493 = vpop.f32.mrf.mxu0
        %v6494 = vadd.f32 0.0, %v6493
        %v6495 = vpop.f32.mrf.mxu0
        %v6496 = vadd.f32 0.0, %v6495
        %6497 = vmatmul.bf16.gmra.mxu0 %v6322
        %v6498 = vpop.f32.mrf.mxu0
        %v6499 = vadd.f32 0.0, %v6498
        %v6500 = vpop.f32.mrf.mxu0
        %v6501 = vadd.f32 0.0, %v6500
        %6502 = vmatmul.bf16.gmra.mxu0 %v6330
        %v6503 = vpop.f32.mrf.mxu0
        %v6504 = vadd.f32 0.0, %v6503
        %v6505 = vpop.f32.mrf.mxu0
        %v6506 = vadd.f32 0.0, %v6505
        %6507 = vmatmul.bf16.gmra.mxu0 %v6338
        %v6508 = vpop.f32.mrf.mxu0
        %v6509 = vadd.f32 0.0, %v6508
        %v6510 = vpop.f32.mrf.mxu0
        %v6511 = vadd.f32 0.0, %v6510
        %6512 = vmatmul.bf16.gmra.mxu0 %v6346
        %v6513 = vpop.f32.mrf.mxu0
        %v6514 = vadd.f32 0.0, %v6513
        %v6515 = vpop.f32.mrf.mxu0
        %v6516 = vadd.f32 0.0, %v6515
        %6517 = vmatmul.bf16.gmra.mxu0 %v6354
        %v6518 = vpop.f32.mrf.mxu0
        %v6519 = vadd.f32 0.0, %v6518
        %v6520 = vpop.f32.mrf.mxu0
        %v6521 = vadd.f32 0.0, %v6520
        %6522 = vmatmul.bf16.gmra.mxu0 %v6362
        %v6523 = vpop.f32.mrf.mxu0
        %v6524 = vadd.f32 0.0, %v6523
        %v6525 = vpop.f32.mrf.mxu0
        %v6526 = vadd.f32 0.0, %v6525
        %6527 = vmatmul.bf16.gmra.mxu0 %v6370
        %v6528 = vpop.f32.mrf.mxu0
        %v6529 = vadd.f32 0.0, %v6528
        %v6530 = vpop.f32.mrf.mxu0
        %v6531 = vadd.f32 0.0, %v6530
        %6532 = vmatmul.bf16.gmra.mxu0 %v6378
        %v6533 = vpop.f32.mrf.mxu0
        %v6534 = vadd.f32 0.0, %v6533
        %v6535 = vpop.f32.mrf.mxu0
        %v6536 = vadd.f32 0.0, %v6535
        %6537 = vdwg.mxu0
        %v6571 = vunpack.c.l.b16 %v6118
        %v6572 = vunpack.c.l.b16 %v6119
        %v6573 = vunpack.c.l.b16 %v6120
        %v6574 = vunpack.c.l.b16 %v6121
        %v6575 = vunpack.c.l.b16 %v6122
        %v6576 = vunpack.c.l.b16 %v6123
        %v6577 = vunpack.c.l.b16 %v6124
        %v6578 = vunpack.c.l.b16 %v6125
        %v6579 = vunpack.c.l.b16 %v6126
        %v6580 = vunpack.c.l.b16 %v6127
        %v6581 = vunpack.c.l.b16 %v6128
        %v6582 = vunpack.c.l.b16 %v6129
        %v6583 = vunpack.c.l.b16 %v6130
        %v6584 = vunpack.c.l.b16 %v6131
        %v6585 = vunpack.c.l.b16 %v6132
        %v6586 = vunpack.c.l.b16 %v6133
        %v6587 = vpack.c.b16 %v6572, %v6571
        %v6588 = vpack.c.b16 %v6574, %v6573
        %v6589 = vpack.c.b16 %v6576, %v6575
        %v6590 = vpack.c.b16 %v6578, %v6577
        %v6591 = vpack.c.b16 %v6580, %v6579
        %v6592 = vpack.c.b16 %v6582, %v6581
        %v6593 = vpack.c.b16 %v6584, %v6583
        %v6594 = vpack.c.b16 %v6586, %v6585
        %6603 = vmatpush.bf16.msra.mxu0 %v6594
        %6604 = vmatpush.bf16.msra.mxu0 %v6593
        %6605 = vmatpush.bf16.msra.mxu0 %v6592
        %6606 = vmatpush.bf16.msra.mxu0 %v6591
        %6607 = vmatpush.bf16.msra.mxu0 %v6590
        %6608 = vmatpush.bf16.msra.mxu0 %v6589
        %6609 = vmatpush.bf16.msra.mxu0 %v6588
        %6610 = vmatpush.bf16.msra.mxu0 %v6587
        %6611 = vmatmul.bf16.gmra.mxu0 %v6221
        %v6612 = vpop.f32.mrf.mxu0
        %v6613 = vadd.f32 %v6454, %v6612
        %v6614 = vpop.f32.mrf.mxu0
        %v6615 = vadd.f32 %v6456, %v6614
        %6616 = vmatmul.bf16.gmra.mxu0 %v6222
        %v6617 = vpop.f32.mrf.mxu0
        %v6618 = vadd.f32 %v6459, %v6617
        %v6619 = vpop.f32.mrf.mxu0
        %v6620 = vadd.f32 %v6461, %v6619
        %6621 = vmatmul.bf16.gmra.mxu0 %v6223
        %v6622 = vpop.f32.mrf.mxu0
        %v6623 = vadd.f32 %v6464, %v6622
        %v6624 = vpop.f32.mrf.mxu0
        %v6625 = vadd.f32 %v6466, %v6624
        %6626 = vmatmul.bf16.gmra.mxu0 %v6224
        %v6627 = vpop.f32.mrf.mxu0
        %v6628 = vadd.f32 %v6469, %v6627
        %v6629 = vpop.f32.mrf.mxu0
        %v6630 = vadd.f32 %v6471, %v6629
        %6631 = vmatmul.bf16.gmra.mxu0 %v6225
        %v6632 = vpop.f32.mrf.mxu0
        %v6633 = vadd.f32 %v6474, %v6632
        %v6634 = vpop.f32.mrf.mxu0
        %v6635 = vadd.f32 %v6476, %v6634
        %6636 = vmatmul.bf16.gmra.mxu0 %v6226
        %v6637 = vpop.f32.mrf.mxu0
        %v6638 = vadd.f32 %v6479, %v6637
        %v6639 = vpop.f32.mrf.mxu0
        %v6640 = vadd.f32 %v6481, %v6639
        %6641 = vmatmul.bf16.gmra.mxu0 %v6227
        %v6642 = vpop.f32.mrf.mxu0
        %v6643 = vadd.f32 %v6484, %v6642
        %v6644 = vpop.f32.mrf.mxu0
        %v6645 = vadd.f32 %v6486, %v6644
        %6646 = vmatmul.bf16.gmra.mxu0 %v6228
        %v6647 = vpop.f32.mrf.mxu0
        %v6648 = vadd.f32 %v6489, %v6647
        %v6649 = vpop.f32.mrf.mxu0
        %v6650 = vadd.f32 %v6491, %v6649
        %6651 = vmatmul.bf16.gmra.mxu0 %v6229
        %v6652 = vpop.f32.mrf.mxu0
        %v6653 = vadd.f32 %v6494, %v6652
        %v6654 = vpop.f32.mrf.mxu0
        %v6655 = vadd.f32 %v6496, %v6654
        %6656 = vmatmul.bf16.gmra.mxu0 %v6230
        %v6657 = vpop.f32.mrf.mxu0
        %v6658 = vadd.f32 %v6499, %v6657
        %v6659 = vpop.f32.mrf.mxu0
        %v6660 = vadd.f32 %v6501, %v6659
        %6661 = vmatmul.bf16.gmra.mxu0 %v6231
        %v6662 = vpop.f32.mrf.mxu0
        %v6663 = vadd.f32 %v6504, %v6662
        %v6664 = vpop.f32.mrf.mxu0
        %v6665 = vadd.f32 %v6506, %v6664
        %6666 = vmatmul.bf16.gmra.mxu0 %v6232
        %v6667 = vpop.f32.mrf.mxu0
        %v6668 = vadd.f32 %v6509, %v6667
        %v6669 = vpop.f32.mrf.mxu0
        %v6670 = vadd.f32 %v6511, %v6669
        %6671 = vmatmul.bf16.gmra.mxu0 %v6233
        %v6672 = vpop.f32.mrf.mxu0
        %v6673 = vadd.f32 %v6514, %v6672
        %v6674 = vpop.f32.mrf.mxu0
        %v6675 = vadd.f32 %v6516, %v6674
        %6676 = vmatmul.bf16.gmra.mxu0 %v6234
        %v6677 = vpop.f32.mrf.mxu0
        %v6678 = vadd.f32 %v6519, %v6677
        %v6679 = vpop.f32.mrf.mxu0
        %v6680 = vadd.f32 %v6521, %v6679
        %6681 = vmatmul.bf16.gmra.mxu0 %v6235
        %v6682 = vpop.f32.mrf.mxu0
        %v6683 = vadd.f32 %v6524, %v6682
        %v6684 = vpop.f32.mrf.mxu0
        %v6685 = vadd.f32 %v6526, %v6684
        %6686 = vmatmul.bf16.gmra.mxu0 %v6236
        %v6687 = vpop.f32.mrf.mxu0
        %v6688 = vadd.f32 %v6529, %v6687
        %v6689 = vpop.f32.mrf.mxu0
        %v6690 = vadd.f32 %v6531, %v6689
        %6691 = vmatmul.bf16.gmra.mxu0 %v6237
        %v6692 = vpop.f32.mrf.mxu0
        %v6693 = vadd.f32 %v6534, %v6692
        %v6694 = vpop.f32.mrf.mxu0
        %v6695 = vadd.f32 %v6536, %v6694
        %6696 = vdwg.mxu0
        %v6697 = vld [vmem:[#allocation4] sm:$0xe]
        %v6698 = vld [vmem:[#allocation14 + $0x80] sm:$0xf]
        %v6699 = vld [vmem:[#allocation14 + $0x84] sm:$0xf]
        %v6700 = vld [vmem:[#allocation14 + $0x88] sm:$0xf]
        %v6701 = vld [vmem:[#allocation14 + $0x8c] sm:$0xf]
        %v6702 = vld [vmem:[#allocation14 + $0x90] sm:$0xf]
        %v6703 = vld [vmem:[#allocation14 + $0x94] sm:$0xf]
        %v6704 = vld [vmem:[#allocation14 + $0x98] sm:$0xf]
        %v6705 = vld [vmem:[#allocation14 + $0x9c] sm:$0xf]
        %v6706 = vld [vmem:[#allocation14 + $0xa0] sm:$0xf]
        %v6707 = vld [vmem:[#allocation14 + $0xa4] sm:$0xf]
        %v6708 = vld [vmem:[#allocation14 + $0xa8] sm:$0xf]
        %v6709 = vld [vmem:[#allocation14 + $0xac] sm:$0xf]
        %v6710 = vld [vmem:[#allocation14 + $0xb0] sm:$0xf]
        %v6711 = vld [vmem:[#allocation14 + $0xb4] sm:$0xf]
        %v6712 = vld [vmem:[#allocation14 + $0xb8] sm:$0xf]
        %v6713 = vld [vmem:[#allocation14 + $0xbc] sm:$0xf]
        %v6715 = vunpack.c.l.b16 %v6697
        %v6716 = vpack.c.b16 %v6187, %v6715
        %v6717 = vrot.slane %v6716, 1
        %v6718 = vrot.slane %v6222, 1
        %v6719 = vsel %vm2621, %v6717, %v6718
        %v6720 = vrot.slane %v6223, 1
        %v6721 = vsel %vm2621, %v6718, %v6720
        %v6722 = vrot.slane %v6224, 1
        %v6723 = vsel %vm2621, %v6720, %v6722
        %v6724 = vrot.slane %v6225, 1
        %v6725 = vsel %vm2621, %v6722, %v6724
        %v6726 = vrot.slane %v6226, 1
        %v6727 = vsel %vm2621, %v6724, %v6726
        %v6728 = vrot.slane %v6227, 1
        %v6729 = vsel %vm2621, %v6726, %v6728
        %v6730 = vrot.slane %v6228, 1
        %v6731 = vsel %vm2621, %v6728, %v6730
        %v6732 = vrot.slane %v6229, 1
        %v6733 = vsel %vm2621, %v6730, %v6732
        %v6734 = vrot.slane %v6230, 1
        %v6735 = vsel %vm2621, %v6732, %v6734
        %v6736 = vrot.slane %v6231, 1
        %v6737 = vsel %vm2621, %v6734, %v6736
        %v6738 = vrot.slane %v6232, 1
        %v6739 = vsel %vm2621, %v6736, %v6738
        %v6740 = vrot.slane %v6233, 1
        %v6741 = vsel %vm2621, %v6738, %v6740
        %v6742 = vrot.slane %v6234, 1
        %v6743 = vsel %vm2621, %v6740, %v6742
        %v6744 = vrot.slane %v6235, 1
        %v6745 = vsel %vm2621, %v6742, %v6744
        %v6746 = vrot.slane %v6236, 1
        %v6747 = vsel %vm2621, %v6744, %v6746
        %v6748 = vrot.slane %v6237, 1
        %v6749 = vsel %vm2621, %v6746, %v6748
        %v6750 = vrot.slane %v6238, 1
        %v6751 = vsel %vm2621, %v6748, %v6750
        %v6785 = vunpack.c.l.b16 %v6698
        %v6786 = vunpack.c.l.b16 %v6699
        %v6787 = vunpack.c.l.b16 %v6700
        %v6788 = vunpack.c.l.b16 %v6701
        %v6789 = vunpack.c.l.b16 %v6702
        %v6790 = vunpack.c.l.b16 %v6703
        %v6791 = vunpack.c.l.b16 %v6704
        %v6792 = vunpack.c.l.b16 %v6705
        %v6793 = vunpack.c.l.b16 %v6706
        %v6794 = vunpack.c.l.b16 %v6707
        %v6795 = vunpack.c.l.b16 %v6708
        %v6796 = vunpack.c.l.b16 %v6709
        %v6797 = vunpack.c.l.b16 %v6710
        %v6798 = vunpack.c.l.b16 %v6711
        %v6799 = vunpack.c.l.b16 %v6712
        %v6800 = vunpack.c.l.b16 %v6713
        %v6801 = vpack.c.b16 %v6786, %v6785
        %v6802 = vpack.c.b16 %v6788, %v6787
        %v6803 = vpack.c.b16 %v6790, %v6789
        %v6804 = vpack.c.b16 %v6792, %v6791
        %v6805 = vpack.c.b16 %v6794, %v6793
        %v6806 = vpack.c.b16 %v6796, %v6795
        %v6807 = vpack.c.b16 %v6798, %v6797
        %v6808 = vpack.c.b16 %v6800, %v6799
        %6817 = vmatpush.bf16.msra.mxu0 %v6808
        %6818 = vmatpush.bf16.msra.mxu0 %v6807
        %6819 = vmatpush.bf16.msra.mxu0 %v6806
        %6820 = vmatpush.bf16.msra.mxu0 %v6805
        %6821 = vmatpush.bf16.msra.mxu0 %v6804
        %6822 = vmatpush.bf16.msra.mxu0 %v6803
        %6823 = vmatpush.bf16.msra.mxu0 %v6802
        %6824 = vmatpush.bf16.msra.mxu0 %v6801
        %6825 = vmatmul.bf16.gmra.mxu0 %v6719
        %v6826 = vpop.f32.mrf.mxu0
        %v6827 = vadd.f32 0.0, %v6826
        %v6828 = vpop.f32.mrf.mxu0
        %v6829 = vadd.f32 0.0, %v6828
        %6830 = vmatmul.bf16.gmra.mxu0 %v6721
        %v6831 = vpop.f32.mrf.mxu0
        %v6832 = vadd.f32 0.0, %v6831
        %v6833 = vpop.f32.mrf.mxu0
        %v6834 = vadd.f32 0.0, %v6833
        %6835 = vmatmul.bf16.gmra.mxu0 %v6723
        %v6836 = vpop.f32.mrf.mxu0
        %v6837 = vadd.f32 0.0, %v6836
        %v6838 = vpop.f32.mrf.mxu0
        %v6839 = vadd.f32 0.0, %v6838
        %6840 = vmatmul.bf16.gmra.mxu0 %v6725
        %v6841 = vpop.f32.mrf.mxu0
        %v6842 = vadd.f32 0.0, %v6841
        %v6843 = vpop.f32.mrf.mxu0
        %v6844 = vadd.f32 0.0, %v6843
        %6845 = vmatmul.bf16.gmra.mxu0 %v6727
        %v6846 = vpop.f32.mrf.mxu0
        %v6847 = vadd.f32 0.0, %v6846
        %v6848 = vpop.f32.mrf.mxu0
        %v6849 = vadd.f32 0.0, %v6848
        %6850 = vmatmul.bf16.gmra.mxu0 %v6729
        %v6851 = vpop.f32.mrf.mxu0
        %v6852 = vadd.f32 0.0, %v6851
        %v6853 = vpop.f32.mrf.mxu0
        %v6854 = vadd.f32 0.0, %v6853
        %6855 = vmatmul.bf16.gmra.mxu0 %v6731
        %v6856 = vpop.f32.mrf.mxu0
        %v6857 = vadd.f32 0.0, %v6856
        %v6858 = vpop.f32.mrf.mxu0
        %v6859 = vadd.f32 0.0, %v6858
        %6860 = vmatmul.bf16.gmra.mxu0 %v6733
        %v6861 = vpop.f32.mrf.mxu0
        %v6862 = vadd.f32 0.0, %v6861
        %v6863 = vpop.f32.mrf.mxu0
        %v6864 = vadd.f32 0.0, %v6863
        %6865 = vmatmul.bf16.gmra.mxu0 %v6735
        %v6866 = vpop.f32.mrf.mxu0
        %v6867 = vadd.f32 0.0, %v6866
        %v6868 = vpop.f32.mrf.mxu0
        %v6869 = vadd.f32 0.0, %v6868
        %6870 = vmatmul.bf16.gmra.mxu0 %v6737
        %v6871 = vpop.f32.mrf.mxu0
        %v6872 = vadd.f32 0.0, %v6871
        %v6873 = vpop.f32.mrf.mxu0
        %v6874 = vadd.f32 0.0, %v6873
        %6875 = vmatmul.bf16.gmra.mxu0 %v6739
        %v6876 = vpop.f32.mrf.mxu0
        %v6877 = vadd.f32 0.0, %v6876
        %v6878 = vpop.f32.mrf.mxu0
        %v6879 = vadd.f32 0.0, %v6878
        %6880 = vmatmul.bf16.gmra.mxu0 %v6741
        %v6881 = vpop.f32.mrf.mxu0
        %v6882 = vadd.f32 0.0, %v6881
        %v6883 = vpop.f32.mrf.mxu0
        %v6884 = vadd.f32 0.0, %v6883
        %6885 = vmatmul.bf16.gmra.mxu0 %v6743
        %v6886 = vpop.f32.mrf.mxu0
        %v6887 = vadd.f32 0.0, %v6886
        %v6888 = vpop.f32.mrf.mxu0
        %v6889 = vadd.f32 0.0, %v6888
        %6890 = vmatmul.bf16.gmra.mxu0 %v6745
        %v6891 = vpop.f32.mrf.mxu0
        %v6892 = vadd.f32 0.0, %v6891
        %v6893 = vpop.f32.mrf.mxu0
        %v6894 = vadd.f32 0.0, %v6893
        %6895 = vmatmul.bf16.gmra.mxu0 %v6747
        %v6896 = vpop.f32.mrf.mxu0
        %v6897 = vadd.f32 0.0, %v6896
        %v6898 = vpop.f32.mrf.mxu0
        %v6899 = vadd.f32 0.0, %v6898
        %6900 = vmatmul.bf16.gmra.mxu0 %v6749
        %v6901 = vpop.f32.mrf.mxu0
        %v6902 = vadd.f32 0.0, %v6901
        %v6903 = vpop.f32.mrf.mxu0
        %v6904 = vadd.f32 0.0, %v6903
        %6905 = vmatmul.bf16.gmra.mxu0 %v6751
        %v6906 = vpop.f32.mrf.mxu0
        %v6907 = vadd.f32 0.0, %v6906
        %v6908 = vpop.f32.mrf.mxu0
        %v6909 = vadd.f32 0.0, %v6908
        %6910 = vdwg.mxu0
        %v6911 = vadd.f32 %v6613, %v6827
        %v6912 = vadd.f32 %v6615, %v6829
        %v6913 = vadd.f32 %v6618, %v6832
        %v6914 = vadd.f32 %v6620, %v6834
        %v6915 = vadd.f32 %v6623, %v6837
        %v6916 = vadd.f32 %v6625, %v6839
        %v6917 = vadd.f32 %v6628, %v6842
        %v6918 = vadd.f32 %v6630, %v6844
        %v6919 = vadd.f32 %v6633, %v6847
        %v6920 = vadd.f32 %v6635, %v6849
        %v6921 = vadd.f32 %v6638, %v6852
        %v6922 = vadd.f32 %v6640, %v6854
        %v6923 = vadd.f32 %v6643, %v6857
        %v6924 = vadd.f32 %v6645, %v6859
        %v6925 = vadd.f32 %v6648, %v6862
        %v6926 = vadd.f32 %v6650, %v6864
        %v6927 = vadd.f32 %v6653, %v6867
        %v6928 = vadd.f32 %v6655, %v6869
        %v6929 = vadd.f32 %v6658, %v6872
        %v6930 = vadd.f32 %v6660, %v6874
        %v6931 = vadd.f32 %v6663, %v6877
        %v6932 = vadd.f32 %v6665, %v6879
        %v6933 = vadd.f32 %v6668, %v6882
        %v6934 = vadd.f32 %v6670, %v6884
        %v6935 = vadd.f32 %v6673, %v6887
        %v6936 = vadd.f32 %v6675, %v6889
        %v6937 = vadd.f32 %v6678, %v6892
        %v6938 = vadd.f32 %v6680, %v6894
        %v6939 = vadd.f32 %v6683, %v6897
        %v6940 = vadd.f32 %v6685, %v6899
        %v6941 = vadd.f32 %v6688, %v6902
        %v6942 = vadd.f32 %v6690, %v6904
        %v6943 = vadd.f32 %v6693, %v6907
        %v6944 = vadd.f32 %v6695, %v6909
        %v6945 = vld [vmem:[#allocation4 + $0x10] sm:$0xe]
        %v6946 = vld [vmem:[#allocation4 + $0x14] sm:$0xf]
        %v6947 = vld [vmem:[#allocation4 + $0x18] sm:$0xf]
        %v6948 = vld [vmem:[#allocation4 + $0x1c] sm:$0xf]
        %v6949 = vld [vmem:[#allocation4 + $0x20] sm:$0xf]
        %v6950 = vld [vmem:[#allocation4 + $0x24] sm:$0xf]
        %v6951 = vld [vmem:[#allocation4 + $0x28] sm:$0xf]
        %v6952 = vld [vmem:[#allocation4 + $0x2c] sm:$0xf]
        %v6953 = vld [vmem:[#allocation4 + $0x30] sm:$0xf]
        %v6954 = vld [vmem:[#allocation4 + $0x34] sm:$0xf]
        %v6955 = vld [vmem:[#allocation4 + $0x38] sm:$0xf]
        %v6956 = vld [vmem:[#allocation4 + $0x3c] sm:$0xf]
        %v6957 = vld [vmem:[#allocation4 + $0x40] sm:$0xf]
        %v6958 = vld [vmem:[#allocation4 + $0x44] sm:$0xf]
        %v6959 = vld [vmem:[#allocation4 + $0x48] sm:$0xf]
        %v6960 = vld [vmem:[#allocation4 + $0x4c] sm:$0xf]
        %v6961 = vld [vmem:[#allocation4 + $0x50] sm:$0xf]
        %v6962 = vld [vmem:[#allocation4 + $0x54] sm:$0xf]
        %v6963 = vld [vmem:[#allocation4 + $0x58] sm:$0xf]
        %v6964 = vld [vmem:[#allocation4 + $0x5c] sm:$0xf]
        %v6965 = vld [vmem:[#allocation4 + $0x60] sm:$0xf]
        %v6966 = vld [vmem:[#allocation4 + $0x64] sm:$0xf]
        %v6967 = vld [vmem:[#allocation4 + $0x68] sm:$0xf]
        %v6968 = vld [vmem:[#allocation4 + $0x6c] sm:$0xf]
        %v6969 = vld [vmem:[#allocation4 + $0x70] sm:$0xf]
        %v6970 = vld [vmem:[#allocation4 + $0x74] sm:$0xf]
        %v6971 = vld [vmem:[#allocation4 + $0x78] sm:$0xf]
        %v6972 = vld [vmem:[#allocation4 + $0x7c] sm:$0xf]
        %v6973 = vld [vmem:[#allocation4 + $0x80] sm:$0xf]
        %v6974 = vld [vmem:[#allocation4 + $0x84] sm:$0xf]
        %v6975 = vld [vmem:[#allocation4 + $0x88] sm:$0xf]
        %v6976 = vld [vmem:[#allocation4 + $0x8c] sm:$0xf]
        %v6977 = vld [vmem:[#allocation4 + $0x90] sm:$0xf]
        %v6978 = vld [vmem:[#allocation4 + $0x94] sm:$0xf]
        %v6979 = vld [vmem:[#allocation4 + $0x98] sm:$0x1]
        %v6980 = vld [vmem:[#allocation14 + $0xc0] sm:$0xf]
        %v6981 = vld [vmem:[#allocation14 + $0xc4] sm:$0xf]
        %v6982 = vld [vmem:[#allocation14 + $0xc8] sm:$0xf]
        %v6983 = vld [vmem:[#allocation14 + $0xcc] sm:$0xf]
        %v6984 = vld [vmem:[#allocation14 + $0xd0] sm:$0xf]
        %v6985 = vld [vmem:[#allocation14 + $0xd4] sm:$0xf]
        %v6986 = vld [vmem:[#allocation14 + $0xd8] sm:$0xf]
        %v6987 = vld [vmem:[#allocation14 + $0xdc] sm:$0xf]
        %v6988 = vld [vmem:[#allocation14 + $0xe0] sm:$0xf]
        %v6989 = vld [vmem:[#allocation14 + $0xe4] sm:$0xf]
        %v6990 = vld [vmem:[#allocation14 + $0xe8] sm:$0xf]
        %v6991 = vld [vmem:[#allocation14 + $0xec] sm:$0xf]
        %v6992 = vld [vmem:[#allocation14 + $0xf0] sm:$0xf]
        %v6993 = vld [vmem:[#allocation14 + $0xf4] sm:$0xf]
        %v6994 = vld [vmem:[#allocation14 + $0xf8] sm:$0xf]
        %v6995 = vld [vmem:[#allocation14 + $0xfc] sm:$0xf]
        %v7031 = vunpack.c.l.b16 %v6945
        %v7032 = vunpack.c.l.b16 %v6946
        %v7033 = vunpack.c.l.b16 %v6947
        %v7034 = vunpack.c.l.b16 %v6948
        %v7035 = vunpack.c.l.b16 %v6949
        %v7036 = vunpack.c.l.b16 %v6950
        %v7037 = vunpack.c.l.b16 %v6951
        %v7038 = vunpack.c.l.b16 %v6952
        %v7039 = vunpack.c.l.b16 %v6953
        %v7040 = vunpack.c.l.b16 %v6954
        %v7041 = vunpack.c.l.b16 %v6955
        %v7042 = vunpack.c.l.b16 %v6956
        %v7043 = vunpack.c.l.b16 %v6957
        %v7044 = vunpack.c.l.b16 %v6958
        %v7045 = vunpack.c.l.b16 %v6959
        %v7046 = vunpack.c.l.b16 %v6960
        %v7047 = vunpack.c.l.b16 %v6961
        %v7048 = vunpack.c.l.b16 %v6962
        %v7049 = vunpack.c.l.b16 %v6963
        %v7050 = vunpack.c.l.b16 %v6964
        %v7051 = vunpack.c.l.b16 %v6965
        %v7052 = vunpack.c.l.b16 %v6966
        %v7053 = vunpack.c.l.b16 %v6967
        %v7054 = vunpack.c.l.b16 %v6968
        %v7055 = vunpack.c.l.b16 %v6969
        %v7056 = vunpack.c.l.b16 %v6970
        %v7057 = vunpack.c.l.b16 %v6971
        %v7058 = vunpack.c.l.b16 %v6972
        %v7059 = vunpack.c.l.b16 %v6973
        %v7060 = vunpack.c.l.b16 %v6974
        %v7061 = vunpack.c.l.b16 %v6975
        %v7062 = vunpack.c.l.b16 %v6976
        %v7063 = vunpack.c.l.b16 %v6977
        %v7064 = vunpack.c.l.b16 %v6978
        %v7065 = vunpack.c.l.b16 %v6979
        %v7066 = vpack.c.b16 %v7032, %v7031
        %v7067 = vpack.c.b16 %v7034, %v7033
        %v7068 = vpack.c.b16 %v7036, %v7035
        %v7069 = vpack.c.b16 %v7038, %v7037
        %v7070 = vpack.c.b16 %v7040, %v7039
        %v7071 = vpack.c.b16 %v7042, %v7041
        %v7072 = vpack.c.b16 %v7044, %v7043
        %v7073 = vpack.c.b16 %v7046, %v7045
        %v7074 = vpack.c.b16 %v7048, %v7047
        %v7075 = vpack.c.b16 %v7050, %v7049
        %v7076 = vpack.c.b16 %v7052, %v7051
        %v7077 = vpack.c.b16 %v7054, %v7053
        %v7078 = vpack.c.b16 %v7056, %v7055
        %v7079 = vpack.c.b16 %v7058, %v7057
        %v7080 = vpack.c.b16 %v7060, %v7059
        %v7081 = vpack.c.b16 %v7062, %v7061
        %v7082 = vpack.c.b16 %v7064, %v7063
        %v7083 = vpack.c.b16 %v7065, %v7065
        %v7084 = vrot.slane %v7066, 1
        %v7085 = vrot.slane %v7067, 1
        %v7086 = vsel %vm2621, %v7084, %v7085
        %v7087 = vrot.slane %v7068, 1
        %v7088 = vsel %vm2621, %v7085, %v7087
        %v7089 = vrot.slane %v7069, 1
        %v7090 = vsel %vm2621, %v7087, %v7089
        %v7091 = vrot.slane %v7070, 1
        %v7092 = vsel %vm2621, %v7089, %v7091
        %v7093 = vrot.slane %v7071, 1
        %v7094 = vsel %vm2621, %v7091, %v7093
        %v7095 = vrot.slane %v7072, 1
        %v7096 = vsel %vm2621, %v7093, %v7095
        %v7097 = vrot.slane %v7073, 1
        %v7098 = vsel %vm2621, %v7095, %v7097
        %v7099 = vrot.slane %v7074, 1
        %v7100 = vsel %vm2621, %v7097, %v7099
        %v7101 = vrot.slane %v7075, 1
        %v7102 = vsel %vm2621, %v7099, %v7101
        %v7103 = vrot.slane %v7076, 1
        %v7104 = vsel %vm2621, %v7101, %v7103
        %v7105 = vrot.slane %v7077, 1
        %v7106 = vsel %vm2621, %v7103, %v7105
        %v7107 = vrot.slane %v7078, 1
        %v7108 = vsel %vm2621, %v7105, %v7107
        %v7109 = vrot.slane %v7079, 1
        %v7110 = vsel %vm2621, %v7107, %v7109
        %v7111 = vrot.slane %v7080, 1
        %v7112 = vsel %vm2621, %v7109, %v7111
        %v7113 = vrot.slane %v7081, 1
        %v7114 = vsel %vm2621, %v7111, %v7113
        %v7115 = vrot.slane %v7082, 1
        %v7116 = vsel %vm2621, %v7113, %v7115
        %v7117 = vrot.slane %v7083, 1
        %v7118 = vsel %vm2621, %v7115, %v7117
        %v7152 = vunpack.c.l.b16 %v6980
        %v7153 = vunpack.c.l.b16 %v6981
        %v7154 = vunpack.c.l.b16 %v6982
        %v7155 = vunpack.c.l.b16 %v6983
        %v7156 = vunpack.c.l.b16 %v6984
        %v7157 = vunpack.c.l.b16 %v6985
        %v7158 = vunpack.c.l.b16 %v6986
        %v7159 = vunpack.c.l.b16 %v6987
        %v7160 = vunpack.c.l.b16 %v6988
        %v7161 = vunpack.c.l.b16 %v6989
        %v7162 = vunpack.c.l.b16 %v6990
        %v7163 = vunpack.c.l.b16 %v6991
        %v7164 = vunpack.c.l.b16 %v6992
        %v7165 = vunpack.c.l.b16 %v6993
        %v7166 = vunpack.c.l.b16 %v6994
        %v7167 = vunpack.c.l.b16 %v6995
        %v7168 = vpack.c.b16 %v7153, %v7152
        %v7169 = vpack.c.b16 %v7155, %v7154
        %v7170 = vpack.c.b16 %v7157, %v7156
        %v7171 = vpack.c.b16 %v7159, %v7158
        %v7172 = vpack.c.b16 %v7161, %v7160
        %v7173 = vpack.c.b16 %v7163, %v7162
        %v7174 = vpack.c.b16 %v7165, %v7164
        %v7175 = vpack.c.b16 %v7167, %v7166
        %7184 = vmatpush.bf16.msra.mxu0 %v7175
        %7185 = vmatpush.bf16.msra.mxu0 %v7174
        %7186 = vmatpush.bf16.msra.mxu0 %v7173
        %7187 = vmatpush.bf16.msra.mxu0 %v7172
        %7188 = vmatpush.bf16.msra.mxu0 %v7171
        %7189 = vmatpush.bf16.msra.mxu0 %v7170
        %7190 = vmatpush.bf16.msra.mxu0 %v7169
        %7191 = vmatpush.bf16.msra.mxu0 %v7168
        %7192 = vmatmul.bf16.gmra.mxu0 %v7086
        %v7193 = vpop.f32.mrf.mxu0
        %v7194 = vadd.f32 0.0, %v7193
        %v7195 = vpop.f32.mrf.mxu0
        %v7196 = vadd.f32 0.0, %v7195
        %7197 = vmatmul.bf16.gmra.mxu0 %v7088
        %v7198 = vpop.f32.mrf.mxu0
        %v7199 = vadd.f32 0.0, %v7198
        %v7200 = vpop.f32.mrf.mxu0
        %v7201 = vadd.f32 0.0, %v7200
        %7202 = vmatmul.bf16.gmra.mxu0 %v7090
        %v7203 = vpop.f32.mrf.mxu0
        %v7204 = vadd.f32 0.0, %v7203
        %v7205 = vpop.f32.mrf.mxu0
        %v7206 = vadd.f32 0.0, %v7205
        %7207 = vmatmul.bf16.gmra.mxu0 %v7092
        %v7208 = vpop.f32.mrf.mxu0
        %v7209 = vadd.f32 0.0, %v7208
        %v7210 = vpop.f32.mrf.mxu0
        %v7211 = vadd.f32 0.0, %v7210
        %7212 = vmatmul.bf16.gmra.mxu0 %v7094
        %v7213 = vpop.f32.mrf.mxu0
        %v7214 = vadd.f32 0.0, %v7213
        %v7215 = vpop.f32.mrf.mxu0
        %v7216 = vadd.f32 0.0, %v7215
        %7217 = vmatmul.bf16.gmra.mxu0 %v7096
        %v7218 = vpop.f32.mrf.mxu0
        %v7219 = vadd.f32 0.0, %v7218
        %v7220 = vpop.f32.mrf.mxu0
        %v7221 = vadd.f32 0.0, %v7220
        %7222 = vmatmul.bf16.gmra.mxu0 %v7098
        %v7223 = vpop.f32.mrf.mxu0
        %v7224 = vadd.f32 0.0, %v7223
        %v7225 = vpop.f32.mrf.mxu0
        %v7226 = vadd.f32 0.0, %v7225
        %7227 = vmatmul.bf16.gmra.mxu0 %v7100
        %v7228 = vpop.f32.mrf.mxu0
        %v7229 = vadd.f32 0.0, %v7228
        %v7230 = vpop.f32.mrf.mxu0
        %v7231 = vadd.f32 0.0, %v7230
        %7232 = vmatmul.bf16.gmra.mxu0 %v7102
        %v7233 = vpop.f32.mrf.mxu0
        %v7234 = vadd.f32 0.0, %v7233
        %v7235 = vpop.f32.mrf.mxu0
        %v7236 = vadd.f32 0.0, %v7235
        %7237 = vmatmul.bf16.gmra.mxu0 %v7104
        %v7238 = vpop.f32.mrf.mxu0
        %v7239 = vadd.f32 0.0, %v7238
        %v7240 = vpop.f32.mrf.mxu0
        %v7241 = vadd.f32 0.0, %v7240
        %7242 = vmatmul.bf16.gmra.mxu0 %v7106
        %v7243 = vpop.f32.mrf.mxu0
        %v7244 = vadd.f32 0.0, %v7243
        %v7245 = vpop.f32.mrf.mxu0
        %v7246 = vadd.f32 0.0, %v7245
        %7247 = vmatmul.bf16.gmra.mxu0 %v7108
        %v7248 = vpop.f32.mrf.mxu0
        %v7249 = vadd.f32 0.0, %v7248
        %v7250 = vpop.f32.mrf.mxu0
        %v7251 = vadd.f32 0.0, %v7250
        %7252 = vmatmul.bf16.gmra.mxu0 %v7110
        %v7253 = vpop.f32.mrf.mxu0
        %v7254 = vadd.f32 0.0, %v7253
        %v7255 = vpop.f32.mrf.mxu0
        %v7256 = vadd.f32 0.0, %v7255
        %7257 = vmatmul.bf16.gmra.mxu0 %v7112
        %v7258 = vpop.f32.mrf.mxu0
        %v7259 = vadd.f32 0.0, %v7258
        %v7260 = vpop.f32.mrf.mxu0
        %v7261 = vadd.f32 0.0, %v7260
        %7262 = vmatmul.bf16.gmra.mxu0 %v7114
        %v7263 = vpop.f32.mrf.mxu0
        %v7264 = vadd.f32 0.0, %v7263
        %v7265 = vpop.f32.mrf.mxu0
        %v7266 = vadd.f32 0.0, %v7265
        %7267 = vmatmul.bf16.gmra.mxu0 %v7116
        %v7268 = vpop.f32.mrf.mxu0
        %v7269 = vadd.f32 0.0, %v7268
        %v7270 = vpop.f32.mrf.mxu0
        %v7271 = vadd.f32 0.0, %v7270
        %7272 = vmatmul.bf16.gmra.mxu0 %v7118
        %v7273 = vpop.f32.mrf.mxu0
        %v7274 = vadd.f32 0.0, %v7273
        %v7275 = vpop.f32.mrf.mxu0
        %v7276 = vadd.f32 0.0, %v7275
        %7277 = vdwg.mxu0
        %v7278 = vadd.f32 %v6911, %v7194
        %v7279 = vadd.f32 %v6912, %v7196
        %v7280 = vadd.f32 %v6913, %v7199
        %v7281 = vadd.f32 %v6914, %v7201
        %v7282 = vadd.f32 %v6915, %v7204
        %v7283 = vadd.f32 %v6916, %v7206
        %v7284 = vadd.f32 %v6917, %v7209
        %v7285 = vadd.f32 %v6918, %v7211
        %v7286 = vadd.f32 %v6919, %v7214
        %v7287 = vadd.f32 %v6920, %v7216
        %v7288 = vadd.f32 %v6921, %v7219
        %v7289 = vadd.f32 %v6922, %v7221
        %v7290 = vadd.f32 %v6923, %v7224
        %v7291 = vadd.f32 %v6924, %v7226
        %v7292 = vadd.f32 %v6925, %v7229
        %v7293 = vadd.f32 %v6926, %v7231
        %v7294 = vadd.f32 %v6927, %v7234
        %v7295 = vadd.f32 %v6928, %v7236
        %v7296 = vadd.f32 %v6929, %v7239
        %v7297 = vadd.f32 %v6930, %v7241
        %v7298 = vadd.f32 %v6931, %v7244
        %v7299 = vadd.f32 %v6932, %v7246
        %v7300 = vadd.f32 %v6933, %v7249
        %v7301 = vadd.f32 %v6934, %v7251
        %v7302 = vadd.f32 %v6935, %v7254
        %v7303 = vadd.f32 %v6936, %v7256
        %v7304 = vadd.f32 %v6937, %v7259
        %v7305 = vadd.f32 %v6938, %v7261
        %v7306 = vadd.f32 %v6939, %v7264
        %v7307 = vadd.f32 %v6940, %v7266
        %v7308 = vadd.f32 %v6941, %v7269
        %v7309 = vadd.f32 %v6942, %v7271
        %v7310 = vadd.f32 %v6943, %v7274
        %v7311 = vadd.f32 %v6944, %v7276
        %v7312 = vld [vmem:[#allocation4 + $0x98] sm:$0x3]
        %v7313 = vld [vmem:[#allocation14 + $0x100] sm:$0xf]
        %v7314 = vld [vmem:[#allocation14 + $0x104] sm:$0xf]
        %v7315 = vld [vmem:[#allocation14 + $0x108] sm:$0xf]
        %v7316 = vld [vmem:[#allocation14 + $0x10c] sm:$0xf]
        %v7317 = vld [vmem:[#allocation14 + $0x110] sm:$0xf]
        %v7318 = vld [vmem:[#allocation14 + $0x114] sm:$0xf]
        %v7319 = vld [vmem:[#allocation14 + $0x118] sm:$0xf]
        %v7320 = vld [vmem:[#allocation14 + $0x11c] sm:$0xf]
        %v7321 = vld [vmem:[#allocation14 + $0x120] sm:$0xf]
        %v7322 = vld [vmem:[#allocation14 + $0x124] sm:$0xf]
        %v7323 = vld [vmem:[#allocation14 + $0x128] sm:$0xf]
        %v7324 = vld [vmem:[#allocation14 + $0x12c] sm:$0xf]
        %v7325 = vld [vmem:[#allocation14 + $0x130] sm:$0xf]
        %v7326 = vld [vmem:[#allocation14 + $0x134] sm:$0xf]
        %v7327 = vld [vmem:[#allocation14 + $0x138] sm:$0xf]
        %v7328 = vld [vmem:[#allocation14 + $0x13c] sm:$0xf]
        %v7330 = vunpack.c.l.b16 %v7312
        %v7331 = vpack.c.b16 %v7330, %v7330
        %v7333 = vshrl.u32 %v7066, 16
        %v7335 = vrot.slane %v7333, 1
        %v7336 = vshll.u32 %v7066, 16
        %v7338 = vrot.slane %v7336, 2
        %v7339 = vor.u32 %v7335, %v7338
        %v7341 = vshrl.u32 %v7067, 16
        %v7343 = vrot.slane %v7341, 1
        %v7344 = vshll.u32 %v7067, 16
        %v7346 = vrot.slane %v7344, 2
        %v7347 = vor.u32 %v7343, %v7346
        %v7348 = vsel %vm3357, %v7339, %v7347
        %v7350 = vshrl.u32 %v7068, 16
        %v7352 = vrot.slane %v7350, 1
        %v7353 = vshll.u32 %v7068, 16
        %v7355 = vrot.slane %v7353, 2
        %v7356 = vor.u32 %v7352, %v7355
        %v7357 = vsel %vm3357, %v7347, %v7356
        %v7359 = vshrl.u32 %v7069, 16
        %v7361 = vrot.slane %v7359, 1
        %v7362 = vshll.u32 %v7069, 16
        %v7364 = vrot.slane %v7362, 2
        %v7365 = vor.u32 %v7361, %v7364
        %v7366 = vsel %vm3357, %v7356, %v7365
        %v7368 = vshrl.u32 %v7070, 16
        %v7370 = vrot.slane %v7368, 1
        %v7371 = vshll.u32 %v7070, 16
        %v7373 = vrot.slane %v7371, 2
        %v7374 = vor.u32 %v7370, %v7373
        %v7375 = vsel %vm3357, %v7365, %v7374
        %v7377 = vshrl.u32 %v7071, 16
        %v7379 = vrot.slane %v7377, 1
        %v7380 = vshll.u32 %v7071, 16
        %v7382 = vrot.slane %v7380, 2
        %v7383 = vor.u32 %v7379, %v7382
        %v7384 = vsel %vm3357, %v7374, %v7383
        %v7386 = vshrl.u32 %v7072, 16
        %v7388 = vrot.slane %v7386, 1
        %v7389 = vshll.u32 %v7072, 16
        %v7391 = vrot.slane %v7389, 2
        %v7392 = vor.u32 %v7388, %v7391
        %v7393 = vsel %vm3357, %v7383, %v7392
        %v7395 = vshrl.u32 %v7073, 16
        %v7397 = vrot.slane %v7395, 1
        %v7398 = vshll.u32 %v7073, 16
        %v7400 = vrot.slane %v7398, 2
        %v7401 = vor.u32 %v7397, %v7400
        %v7402 = vsel %vm3357, %v7392, %v7401
        %v7404 = vshrl.u32 %v7074, 16
        %v7406 = vrot.slane %v7404, 1
        %v7407 = vshll.u32 %v7074, 16
        %v7409 = vrot.slane %v7407, 2
        %v7410 = vor.u32 %v7406, %v7409
        %v7411 = vsel %vm3357, %v7401, %v7410
        %v7413 = vshrl.u32 %v7075, 16
        %v7415 = vrot.slane %v7413, 1
        %v7416 = vshll.u32 %v7075, 16
        %v7418 = vrot.slane %v7416, 2
        %v7419 = vor.u32 %v7415, %v7418
        %v7420 = vsel %vm3357, %v7410, %v7419
        %v7422 = vshrl.u32 %v7076, 16
        %v7424 = vrot.slane %v7422, 1
        %v7425 = vshll.u32 %v7076, 16
        %v7427 = vrot.slane %v7425, 2
        %v7428 = vor.u32 %v7424, %v7427
        %v7429 = vsel %vm3357, %v7419, %v7428
        %v7431 = vshrl.u32 %v7077, 16
        %v7433 = vrot.slane %v7431, 1
        %v7434 = vshll.u32 %v7077, 16
        %v7436 = vrot.slane %v7434, 2
        %v7437 = vor.u32 %v7433, %v7436
        %v7438 = vsel %vm3357, %v7428, %v7437
        %v7440 = vshrl.u32 %v7078, 16
        %v7442 = vrot.slane %v7440, 1
        %v7443 = vshll.u32 %v7078, 16
        %v7445 = vrot.slane %v7443, 2
        %v7446 = vor.u32 %v7442, %v7445
        %v7447 = vsel %vm3357, %v7437, %v7446
        %v7449 = vshrl.u32 %v7079, 16
        %v7451 = vrot.slane %v7449, 1
        %v7452 = vshll.u32 %v7079, 16
        %v7454 = vrot.slane %v7452, 2
        %v7455 = vor.u32 %v7451, %v7454
        %v7456 = vsel %vm3357, %v7446, %v7455
        %v7458 = vshrl.u32 %v7080, 16
        %v7460 = vrot.slane %v7458, 1
        %v7461 = vshll.u32 %v7080, 16
        %v7463 = vrot.slane %v7461, 2
        %v7464 = vor.u32 %v7460, %v7463
        %v7465 = vsel %vm3357, %v7455, %v7464
        %v7467 = vshrl.u32 %v7081, 16
        %v7469 = vrot.slane %v7467, 1
        %v7470 = vshll.u32 %v7081, 16
        %v7472 = vrot.slane %v7470, 2
        %v7473 = vor.u32 %v7469, %v7472
        %v7474 = vsel %vm3357, %v7464, %v7473
        %v7476 = vshrl.u32 %v7082, 16
        %v7478 = vrot.slane %v7476, 1
        %v7479 = vshll.u32 %v7082, 16
        %v7481 = vrot.slane %v7479, 2
        %v7482 = vor.u32 %v7478, %v7481
        %v7483 = vsel %vm3357, %v7473, %v7482
        %v7485 = vshrl.u32 %v7331, 16
        %v7487 = vrot.slane %v7485, 1
        %v7488 = vshll.u32 %v7331, 16
        %v7490 = vrot.slane %v7488, 2
        %v7491 = vor.u32 %v7487, %v7490
        %v7492 = vsel %vm3357, %v7482, %v7491
        %v7526 = vunpack.c.l.b16 %v7313
        %v7527 = vunpack.c.l.b16 %v7314
        %v7528 = vunpack.c.l.b16 %v7315
        %v7529 = vunpack.c.l.b16 %v7316
        %v7530 = vunpack.c.l.b16 %v7317
        %v7531 = vunpack.c.l.b16 %v7318
        %v7532 = vunpack.c.l.b16 %v7319
        %v7533 = vunpack.c.l.b16 %v7320
        %v7534 = vunpack.c.l.b16 %v7321
        %v7535 = vunpack.c.l.b16 %v7322
        %v7536 = vunpack.c.l.b16 %v7323
        %v7537 = vunpack.c.l.b16 %v7324
        %v7538 = vunpack.c.l.b16 %v7325
        %v7539 = vunpack.c.l.b16 %v7326
        %v7540 = vunpack.c.l.b16 %v7327
        %v7541 = vunpack.c.l.b16 %v7328
        %v7542 = vpack.c.b16 %v7527, %v7526
        %v7543 = vpack.c.b16 %v7529, %v7528
        %v7544 = vpack.c.b16 %v7531, %v7530
        %v7545 = vpack.c.b16 %v7533, %v7532
        %v7546 = vpack.c.b16 %v7535, %v7534
        %v7547 = vpack.c.b16 %v7537, %v7536
        %v7548 = vpack.c.b16 %v7539, %v7538
        %v7549 = vpack.c.b16 %v7541, %v7540
        %7558 = vmatpush.bf16.msra.mxu0 %v7549
        %7559 = vmatpush.bf16.msra.mxu0 %v7548
        %7560 = vmatpush.bf16.msra.mxu0 %v7547
        %7561 = vmatpush.bf16.msra.mxu0 %v7546
        %7562 = vmatpush.bf16.msra.mxu0 %v7545
        %7563 = vmatpush.bf16.msra.mxu0 %v7544
        %7564 = vmatpush.bf16.msra.mxu0 %v7543
        %7565 = vmatpush.bf16.msra.mxu0 %v7542
        %7566 = vmatmul.bf16.gmra.mxu0 %v7348
        %v7567 = vpop.f32.mrf.mxu0
        %v7568 = vadd.f32 0.0, %v7567
        %v7569 = vpop.f32.mrf.mxu0
        %v7570 = vadd.f32 0.0, %v7569
        %7571 = vmatmul.bf16.gmra.mxu0 %v7357
        %v7572 = vpop.f32.mrf.mxu0
        %v7573 = vadd.f32 0.0, %v7572
        %v7574 = vpop.f32.mrf.mxu0
        %v7575 = vadd.f32 0.0, %v7574
        %7576 = vmatmul.bf16.gmra.mxu0 %v7366
        %v7577 = vpop.f32.mrf.mxu0
        %v7578 = vadd.f32 0.0, %v7577
        %v7579 = vpop.f32.mrf.mxu0
        %v7580 = vadd.f32 0.0, %v7579
        %7581 = vmatmul.bf16.gmra.mxu0 %v7375
        %v7582 = vpop.f32.mrf.mxu0
        %v7583 = vadd.f32 0.0, %v7582
        %v7584 = vpop.f32.mrf.mxu0
        %v7585 = vadd.f32 0.0, %v7584
        %7586 = vmatmul.bf16.gmra.mxu0 %v7384
        %v7587 = vpop.f32.mrf.mxu0
        %v7588 = vadd.f32 0.0, %v7587
        %v7589 = vpop.f32.mrf.mxu0
        %v7590 = vadd.f32 0.0, %v7589
        %7591 = vmatmul.bf16.gmra.mxu0 %v7393
        %v7592 = vpop.f32.mrf.mxu0
        %v7593 = vadd.f32 0.0, %v7592
        %v7594 = vpop.f32.mrf.mxu0
        %v7595 = vadd.f32 0.0, %v7594
        %7596 = vmatmul.bf16.gmra.mxu0 %v7402
        %v7597 = vpop.f32.mrf.mxu0
        %v7598 = vadd.f32 0.0, %v7597
        %v7599 = vpop.f32.mrf.mxu0
        %v7600 = vadd.f32 0.0, %v7599
        %7601 = vmatmul.bf16.gmra.mxu0 %v7411
        %v7602 = vpop.f32.mrf.mxu0
        %v7603 = vadd.f32 0.0, %v7602
        %v7604 = vpop.f32.mrf.mxu0
        %v7605 = vadd.f32 0.0, %v7604
        %7606 = vmatmul.bf16.gmra.mxu0 %v7420
        %v7607 = vpop.f32.mrf.mxu0
        %v7608 = vadd.f32 0.0, %v7607
        %v7609 = vpop.f32.mrf.mxu0
        %v7610 = vadd.f32 0.0, %v7609
        %7611 = vmatmul.bf16.gmra.mxu0 %v7429
        %v7612 = vpop.f32.mrf.mxu0
        %v7613 = vadd.f32 0.0, %v7612
        %v7614 = vpop.f32.mrf.mxu0
        %v7615 = vadd.f32 0.0, %v7614
        %7616 = vmatmul.bf16.gmra.mxu0 %v7438
        %v7617 = vpop.f32.mrf.mxu0
        %v7618 = vadd.f32 0.0, %v7617
        %v7619 = vpop.f32.mrf.mxu0
        %v7620 = vadd.f32 0.0, %v7619
        %7621 = vmatmul.bf16.gmra.mxu0 %v7447
        %v7622 = vpop.f32.mrf.mxu0
        %v7623 = vadd.f32 0.0, %v7622
        %v7624 = vpop.f32.mrf.mxu0
        %v7625 = vadd.f32 0.0, %v7624
        %7626 = vmatmul.bf16.gmra.mxu0 %v7456
        %v7627 = vpop.f32.mrf.mxu0
        %v7628 = vadd.f32 0.0, %v7627
        %v7629 = vpop.f32.mrf.mxu0
        %v7630 = vadd.f32 0.0, %v7629
        %7631 = vmatmul.bf16.gmra.mxu0 %v7465
        %v7632 = vpop.f32.mrf.mxu0
        %v7633 = vadd.f32 0.0, %v7632
        %v7634 = vpop.f32.mrf.mxu0
        %v7635 = vadd.f32 0.0, %v7634
        %7636 = vmatmul.bf16.gmra.mxu0 %v7474
        %v7637 = vpop.f32.mrf.mxu0
        %v7638 = vadd.f32 0.0, %v7637
        %v7639 = vpop.f32.mrf.mxu0
        %v7640 = vadd.f32 0.0, %v7639
        %7641 = vmatmul.bf16.gmra.mxu0 %v7483
        %v7642 = vpop.f32.mrf.mxu0
        %v7643 = vadd.f32 0.0, %v7642
        %v7644 = vpop.f32.mrf.mxu0
        %v7645 = vadd.f32 0.0, %v7644
        %7646 = vmatmul.bf16.gmra.mxu0 %v7492
        %v7647 = vpop.f32.mrf.mxu0
        %v7648 = vadd.f32 0.0, %v7647
        %v7649 = vpop.f32.mrf.mxu0
        %v7650 = vadd.f32 0.0, %v7649
        %7651 = vdwg.mxu0
        %v7652 = vadd.f32 %v7278, %v7568
        %v7653 = vadd.f32 %v7279, %v7570
        %v7654 = vadd.f32 %v7280, %v7573
        %v7655 = vadd.f32 %v7281, %v7575
        %v7656 = vadd.f32 %v7282, %v7578
        %v7657 = vadd.f32 %v7283, %v7580
        %v7658 = vadd.f32 %v7284, %v7583
        %v7659 = vadd.f32 %v7285, %v7585
        %v7660 = vadd.f32 %v7286, %v7588
        %v7661 = vadd.f32 %v7287, %v7590
        %v7662 = vadd.f32 %v7288, %v7593
        %v7663 = vadd.f32 %v7289, %v7595
        %v7664 = vadd.f32 %v7290, %v7598
        %v7665 = vadd.f32 %v7291, %v7600
        %v7666 = vadd.f32 %v7292, %v7603
        %v7667 = vadd.f32 %v7293, %v7605
        %v7668 = vadd.f32 %v7294, %v7608
        %v7669 = vadd.f32 %v7295, %v7610
        %v7670 = vadd.f32 %v7296, %v7613
        %v7671 = vadd.f32 %v7297, %v7615
        %v7672 = vadd.f32 %v7298, %v7618
        %v7673 = vadd.f32 %v7299, %v7620
        %v7674 = vadd.f32 %v7300, %v7623
        %v7675 = vadd.f32 %v7301, %v7625
        %v7676 = vadd.f32 %v7302, %v7628
        %v7677 = vadd.f32 %v7303, %v7630
        %v7678 = vadd.f32 %v7304, %v7633
        %v7679 = vadd.f32 %v7305, %v7635
        %v7680 = vadd.f32 %v7306, %v7638
        %v7681 = vadd.f32 %v7307, %v7640
        %v7682 = vadd.f32 %v7308, %v7643
        %v7683 = vadd.f32 %v7309, %v7645
        %v7684 = vadd.f32 %v7310, %v7648
        %v7685 = vadd.f32 %v7311, %v7650
        %v7686 = vld [vmem:[#allocation4 + $0x10] sm:$0xc]
        %v7687 = vld [vmem:[#allocation14 + $0x140] sm:$0xf]
        %v7688 = vld [vmem:[#allocation14 + $0x144] sm:$0xf]
        %v7689 = vld [vmem:[#allocation14 + $0x148] sm:$0xf]
        %v7690 = vld [vmem:[#allocation14 + $0x14c] sm:$0xf]
        %v7691 = vld [vmem:[#allocation14 + $0x150] sm:$0xf]
        %v7692 = vld [vmem:[#allocation14 + $0x154] sm:$0xf]
        %v7693 = vld [vmem:[#allocation14 + $0x158] sm:$0xf]
        %v7694 = vld [vmem:[#allocation14 + $0x15c] sm:$0xf]
        %v7695 = vld [vmem:[#allocation14 + $0x160] sm:$0xf]
        %v7696 = vld [vmem:[#allocation14 + $0x164] sm:$0xf]
        %v7697 = vld [vmem:[#allocation14 + $0x168] sm:$0xf]
        %v7698 = vld [vmem:[#allocation14 + $0x16c] sm:$0xf]
        %v7699 = vld [vmem:[#allocation14 + $0x170] sm:$0xf]
        %v7700 = vld [vmem:[#allocation14 + $0x174] sm:$0xf]
        %v7701 = vld [vmem:[#allocation14 + $0x178] sm:$0xf]
        %v7702 = vld [vmem:[#allocation14 + $0x17c] sm:$0xf]
        %v7704 = vunpack.c.l.b16 %v7686
        %v7705 = vpack.c.b16 %v7032, %v7704
        %v7706 = vrot.slane %v7705, 2
        %v7707 = vrot.slane %v7067, 2
        %v7708 = vsel %vm3806, %v7706, %v7707
        %v7709 = vrot.slane %v7068, 2
        %v7710 = vsel %vm3806, %v7707, %v7709
        %v7711 = vrot.slane %v7069, 2
        %v7712 = vsel %vm3806, %v7709, %v7711
        %v7713 = vrot.slane %v7070, 2
        %v7714 = vsel %vm3806, %v7711, %v7713
        %v7715 = vrot.slane %v7071, 2
        %v7716 = vsel %vm3806, %v7713, %v7715
        %v7717 = vrot.slane %v7072, 2
        %v7718 = vsel %vm3806, %v7715, %v7717
        %v7719 = vrot.slane %v7073, 2
        %v7720 = vsel %vm3806, %v7717, %v7719
        %v7721 = vrot.slane %v7074, 2
        %v7722 = vsel %vm3806, %v7719, %v7721
        %v7723 = vrot.slane %v7075, 2
        %v7724 = vsel %vm3806, %v7721, %v7723
        %v7725 = vrot.slane %v7076, 2
        %v7726 = vsel %vm3806, %v7723, %v7725
        %v7727 = vrot.slane %v7077, 2
        %v7728 = vsel %vm3806, %v7725, %v7727
        %v7729 = vrot.slane %v7078, 2
        %v7730 = vsel %vm3806, %v7727, %v7729
        %v7731 = vrot.slane %v7079, 2
        %v7732 = vsel %vm3806, %v7729, %v7731
        %v7733 = vrot.slane %v7080, 2
        %v7734 = vsel %vm3806, %v7731, %v7733
        %v7735 = vrot.slane %v7081, 2
        %v7736 = vsel %vm3806, %v7733, %v7735
        %v7737 = vrot.slane %v7082, 2
        %v7738 = vsel %vm3806, %v7735, %v7737
        %v7739 = vrot.slane %v7331, 2
        %v7740 = vsel %vm3806, %v7737, %v7739
        %v7774 = vunpack.c.l.b16 %v7687
        %v7775 = vunpack.c.l.b16 %v7688
        %v7776 = vunpack.c.l.b16 %v7689
        %v7777 = vunpack.c.l.b16 %v7690
        %v7778 = vunpack.c.l.b16 %v7691
        %v7779 = vunpack.c.l.b16 %v7692
        %v7780 = vunpack.c.l.b16 %v7693
        %v7781 = vunpack.c.l.b16 %v7694
        %v7782 = vunpack.c.l.b16 %v7695
        %v7783 = vunpack.c.l.b16 %v7696
        %v7784 = vunpack.c.l.b16 %v7697
        %v7785 = vunpack.c.l.b16 %v7698
        %v7786 = vunpack.c.l.b16 %v7699
        %v7787 = vunpack.c.l.b16 %v7700
        %v7788 = vunpack.c.l.b16 %v7701
        %v7789 = vunpack.c.l.b16 %v7702
        %v7790 = vpack.c.b16 %v7775, %v7774
        %v7791 = vpack.c.b16 %v7777, %v7776
        %v7792 = vpack.c.b16 %v7779, %v7778
        %v7793 = vpack.c.b16 %v7781, %v7780
        %v7794 = vpack.c.b16 %v7783, %v7782
        %v7795 = vpack.c.b16 %v7785, %v7784
        %v7796 = vpack.c.b16 %v7787, %v7786
        %v7797 = vpack.c.b16 %v7789, %v7788
        %7806 = vmatpush.bf16.msra.mxu0 %v7797
        %7807 = vmatpush.bf16.msra.mxu0 %v7796
        %7808 = vmatpush.bf16.msra.mxu0 %v7795
        %7809 = vmatpush.bf16.msra.mxu0 %v7794
        %7810 = vmatpush.bf16.msra.mxu0 %v7793
        %7811 = vmatpush.bf16.msra.mxu0 %v7792
        %7812 = vmatpush.bf16.msra.mxu0 %v7791
        %7813 = vmatpush.bf16.msra.mxu0 %v7790
        %7814 = vmatmul.bf16.gmra.mxu0 %v7708
        %v7815 = vpop.f32.mrf.mxu0
        %v7816 = vadd.f32 0.0, %v7815
        %v7817 = vpop.f32.mrf.mxu0
        %v7818 = vadd.f32 0.0, %v7817
        %7819 = vmatmul.bf16.gmra.mxu0 %v7710
        %v7820 = vpop.f32.mrf.mxu0
        %v7821 = vadd.f32 0.0, %v7820
        %v7822 = vpop.f32.mrf.mxu0
        %v7823 = vadd.f32 0.0, %v7822
        %7824 = vmatmul.bf16.gmra.mxu0 %v7712
        %v7825 = vpop.f32.mrf.mxu0
        %v7826 = vadd.f32 0.0, %v7825
        %v7827 = vpop.f32.mrf.mxu0
        %v7828 = vadd.f32 0.0, %v7827
        %7829 = vmatmul.bf16.gmra.mxu0 %v7714
        %v7830 = vpop.f32.mrf.mxu0
        %v7831 = vadd.f32 0.0, %v7830
        %v7832 = vpop.f32.mrf.mxu0
        %v7833 = vadd.f32 0.0, %v7832
        %7834 = vmatmul.bf16.gmra.mxu0 %v7716
        %v7835 = vpop.f32.mrf.mxu0
        %v7836 = vadd.f32 0.0, %v7835
        %v7837 = vpop.f32.mrf.mxu0
        %v7838 = vadd.f32 0.0, %v7837
        %7839 = vmatmul.bf16.gmra.mxu0 %v7718
        %v7840 = vpop.f32.mrf.mxu0
        %v7841 = vadd.f32 0.0, %v7840
        %v7842 = vpop.f32.mrf.mxu0
        %v7843 = vadd.f32 0.0, %v7842
        %7844 = vmatmul.bf16.gmra.mxu0 %v7720
        %v7845 = vpop.f32.mrf.mxu0
        %v7846 = vadd.f32 0.0, %v7845
        %v7847 = vpop.f32.mrf.mxu0
        %v7848 = vadd.f32 0.0, %v7847
        %7849 = vmatmul.bf16.gmra.mxu0 %v7722
        %v7850 = vpop.f32.mrf.mxu0
        %v7851 = vadd.f32 0.0, %v7850
        %v7852 = vpop.f32.mrf.mxu0
        %v7853 = vadd.f32 0.0, %v7852
        %7854 = vmatmul.bf16.gmra.mxu0 %v7724
        %v7855 = vpop.f32.mrf.mxu0
        %v7856 = vadd.f32 0.0, %v7855
        %v7857 = vpop.f32.mrf.mxu0
        %v7858 = vadd.f32 0.0, %v7857
        %7859 = vmatmul.bf16.gmra.mxu0 %v7726
        %v7860 = vpop.f32.mrf.mxu0
        %v7861 = vadd.f32 0.0, %v7860
        %v7862 = vpop.f32.mrf.mxu0
        %v7863 = vadd.f32 0.0, %v7862
        %7864 = vmatmul.bf16.gmra.mxu0 %v7728
        %v7865 = vpop.f32.mrf.mxu0
        %v7866 = vadd.f32 0.0, %v7865
        %v7867 = vpop.f32.mrf.mxu0
        %v7868 = vadd.f32 0.0, %v7867
        %7869 = vmatmul.bf16.gmra.mxu0 %v7730
        %v7870 = vpop.f32.mrf.mxu0
        %v7871 = vadd.f32 0.0, %v7870
        %v7872 = vpop.f32.mrf.mxu0
        %v7873 = vadd.f32 0.0, %v7872
        %7874 = vmatmul.bf16.gmra.mxu0 %v7732
        %v7875 = vpop.f32.mrf.mxu0
        %v7876 = vadd.f32 0.0, %v7875
        %v7877 = vpop.f32.mrf.mxu0
        %v7878 = vadd.f32 0.0, %v7877
        %7879 = vmatmul.bf16.gmra.mxu0 %v7734
        %v7880 = vpop.f32.mrf.mxu0
        %v7881 = vadd.f32 0.0, %v7880
        %v7882 = vpop.f32.mrf.mxu0
        %v7883 = vadd.f32 0.0, %v7882
        %7884 = vmatmul.bf16.gmra.mxu0 %v7736
        %v7885 = vpop.f32.mrf.mxu0
        %v7886 = vadd.f32 0.0, %v7885
        %v7887 = vpop.f32.mrf.mxu0
        %v7888 = vadd.f32 0.0, %v7887
        %7889 = vmatmul.bf16.gmra.mxu0 %v7738
        %v7890 = vpop.f32.mrf.mxu0
        %v7891 = vadd.f32 0.0, %v7890
        %v7892 = vpop.f32.mrf.mxu0
        %v7893 = vadd.f32 0.0, %v7892
        %7894 = vmatmul.bf16.gmra.mxu0 %v7740
        %v7895 = vpop.f32.mrf.mxu0
        %v7896 = vadd.f32 0.0, %v7895
        %v7897 = vpop.f32.mrf.mxu0
        %v7898 = vadd.f32 0.0, %v7897
        %7899 = vdwg.mxu0
        %v7900 = vadd.f32 %v7652, %v7816
        %v7901 = vadd.f32 %v7653, %v7818
        %v7902 = vadd.f32 %v7654, %v7821
        %v7903 = vadd.f32 %v7655, %v7823
        %v7904 = vadd.f32 %v7656, %v7826
        %v7905 = vadd.f32 %v7657, %v7828
        %v7906 = vadd.f32 %v7658, %v7831
        %v7907 = vadd.f32 %v7659, %v7833
        %v7908 = vadd.f32 %v7660, %v7836
        %v7909 = vadd.f32 %v7661, %v7838
        %v7910 = vadd.f32 %v7662, %v7841
        %v7911 = vadd.f32 %v7663, %v7843
        %v7912 = vadd.f32 %v7664, %v7846
        %v7913 = vadd.f32 %v7665, %v7848
        %v7914 = vadd.f32 %v7666, %v7851
        %v7915 = vadd.f32 %v7667, %v7853
        %v7916 = vadd.f32 %v7668, %v7856
        %v7917 = vadd.f32 %v7669, %v7858
        %v7918 = vadd.f32 %v7670, %v7861
        %v7919 = vadd.f32 %v7671, %v7863
        %v7920 = vadd.f32 %v7672, %v7866
        %v7921 = vadd.f32 %v7673, %v7868
        %v7922 = vadd.f32 %v7674, %v7871
        %v7923 = vadd.f32 %v7675, %v7873
        %v7924 = vadd.f32 %v7676, %v7876
        %v7925 = vadd.f32 %v7677, %v7878
        %v7926 = vadd.f32 %v7678, %v7881
        %v7927 = vadd.f32 %v7679, %v7883
        %v7928 = vadd.f32 %v7680, %v7886
        %v7929 = vadd.f32 %v7681, %v7888
        %v7930 = vadd.f32 %v7682, %v7891
        %v7931 = vadd.f32 %v7683, %v7893
        %v7932 = vadd.f32 %v7684, %v7896
        %v7933 = vadd.f32 %v7685, %v7898
        %v7934 = vld [vmem:[#allocation4 + $0x20] sm:$0xc]
        %v7935 = vld [vmem:[#allocation4 + $0x24] sm:$0xf]
        %v7936 = vld [vmem:[#allocation4 + $0x28] sm:$0xf]
        %v7937 = vld [vmem:[#allocation4 + $0x2c] sm:$0xf]
        %v7938 = vld [vmem:[#allocation4 + $0x30] sm:$0xf]
        %v7939 = vld [vmem:[#allocation4 + $0x34] sm:$0xf]
        %v7940 = vld [vmem:[#allocation4 + $0x38] sm:$0xf]
        %v7941 = vld [vmem:[#allocation4 + $0x3c] sm:$0xf]
        %v7942 = vld [vmem:[#allocation4 + $0x40] sm:$0xf]
        %v7943 = vld [vmem:[#allocation4 + $0x44] sm:$0xf]
        %v7944 = vld [vmem:[#allocation4 + $0x48] sm:$0xf]
        %v7945 = vld [vmem:[#allocation4 + $0x4c] sm:$0xf]
        %v7946 = vld [vmem:[#allocation4 + $0x50] sm:$0xf]
        %v7947 = vld [vmem:[#allocation4 + $0x54] sm:$0xf]
        %v7948 = vld [vmem:[#allocation4 + $0x58] sm:$0xf]
        %v7949 = vld [vmem:[#allocation4 + $0x5c] sm:$0xf]
        %v7950 = vld [vmem:[#allocation4 + $0x60] sm:$0xf]
        %v7951 = vld [vmem:[#allocation4 + $0x64] sm:$0xf]
        %v7952 = vld [vmem:[#allocation4 + $0x68] sm:$0xf]
        %v7953 = vld [vmem:[#allocation4 + $0x6c] sm:$0xf]
        %v7954 = vld [vmem:[#allocation4 + $0x70] sm:$0xf]
        %v7955 = vld [vmem:[#allocation4 + $0x74] sm:$0xf]
        %v7956 = vld [vmem:[#allocation4 + $0x78] sm:$0xf]
        %v7957 = vld [vmem:[#allocation4 + $0x7c] sm:$0xf]
        %v7958 = vld [vmem:[#allocation4 + $0x80] sm:$0xf]
        %v7959 = vld [vmem:[#allocation4 + $0x84] sm:$0xf]
        %v7960 = vld [vmem:[#allocation4 + $0x88] sm:$0xf]
        %v7961 = vld [vmem:[#allocation4 + $0x8c] sm:$0xf]
        %v7962 = vld [vmem:[#allocation4 + $0x90] sm:$0xf]
        %v7963 = vld [vmem:[#allocation4 + $0x94] sm:$0xf]
        %v7964 = vld [vmem:[#allocation4 + $0x98] sm:$0xf]
        %v7965 = vld [vmem:[#allocation4 + $0x9c] sm:$0xf]
        %v7966 = vld [vmem:[#allocation4 + $0xa0] sm:$0xf]
        %v7967 = vld [vmem:[#allocation4 + $0xa4] sm:$0xf]
        %v7968 = vld [vmem:[#allocation4 + $0xa8] sm:$0x3]
        %v7969 = vld [vmem:[#allocation14 + $0x180] sm:$0xf]
        %v7970 = vld [vmem:[#allocation14 + $0x184] sm:$0xf]
        %v7971 = vld [vmem:[#allocation14 + $0x188] sm:$0xf]
        %v7972 = vld [vmem:[#allocation14 + $0x18c] sm:$0xf]
        %v7973 = vld [vmem:[#allocation14 + $0x190] sm:$0xf]
        %v7974 = vld [vmem:[#allocation14 + $0x194] sm:$0xf]
        %v7975 = vld [vmem:[#allocation14 + $0x198] sm:$0xf]
        %v7976 = vld [vmem:[#allocation14 + $0x19c] sm:$0xf]
        %v7977 = vld [vmem:[#allocation14 + $0x1a0] sm:$0xf]
        %v7978 = vld [vmem:[#allocation14 + $0x1a4] sm:$0xf]
        %v7979 = vld [vmem:[#allocation14 + $0x1a8] sm:$0xf]
        %v7980 = vld [vmem:[#allocation14 + $0x1ac] sm:$0xf]
        %v7981 = vld [vmem:[#allocation14 + $0x1b0] sm:$0xf]
        %v7982 = vld [vmem:[#allocation14 + $0x1b4] sm:$0xf]
        %v7983 = vld [vmem:[#allocation14 + $0x1b8] sm:$0xf]
        %v7984 = vld [vmem:[#allocation14 + $0x1bc] sm:$0xf]
        %v8020 = vunpack.c.l.b16 %v7934
        %v8021 = vunpack.c.l.b16 %v7935
        %v8022 = vunpack.c.l.b16 %v7936
        %v8023 = vunpack.c.l.b16 %v7937
        %v8024 = vunpack.c.l.b16 %v7938
        %v8025 = vunpack.c.l.b16 %v7939
        %v8026 = vunpack.c.l.b16 %v7940
        %v8027 = vunpack.c.l.b16 %v7941
        %v8028 = vunpack.c.l.b16 %v7942
        %v8029 = vunpack.c.l.b16 %v7943
        %v8030 = vunpack.c.l.b16 %v7944
        %v8031 = vunpack.c.l.b16 %v7945
        %v8032 = vunpack.c.l.b16 %v7946
        %v8033 = vunpack.c.l.b16 %v7947
        %v8034 = vunpack.c.l.b16 %v7948
        %v8035 = vunpack.c.l.b16 %v7949
        %v8036 = vunpack.c.l.b16 %v7950
        %v8037 = vunpack.c.l.b16 %v7951
        %v8038 = vunpack.c.l.b16 %v7952
        %v8039 = vunpack.c.l.b16 %v7953
        %v8040 = vunpack.c.l.b16 %v7954
        %v8041 = vunpack.c.l.b16 %v7955
        %v8042 = vunpack.c.l.b16 %v7956
        %v8043 = vunpack.c.l.b16 %v7957
        %v8044 = vunpack.c.l.b16 %v7958
        %v8045 = vunpack.c.l.b16 %v7959
        %v8046 = vunpack.c.l.b16 %v7960
        %v8047 = vunpack.c.l.b16 %v7961
        %v8048 = vunpack.c.l.b16 %v7962
        %v8049 = vunpack.c.l.b16 %v7963
        %v8050 = vunpack.c.l.b16 %v7964
        %v8051 = vunpack.c.l.b16 %v7965
        %v8052 = vunpack.c.l.b16 %v7966
        %v8053 = vunpack.c.l.b16 %v7967
        %v8054 = vunpack.c.l.b16 %v7968
        %v8055 = vpack.c.b16 %v8021, %v8020
        %v8056 = vpack.c.b16 %v8023, %v8022
        %v8057 = vpack.c.b16 %v8025, %v8024
        %v8058 = vpack.c.b16 %v8027, %v8026
        %v8059 = vpack.c.b16 %v8029, %v8028
        %v8060 = vpack.c.b16 %v8031, %v8030
        %v8061 = vpack.c.b16 %v8033, %v8032
        %v8062 = vpack.c.b16 %v8035, %v8034
        %v8063 = vpack.c.b16 %v8037, %v8036
        %v8064 = vpack.c.b16 %v8039, %v8038
        %v8065 = vpack.c.b16 %v8041, %v8040
        %v8066 = vpack.c.b16 %v8043, %v8042
        %v8067 = vpack.c.b16 %v8045, %v8044
        %v8068 = vpack.c.b16 %v8047, %v8046
        %v8069 = vpack.c.b16 %v8049, %v8048
        %v8070 = vpack.c.b16 %v8051, %v8050
        %v8071 = vpack.c.b16 %v8053, %v8052
        %v8072 = vpack.c.b16 %v8054, %v8054
        %v8073 = vrot.slane %v8055, 2
        %v8074 = vrot.slane %v8056, 2
        %v8075 = vsel %vm3806, %v8073, %v8074
        %v8076 = vrot.slane %v8057, 2
        %v8077 = vsel %vm3806, %v8074, %v8076
        %v8078 = vrot.slane %v8058, 2
        %v8079 = vsel %vm3806, %v8076, %v8078
        %v8080 = vrot.slane %v8059, 2
        %v8081 = vsel %vm3806, %v8078, %v8080
        %v8082 = vrot.slane %v8060, 2
        %v8083 = vsel %vm3806, %v8080, %v8082
        %v8084 = vrot.slane %v8061, 2
        %v8085 = vsel %vm3806, %v8082, %v8084
        %v8086 = vrot.slane %v8062, 2
        %v8087 = vsel %vm3806, %v8084, %v8086
        %v8088 = vrot.slane %v8063, 2
        %v8089 = vsel %vm3806, %v8086, %v8088
        %v8090 = vrot.slane %v8064, 2
        %v8091 = vsel %vm3806, %v8088, %v8090
        %v8092 = vrot.slane %v8065, 2
        %v8093 = vsel %vm3806, %v8090, %v8092
        %v8094 = vrot.slane %v8066, 2
        %v8095 = vsel %vm3806, %v8092, %v8094
        %v8096 = vrot.slane %v8067, 2
        %v8097 = vsel %vm3806, %v8094, %v8096
        %v8098 = vrot.slane %v8068, 2
        %v8099 = vsel %vm3806, %v8096, %v8098
        %v8100 = vrot.slane %v8069, 2
        %v8101 = vsel %vm3806, %v8098, %v8100
        %v8102 = vrot.slane %v8070, 2
        %v8103 = vsel %vm3806, %v8100, %v8102
        %v8104 = vrot.slane %v8071, 2
        %v8105 = vsel %vm3806, %v8102, %v8104
        %v8106 = vrot.slane %v8072, 2
        %v8107 = vsel %vm3806, %v8104, %v8106
        %v8141 = vunpack.c.l.b16 %v7969
        %v8142 = vunpack.c.l.b16 %v7970
        %v8143 = vunpack.c.l.b16 %v7971
        %v8144 = vunpack.c.l.b16 %v7972
        %v8145 = vunpack.c.l.b16 %v7973
        %v8146 = vunpack.c.l.b16 %v7974
        %v8147 = vunpack.c.l.b16 %v7975
        %v8148 = vunpack.c.l.b16 %v7976
        %v8149 = vunpack.c.l.b16 %v7977
        %v8150 = vunpack.c.l.b16 %v7978
        %v8151 = vunpack.c.l.b16 %v7979
        %v8152 = vunpack.c.l.b16 %v7980
        %v8153 = vunpack.c.l.b16 %v7981
        %v8154 = vunpack.c.l.b16 %v7982
        %v8155 = vunpack.c.l.b16 %v7983
        %v8156 = vunpack.c.l.b16 %v7984
        %v8157 = vpack.c.b16 %v8142, %v8141
        %v8158 = vpack.c.b16 %v8144, %v8143
        %v8159 = vpack.c.b16 %v8146, %v8145
        %v8160 = vpack.c.b16 %v8148, %v8147
        %v8161 = vpack.c.b16 %v8150, %v8149
        %v8162 = vpack.c.b16 %v8152, %v8151
        %v8163 = vpack.c.b16 %v8154, %v8153
        %v8164 = vpack.c.b16 %v8156, %v8155
        %8173 = vmatpush.bf16.msra.mxu0 %v8164
        %8174 = vmatpush.bf16.msra.mxu0 %v8163
        %8175 = vmatpush.bf16.msra.mxu0 %v8162
        %8176 = vmatpush.bf16.msra.mxu0 %v8161
        %8177 = vmatpush.bf16.msra.mxu0 %v8160
        %8178 = vmatpush.bf16.msra.mxu0 %v8159
        %8179 = vmatpush.bf16.msra.mxu0 %v8158
        %8180 = vmatpush.bf16.msra.mxu0 %v8157
        %8181 = vmatmul.bf16.gmra.mxu0 %v8075
        %v8182 = vpop.f32.mrf.mxu0
        %v8183 = vadd.f32 0.0, %v8182
        %v8184 = vpop.f32.mrf.mxu0
        %v8185 = vadd.f32 0.0, %v8184
        %8186 = vmatmul.bf16.gmra.mxu0 %v8077
        %v8187 = vpop.f32.mrf.mxu0
        %v8188 = vadd.f32 0.0, %v8187
        %v8189 = vpop.f32.mrf.mxu0
        %v8190 = vadd.f32 0.0, %v8189
        %8191 = vmatmul.bf16.gmra.mxu0 %v8079
        %v8192 = vpop.f32.mrf.mxu0
        %v8193 = vadd.f32 0.0, %v8192
        %v8194 = vpop.f32.mrf.mxu0
        %v8195 = vadd.f32 0.0, %v8194
        %8196 = vmatmul.bf16.gmra.mxu0 %v8081
        %v8197 = vpop.f32.mrf.mxu0
        %v8198 = vadd.f32 0.0, %v8197
        %v8199 = vpop.f32.mrf.mxu0
        %v8200 = vadd.f32 0.0, %v8199
        %8201 = vmatmul.bf16.gmra.mxu0 %v8083
        %v8202 = vpop.f32.mrf.mxu0
        %v8203 = vadd.f32 0.0, %v8202
        %v8204 = vpop.f32.mrf.mxu0
        %v8205 = vadd.f32 0.0, %v8204
        %8206 = vmatmul.bf16.gmra.mxu0 %v8085
        %v8207 = vpop.f32.mrf.mxu0
        %v8208 = vadd.f32 0.0, %v8207
        %v8209 = vpop.f32.mrf.mxu0
        %v8210 = vadd.f32 0.0, %v8209
        %8211 = vmatmul.bf16.gmra.mxu0 %v8087
        %v8212 = vpop.f32.mrf.mxu0
        %v8213 = vadd.f32 0.0, %v8212
        %v8214 = vpop.f32.mrf.mxu0
        %v8215 = vadd.f32 0.0, %v8214
        %8216 = vmatmul.bf16.gmra.mxu0 %v8089
        %v8217 = vpop.f32.mrf.mxu0
        %v8218 = vadd.f32 0.0, %v8217
        %v8219 = vpop.f32.mrf.mxu0
        %v8220 = vadd.f32 0.0, %v8219
        %8221 = vmatmul.bf16.gmra.mxu0 %v8091
        %v8222 = vpop.f32.mrf.mxu0
        %v8223 = vadd.f32 0.0, %v8222
        %v8224 = vpop.f32.mrf.mxu0
        %v8225 = vadd.f32 0.0, %v8224
        %8226 = vmatmul.bf16.gmra.mxu0 %v8093
        %v8227 = vpop.f32.mrf.mxu0
        %v8228 = vadd.f32 0.0, %v8227
        %v8229 = vpop.f32.mrf.mxu0
        %v8230 = vadd.f32 0.0, %v8229
        %8231 = vmatmul.bf16.gmra.mxu0 %v8095
        %v8232 = vpop.f32.mrf.mxu0
        %v8233 = vadd.f32 0.0, %v8232
        %v8234 = vpop.f32.mrf.mxu0
        %v8235 = vadd.f32 0.0, %v8234
        %8236 = vmatmul.bf16.gmra.mxu0 %v8097
        %v8237 = vpop.f32.mrf.mxu0
        %v8238 = vadd.f32 0.0, %v8237
        %v8239 = vpop.f32.mrf.mxu0
        %v8240 = vadd.f32 0.0, %v8239
        %8241 = vmatmul.bf16.gmra.mxu0 %v8099
        %v8242 = vpop.f32.mrf.mxu0
        %v8243 = vadd.f32 0.0, %v8242
        %v8244 = vpop.f32.mrf.mxu0
        %v8245 = vadd.f32 0.0, %v8244
        %8246 = vmatmul.bf16.gmra.mxu0 %v8101
        %v8247 = vpop.f32.mrf.mxu0
        %v8248 = vadd.f32 0.0, %v8247
        %v8249 = vpop.f32.mrf.mxu0
        %v8250 = vadd.f32 0.0, %v8249
        %8251 = vmatmul.bf16.gmra.mxu0 %v8103
        %v8252 = vpop.f32.mrf.mxu0
        %v8253 = vadd.f32 0.0, %v8252
        %v8254 = vpop.f32.mrf.mxu0
        %v8255 = vadd.f32 0.0, %v8254
        %8256 = vmatmul.bf16.gmra.mxu0 %v8105
        %v8257 = vpop.f32.mrf.mxu0
        %v8258 = vadd.f32 0.0, %v8257
        %v8259 = vpop.f32.mrf.mxu0
        %v8260 = vadd.f32 0.0, %v8259
        %8261 = vmatmul.bf16.gmra.mxu0 %v8107
        %v8262 = vpop.f32.mrf.mxu0
        %v8263 = vadd.f32 0.0, %v8262
        %v8264 = vpop.f32.mrf.mxu0
        %v8265 = vadd.f32 0.0, %v8264
        %8266 = vdwg.mxu0
        %v8267 = vadd.f32 %v7900, %v8183
        %v8268 = vadd.f32 %v7901, %v8185
        %v8269 = vadd.f32 %v7902, %v8188
        %v8270 = vadd.f32 %v7903, %v8190
        %v8271 = vadd.f32 %v7904, %v8193
        %v8272 = vadd.f32 %v7905, %v8195
        %v8273 = vadd.f32 %v7906, %v8198
        %v8274 = vadd.f32 %v7907, %v8200
        %v8275 = vadd.f32 %v7908, %v8203
        %v8276 = vadd.f32 %v7909, %v8205
        %v8277 = vadd.f32 %v7910, %v8208
        %v8278 = vadd.f32 %v7911, %v8210
        %v8279 = vadd.f32 %v7912, %v8213
        %v8280 = vadd.f32 %v7913, %v8215
        %v8281 = vadd.f32 %v7914, %v8218
        %v8282 = vadd.f32 %v7915, %v8220
        %v8283 = vadd.f32 %v7916, %v8223
        %v8284 = vadd.f32 %v7917, %v8225
        %v8285 = vadd.f32 %v7918, %v8228
        %v8286 = vadd.f32 %v7919, %v8230
        %v8287 = vadd.f32 %v7920, %v8233
        %v8288 = vadd.f32 %v7921, %v8235
        %v8289 = vadd.f32 %v7922, %v8238
        %v8290 = vadd.f32 %v7923, %v8240
        %v8291 = vadd.f32 %v7924, %v8243
        %v8292 = vadd.f32 %v7925, %v8245
        %v8293 = vadd.f32 %v7926, %v8248
        %v8294 = vadd.f32 %v7927, %v8250
        %v8295 = vadd.f32 %v7928, %v8253
        %v8296 = vadd.f32 %v7929, %v8255
        %v8297 = vadd.f32 %v7930, %v8258
        %v8298 = vadd.f32 %v7931, %v8260
        %v8299 = vadd.f32 %v7932, %v8263
        %v8300 = vadd.f32 %v7933, %v8265
        %v8301 = vld [vmem:[#allocation4 + $0xa8] sm:$0x7]
        %v8302 = vld [vmem:[#allocation14 + $0x1c0] sm:$0xf]
        %v8303 = vld [vmem:[#allocation14 + $0x1c4] sm:$0xf]
        %v8304 = vld [vmem:[#allocation14 + $0x1c8] sm:$0xf]
        %v8305 = vld [vmem:[#allocation14 + $0x1cc] sm:$0xf]
        %v8306 = vld [vmem:[#allocation14 + $0x1d0] sm:$0xf]
        %v8307 = vld [vmem:[#allocation14 + $0x1d4] sm:$0xf]
        %v8308 = vld [vmem:[#allocation14 + $0x1d8] sm:$0xf]
        %v8309 = vld [vmem:[#allocation14 + $0x1dc] sm:$0xf]
        %v8310 = vld [vmem:[#allocation14 + $0x1e0] sm:$0xf]
        %v8311 = vld [vmem:[#allocation14 + $0x1e4] sm:$0xf]
        %v8312 = vld [vmem:[#allocation14 + $0x1e8] sm:$0xf]
        %v8313 = vld [vmem:[#allocation14 + $0x1ec] sm:$0xf]
        %v8314 = vld [vmem:[#allocation14 + $0x1f0] sm:$0xf]
        %v8315 = vld [vmem:[#allocation14 + $0x1f4] sm:$0xf]
        %v8316 = vld [vmem:[#allocation14 + $0x1f8] sm:$0xf]
        %v8317 = vld [vmem:[#allocation14 + $0x1fc] sm:$0xf]
        %v8319 = vunpack.c.l.b16 %v8301
        %v8320 = vpack.c.b16 %v8319, %v8319
        %v8322 = vshrl.u32 %v8055, 16
        %v8324 = vrot.slane %v8322, 2
        %v8325 = vshll.u32 %v8055, 16
        %v8327 = vrot.slane %v8325, 3
        %v8328 = vor.u32 %v8324, %v8327
        %v8330 = vshrl.u32 %v8056, 16
        %v8332 = vrot.slane %v8330, 2
        %v8333 = vshll.u32 %v8056, 16
        %v8335 = vrot.slane %v8333, 3
        %v8336 = vor.u32 %v8332, %v8335
        %v8337 = vsel %vm4692, %v8328, %v8336
        %v8339 = vshrl.u32 %v8057, 16
        %v8341 = vrot.slane %v8339, 2
        %v8342 = vshll.u32 %v8057, 16
        %v8344 = vrot.slane %v8342, 3
        %v8345 = vor.u32 %v8341, %v8344
        %v8346 = vsel %vm4692, %v8336, %v8345
        %v8348 = vshrl.u32 %v8058, 16
        %v8350 = vrot.slane %v8348, 2
        %v8351 = vshll.u32 %v8058, 16
        %v8353 = vrot.slane %v8351, 3
        %v8354 = vor.u32 %v8350, %v8353
        %v8355 = vsel %vm4692, %v8345, %v8354
        %v8357 = vshrl.u32 %v8059, 16
        %v8359 = vrot.slane %v8357, 2
        %v8360 = vshll.u32 %v8059, 16
        %v8362 = vrot.slane %v8360, 3
        %v8363 = vor.u32 %v8359, %v8362
        %v8364 = vsel %vm4692, %v8354, %v8363
        %v8366 = vshrl.u32 %v8060, 16
        %v8368 = vrot.slane %v8366, 2
        %v8369 = vshll.u32 %v8060, 16
        %v8371 = vrot.slane %v8369, 3
        %v8372 = vor.u32 %v8368, %v8371
        %v8373 = vsel %vm4692, %v8363, %v8372
        %v8375 = vshrl.u32 %v8061, 16
        %v8377 = vrot.slane %v8375, 2
        %v8378 = vshll.u32 %v8061, 16
        %v8380 = vrot.slane %v8378, 3
        %v8381 = vor.u32 %v8377, %v8380
        %v8382 = vsel %vm4692, %v8372, %v8381
        %v8384 = vshrl.u32 %v8062, 16
        %v8386 = vrot.slane %v8384, 2
        %v8387 = vshll.u32 %v8062, 16
        %v8389 = vrot.slane %v8387, 3
        %v8390 = vor.u32 %v8386, %v8389
        %v8391 = vsel %vm4692, %v8381, %v8390
        %v8393 = vshrl.u32 %v8063, 16
        %v8395 = vrot.slane %v8393, 2
        %v8396 = vshll.u32 %v8063, 16
        %v8398 = vrot.slane %v8396, 3
        %v8399 = vor.u32 %v8395, %v8398
        %v8400 = vsel %vm4692, %v8390, %v8399
        %v8402 = vshrl.u32 %v8064, 16
        %v8404 = vrot.slane %v8402, 2
        %v8405 = vshll.u32 %v8064, 16
        %v8407 = vrot.slane %v8405, 3
        %v8408 = vor.u32 %v8404, %v8407
        %v8409 = vsel %vm4692, %v8399, %v8408
        %v8411 = vshrl.u32 %v8065, 16
        %v8413 = vrot.slane %v8411, 2
        %v8414 = vshll.u32 %v8065, 16
        %v8416 = vrot.slane %v8414, 3
        %v8417 = vor.u32 %v8413, %v8416
        %v8418 = vsel %vm4692, %v8408, %v8417
        %v8420 = vshrl.u32 %v8066, 16
        %v8422 = vrot.slane %v8420, 2
        %v8423 = vshll.u32 %v8066, 16
        %v8425 = vrot.slane %v8423, 3
        %v8426 = vor.u32 %v8422, %v8425
        %v8427 = vsel %vm4692, %v8417, %v8426
        %v8429 = vshrl.u32 %v8067, 16
        %v8431 = vrot.slane %v8429, 2
        %v8432 = vshll.u32 %v8067, 16
        %v8434 = vrot.slane %v8432, 3
        %v8435 = vor.u32 %v8431, %v8434
        %v8436 = vsel %vm4692, %v8426, %v8435
        %v8438 = vshrl.u32 %v8068, 16
        %v8440 = vrot.slane %v8438, 2
        %v8441 = vshll.u32 %v8068, 16
        %v8443 = vrot.slane %v8441, 3
        %v8444 = vor.u32 %v8440, %v8443
        %v8445 = vsel %vm4692, %v8435, %v8444
        %v8447 = vshrl.u32 %v8069, 16
        %v8449 = vrot.slane %v8447, 2
        %v8450 = vshll.u32 %v8069, 16
        %v8452 = vrot.slane %v8450, 3
        %v8453 = vor.u32 %v8449, %v8452
        %v8454 = vsel %vm4692, %v8444, %v8453
        %v8456 = vshrl.u32 %v8070, 16
        %v8458 = vrot.slane %v8456, 2
        %v8459 = vshll.u32 %v8070, 16
        %v8461 = vrot.slane %v8459, 3
        %v8462 = vor.u32 %v8458, %v8461
        %v8463 = vsel %vm4692, %v8453, %v8462
        %v8465 = vshrl.u32 %v8071, 16
        %v8467 = vrot.slane %v8465, 2
        %v8468 = vshll.u32 %v8071, 16
        %v8470 = vrot.slane %v8468, 3
        %v8471 = vor.u32 %v8467, %v8470
        %v8472 = vsel %vm4692, %v8462, %v8471
        %v8474 = vshrl.u32 %v8320, 16
        %v8476 = vrot.slane %v8474, 2
        %v8477 = vshll.u32 %v8320, 16
        %v8479 = vrot.slane %v8477, 3
        %v8480 = vor.u32 %v8476, %v8479
        %v8481 = vsel %vm4692, %v8471, %v8480
        %v8515 = vunpack.c.l.b16 %v8302
        %v8516 = vunpack.c.l.b16 %v8303
        %v8517 = vunpack.c.l.b16 %v8304
        %v8518 = vunpack.c.l.b16 %v8305
        %v8519 = vunpack.c.l.b16 %v8306
        %v8520 = vunpack.c.l.b16 %v8307
        %v8521 = vunpack.c.l.b16 %v8308
        %v8522 = vunpack.c.l.b16 %v8309
        %v8523 = vunpack.c.l.b16 %v8310
        %v8524 = vunpack.c.l.b16 %v8311
        %v8525 = vunpack.c.l.b16 %v8312
        %v8526 = vunpack.c.l.b16 %v8313
        %v8527 = vunpack.c.l.b16 %v8314
        %v8528 = vunpack.c.l.b16 %v8315
        %v8529 = vunpack.c.l.b16 %v8316
        %v8530 = vunpack.c.l.b16 %v8317
        %v8531 = vpack.c.b16 %v8516, %v8515
        %v8532 = vpack.c.b16 %v8518, %v8517
        %v8533 = vpack.c.b16 %v8520, %v8519
        %v8534 = vpack.c.b16 %v8522, %v8521
        %v8535 = vpack.c.b16 %v8524, %v8523
        %v8536 = vpack.c.b16 %v8526, %v8525
        %v8537 = vpack.c.b16 %v8528, %v8527
        %v8538 = vpack.c.b16 %v8530, %v8529
        %8547 = vmatpush.bf16.msra.mxu0 %v8538
        %8548 = vmatpush.bf16.msra.mxu0 %v8537
        %8549 = vmatpush.bf16.msra.mxu0 %v8536
        %8550 = vmatpush.bf16.msra.mxu0 %v8535
        %8551 = vmatpush.bf16.msra.mxu0 %v8534
        %8552 = vmatpush.bf16.msra.mxu0 %v8533
        %8553 = vmatpush.bf16.msra.mxu0 %v8532
        %8554 = vmatpush.bf16.msra.mxu0 %v8531
        %8555 = vmatmul.bf16.gmra.mxu0 %v8337
        %v8556 = vpop.f32.mrf.mxu0
        %v8557 = vadd.f32 0.0, %v8556
        %v8558 = vpop.f32.mrf.mxu0
        %v8559 = vadd.f32 0.0, %v8558
        %8560 = vmatmul.bf16.gmra.mxu0 %v8346
        %v8561 = vpop.f32.mrf.mxu0
        %v8562 = vadd.f32 0.0, %v8561
        %v8563 = vpop.f32.mrf.mxu0
        %v8564 = vadd.f32 0.0, %v8563
        %8565 = vmatmul.bf16.gmra.mxu0 %v8355
        %v8566 = vpop.f32.mrf.mxu0
        %v8567 = vadd.f32 0.0, %v8566
        %v8568 = vpop.f32.mrf.mxu0
        %v8569 = vadd.f32 0.0, %v8568
        %8570 = vmatmul.bf16.gmra.mxu0 %v8364
        %v8571 = vpop.f32.mrf.mxu0
        %v8572 = vadd.f32 0.0, %v8571
        %v8573 = vpop.f32.mrf.mxu0
        %v8574 = vadd.f32 0.0, %v8573
        %8575 = vmatmul.bf16.gmra.mxu0 %v8373
        %v8576 = vpop.f32.mrf.mxu0
        %v8577 = vadd.f32 0.0, %v8576
        %v8578 = vpop.f32.mrf.mxu0
        %v8579 = vadd.f32 0.0, %v8578
        %8580 = vmatmul.bf16.gmra.mxu0 %v8382
        %v8581 = vpop.f32.mrf.mxu0
        %v8582 = vadd.f32 0.0, %v8581
        %v8583 = vpop.f32.mrf.mxu0
        %v8584 = vadd.f32 0.0, %v8583
        %8585 = vmatmul.bf16.gmra.mxu0 %v8391
        %v8586 = vpop.f32.mrf.mxu0
        %v8587 = vadd.f32 0.0, %v8586
        %v8588 = vpop.f32.mrf.mxu0
        %v8589 = vadd.f32 0.0, %v8588
        %8590 = vmatmul.bf16.gmra.mxu0 %v8400
        %v8591 = vpop.f32.mrf.mxu0
        %v8592 = vadd.f32 0.0, %v8591
        %v8593 = vpop.f32.mrf.mxu0
        %v8594 = vadd.f32 0.0, %v8593
        %8595 = vmatmul.bf16.gmra.mxu0 %v8409
        %v8596 = vpop.f32.mrf.mxu0
        %v8597 = vadd.f32 0.0, %v8596
        %v8598 = vpop.f32.mrf.mxu0
        %v8599 = vadd.f32 0.0, %v8598
        %8600 = vmatmul.bf16.gmra.mxu0 %v8418
        %v8601 = vpop.f32.mrf.mxu0
        %v8602 = vadd.f32 0.0, %v8601
        %v8603 = vpop.f32.mrf.mxu0
        %v8604 = vadd.f32 0.0, %v8603
        %8605 = vmatmul.bf16.gmra.mxu0 %v8427
        %v8606 = vpop.f32.mrf.mxu0
        %v8607 = vadd.f32 0.0, %v8606
        %v8608 = vpop.f32.mrf.mxu0
        %v8609 = vadd.f32 0.0, %v8608
        %8610 = vmatmul.bf16.gmra.mxu0 %v8436
        %v8611 = vpop.f32.mrf.mxu0
        %v8612 = vadd.f32 0.0, %v8611
        %v8613 = vpop.f32.mrf.mxu0
        %v8614 = vadd.f32 0.0, %v8613
        %8615 = vmatmul.bf16.gmra.mxu0 %v8445
        %v8616 = vpop.f32.mrf.mxu0
        %v8617 = vadd.f32 0.0, %v8616
        %v8618 = vpop.f32.mrf.mxu0
        %v8619 = vadd.f32 0.0, %v8618
        %8620 = vmatmul.bf16.gmra.mxu0 %v8454
        %v8621 = vpop.f32.mrf.mxu0
        %v8622 = vadd.f32 0.0, %v8621
        %v8623 = vpop.f32.mrf.mxu0
        %v8624 = vadd.f32 0.0, %v8623
        %8625 = vmatmul.bf16.gmra.mxu0 %v8463
        %v8626 = vpop.f32.mrf.mxu0
        %v8627 = vadd.f32 0.0, %v8626
        %v8628 = vpop.f32.mrf.mxu0
        %v8629 = vadd.f32 0.0, %v8628
        %8630 = vmatmul.bf16.gmra.mxu0 %v8472
        %v8631 = vpop.f32.mrf.mxu0
        %v8632 = vadd.f32 0.0, %v8631
        %v8633 = vpop.f32.mrf.mxu0
        %v8634 = vadd.f32 0.0, %v8633
        %8635 = vmatmul.bf16.gmra.mxu0 %v8481
        %v8636 = vpop.f32.mrf.mxu0
        %v8637 = vadd.f32 0.0, %v8636
        %v8638 = vpop.f32.mrf.mxu0
        %v8639 = vadd.f32 0.0, %v8638
        %8640 = vdwg.mxu0
        %v8641 = vadd.f32 %v8267, %v8557
        %v8642 = vadd.f32 %v8268, %v8559
        %v8643 = vadd.f32 %v8269, %v8562
        %v8644 = vadd.f32 %v8270, %v8564
        %v8645 = vadd.f32 %v8271, %v8567
        %v8646 = vadd.f32 %v8272, %v8569
        %v8647 = vadd.f32 %v8273, %v8572
        %v8648 = vadd.f32 %v8274, %v8574
        %v8649 = vadd.f32 %v8275, %v8577
        %v8650 = vadd.f32 %v8276, %v8579
        %v8651 = vadd.f32 %v8277, %v8582
        %v8652 = vadd.f32 %v8278, %v8584
        %v8653 = vadd.f32 %v8279, %v8587
        %v8654 = vadd.f32 %v8280, %v8589
        %v8655 = vadd.f32 %v8281, %v8592
        %v8656 = vadd.f32 %v8282, %v8594
        %v8657 = vadd.f32 %v8283, %v8597
        %v8658 = vadd.f32 %v8284, %v8599
        %v8659 = vadd.f32 %v8285, %v8602
        %v8660 = vadd.f32 %v8286, %v8604
        %v8661 = vadd.f32 %v8287, %v8607
        %v8662 = vadd.f32 %v8288, %v8609
        %v8663 = vadd.f32 %v8289, %v8612
        %v8664 = vadd.f32 %v8290, %v8614
        %v8665 = vadd.f32 %v8291, %v8617
        %v8666 = vadd.f32 %v8292, %v8619
        %v8667 = vadd.f32 %v8293, %v8622
        %v8668 = vadd.f32 %v8294, %v8624
        %v8669 = vadd.f32 %v8295, %v8627
        %v8670 = vadd.f32 %v8296, %v8629
        %v8671 = vadd.f32 %v8297, %v8632
        %v8672 = vadd.f32 %v8298, %v8634
        %v8673 = vadd.f32 %v8299, %v8637
        %v8674 = vadd.f32 %v8300, %v8639
        %v8675 = vld [vmem:[#allocation4 + $0x20] sm:$0x8]
        %v8676 = vld [vmem:[#allocation14 + $0x200] sm:$0xf]
        %v8677 = vld [vmem:[#allocation14 + $0x204] sm:$0xf]
        %v8678 = vld [vmem:[#allocation14 + $0x208] sm:$0xf]
        %v8679 = vld [vmem:[#allocation14 + $0x20c] sm:$0xf]
        %v8680 = vld [vmem:[#allocation14 + $0x210] sm:$0xf]
        %v8681 = vld [vmem:[#allocation14 + $0x214] sm:$0xf]
        %v8682 = vld [vmem:[#allocation14 + $0x218] sm:$0xf]
        %v8683 = vld [vmem:[#allocation14 + $0x21c] sm:$0xf]
        %v8684 = vld [vmem:[#allocation14 + $0x220] sm:$0xf]
        %v8685 = vld [vmem:[#allocation14 + $0x224] sm:$0xf]
        %v8686 = vld [vmem:[#allocation14 + $0x228] sm:$0xf]
        %v8687 = vld [vmem:[#allocation14 + $0x22c] sm:$0xf]
        %v8688 = vld [vmem:[#allocation14 + $0x230] sm:$0xf]
        %v8689 = vld [vmem:[#allocation14 + $0x234] sm:$0xf]
        %v8690 = vld [vmem:[#allocation14 + $0x238] sm:$0xf]
        %v8691 = vld [vmem:[#allocation14 + $0x23c] sm:$0xf]
        %v8693 = vunpack.c.l.b16 %v8675
        %v8694 = vpack.c.b16 %v8021, %v8693
        %v8695 = vrot.slane %v8694, 3
        %v8696 = vrot.slane %v8056, 3
        %v8697 = vsel %vm5141, %v8695, %v8696
        %v8698 = vrot.slane %v8057, 3
        %v8699 = vsel %vm5141, %v8696, %v8698
        %v8700 = vrot.slane %v8058, 3
        %v8701 = vsel %vm5141, %v8698, %v8700
        %v8702 = vrot.slane %v8059, 3
        %v8703 = vsel %vm5141, %v8700, %v8702
        %v8704 = vrot.slane %v8060, 3
        %v8705 = vsel %vm5141, %v8702, %v8704
        %v8706 = vrot.slane %v8061, 3
        %v8707 = vsel %vm5141, %v8704, %v8706
        %v8708 = vrot.slane %v8062, 3
        %v8709 = vsel %vm5141, %v8706, %v8708
        %v8710 = vrot.slane %v8063, 3
        %v8711 = vsel %vm5141, %v8708, %v8710
        %v8712 = vrot.slane %v8064, 3
        %v8713 = vsel %vm5141, %v8710, %v8712
        %v8714 = vrot.slane %v8065, 3
        %v8715 = vsel %vm5141, %v8712, %v8714
        %v8716 = vrot.slane %v8066, 3
        %v8717 = vsel %vm5141, %v8714, %v8716
        %v8718 = vrot.slane %v8067, 3
        %v8719 = vsel %vm5141, %v8716, %v8718
        %v8720 = vrot.slane %v8068, 3
        %v8721 = vsel %vm5141, %v8718, %v8720
        %v8722 = vrot.slane %v8069, 3
        %v8723 = vsel %vm5141, %v8720, %v8722
        %v8724 = vrot.slane %v8070, 3
        %v8725 = vsel %vm5141, %v8722, %v8724
        %v8726 = vrot.slane %v8071, 3
        %v8727 = vsel %vm5141, %v8724, %v8726
        %v8728 = vrot.slane %v8320, 3
        %v8729 = vsel %vm5141, %v8726, %v8728
        %v8763 = vunpack.c.l.b16 %v8676
        %v8764 = vunpack.c.l.b16 %v8677
        %v8765 = vunpack.c.l.b16 %v8678
        %v8766 = vunpack.c.l.b16 %v8679
        %v8767 = vunpack.c.l.b16 %v8680
        %v8768 = vunpack.c.l.b16 %v8681
        %v8769 = vunpack.c.l.b16 %v8682
        %v8770 = vunpack.c.l.b16 %v8683
        %v8771 = vunpack.c.l.b16 %v8684
        %v8772 = vunpack.c.l.b16 %v8685
        %v8773 = vunpack.c.l.b16 %v8686
        %v8774 = vunpack.c.l.b16 %v8687
        %v8775 = vunpack.c.l.b16 %v8688
        %v8776 = vunpack.c.l.b16 %v8689
        %v8777 = vunpack.c.l.b16 %v8690
        %v8778 = vunpack.c.l.b16 %v8691
        %v8779 = vpack.c.b16 %v8764, %v8763
        %v8780 = vpack.c.b16 %v8766, %v8765
        %v8781 = vpack.c.b16 %v8768, %v8767
        %v8782 = vpack.c.b16 %v8770, %v8769
        %v8783 = vpack.c.b16 %v8772, %v8771
        %v8784 = vpack.c.b16 %v8774, %v8773
        %v8785 = vpack.c.b16 %v8776, %v8775
        %v8786 = vpack.c.b16 %v8778, %v8777
        %8795 = vmatpush.bf16.msra.mxu0 %v8786
        %8796 = vmatpush.bf16.msra.mxu0 %v8785
        %8797 = vmatpush.bf16.msra.mxu0 %v8784
        %8798 = vmatpush.bf16.msra.mxu0 %v8783
        %8799 = vmatpush.bf16.msra.mxu0 %v8782
        %8800 = vmatpush.bf16.msra.mxu0 %v8781
        %8801 = vmatpush.bf16.msra.mxu0 %v8780
        %8802 = vmatpush.bf16.msra.mxu0 %v8779
        %8803 = vmatmul.bf16.gmra.mxu0 %v8697
        %v8804 = vpop.f32.mrf.mxu0
        %v8805 = vadd.f32 0.0, %v8804
        %v8806 = vpop.f32.mrf.mxu0
        %v8807 = vadd.f32 0.0, %v8806
        %8808 = vmatmul.bf16.gmra.mxu0 %v8699
        %v8809 = vpop.f32.mrf.mxu0
        %v8810 = vadd.f32 0.0, %v8809
        %v8811 = vpop.f32.mrf.mxu0
        %v8812 = vadd.f32 0.0, %v8811
        %8813 = vmatmul.bf16.gmra.mxu0 %v8701
        %v8814 = vpop.f32.mrf.mxu0
        %v8815 = vadd.f32 0.0, %v8814
        %v8816 = vpop.f32.mrf.mxu0
        %v8817 = vadd.f32 0.0, %v8816
        %8818 = vmatmul.bf16.gmra.mxu0 %v8703
        %v8819 = vpop.f32.mrf.mxu0
        %v8820 = vadd.f32 0.0, %v8819
        %v8821 = vpop.f32.mrf.mxu0
        %v8822 = vadd.f32 0.0, %v8821
        %8823 = vmatmul.bf16.gmra.mxu0 %v8705
        %v8824 = vpop.f32.mrf.mxu0
        %v8825 = vadd.f32 0.0, %v8824
        %v8826 = vpop.f32.mrf.mxu0
        %v8827 = vadd.f32 0.0, %v8826
        %8828 = vmatmul.bf16.gmra.mxu0 %v8707
        %v8829 = vpop.f32.mrf.mxu0
        %v8830 = vadd.f32 0.0, %v8829
        %v8831 = vpop.f32.mrf.mxu0
        %v8832 = vadd.f32 0.0, %v8831
        %8833 = vmatmul.bf16.gmra.mxu0 %v8709
        %v8834 = vpop.f32.mrf.mxu0
        %v8835 = vadd.f32 0.0, %v8834
        %v8836 = vpop.f32.mrf.mxu0
        %v8837 = vadd.f32 0.0, %v8836
        %8838 = vmatmul.bf16.gmra.mxu0 %v8711
        %v8839 = vpop.f32.mrf.mxu0
        %v8840 = vadd.f32 0.0, %v8839
        %v8841 = vpop.f32.mrf.mxu0
        %v8842 = vadd.f32 0.0, %v8841
        %8843 = vmatmul.bf16.gmra.mxu0 %v8713
        %v8844 = vpop.f32.mrf.mxu0
        %v8845 = vadd.f32 0.0, %v8844
        %v8846 = vpop.f32.mrf.mxu0
        %v8847 = vadd.f32 0.0, %v8846
        %8848 = vmatmul.bf16.gmra.mxu0 %v8715
        %v8849 = vpop.f32.mrf.mxu0
        %v8850 = vadd.f32 0.0, %v8849
        %v8851 = vpop.f32.mrf.mxu0
        %v8852 = vadd.f32 0.0, %v8851
        %8853 = vmatmul.bf16.gmra.mxu0 %v8717
        %v8854 = vpop.f32.mrf.mxu0
        %v8855 = vadd.f32 0.0, %v8854
        %v8856 = vpop.f32.mrf.mxu0
        %v8857 = vadd.f32 0.0, %v8856
        %8858 = vmatmul.bf16.gmra.mxu0 %v8719
        %v8859 = vpop.f32.mrf.mxu0
        %v8860 = vadd.f32 0.0, %v8859
        %v8861 = vpop.f32.mrf.mxu0
        %v8862 = vadd.f32 0.0, %v8861
        %8863 = vmatmul.bf16.gmra.mxu0 %v8721
        %v8864 = vpop.f32.mrf.mxu0
        %v8865 = vadd.f32 0.0, %v8864
        %v8866 = vpop.f32.mrf.mxu0
        %v8867 = vadd.f32 0.0, %v8866
        %8868 = vmatmul.bf16.gmra.mxu0 %v8723
        %v8869 = vpop.f32.mrf.mxu0
        %v8870 = vadd.f32 0.0, %v8869
        %v8871 = vpop.f32.mrf.mxu0
        %v8872 = vadd.f32 0.0, %v8871
        %8873 = vmatmul.bf16.gmra.mxu0 %v8725
        %v8874 = vpop.f32.mrf.mxu0
        %v8875 = vadd.f32 0.0, %v8874
        %v8876 = vpop.f32.mrf.mxu0
        %v8877 = vadd.f32 0.0, %v8876
        %8878 = vmatmul.bf16.gmra.mxu0 %v8727
        %v8879 = vpop.f32.mrf.mxu0
        %v8880 = vadd.f32 0.0, %v8879
        %v8881 = vpop.f32.mrf.mxu0
        %v8882 = vadd.f32 0.0, %v8881
        %8883 = vmatmul.bf16.gmra.mxu0 %v8729
        %v8884 = vpop.f32.mrf.mxu0
        %v8885 = vadd.f32 0.0, %v8884
        %v8886 = vpop.f32.mrf.mxu0
        %v8887 = vadd.f32 0.0, %v8886
        %8888 = vdwg.mxu0
        %v8889 = vadd.f32 %v8641, %v8805
        %v8890 = vadd.f32 %v8642, %v8807
        %v8891 = vadd.f32 %v8643, %v8810
        %v8892 = vadd.f32 %v8644, %v8812
        %v8893 = vadd.f32 %v8645, %v8815
        %v8894 = vadd.f32 %v8646, %v8817
        %v8895 = vadd.f32 %v8647, %v8820
        %v8896 = vadd.f32 %v8648, %v8822
        %v8897 = vadd.f32 %v8649, %v8825
        %v8898 = vadd.f32 %v8650, %v8827
        %v8899 = vadd.f32 %v8651, %v8830
        %v8900 = vadd.f32 %v8652, %v8832
        %v8901 = vadd.f32 %v8653, %v8835
        %v8902 = vadd.f32 %v8654, %v8837
        %v8903 = vadd.f32 %v8655, %v8840
        %v8904 = vadd.f32 %v8656, %v8842
        %v8905 = vadd.f32 %v8657, %v8845
        %v8906 = vadd.f32 %v8658, %v8847
        %v8907 = vadd.f32 %v8659, %v8850
        %v8908 = vadd.f32 %v8660, %v8852
        %v8909 = vadd.f32 %v8661, %v8855
        %v8910 = vadd.f32 %v8662, %v8857
        %v8911 = vadd.f32 %v8663, %v8860
        %v8912 = vadd.f32 %v8664, %v8862
        %v8913 = vadd.f32 %v8665, %v8865
        %v8914 = vadd.f32 %v8666, %v8867
        %v8915 = vadd.f32 %v8667, %v8870
        %v8916 = vadd.f32 %v8668, %v8872
        %v8917 = vadd.f32 %v8669, %v8875
        %v8918 = vadd.f32 %v8670, %v8877
        %v8919 = vadd.f32 %v8671, %v8880
        %v8920 = vadd.f32 %v8672, %v8882
        %v8921 = vadd.f32 %v8673, %v8885
        %v8922 = vadd.f32 %v8674, %v8887
        %v8923 = vld [vmem:[%s8] sm:$0x1]
        %v8925 = vperm.slane %v8923, 0
        %v8927 = vadd.f32 %v8889, %v8925
        %v8928 = vadd.f32 %v8890, %v8925
        %v8929 = vadd.f32 %v8891, %v8925
        %v8930 = vadd.f32 %v8892, %v8925
        %v8931 = vadd.f32 %v8893, %v8925
        %v8932 = vadd.f32 %v8894, %v8925
        %v8933 = vadd.f32 %v8895, %v8925
        %v8934 = vadd.f32 %v8896, %v8925
        %v8935 = vadd.f32 %v8897, %v8925
        %v8936 = vadd.f32 %v8898, %v8925
        %v8937 = vadd.f32 %v8899, %v8925
        %v8938 = vadd.f32 %v8900, %v8925
        %v8939 = vadd.f32 %v8901, %v8925
        %v8940 = vadd.f32 %v8902, %v8925
        %v8941 = vadd.f32 %v8903, %v8925
        %v8942 = vadd.f32 %v8904, %v8925
        %v8943 = vadd.f32 %v8905, %v8925
        %v8944 = vadd.f32 %v8906, %v8925
        %v8945 = vadd.f32 %v8907, %v8925
        %v8946 = vadd.f32 %v8908, %v8925
        %v8947 = vadd.f32 %v8909, %v8925
        %v8948 = vadd.f32 %v8910, %v8925
        %v8949 = vadd.f32 %v8911, %v8925
        %v8950 = vadd.f32 %v8912, %v8925
        %v8951 = vadd.f32 %v8913, %v8925
        %v8952 = vadd.f32 %v8914, %v8925
        %v8953 = vadd.f32 %v8915, %v8925
        %v8954 = vadd.f32 %v8916, %v8925
        %v8955 = vadd.f32 %v8917, %v8925
        %v8956 = vadd.f32 %v8918, %v8925
        %v8957 = vadd.f32 %v8919, %v8925
        %v8958 = vadd.f32 %v8920, %v8925
        %v8959 = vadd.f32 %v8921, %v8925
        %v8960 = vadd.f32 %v8922, %v8925
        %v8961 = vmax.f32 %v8927, 0.0
        %v8962 = vmax.f32 %v8928, 0.0
        %v8963 = vmax.f32 %v8929, 0.0
        %v8964 = vmax.f32 %v8930, 0.0
        %v8965 = vmax.f32 %v8931, 0.0
        %v8966 = vmax.f32 %v8932, 0.0
        %v8967 = vmax.f32 %v8933, 0.0
        %v8968 = vmax.f32 %v8934, 0.0
        %v8969 = vmax.f32 %v8935, 0.0
        %v8970 = vmax.f32 %v8936, 0.0
        %v8971 = vmax.f32 %v8937, 0.0
        %v8972 = vmax.f32 %v8938, 0.0
        %v8973 = vmax.f32 %v8939, 0.0
        %v8974 = vmax.f32 %v8940, 0.0
        %v8975 = vmax.f32 %v8941, 0.0
        %v8976 = vmax.f32 %v8942, 0.0
        %v8977 = vmax.f32 %v8943, 0.0
        %v8978 = vmax.f32 %v8944, 0.0
        %v8979 = vmax.f32 %v8945, 0.0
        %v8980 = vmax.f32 %v8946, 0.0
        %v8981 = vmax.f32 %v8947, 0.0
        %v8982 = vmax.f32 %v8948, 0.0
        %v8983 = vmax.f32 %v8949, 0.0
        %v8984 = vmax.f32 %v8950, 0.0
        %v8985 = vmax.f32 %v8951, 0.0
        %v8986 = vmax.f32 %v8952, 0.0
        %v8987 = vmax.f32 %v8953, 0.0
        %v8988 = vmax.f32 %v8954, 0.0
        %v8989 = vmax.f32 %v8955, 0.0
        %v8990 = vmax.f32 %v8956, 0.0
        %v8991 = vmax.f32 %v8957, 0.0
        %v8992 = vmax.f32 %v8958, 0.0
        %v8993 = vmax.f32 %v8959, 0.0
        %v8994 = vmax.f32 %v8960, 0.0
        %8995 = vst [vmem:[%s339] sm:$0xff] %v8961
        %8996 = vst [vmem:[%s339 + $0x8] sm:$0xff] %v8962
        %8997 = vst [vmem:[%s339 + $0x10] sm:$0xff] %v8963
        %8998 = vst [vmem:[%s339 + $0x18] sm:$0xff] %v8964
        %s8999 = scalar_lea.vmem %s339, 32 [#allocation15]
        %9000 = vst [vmem:[%s8999 - $0x2] sm:$0xfc] %v8965
        %9001 = vst [vmem:[%s8999 + $0x6] sm:$0xff] %v8966
        %9002 = vst [vmem:[%s8999 + $0xe] sm:$0xff] %v8967
        %9003 = vst [vmem:[%s8999 + $0x16] sm:$0xff] %v8968
        %9004 = vst [vmem:[%s8999 + $0x1e] sm:$0x3] %v8969
        %s9005 = scalar_lea.vmem %s339, 64 [#allocation15]
        %9006 = vst [vmem:[%s9005 - $0x4] sm:$0xf0] %v8969
        %9007 = vst [vmem:[%s9005 + $0x4] sm:$0xff] %v8970
        %9008 = vst [vmem:[%s9005 + $0xc] sm:$0xff] %v8971
        %9009 = vst [vmem:[%s9005 + $0x14] sm:$0xff] %v8972
        %9010 = vst [vmem:[%s9005 + $0x1c] sm:$0xf] %v8973
        %s9011 = scalar_lea.vmem %s339, 96 [#allocation15]
        %9012 = vst [vmem:[%s9011 - $0x6] sm:$0xc0] %v8973
        %9013 = vst [vmem:[%s9011 + $0x2] sm:$0xff] %v8974
        %9014 = vst [vmem:[%s9011 + $0xa] sm:$0xff] %v8975
        %9015 = vst [vmem:[%s9011 + $0x12] sm:$0xff] %v8976
        %9016 = vst [vmem:[%s9011 + $0x1a] sm:$0x3f] %v8977
        %s9017 = scalar_lea.vmem %s339, 128 [#allocation15]
        %9018 = vst [vmem:[%s9017] sm:$0xff] %v8978
        %9019 = vst [vmem:[%s9017 + $0x8] sm:$0xff] %v8979
        %9020 = vst [vmem:[%s9017 + $0x10] sm:$0xff] %v8980
        %9021 = vst [vmem:[%s9017 + $0x18] sm:$0xff] %v8981
        %s9022 = scalar_lea.vmem %s339, 160 [#allocation15]
        %9023 = vst [vmem:[%s9022 - $0x2] sm:$0xfc] %v8982
        %9024 = vst [vmem:[%s9022 + $0x6] sm:$0xff] %v8983
        %9025 = vst [vmem:[%s9022 + $0xe] sm:$0xff] %v8984
        %9026 = vst [vmem:[%s9022 + $0x16] sm:$0xff] %v8985
        %9027 = vst [vmem:[%s9022 + $0x1e] sm:$0x3] %v8986
        %s9028 = scalar_lea.vmem %s339, 192 [#allocation15]
        %9029 = vst [vmem:[%s9028 - $0x4] sm:$0xf0] %v8986
        %9030 = vst [vmem:[%s9028 + $0x4] sm:$0xff] %v8987
        %9031 = vst [vmem:[%s9028 + $0xc] sm:$0xff] %v8988
        %9032 = vst [vmem:[%s9028 + $0x14] sm:$0xff] %v8989
        %9033 = vst [vmem:[%s9028 + $0x1c] sm:$0xf] %v8990
        %s9034 = scalar_lea.vmem %s339, 224 [#allocation15]
        %9035 = vst [vmem:[%s9034 - $0x6] sm:$0xc0] %v8990
        %9036 = vst [vmem:[%s9034 + $0x2] sm:$0xff] %v8991
        %9037 = vst [vmem:[%s9034 + $0xa] sm:$0xff] %v8992
        %9038 = vst [vmem:[%s9034 + $0x12] sm:$0xff] %v8993
        %9039 = vst [vmem:[%s9034 + $0x1a] sm:$0x3f] %v8994
        %s9040 = sand.u32 %s198, 1
        %s9041 = scalar_lea.sflag [#allocation11], %s9040
        %s9042 = sand.u32 %s198, 1
        %s9043 = smul.addr %s9042, 256
        %s9044 = scalar_lea.vmem [#allocation15], %s9043
        // Predicated region
        $region76: #{tpu_custom_call.1} parent=43 // pred_check
          %p9045 = pneg %p208
        $region77: #{tpu_custom_call.1} parent=43 // pred_check_branch
          %9047 = sbr.rel (%p9045) target = $region79
        $region78: #{tpu_custom_call.1} parent=43 // pred_region
          %s9048 = smul.u32 8, %s50
          %9050 = vsyncadd %s9041, 0
          %s9051 = smul.addr %s9048, 4
          %s9052 = smul.addr %s49, 128
          %s9053 = sadd.s32 %s9051, %s9052
          %s9054 = smul.addr %s9053, 8
          %s9055 = scalar_lea.hbm %s9, %s9054
          %s9056 = sshll.u32 %s9044, 4
          %s9057 = int_to_ptr.vmem [resolvable:$true] %s9056
          %s9058 = sshll.u32 %s9055, 4
          %s9059 = int_to_ptr.hbm [resolvable:$true] %s9058
          %9064 = dma.vmem_to_hbm [thread:$0]  %s9057, 4096, %s9059, %s9041, 128, 128, 8
        $region79: #{tpu_custom_call.1} parent=43 // pred_fallthru
          _
      $region44: #{tpu_custom_call.1} parent=5 // pred_fallthru
        _
      %p9065 = scmp.le.s32.totalorder 2, %s40
      // Predicated region
      $region80: #{tpu_custom_call.1} parent=5 // pred_check
        %p9066 = pneg %p9065
      $region81: #{tpu_custom_call.1} parent=5 // pred_check_branch
        %9068 = sbr.rel (%p9066) target = $region83
      $region82: #{tpu_custom_call.1} parent=5 // pred_region
        %s9069 = ssub.s32 %s40, 2
        // Predicated region
        $region84: #{tpu_custom_call.1} parent=82 // pred_check
          %p9070 = pneg %p214
        $region85: #{tpu_custom_call.1} parent=82 // pred_check_branch
          %9072 = sbr.rel (%p9070) target = $region87
        $region86: #{tpu_custom_call.1} parent=82 // pred_region
          %s9073 = sand.u32 %s199, 1
          %s9074 = scalar_lea.sflag [#allocation11], %s9073
          %s9075 = sand.u32 %s199, 1
          %s9076 = smul.addr %s9075, 256
          %s9077 = scalar_lea.vmem [#allocation15], %s9076
          %9079 = dma.done %s9074, 4096
        $region87: #{tpu_custom_call.1} parent=82 // pred_fallthru
          _
      $region83: #{tpu_custom_call.1} parent=5 // pred_fallthru
        _
    $region6: #{tpu_custom_call.1} parent=1 // loop_footer
      %s44 = sadd.s32 1, %s40
    $region7: #{tpu_custom_call.1} parent=1 // loop_footer_branch
      %39 = sbr.rel target = $region3
    $region8: #{tpu_custom_call.1} parent=1 // loop_exit
      _
    %9080 = vsyncpa [#allocation10], 1
    %s9081 = scalar_lea.sflag [#allocation10], 1
    %9082 = vsyncpa %s9081, 1
    %9083 = vsyncpa [#allocation13], 1
    %9084 = vsyncpa [#allocation11], 1
    %s9085 = scalar_lea.sflag [#allocation11], 1
    %9086 = vsyncpa %s9085, 1

</llo_original>
